<compile_context>
chip_gen: v6e
topology: v6e:2x2x1
jax: 0.10.0
libtpu: 0.0.40
codegen_flags: <defaults>
</compile_context>

<pallas_src>
import jax
import jax.numpy as jnp
import numpy as np
from jax.experimental import pallas as pl
from jax.experimental.pallas import tpu as pltpu

# Kept so the f32 Pallas kernels and the pure-JAX reference agree to 1e-3.
# (Dropping this + feeding bf16 to the MXU is the v6e/v7x production path.)
jax.config.update("jax_default_matmul_precision", "highest")

_VMEM_LIMIT = 32 * 1024 * 1024  # fits v5e/v6e/v7x; sized with large headroom


def _round_up(x, m):
    return ((x + m - 1) // m) * m


# ----------------------------------------------------------------------------
# Kernel 1: hoisted GRU input-gate projections for both directions.
#   gi_f = x @ W_ih_f + b_ih_f ;  gi_b = x @ W_ih_b + b_ih_b
# x is the whole sequence flattened to rows (S*B, In); the call is gridded over
# row blocks so the matmul is pipelined and never pins the full sequence in
# VMEM at large S.
# ----------------------------------------------------------------------------
def gru_gates_kernel(x_ref, wf_ref, wb_ref, bf_ref, bib_ref, gf_ref, gb_ref):
    x = x_ref[...]
    gf_ref[...] = jnp.dot(x, wf_ref[...],
                          preferred_element_type=jnp.float32) + bf_ref[...]
    gb_ref[...] = jnp.dot(x, wb_ref[...],
                          preferred_element_type=jnp.float32) + bib_ref[...]


def gru_gates(x2, w_f, w_b, b_f, b_b, row_block=512):
    R, In = x2.shape
    H3 = w_f.shape[1]
    rb = R if R <= row_block else row_block          # R is a multiple of 8
    grid = (pl.cdiv(R, rb),)
    return pl.pallas_call(
        gru_gates_kernel,
        grid=grid,
        out_shape=(jax.ShapeDtypeStruct((R, H3), jnp.float32),
                   jax.ShapeDtypeStruct((R, H3), jnp.float32)),
        in_specs=[
            pl.BlockSpec((rb, In), lambda i: (i, 0)),
            pl.BlockSpec((In, H3), lambda i: (0, 0)),
            pl.BlockSpec((In, H3), lambda i: (0, 0)),
            pl.BlockSpec((1, H3), lambda i: (0, 0)),
            pl.BlockSpec((1, H3), lambda i: (0, 0)),
        ],
        out_specs=(pl.BlockSpec((rb, H3), lambda i: (i, 0)),
                   pl.BlockSpec((rb, H3), lambda i: (i, 0))),
        compiler_params=pltpu.CompilerParams(
            dimension_semantics=("parallel",),
            vmem_limit_bytes=_VMEM_LIMIT),
    )(x2, w_f, w_b, b_f, b_b)


# ----------------------------------------------------------------------------
# Kernel 2: fused bidirectional GRU recurrence (PyTorch semantics).
# Only the recurrent matmul gh = h @ W_hh + b_hh remains inside the loop; the
# fwd direction advances time t while the bwd direction advances S-1-t, and
# the two halves of the (S, B, 2H) output are written without flips/concat.
# ----------------------------------------------------------------------------
def bigru_recurrence_kernel(gif_ref, gib_ref, whhf_ref, whhb_ref,
                            bhhf_ref, bhhb_ref, y_ref, yf_scr, yb_scr):
    S, Bp, H3 = gif_ref.shape
    H = H3 // 3

    # Hoist weight/bias loads out of the serial loop (feedback item).
    whh_f = whhf_ref[...]
    whh_b = whhb_ref[...]
    bhh_f = bhhf_ref[...]
    bhh_b = bhhb_ref[...]

    def cell(gi, h, whh, bhh):
        gh = jnp.dot(h, whh, preferred_element_type=jnp.float32) + bhh
        r = jax.nn.sigmoid(gi[:, 0:H] + gh[:, 0:H])
        z = jax.nn.sigmoid(gi[:, H:2 * H] + gh[:, H:2 * H])
        n = jnp.tanh(gi[:, 2 * H:3 * H] + r * gh[:, 2 * H:3 * H])
        return (1.0 - z) * n + z * h

    def step(i, carry):
        h_f, h_b = carry
        tb = S - 1 - i
        h_f = cell(gif_ref[i], h_f, whh_f, bhh_f)
        h_b = cell(gib_ref[tb], h_b, whh_b, bhh_b)
        yf_scr[i] = h_f
        yb_scr[tb] = h_b
        return (h_f, h_b)

    h0 = jnp.zeros((Bp, H), dtype=jnp.float32)
    jax.lax.fori_loop(0, S, step, (h0, h0))

    # Two static lane-slice stores: [fwd | bwd] halves, PyTorch ordering.
    y_ref[:, :, 0:H] = yf_scr[...]
    y_ref[:, :, H:2 * H] = yb_scr[...]


def bigru_recurrence(gif3, gib3, whh_f, whh_b, bhh_f, bhh_b):
    S, Bp, H3 = gif3.shape
    H = H3 // 3
    return pl.pallas_call(
        bigru_recurrence_kernel,
        out_shape=jax.ShapeDtypeStruct((S, Bp, 2 * H), jnp.float32),
        in_specs=[pl.BlockSpec(memory_space=pltpu.MemorySpace.VMEM)] * 6,
        out_specs=pl.BlockSpec(memory_space=pltpu.MemorySpace.VMEM),
        scratch_shapes=[pltpu.VMEM((S, Bp, H), jnp.float32),
                        pltpu.VMEM((S, Bp, H), jnp.float32)],
        compiler_params=pltpu.CompilerParams(vmem_limit_bytes=_VMEM_LIMIT),
    )(gif3, gib3, whh_f, whh_b, bhh_f, bhh_b)


# ----------------------------------------------------------------------------
# Kernel 3: attention scores, folded into one big matmul over all (s, b) rows.
#   scores = tanh(y @ W_s1 + b_s1) @ W_s2 + b_s2         with y = (S*B, 2H)
# b_s2 is a true scalar -> SMEM (feedback item).
# ----------------------------------------------------------------------------
def attn_scores_kernel(y_ref, ws1_ref, bs1_ref, ws2_ref, bs2_ref, s_ref):
    z1 = jnp.tanh(jnp.dot(y_ref[...], ws1_ref[...],
                          preferred_element_type=jnp.float32) + bs1_ref[...])
    s_ref[...] = jnp.dot(z1, ws2_ref[...],
                         preferred_element_type=jnp.float32) + bs2_ref[0, 0]


def attn_scores(y2, w_s1, b_s1, w_s2, b_s2, row_block=512):
    R, D = y2.shape
    rb = R if R <= row_block else row_block
    grid = (pl.cdiv(R, rb),)
    return pl.pallas_call(
        attn_scores_kernel,
        grid=grid,
        out_shape=jax.ShapeDtypeStruct((R, 1), jnp.float32),
        in_specs=[
            pl.BlockSpec((rb, D), lambda i: (i, 0)),
            pl.BlockSpec((D, D), lambda i: (0, 0)),
            pl.BlockSpec((1, D), lambda i: (0, 0)),
            pl.BlockSpec((D, 1), lambda i: (0, 0)),
            pl.BlockSpec(memory_space=pltpu.MemorySpace.SMEM),
        ],
        out_specs=pl.BlockSpec((rb, 1), lambda i: (i, 0)),
        compiler_params=pltpu.CompilerParams(
            dimension_semantics=("parallel",),
            vmem_limit_bytes=_VMEM_LIMIT),
    )(y2, w_s1, b_s1, w_s2, b_s2)


# ----------------------------------------------------------------------------
# Kernel 4: softmax-over-S pooling + sentiment linear + log_softmax, processing
# a whole block of batch columns per grid step (online softmax over S, single
# lane-dense (Bblk, OUT) store).
# ----------------------------------------------------------------------------
def attn_pool_kernel(s_ref, y_ref, wsent_ref, bsent_ref, out_ref):
    S, Bb, D = y_ref.shape

    m0 = jnp.full((Bb, 1), -jnp.inf, dtype=jnp.float32)
    l0 = jnp.zeros((Bb, 1), dtype=jnp.float32)
    a0 = jnp.zeros((Bb, D), dtype=jnp.float32)

    def step(t, carry):
        m, l, acc = carry
        s_t = s_ref[t]                       # (Bb, 1)
        y_t = y_ref[t]                       # (Bb, D)
        m_new = jnp.maximum(m, s_t)
        alpha = jnp.exp(m - m_new)
        p = jnp.exp(s_t - m_new)
        l = l * alpha + p
        acc = acc * alpha + p * y_t
        return (m_new, l, acc)

    _, l, acc = jax.lax.fori_loop(0, S, step, (m0, l0, a0))
    ctx = acc / l                                              # (Bb, D)

    logits = jnp.dot(ctx, wsent_ref[...],
                     preferred_element_type=jnp.float32) + bsent_ref[...]
    lmax = jnp.max(logits, axis=-1, keepdims=True)
    lse = jnp.log(jnp.sum(jnp.exp(logits - lmax), axis=-1, keepdims=True)) + lmax
    out_ref[...] = logits - lse


def attn_pool(s3, y3, w_sent, b_sent, batch_block=128):
    S, Bp, D = y3.shape
    OUT = w_sent.shape[1]
    bb = Bp if Bp <= batch_block else batch_block     # Bp is a multiple of 8
    grid = (pl.cdiv(Bp, bb),)
    return pl.pallas_call(
        attn_pool_kernel,
        grid=grid,
        out_shape=jax.ShapeDtypeStruct((Bp, OUT), jnp.float32),
        in_specs=[
            pl.BlockSpec((S, bb, 1), lambda i: (0, i, 0)),
            pl.BlockSpec((S, bb, D), lambda i: (0, i, 0)),
            pl.BlockSpec((D, OUT), lambda i: (0, 0)),
            pl.BlockSpec((1, OUT), lambda i: (0, 0)),
        ],
        out_specs=pl.BlockSpec((bb, OUT), lambda i: (i, 0)),
        compiler_params=pltpu.CompilerParams(
            dimension_semantics=("parallel",),
            vmem_limit_bytes=_VMEM_LIMIT),
    )(s3, y3, w_sent, b_sent)


# ----------------------------------------------------------------------------
# Parameter init (deterministic, uniform(-0.15, 0.15) like init_parameters()).
# GRU weights are stored already transposed: W_ih (In, 3H), W_hh (H, 3H).
# ----------------------------------------------------------------------------
def init_params(key, vocab, E, H, OUT, layers=2):
    keys = iter(jax.random.split(key, 64))
    unif = lambda k, s: jax.random.uniform(k, s, jnp.float32, -0.15, 0.15)
    params = {"embedding": jax.random.normal(next(keys), (vocab, E), jnp.float32) * 0.1}
    gru = []
    for l in range(layers):
        in_dim = E if l == 0 else 2 * H
        layer = {}
        for d in ("fwd", "bwd"):
            layer[d] = dict(
                W_ih=unif(next(keys), (in_dim, 3 * H)),
                W_hh=unif(next(keys), (H, 3 * H)),
                b_ih=unif(next(keys), (1, 3 * H)),
                b_hh=unif(next(keys), (1, 3 * H)),
            )
        gru.append(layer)
    params["gru"] = gru
    params["W_s1"] = unif(next(keys), (2 * H, 2 * H))
    params["b_s1"] = unif(next(keys), (1, 2 * H))
    params["W_s2"] = unif(next(keys), (2 * H, 1))
    params["b_s2"] = unif(next(keys), (1, 1))
    params["W_sent"] = unif(next(keys), (2 * H, OUT))
    params["b_sent"] = unif(next(keys), (1, OUT))
    return params


# ----------------------------------------------------------------------------
# Forward pass (Pallas).  Dropout layers have p=0.0 -> identity.
# No flips / concats / transposes over HBM: the kernels produce the layouts
# the next stage consumes directly.  Batch is padded to a multiple of 8.
# ----------------------------------------------------------------------------
def forward(params, X):
    S, B = X.shape
    Bp = _round_up(max(B, 8), 8)
    emb = params["embedding"][X]                      # (S, B, E) gather (glue)
    if Bp != B:
        emb = jnp.pad(emb, ((0, 0), (0, Bp - B), (0, 0)))

    h = emb                                           # (S, Bp, F)
    for layer in params["gru"]:
        F = h.shape[-1]
        x2 = h.reshape(S * Bp, F)                     # layout-trivial (Bp % 8 == 0)
        gf2, gb2 = gru_gates(x2,
                             layer["fwd"]["W_ih"], layer["bwd"]["W_ih"],
                             layer["fwd"]["b_ih"], layer["bwd"]["b_ih"])
        H3 = gf2.shape[-1]
        h = bigru_recurrence(gf2.reshape(S, Bp, H3), gb2.reshape(S, Bp, H3),
                             layer["fwd"]["W_hh"], layer["bwd"]["W_hh"],
                             layer["fwd"]["b_hh"], layer["bwd"]["b_hh"])
        # h: (S, Bp, 2H), [fwd | bwd] halves, matching torch bi-GRU output.

    D = h.shape[-1]
    scores = attn_scores(h.reshape(S * Bp, D), params["W_s1"], params["b_s1"],
                         params["W_s2"], params["b_s2"])        # (S*Bp, 1)
    out = attn_pool(scores.reshape(S, Bp, 1), h,
                    params["W_sent"], params["b_sent"])         # (Bp, OUT)
    return out[:B]


# ----------------------------------------------------------------------------
# Pure-JAX reference for validation.
# ----------------------------------------------------------------------------
def _gru_cell_ref(x, h, p):
    H = h.shape[-1]
    gi = x @ p["W_ih"] + p["b_ih"]
    gh = h @ p["W_hh"] + p["b_hh"]
    r = jax.nn.sigmoid(gi[:, :H] + gh[:, :H])
    z = jax.nn.sigmoid(gi[:, H:2 * H] + gh[:, H:2 * H])
    n = jnp.tanh(gi[:, 2 * H:] + r * gh[:, 2 * H:])
    return (1.0 - z) * n + z * h


def _gru_layer_ref(x_seq, p):
    S, B, _ = x_seq.shape
    H = p["W_hh"].shape[0]
    h = jnp.zeros((B, H), jnp.float32)
    ys = []
    for t in range(S):
        h = _gru_cell_ref(x_seq[t], h, p)
        ys.append(h)
    return jnp.stack(ys, 0)


def forward_ref(params, X):
    h = params["embedding"][X]
    for layer in params["gru"]:
        yf = _gru_layer_ref(h, layer["fwd"])
        yb = jnp.flip(_gru_layer_ref(jnp.flip(h, 0), layer["bwd"]), 0)
        h = jnp.concatenate([yf, yb], -1)
    yt = jnp.transpose(h, (1, 0, 2))
    z1 = jnp.tanh(yt @ params["W_s1"] + params["b_s1"])
    scores = (z1 @ params["W_s2"] + params["b_s2"])[..., 0]
    attn = jax.nn.softmax(scores, axis=-1)
    ctx = jnp.einsum("bs,bsd->bd", attn, yt)
    logits = ctx @ params["W_sent"] + params["b_sent"]
    return jax.nn.log_softmax(logits, axis=-1)


if __name__ == "__main__":
    VOCAB, E, H, OUT, S, B = 32, 16, 16, 4, 8, 2
    key = jax.random.PRNGKey(0)
    kp, kx = jax.random.split(key)
    params = init_params(kp, VOCAB, E, H, OUT, layers=2)
    X = jax.random.randint(kx, (S, B), 0, VOCAB, dtype=jnp.int32)

    out = jax.jit(forward)(params, X)
    out = jax.block_until_ready(out)
    assert out.shape == (B, OUT)

    ref = forward_ref(params, X)
    np.testing.assert_allclose(np.asarray(out), np.asarray(ref),
                               atol=1e-3, rtol=1e-3)
    print("KERNEL_OK")
</pallas_src>

<mosaic_0001>
module attributes {stable_mosaic.version = 11 : i64} {
  func.func @gru_gates_kernel(%arg0: i32, %arg1: memref<64x16xf32, #tpu.memory_space<vmem>>, %arg2: memref<16x48xf32, #tpu.memory_space<vmem>>, %arg3: memref<16x48xf32, #tpu.memory_space<vmem>>, %arg4: memref<1x48xf32, #tpu.memory_space<vmem>>, %arg5: memref<1x48xf32, #tpu.memory_space<vmem>>, %arg6: memref<64x48xf32, #tpu.memory_space<vmem>>, %arg7: memref<64x48xf32, #tpu.memory_space<vmem>>) attributes {dimension_semantics = [#tpu.dimension_semantics<parallel>], iteration_bounds = array<i64: 1>, scalar_prefetch = 0 : i64, scratch_operands = 0 : i64, tpu.core_type = #tpu.core_type<tc>, window_params = [{transform_indices = @transform_0, window_bounds = array<i64: 64, 16>}, {pipeline_mode = #tpu.pipeline_mode<synchronous>, transform_indices = @transform_1, window_bounds = array<i64: 16, 48>}, {pipeline_mode = #tpu.pipeline_mode<synchronous>, transform_indices = @transform_2, window_bounds = array<i64: 16, 48>}, {pipeline_mode = #tpu.pipeline_mode<synchronous>, transform_indices = @transform_3, window_bounds = array<i64: 1, 48>}, {pipeline_mode = #tpu.pipeline_mode<synchronous>, transform_indices = @transform_4, window_bounds = array<i64: 1, 48>}, {transform_indices = @transform_5, window_bounds = array<i64: 64, 48>}, {transform_indices = @transform_6, window_bounds = array<i64: 64, 48>}]} {
    %c0 = arith.constant 0 : index
    %c0_0 = arith.constant 0 : index
    %0 = vector.load %arg1[%c0, %c0_0] : memref<64x16xf32, #tpu.memory_space<vmem>>, vector<64x16xf32>
    %c0_1 = arith.constant 0 : index
    %c0_2 = arith.constant 0 : index
    %1 = vector.load %arg2[%c0_1, %c0_2] : memref<16x48xf32, #tpu.memory_space<vmem>>, vector<16x48xf32>
    %cst = arith.constant dense<0.000000e+00> : vector<64x48xf32>
    %2 = tpu.matmul %0, %1, %cst {dimension_numbers = #tpu.dot_dimension_numbers<[1], [0], [0], [1], [0, 0, 1, 1], [], []>, precision = #tpu.contract_precision<fp32>} : vector<64x16xf32>, vector<16x48xf32>, vector<64x48xf32> -> vector<64x48xf32>
    %c0_3 = arith.constant 0 : index
    %c0_4 = arith.constant 0 : index
    %3 = vector.load %arg4[%c0_3, %c0_4] : memref<1x48xf32, #tpu.memory_space<vmem>>, vector<1x48xf32>
    %4 = vector.broadcast %3 : vector<1x48xf32> to vector<64x48xf32>
    %5 = arith.addf %2, %4 : vector<64x48xf32>
    %c0_5 = arith.constant 0 : index
    %c0_6 = arith.constant 0 : index
    %6 = vector.load %arg6[%c0_5, %c0_6] : memref<64x48xf32, #tpu.memory_space<vmem>>, vector<64x48xf32>
    tpu.vector_store %arg6[%c0_5, %c0_6], %5 {strides = array<i32>} : memref<64x48xf32, #tpu.memory_space<vmem>>, vector<64x48xf32>,
    %c0_7 = arith.constant 0 : index
    %c0_8 = arith.constant 0 : index
    %7 = vector.load %arg3[%c0_7, %c0_8] : memref<16x48xf32, #tpu.memory_space<vmem>>, vector<16x48xf32>
    %cst_9 = arith.constant dense<0.000000e+00> : vector<64x48xf32>
    %8 = tpu.matmul %0, %7, %cst_9 {dimension_numbers = #tpu.dot_dimension_numbers<[1], [0], [0], [1], [0, 0, 1, 1], [], []>, precision = #tpu.contract_precision<fp32>} : vector<64x16xf32>, vector<16x48xf32>, vector<64x48xf32> -> vector<64x48xf32>
    %c0_10 = arith.constant 0 : index
    %c0_11 = arith.constant 0 : index
    %9 = vector.load %arg5[%c0_10, %c0_11] : memref<1x48xf32, #tpu.memory_space<vmem>>, vector<1x48xf32>
    %10 = vector.broadcast %9 : vector<1x48xf32> to vector<64x48xf32>
    %11 = arith.addf %8, %10 : vector<64x48xf32>
    %c0_12 = arith.constant 0 : index
    %c0_13 = arith.constant 0 : index
    %12 = vector.load %arg7[%c0_12, %c0_13] : memref<64x48xf32, #tpu.memory_space<vmem>>, vector<64x48xf32>
    tpu.vector_store %arg7[%c0_12, %c0_13], %11 {strides = array<i32>} : memref<64x48xf32, #tpu.memory_space<vmem>>, vector<64x48xf32>,
    return
  }
  func.func @transform_0(%arg0: i32) -> (i32, i32) {
    %c0_i32 = arith.constant 0 : i32
    %c0_i32_0 = arith.constant 0 : i32
    return %arg0, %c0_i32 : i32, i32
  }
  func.func @transform_1(%arg0: i32) -> (i32, i32) {
    %c0_i32 = arith.constant 0 : i32
    %c0_i32_0 = arith.constant 0 : i32
    %c0_i32_1 = arith.constant 0 : i32
    return %c0_i32, %c0_i32_0 : i32, i32
  }
  func.func @transform_2(%arg0: i32) -> (i32, i32) {
    %c0_i32 = arith.constant 0 : i32
    %c0_i32_0 = arith.constant 0 : i32
    %c0_i32_1 = arith.constant 0 : i32
    return %c0_i32, %c0_i32_0 : i32, i32
  }
  func.func @transform_3(%arg0: i32) -> (i32, i32) {
    %c0_i32 = arith.constant 0 : i32
    %c0_i32_0 = arith.constant 0 : i32
    %c0_i32_1 = arith.constant 0 : i32
    return %c0_i32, %c0_i32_0 : i32, i32
  }
  func.func @transform_4(%arg0: i32) -> (i32, i32) {
    %c0_i32 = arith.constant 0 : i32
    %c0_i32_0 = arith.constant 0 : i32
    %c0_i32_1 = arith.constant 0 : i32
    return %c0_i32, %c0_i32_0 : i32, i32
  }
  func.func @transform_5(%arg0: i32) -> (i32, i32) {
    %c0_i32 = arith.constant 0 : i32
    %c0_i32_0 = arith.constant 0 : i32
    return %arg0, %c0_i32 : i32, i32
  }
  func.func @transform_6(%arg0: i32) -> (i32, i32) {
    %c0_i32 = arith.constant 0 : i32
    %c0_i32_0 = arith.constant 0 : i32
    return %arg0, %c0_i32 : i32, i32
  }
}

module attributes {stable_mosaic.version = 11 : i64} {
  func.func @bigru_recurrence_kernel(%arg0: memref<8x8x48xf32, #tpu.memory_space<vmem>>, %arg1: memref<8x8x48xf32, #tpu.memory_space<vmem>>, %arg2: memref<16x48xf32, #tpu.memory_space<vmem>>, %arg3: memref<16x48xf32, #tpu.memory_space<vmem>>, %arg4: memref<1x48xf32, #tpu.memory_space<vmem>>, %arg5: memref<1x48xf32, #tpu.memory_space<vmem>>, %arg6: memref<8x8x32xf32, #tpu.memory_space<vmem>>, %arg7: memref<8x8x16xf32, #tpu.memory_space<vmem>>, %arg8: memref<8x8x16xf32, #tpu.memory_space<vmem>>) attributes {dimension_semantics = [], scalar_prefetch = 0 : i64, scratch_operands = 2 : i64, tpu.core_type = #tpu.core_type<tc>} {
    %c0 = arith.constant 0 : index
    %c0_0 = arith.constant 0 : index
    %0 = vector.load %arg2[%c0, %c0_0] : memref<16x48xf32, #tpu.memory_space<vmem>>, vector<16x48xf32>
    %c0_1 = arith.constant 0 : index
    %c0_2 = arith.constant 0 : index
    %1 = vector.load %arg3[%c0_1, %c0_2] : memref<16x48xf32, #tpu.memory_space<vmem>>, vector<16x48xf32>
    %c0_3 = arith.constant 0 : index
    %c0_4 = arith.constant 0 : index
    %2 = vector.load %arg4[%c0_3, %c0_4] : memref<1x48xf32, #tpu.memory_space<vmem>>, vector<1x48xf32>
    %c0_5 = arith.constant 0 : index
    %c0_6 = arith.constant 0 : index
    %3 = vector.load %arg5[%c0_5, %c0_6] : memref<1x48xf32, #tpu.memory_space<vmem>>, vector<1x48xf32>
    %cst = arith.constant 0.000000e+00 : f32
    %4 = vector.broadcast %cst : f32 to vector<8x16xf32>
    %c0_i32 = arith.constant 0 : i32
    %c8_i32 = arith.constant 8 : i32
    %5 = arith.addi %c0_i32, %c8_i32 : i32
    %c1_i32 = arith.constant 1 : i32
    %6:2 = scf.for %arg9 = %c0_i32 to %5 step %c1_i32 iter_args(%arg10 = %4, %arg11 = %4) -> (vector<8x16xf32>, vector<8x16xf32>)  : i32 {
      %c7_i32 = arith.constant 7 : i32
      %11 = arith.subi %c7_i32, %arg9 : i32
      %12 = arith.index_cast %arg9 : i32 to index
      %c0_19 = arith.constant 0 : index
      %c0_20 = arith.constant 0 : index
      %13 = vector.load %arg0[%12, %c0_19, %c0_20] : memref<8x8x48xf32, #tpu.memory_space<vmem>>, vector<1x8x48xf32>
      %14 = vector.shape_cast %13 : vector<1x8x48xf32> to vector<8x48xf32>
      %cst_21 = arith.constant dense<0.000000e+00> : vector<8x48xf32>
      %15 = tpu.matmul %arg10, %0, %cst_21 {dimension_numbers = #tpu.dot_dimension_numbers<[1], [0], [0], [1], [0, 0, 1, 1], [], []>, precision = #tpu.contract_precision<fp32>} : vector<8x16xf32>, vector<16x48xf32>, vector<8x48xf32> -> vector<8x48xf32>
      %16 = vector.broadcast %2 : vector<1x48xf32> to vector<8x48xf32>
      %17 = arith.addf %15, %16 : vector<8x48xf32>
      %18 = vector.extract_strided_slice %14 {offsets = [0, 0], sizes = [8, 16], strides = [1, 1]} : vector<8x48xf32> to vector<8x16xf32>
      %19 = vector.extract_strided_slice %17 {offsets = [0, 0], sizes = [8, 16], strides = [1, 1]} : vector<8x48xf32> to vector<8x16xf32>
      %20 = arith.addf %18, %19 : vector<8x16xf32>
      %21 = arith.negf %20 : vector<8x16xf32>
      %22 = math.exp %21 : vector<8x16xf32>
      %cst_22 = arith.constant 1.000000e+00 : f32
      %23 = vector.broadcast %cst_22 : f32 to vector<8x16xf32>
      %24 = arith.addf %23, %22 : vector<8x16xf32>
      %25 = arith.divf %23, %24 : vector<8x16xf32>
      %26 = vector.extract_strided_slice %14 {offsets = [0, 16], sizes = [8, 16], strides = [1, 1]} : vector<8x48xf32> to vector<8x16xf32>
      %27 = vector.extract_strided_slice %17 {offsets = [0, 16], sizes = [8, 16], strides = [1, 1]} : vector<8x48xf32> to vector<8x16xf32>
      %28 = arith.addf %26, %27 : vector<8x16xf32>
      %29 = arith.negf %28 : vector<8x16xf32>
      %30 = math.exp %29 : vector<8x16xf32>
      %cst_23 = arith.constant 1.000000e+00 : f32
      %31 = vector.broadcast %cst_23 : f32 to vector<8x16xf32>
      %32 = arith.addf %31, %30 : vector<8x16xf32>
      %33 = arith.divf %31, %32 : vector<8x16xf32>
      %34 = vector.extract_strided_slice %14 {offsets = [0, 32], sizes = [8, 16], strides = [1, 1]} : vector<8x48xf32> to vector<8x16xf32>
      %35 = vector.extract_strided_slice %17 {offsets = [0, 32], sizes = [8, 16], strides = [1, 1]} : vector<8x48xf32> to vector<8x16xf32>
      %36 = arith.mulf %25, %35 : vector<8x16xf32>
      %37 = arith.addf %34, %36 : vector<8x16xf32>
      %38 = math.tanh %37 : vector<8x16xf32>
      %cst_24 = arith.constant 1.000000e+00 : f32
      %39 = vector.broadcast %cst_24 : f32 to vector<8x16xf32>
      %40 = arith.subf %39, %33 : vector<8x16xf32>
      %41 = arith.mulf %40, %38 : vector<8x16xf32>
      %42 = arith.mulf %33, %arg10 : vector<8x16xf32>
      %43 = arith.addf %41, %42 : vector<8x16xf32>
      %44 = arith.index_cast %11 : i32 to index
      %c0_25 = arith.constant 0 : index
      %c0_26 = arith.constant 0 : index
      %45 = vector.load %arg1[%44, %c0_25, %c0_26] : memref<8x8x48xf32, #tpu.memory_space<vmem>>, vector<1x8x48xf32>
      %46 = vector.shape_cast %45 : vector<1x8x48xf32> to vector<8x48xf32>
      %cst_27 = arith.constant dense<0.000000e+00> : vector<8x48xf32>
      %47 = tpu.matmul %arg11, %1, %cst_27 {dimension_numbers = #tpu.dot_dimension_numbers<[1], [0], [0], [1], [0, 0, 1, 1], [], []>, precision = #tpu.contract_precision<fp32>} : vector<8x16xf32>, vector<16x48xf32>, vector<8x48xf32> -> vector<8x48xf32>
      %48 = vector.broadcast %3 : vector<1x48xf32> to vector<8x48xf32>
      %49 = arith.addf %47, %48 : vector<8x48xf32>
      %50 = vector.extract_strided_slice %46 {offsets = [0, 0], sizes = [8, 16], strides = [1, 1]} : vector<8x48xf32> to vector<8x16xf32>
      %51 = vector.extract_strided_slice %49 {offsets = [0, 0], sizes = [8, 16], strides = [1, 1]} : vector<8x48xf32> to vector<8x16xf32>
      %52 = arith.addf %50, %51 : vector<8x16xf32>
      %53 = arith.negf %52 : vector<8x16xf32>
      %54 = math.exp %53 : vector<8x16xf32>
      %cst_28 = arith.constant 1.000000e+00 : f32
      %55 = vector.broadcast %cst_28 : f32 to vector<8x16xf32>
      %56 = arith.addf %55, %54 : vector<8x16xf32>
      %57 = arith.divf %55, %56 : vector<8x16xf32>
      %58 = vector.extract_strided_slice %46 {offsets = [0, 16], sizes = [8, 16], strides = [1, 1]} : vector<8x48xf32> to vector<8x16xf32>
      %59 = vector.extract_strided_slice %49 {offsets = [0, 16], sizes = [8, 16], strides = [1, 1]} : vector<8x48xf32> to vector<8x16xf32>
      %60 = arith.addf %58, %59 : vector<8x16xf32>
      %61 = arith.negf %60 : vector<8x16xf32>
      %62 = math.exp %61 : vector<8x16xf32>
      %cst_29 = arith.constant 1.000000e+00 : f32
      %63 = vector.broadcast %cst_29 : f32 to vector<8x16xf32>
      %64 = arith.addf %63, %62 : vector<8x16xf32>
      %65 = arith.divf %63, %64 : vector<8x16xf32>
      %66 = vector.extract_strided_slice %46 {offsets = [0, 32], sizes = [8, 16], strides = [1, 1]} : vector<8x48xf32> to vector<8x16xf32>
      %67 = vector.extract_strided_slice %49 {offsets = [0, 32], sizes = [8, 16], strides = [1, 1]} : vector<8x48xf32> to vector<8x16xf32>
      %68 = arith.mulf %57, %67 : vector<8x16xf32>
      %69 = arith.addf %66, %68 : vector<8x16xf32>
      %70 = math.tanh %69 : vector<8x16xf32>
      %cst_30 = arith.constant 1.000000e+00 : f32
      %71 = vector.broadcast %cst_30 : f32 to vector<8x16xf32>
      %72 = arith.subf %71, %65 : vector<8x16xf32>
      %73 = arith.mulf %72, %70 : vector<8x16xf32>
      %74 = arith.mulf %65, %arg11 : vector<8x16xf32>
      %75 = arith.addf %73, %74 : vector<8x16xf32>
      %76 = arith.index_cast %arg9 : i32 to index
      %c0_31 = arith.constant 0 : index
      %c0_32 = arith.constant 0 : index
      %77 = vector.load %arg7[%76, %c0_31, %c0_32] : memref<8x8x16xf32, #tpu.memory_space<vmem>>, vector<1x8x16xf32>
      %78 = vector.shape_cast %77 : vector<1x8x16xf32> to vector<8x16xf32>
      %79 = vector.shape_cast %43 : vector<8x16xf32> to vector<1x8x16xf32>
      tpu.vector_store %arg7[%76, %c0_31, %c0_32], %79 {strides = array<i32>} : memref<8x8x16xf32, #tpu.memory_space<vmem>>, vector<1x8x16xf32>,
      %80 = arith.index_cast %11 : i32 to index
      %c0_33 = arith.constant 0 : index
      %c0_34 = arith.constant 0 : index
      %81 = vector.load %arg8[%80, %c0_33, %c0_34] : memref<8x8x16xf32, #tpu.memory_space<vmem>>, vector<1x8x16xf32>
      %82 = vector.shape_cast %81 : vector<1x8x16xf32> to vector<8x16xf32>
      %83 = vector.shape_cast %75 : vector<8x16xf32> to vector<1x8x16xf32>
      tpu.vector_store %arg8[%80, %c0_33, %c0_34], %83 {strides = array<i32>} : memref<8x8x16xf32, #tpu.memory_space<vmem>>, vector<1x8x16xf32>,
      scf.yield %43, %75 : vector<8x16xf32>, vector<8x16xf32>
    }
    %c8_i32_7 = arith.constant 8 : i32
    %c0_8 = arith.constant 0 : index
    %c0_9 = arith.constant 0 : index
    %c0_10 = arith.constant 0 : index
    %7 = vector.load %arg7[%c0_8, %c0_9, %c0_10] : memref<8x8x16xf32, #tpu.memory_space<vmem>>, vector<8x8x16xf32>
    %c0_11 = arith.constant 0 : index
    %c0_12 = arith.constant 0 : index
    %c0_13 = arith.constant 0 : index
    %8 = vector.load %arg6[%c0_11, %c0_12, %c0_13] : memref<8x8x32xf32, #tpu.memory_space<vmem>>, vector<8x8x16xf32>
    tpu.vector_store %arg6[%c0_11, %c0_12, %c0_13], %7 {strides = array<i32>} : memref<8x8x32xf32, #tpu.memory_space<vmem>>, vector<8x8x16xf32>,
    %c0_14 = arith.constant 0 : index
    %c0_15 = arith.constant 0 : index
    %c0_16 = arith.constant 0 : index
    %9 = vector.load %arg8[%c0_14, %c0_15, %c0_16] : memref<8x8x16xf32, #tpu.memory_space<vmem>>, vector<8x8x16xf32>
    %c0_17 = arith.constant 0 : index
    %c0_18 = arith.constant 0 : index
    %c16 = arith.constant 16 : index
    %10 = vector.load %arg6[%c0_17, %c0_18, %c16] : memref<8x8x32xf32, #tpu.memory_space<vmem>>, vector<8x8x16xf32>
    tpu.vector_store %arg6[%c0_17, %c0_18, %c16], %9 {strides = array<i32>} : memref<8x8x32xf32, #tpu.memory_space<vmem>>, vector<8x8x16xf32>,
    return
  }
}

module attributes {stable_mosaic.version = 11 : i64} {
  func.func @gru_gates_kernel(%arg0: i32, %arg1: memref<64x32xf32, #tpu.memory_space<vmem>>, %arg2: memref<32x48xf32, #tpu.memory_space<vmem>>, %arg3: memref<32x48xf32, #tpu.memory_space<vmem>>, %arg4: memref<1x48xf32, #tpu.memory_space<vmem>>, %arg5: memref<1x48xf32, #tpu.memory_space<vmem>>, %arg6: memref<64x48xf32, #tpu.memory_space<vmem>>, %arg7: memref<64x48xf32, #tpu.memory_space<vmem>>) attributes {dimension_semantics = [#tpu.dimension_semantics<parallel>], iteration_bounds = array<i64: 1>, scalar_prefetch = 0 : i64, scratch_operands = 0 : i64, tpu.core_type = #tpu.core_type<tc>, window_params = [{transform_indices = @transform_0, window_bounds = array<i64: 64, 32>}, {pipeline_mode = #tpu.pipeline_mode<synchronous>, transform_indices = @transform_1, window_bounds = array<i64: 32, 48>}, {pipeline_mode = #tpu.pipeline_mode<synchronous>, transform_indices = @transform_2, window_bounds = array<i64: 32, 48>}, {pipeline_mode = #tpu.pipeline_mode<synchronous>, transform_indices = @transform_3, window_bounds = array<i64: 1, 48>}, {pipeline_mode = #tpu.pipeline_mode<synchronous>, transform_indices = @transform_4, window_bounds = array<i64: 1, 48>}, {transform_indices = @transform_5, window_bounds = array<i64: 64, 48>}, {transform_indices = @transform_6, window_bounds = array<i64: 64, 48>}]} {
    %c0 = arith.constant 0 : index
    %c0_0 = arith.constant 0 : index
    %0 = vector.load %arg1[%c0, %c0_0] : memref<64x32xf32, #tpu.memory_space<vmem>>, vector<64x32xf32>
    %c0_1 = arith.constant 0 : index
    %c0_2 = arith.constant 0 : index
    %1 = vector.load %arg2[%c0_1, %c0_2] : memref<32x48xf32, #tpu.memory_space<vmem>>, vector<32x48xf32>
    %cst = arith.constant dense<0.000000e+00> : vector<64x48xf32>
    %2 = tpu.matmul %0, %1, %cst {dimension_numbers = #tpu.dot_dimension_numbers<[1], [0], [0], [1], [0, 0, 1, 1], [], []>, precision = #tpu.contract_precision<fp32>} : vector<64x32xf32>, vector<32x48xf32>, vector<64x48xf32> -> vector<64x48xf32>
    %c0_3 = arith.constant 0 : index
    %c0_4 = arith.constant 0 : index
    %3 = vector.load %arg4[%c0_3, %c0_4] : memref<1x48xf32, #tpu.memory_space<vmem>>, vector<1x48xf32>
    %4 = vector.broadcast %3 : vector<1x48xf32> to vector<64x48xf32>
    %5 = arith.addf %2, %4 : vector<64x48xf32>
    %c0_5 = arith.constant 0 : index
    %c0_6 = arith.constant 0 : index
    %6 = vector.load %arg6[%c0_5, %c0_6] : memref<64x48xf32, #tpu.memory_space<vmem>>, vector<64x48xf32>
    tpu.vector_store %arg6[%c0_5, %c0_6], %5 {strides = array<i32>} : memref<64x48xf32, #tpu.memory_space<vmem>>, vector<64x48xf32>,
    %c0_7 = arith.constant 0 : index
    %c0_8 = arith.constant 0 : index
    %7 = vector.load %arg3[%c0_7, %c0_8] : memref<32x48xf32, #tpu.memory_space<vmem>>, vector<32x48xf32>
    %cst_9 = arith.constant dense<0.000000e+00> : vector<64x48xf32>
    %8 = tpu.matmul %0, %7, %cst_9 {dimension_numbers = #tpu.dot_dimension_numbers<[1], [0], [0], [1], [0, 0, 1, 1], [], []>, precision = #tpu.contract_precision<fp32>} : vector<64x32xf32>, vector<32x48xf32>, vector<64x48xf32> -> vector<64x48xf32>
    %c0_10 = arith.constant 0 : index
    %c0_11 = arith.constant 0 : index
    %9 = vector.load %arg5[%c0_10, %c0_11] : memref<1x48xf32, #tpu.memory_space<vmem>>, vector<1x48xf32>
    %10 = vector.broadcast %9 : vector<1x48xf32> to vector<64x48xf32>
    %11 = arith.addf %8, %10 : vector<64x48xf32>
    %c0_12 = arith.constant 0 : index
    %c0_13 = arith.constant 0 : index
    %12 = vector.load %arg7[%c0_12, %c0_13] : memref<64x48xf32, #tpu.memory_space<vmem>>, vector<64x48xf32>
    tpu.vector_store %arg7[%c0_12, %c0_13], %11 {strides = array<i32>} : memref<64x48xf32, #tpu.memory_space<vmem>>, vector<64x48xf32>,
    return
  }
  func.func @transform_0(%arg0: i32) -> (i32, i32) {
    %c0_i32 = arith.constant 0 : i32
    %c0_i32_0 = arith.constant 0 : i32
    return %arg0, %c0_i32 : i32, i32
  }
  func.func @transform_1(%arg0: i32) -> (i32, i32) {
    %c0_i32 = arith.constant 0 : i32
    %c0_i32_0 = arith.constant 0 : i32
    %c0_i32_1 = arith.constant 0 : i32
    return %c0_i32, %c0_i32_0 : i32, i32
  }
  func.func @transform_2(%arg0: i32) -> (i32, i32) {
    %c0_i32 = arith.constant 0 : i32
    %c0_i32_0 = arith.constant 0 : i32
    %c0_i32_1 = arith.constant 0 : i32
    return %c0_i32, %c0_i32_0 : i32, i32
  }
  func.func @transform_3(%arg0: i32) -> (i32, i32) {
    %c0_i32 = arith.constant 0 : i32
    %c0_i32_0 = arith.constant 0 : i32
    %c0_i32_1 = arith.constant 0 : i32
    return %c0_i32, %c0_i32_0 : i32, i32
  }
  func.func @transform_4(%arg0: i32) -> (i32, i32) {
    %c0_i32 = arith.constant 0 : i32
    %c0_i32_0 = arith.constant 0 : i32
    %c0_i32_1 = arith.constant 0 : i32
    return %c0_i32, %c0_i32_0 : i32, i32
  }
  func.func @transform_5(%arg0: i32) -> (i32, i32) {
    %c0_i32 = arith.constant 0 : i32
    %c0_i32_0 = arith.constant 0 : i32
    return %arg0, %c0_i32 : i32, i32
  }
  func.func @transform_6(%arg0: i32) -> (i32, i32) {
    %c0_i32 = arith.constant 0 : i32
    %c0_i32_0 = arith.constant 0 : i32
    return %arg0, %c0_i32 : i32, i32
  }
}

module attributes {stable_mosaic.version = 11 : i64} {
  func.func @attn_scores_kernel(%arg0: i32, %arg1: memref<64x32xf32, #tpu.memory_space<vmem>>, %arg2: memref<32x32xf32, #tpu.memory_space<vmem>>, %arg3: memref<1x32xf32, #tpu.memory_space<vmem>>, %arg4: memref<32x1xf32, #tpu.memory_space<vmem>>, %arg5: memref<1x1xf32, #tpu.memory_space<smem>>, %arg6: memref<64x1xf32, #tpu.memory_space<vmem>>) attributes {dimension_semantics = [#tpu.dimension_semantics<parallel>], iteration_bounds = array<i64: 1>, scalar_prefetch = 0 : i64, scratch_operands = 0 : i64, tpu.core_type = #tpu.core_type<tc>, window_params = [{transform_indices = @transform_0, window_bounds = array<i64: 64, 32>}, {pipeline_mode = #tpu.pipeline_mode<synchronous>, transform_indices = @transform_1, window_bounds = array<i64: 32, 32>}, {pipeline_mode = #tpu.pipeline_mode<synchronous>, transform_indices = @transform_2, window_bounds = array<i64: 1, 32>}, {pipeline_mode = #tpu.pipeline_mode<synchronous>, transform_indices = @transform_3, window_bounds = array<i64: 32, 1>}, {transform_indices = @transform_4, window_bounds = array<i64: 1, 1>}, {transform_indices = @transform_5, window_bounds = array<i64: 64, 1>}]} {
    %c0 = arith.constant 0 : index
    %c0_0 = arith.constant 0 : index
    %0 = vector.load %arg1[%c0, %c0_0] : memref<64x32xf32, #tpu.memory_space<vmem>>, vector<64x32xf32>
    %c0_1 = arith.constant 0 : index
    %c0_2 = arith.constant 0 : index
    %1 = vector.load %arg2[%c0_1, %c0_2] : memref<32x32xf32, #tpu.memory_space<vmem>>, vector<32x32xf32>
    %cst = arith.constant dense<0.000000e+00> : vector<64x32xf32>
    %2 = tpu.matmul %0, %1, %cst {dimension_numbers = #tpu.dot_dimension_numbers<[1], [0], [0], [1], [0, 0, 1, 1], [], []>, precision = #tpu.contract_precision<fp32>} : vector<64x32xf32>, vector<32x32xf32>, vector<64x32xf32> -> vector<64x32xf32>
    %c0_3 = arith.constant 0 : index
    %c0_4 = arith.constant 0 : index
    %3 = vector.load %arg3[%c0_3, %c0_4] : memref<1x32xf32, #tpu.memory_space<vmem>>, vector<1x32xf32>
    %4 = vector.broadcast %3 : vector<1x32xf32> to vector<64x32xf32>
    %5 = arith.addf %2, %4 : vector<64x32xf32>
    %6 = math.tanh %5 : vector<64x32xf32>
    %c0_5 = arith.constant 0 : index
    %c0_6 = arith.constant 0 : index
    %7 = vector.load %arg4[%c0_5, %c0_6] : memref<32x1xf32, #tpu.memory_space<vmem>>, vector<32x1xf32>
    %cst_7 = arith.constant dense<0.000000e+00> : vector<64x1xf32>
    %8 = tpu.matmul %6, %7, %cst_7 {dimension_numbers = #tpu.dot_dimension_numbers<[1], [0], [0], [1], [0, 0, 1, 1], [], []>, precision = #tpu.contract_precision<fp32>} : vector<64x32xf32>, vector<32x1xf32>, vector<64x1xf32> -> vector<64x1xf32>
    %c0_8 = arith.constant 0 : index
    %c0_9 = arith.constant 0 : index
    %9 = memref.load %arg5[%c0_8, %c0_9] : memref<1x1xf32, #tpu.memory_space<smem>>
    %10 = vector.broadcast %9 : f32 to vector<64x1xf32>
    %11 = arith.addf %8, %10 : vector<64x1xf32>
    %c0_10 = arith.constant 0 : index
    %c0_11 = arith.constant 0 : index
    %12 = vector.load %arg6[%c0_10, %c0_11] : memref<64x1xf32, #tpu.memory_space<vmem>>, vector<64x1xf32>
    tpu.vector_store %arg6[%c0_10, %c0_11], %11 {strides = array<i32>} : memref<64x1xf32, #tpu.memory_space<vmem>>, vector<64x1xf32>,
    return
  }
  func.func @transform_0(%arg0: i32) -> (i32, i32) {
    %c0_i32 = arith.constant 0 : i32
    %c0_i32_0 = arith.constant 0 : i32
    return %arg0, %c0_i32 : i32, i32
  }
  func.func @transform_1(%arg0: i32) -> (i32, i32) {
    %c0_i32 = arith.constant 0 : i32
    %c0_i32_0 = arith.constant 0 : i32
    %c0_i32_1 = arith.constant 0 : i32
    return %c0_i32, %c0_i32_0 : i32, i32
  }
  func.func @transform_2(%arg0: i32) -> (i32, i32) {
    %c0_i32 = arith.constant 0 : i32
    %c0_i32_0 = arith.constant 0 : i32
    %c0_i32_1 = arith.constant 0 : i32
    return %c0_i32, %c0_i32_0 : i32, i32
  }
  func.func @transform_3(%arg0: i32) -> (i32, i32) {
    %c0_i32 = arith.constant 0 : i32
    %c0_i32_0 = arith.constant 0 : i32
    %c0_i32_1 = arith.constant 0 : i32
    return %c0_i32, %c0_i32_0 : i32, i32
  }
  func.func @transform_4(%arg0: i32) -> (i32, i32) {
    %c0_i32 = arith.constant 0 : i32
    %c0_i32_0 = arith.constant 0 : i32
    %c0_i32_1 = arith.constant 0 : i32
    return %c0_i32, %c0_i32_0 : i32, i32
  }
  func.func @transform_5(%arg0: i32) -> (i32, i32) {
    %c0_i32 = arith.constant 0 : i32
    %c0_i32_0 = arith.constant 0 : i32
    return %arg0, %c0_i32 : i32, i32
  }
}

module attributes {stable_mosaic.version = 11 : i64} {
  func.func @attn_pool_kernel(%arg0: i32, %arg1: memref<8x8x1xf32, #tpu.memory_space<vmem>>, %arg2: memref<8x8x32xf32, #tpu.memory_space<vmem>>, %arg3: memref<32x4xf32, #tpu.memory_space<vmem>>, %arg4: memref<1x4xf32, #tpu.memory_space<vmem>>, %arg5: memref<8x4xf32, #tpu.memory_space<vmem>>) attributes {dimension_semantics = [#tpu.dimension_semantics<parallel>], iteration_bounds = array<i64: 1>, scalar_prefetch = 0 : i64, scratch_operands = 0 : i64, tpu.core_type = #tpu.core_type<tc>, window_params = [{transform_indices = @transform_0, window_bounds = array<i64: 8, 8, 1>}, {transform_indices = @transform_1, window_bounds = array<i64: 8, 8, 32>}, {pipeline_mode = #tpu.pipeline_mode<synchronous>, transform_indices = @transform_2, window_bounds = array<i64: 32, 4>}, {pipeline_mode = #tpu.pipeline_mode<synchronous>, transform_indices = @transform_3, window_bounds = array<i64: 1, 4>}, {transform_indices = @transform_4, window_bounds = array<i64: 8, 4>}]} {
    %cst = arith.constant 0xFF800000 : f32
    %0 = vector.broadcast %cst : f32 to vector<8x1xf32>
    %cst_0 = arith.constant 0.000000e+00 : f32
    %1 = vector.broadcast %cst_0 : f32 to vector<8x1xf32>
    %cst_1 = arith.constant 0.000000e+00 : f32
    %2 = vector.broadcast %cst_1 : f32 to vector<8x32xf32>
    %c0_i32 = arith.constant 0 : i32
    %c8_i32 = arith.constant 8 : i32
    %3 = arith.addi %c0_i32, %c8_i32 : i32
    %c1_i32 = arith.constant 1 : i32
    %4:3 = scf.for %arg6 = %c0_i32 to %3 step %c1_i32 iter_args(%arg7 = %0, %arg8 = %1, %arg9 = %2) -> (vector<8x1xf32>, vector<8x1xf32>, vector<8x32xf32>)  : i32 {
      %24 = arith.index_cast %arg6 : i32 to index
      %c0_11 = arith.constant 0 : index
      %c0_12 = arith.constant 0 : index
      %25 = vector.load %arg1[%24, %c0_11, %c0_12] : memref<8x8x1xf32, #tpu.memory_space<vmem>>, vector<1x8x1xf32>
      %26 = vector.shape_cast %25 : vector<1x8x1xf32> to vector<8x1xf32>
      %27 = arith.index_cast %arg6 : i32 to index
      %c0_13 = arith.constant 0 : index
      %c0_14 = arith.constant 0 : index
      %28 = vector.load %arg2[%27, %c0_13, %c0_14] : memref<8x8x32xf32, #tpu.memory_space<vmem>>, vector<1x8x32xf32>
      %29 = vector.shape_cast %28 : vector<1x8x32xf32> to vector<8x32xf32>
      %30 = arith.maximumf %arg7, %26 : vector<8x1xf32>
      %31 = arith.subf %arg7, %30 : vector<8x1xf32>
      %32 = math.exp %31 : vector<8x1xf32>
      %33 = arith.subf %26, %30 : vector<8x1xf32>
      %34 = math.exp %33 : vector<8x1xf32>
      %35 = arith.mulf %arg8, %32 : vector<8x1xf32>
      %36 = arith.addf %35, %34 : vector<8x1xf32>
      %37 = vector.broadcast %32 : vector<8x1xf32> to vector<8x32xf32>
      %38 = arith.mulf %arg9, %37 : vector<8x32xf32>
      %39 = vector.broadcast %34 : vector<8x1xf32> to vector<8x32xf32>
      %40 = arith.mulf %39, %29 : vector<8x32xf32>
      %41 = arith.addf %38, %40 : vector<8x32xf32>
      scf.yield %30, %36, %41 : vector<8x1xf32>, vector<8x1xf32>, vector<8x32xf32>
    }
    %c8_i32_2 = arith.constant 8 : i32
    %5 = vector.broadcast %4#1 : vector<8x1xf32> to vector<8x32xf32>
    %6 = arith.divf %4#2, %5 : vector<8x32xf32>
    %c0 = arith.constant 0 : index
    %c0_3 = arith.constant 0 : index
    %7 = vector.load %arg3[%c0, %c0_3] : memref<32x4xf32, #tpu.memory_space<vmem>>, vector<32x4xf32>
    %cst_4 = arith.constant dense<0.000000e+00> : vector<8x4xf32>
    %8 = tpu.matmul %6, %7, %cst_4 {dimension_numbers = #tpu.dot_dimension_numbers<[1], [0], [0], [1], [0, 0, 1, 1], [], []>, precision = #tpu.contract_precision<fp32>} : vector<8x32xf32>, vector<32x4xf32>, vector<8x4xf32> -> vector<8x4xf32>
    %c0_5 = arith.constant 0 : index
    %c0_6 = arith.constant 0 : index
    %9 = vector.load %arg4[%c0_5, %c0_6] : memref<1x4xf32, #tpu.memory_space<vmem>>, vector<1x4xf32>
    %10 = vector.broadcast %9 : vector<1x4xf32> to vector<8x4xf32>
    %11 = arith.addf %8, %10 : vector<8x4xf32>
    %cst_7 = arith.constant dense<0xFF800000> : vector<8xf32>
    %12 = vector.multi_reduction <maximumf>, %11, %cst_7 [1] : vector<8x4xf32> to vector<8xf32>
    %13 = vector.shape_cast %12 : vector<8xf32> to vector<8x1xf32>
    %14 = vector.broadcast %13 : vector<8x1xf32> to vector<8x4xf32>
    %15 = arith.subf %11, %14 : vector<8x4xf32>
    %16 = math.exp %15 : vector<8x4xf32>
    %cst_8 = arith.constant dense<0.000000e+00> : vector<8xf32>
    %17 = vector.multi_reduction <add>, %16, %cst_8 [1] : vector<8x4xf32> to vector<8xf32>
    %18 = vector.shape_cast %17 : vector<8xf32> to vector<8x1xf32>
    %19 = math.log %18 : vector<8x1xf32>
    %20 = arith.addf %19, %13 : vector<8x1xf32>
    %21 = vector.broadcast %20 : vector<8x1xf32> to vector<8x4xf32>
    %22 = arith.subf %11, %21 : vector<8x4xf32>
    %c0_9 = arith.constant 0 : index
    %c0_10 = arith.constant 0 : index
    %23 = vector.load %arg5[%c0_9, %c0_10] : memref<8x4xf32, #tpu.memory_space<vmem>>, vector<8x4xf32>
    tpu.vector_store %arg5[%c0_9, %c0_10], %22 {strides = array<i32>} : memref<8x4xf32, #tpu.memory_space<vmem>>, vector<8x4xf32>,
    return
  }
  func.func @transform_0(%arg0: i32) -> (i32, i32, i32) {
    %c0_i32 = arith.constant 0 : i32
    %c0_i32_0 = arith.constant 0 : i32
    %c0_i32_1 = arith.constant 0 : i32
    return %c0_i32, %arg0, %c0_i32_0 : i32, i32, i32
  }
  func.func @transform_1(%arg0: i32) -> (i32, i32, i32) {
    %c0_i32 = arith.constant 0 : i32
    %c0_i32_0 = arith.constant 0 : i32
    %c0_i32_1 = arith.constant 0 : i32
    return %c0_i32, %arg0, %c0_i32_0 : i32, i32, i32
  }
  func.func @transform_2(%arg0: i32) -> (i32, i32) {
    %c0_i32 = arith.constant 0 : i32
    %c0_i32_0 = arith.constant 0 : i32
    %c0_i32_1 = arith.constant 0 : i32
    return %c0_i32, %c0_i32_0 : i32, i32
  }
  func.func @transform_3(%arg0: i32) -> (i32, i32) {
    %c0_i32 = arith.constant 0 : i32
    %c0_i32_0 = arith.constant 0 : i32
    %c0_i32_1 = arith.constant 0 : i32
    return %c0_i32, %c0_i32_0 : i32, i32
  }
  func.func @transform_4(%arg0: i32) -> (i32, i32) {
    %c0_i32 = arith.constant 0 : i32
    %c0_i32_0 = arith.constant 0 : i32
    return %arg0, %c0_i32 : i32, i32
  }
}

</mosaic_0001>

<llo_original>
// kernel: forward.7
$region0: #{forward.7}
  #allocation0 [shape = 'u32[]', space=smem, size = 0x4, offset = 0x4, fixed_abs, tag = 'smem constant byte address 0x4 - core index']
  #allocation1 [shape = 'u32[144,128]{1,0:T(1,128)}', space=vmem, size = 0x12000, scoped, tag = 'internal scratch']
  #allocation2 [shape = 'f32[8,8,16]{2,1,0:T(8,128)}', space=vmem, size = 0x8000, scoped, tag = 'scratch operand']
  #allocation3 [shape = 'f32[8,8,16]{2,1,0:T(8,128)}', space=vmem, size = 0x8000, scoped, tag = 'scratch operand']
  %s0 = inlined_call_operand.vmem [shape: f32[8,8,48], index: 0, kind: input, shape index: {}]
  %s1 = inlined_call_operand.vmem [shape: f32[8,8,48], index: 1, kind: input, shape index: {}]
  %s2 = inlined_call_operand.vmem [shape: f32[16,48], index: 2, kind: input, shape index: {}]
  %s3 = inlined_call_operand.vmem [shape: f32[16,48], index: 3, kind: input, shape index: {}]
  %s4 = inlined_call_operand.vmem [shape: f32[1,48], index: 4, kind: input, shape index: {}]
  %s5 = inlined_call_operand.vmem [shape: f32[1,48], index: 5, kind: input, shape index: {}]
  %s6 = inlined_call_operand.vmem [shape: f32[8,8,32], index: 6, kind: output, shape index: {}]
  %s7 = sld [smem:[#allocation0]]
  $region41: #{forward.7} parent=0
    _
  %s9 = ssub.s32 1, %s7
  %s10 = scalar_select 0, %s9, %s7
  // Predicated region
  $region2: #{forward.7} parent=0 // pred_check
    _
  $region3: #{forward.7} parent=0 // pred_check_branch
    %12 = sbr.rel (0) target = $region5
  $region4: #{forward.7} parent=0 // pred_region
    _
  $region5: #{forward.7} parent=0 // pred_fallthru
    _
  // Predicated region
  $region6: #{forward.7} parent=0 // pred_check
    _
  $region7: #{forward.7} parent=0 // pred_check_branch
    %14 = sbr.rel (0) target = $region9
  $region8: #{forward.7} parent=0 // pred_region
    _
  $region9: #{forward.7} parent=0 // pred_fallthru
    _
  // Predicated region
  $region10: #{forward.7} parent=0 // pred_check
    _
  $region11: #{forward.7} parent=0 // pred_check_branch
    %16 = sbr.rel (0) target = $region13
  $region12: #{forward.7} parent=0 // pred_region
    _
  $region13: #{forward.7} parent=0 // pred_fallthru
    _
  // Predicated region
  $region14: #{forward.7} parent=0 // pred_check
    _
  $region15: #{forward.7} parent=0 // pred_check_branch
    %18 = sbr.rel (0) target = $region17
  $region16: #{forward.7} parent=0 // pred_region
    _
  $region17: #{forward.7} parent=0 // pred_fallthru
    _
  // Predicated region
  $region18: #{forward.7} parent=0 // pred_check
    _
  $region19: #{forward.7} parent=0 // pred_check_branch
    %20 = sbr.rel (0) target = $region21
  $region20: #{forward.7} parent=0 // pred_region
    _
  $region21: #{forward.7} parent=0 // pred_fallthru
    _
  // Predicated region
  $region22: #{forward.7} parent=0 // pred_check
    _
  $region23: #{forward.7} parent=0 // pred_check_branch
    %22 = sbr.rel (0) target = $region25
  $region24: #{forward.7} parent=0 // pred_region
    _
  $region25: #{forward.7} parent=0 // pred_fallthru
    _
  %v23 = vld [vmem:[%s2] sm:$0xff]
  %v24 = vld [vmem:[%s2 + $0x8] sm:$0xff]
  %v25 = vld [vmem:[%s3] sm:$0xff]
  %v26 = vld [vmem:[%s3 + $0x8] sm:$0xff]
  %v27 = vld [vmem:[%s4] sm:$0x1]
  %v28 = vld [vmem:[%s5] sm:$0x1]
  loop: start=0, step=1, limit=8
  $region26: #{forward.7} parent=0 // loop_pre_header
    _
  $region27: #{forward.7} parent=0 // loop_header
    %s30 = sphi 0, %s34
    %p31 = scmp.ge.s32.totalorder %s30, 8
    %v35 = vphi 0.0, %v537
    %v36 = vphi 0.0, %v1036
  $region28: #{forward.7} parent=0 // loop_header_branch
    %33 = sbr.rel (%p31) target = $region32
  $region29: #{forward.7} parent=0 // loop_body
    %s37 = ssub.s32 7, %s30
    %s38 = smul.u32 %s30, 8
    %s39 = scalar_lea.vmem %s0, %s38
    %v40 = vld [vmem:[%s39] sm:$0xff]
    %v42 = vlaneseq
    %v43 = vshrl.u32 %v42, 7
    %v44 = vsub.s32 0, %v43
    %v45 = vrot.slane %v27, %v44
    %48 = vrot.lane.b32.xlu0 %v35, 112
    %v49 = vpop.permute.xlu0 %48
    %vm50 = vcmask 130048
    %v51 = vsel %vm50, %v49, 0
    %53 = vmatprep.subr.mxu0 0.0
    %54 = vmatpush1.msra.mxu0 0.0
    %55 = vmatprep.subr.mxu0 0.0
    %56 = vmatpush1.msra.mxu0 0.0
    %57 = vmatprep.subr.mxu0 0.0
    %58 = vmatpush1.msra.mxu0 0.0
    %59 = vmatprep.subr.mxu0 0.0
    %60 = vmatpush1.msra.mxu0 0.0
    %61 = vmatprep.subr.mxu0 0.0
    %62 = vmatpush1.msra.mxu0 0.0
    %63 = vmatprep.subr.mxu0 0.0
    %64 = vmatpush1.msra.mxu0 0.0
    %65 = vmatprep.subr.mxu0 0.0
    %66 = vmatpush1.msra.mxu0 0.0
    %67 = vmatprep.subr.mxu0 0.0
    %68 = vmatpush1.msra.mxu0 0.0
    %69 = vmatprep.subr.mxu0 0.0
    %70 = vmatpush1.msra.mxu0 0.0
    %71 = vmatprep.subr.mxu0 0.0
    %72 = vmatpush1.msra.mxu0 0.0
    %73 = vmatprep.subr.mxu0 0.0
    %74 = vmatpush1.msra.mxu0 0.0
    %75 = vmatprep.subr.mxu0 0.0
    %76 = vmatpush1.msra.mxu0 0.0
    %77 = vmatprep.subr.mxu0 0.0
    %78 = vmatpush1.msra.mxu0 0.0
    %79 = vmatprep.subr.mxu0 0.0
    %80 = vmatpush1.msra.mxu0 0.0
    %81 = vmatprep.subr.mxu0 0.0
    %v82 = vand.u32 %v24, 4294901760
    %83 = vmatpush1.msra.mxu0 %v82
    %84 = vmatprep.subr.mxu0 0.0
    %v85 = vand.u32 %v23, 4294901760
    %86 = vmatpush1.msra.mxu0 %v85
    %87 = vmatprep.subr.mxu0 0.0
    %88 = vmatpush2.msra.mxu0 0.0
    %89 = vmatprep.subr.mxu0 0.0
    %90 = vmatpush2.msra.mxu0 0.0
    %91 = vmatprep.subr.mxu0 0.0
    %92 = vmatpush2.msra.mxu0 0.0
    %93 = vmatprep.subr.mxu0 0.0
    %94 = vmatpush2.msra.mxu0 0.0
    %95 = vmatprep.subr.mxu0 0.0
    %96 = vmatpush2.msra.mxu0 0.0
    %97 = vmatprep.subr.mxu0 0.0
    %98 = vmatpush2.msra.mxu0 0.0
    %99 = vmatprep.subr.mxu0 0.0
    %100 = vmatpush2.msra.mxu0 0.0
    %101 = vmatprep.subr.mxu0 0.0
    %102 = vmatpush2.msra.mxu0 0.0
    %103 = vmatprep.subr.mxu0 0.0
    %104 = vmatpush2.msra.mxu0 0.0
    %105 = vmatprep.subr.mxu0 0.0
    %106 = vmatpush2.msra.mxu0 0.0
    %107 = vmatprep.subr.mxu0 0.0
    %108 = vmatpush2.msra.mxu0 0.0
    %109 = vmatprep.subr.mxu0 0.0
    %110 = vmatpush2.msra.mxu0 0.0
    %111 = vmatprep.subr.mxu0 0.0
    %112 = vmatpush2.msra.mxu0 0.0
    %113 = vmatprep.subr.mxu0 0.0
    %114 = vmatpush2.msra.mxu0 0.0
    %115 = vmatprep.subr.mxu0 0.0
    %116 = vmatpush2.msra.mxu0 0.0
    %117 = vmatprep.subr.mxu0 0.0
    %118 = vmatpush2.msra.mxu0 0.0
    %119 = vmatprep.mubr.f32.mxu0 0.0
    %v120 = vand.u32 %v51, 4294901760
    %v121 = vsub.f32 %v51, %v120
    %v122 = vand.u32 %v121, 4294901760
    %v123 = vsub.f32 %v121, %v122
    %v124 = vand.u32 %v123, 4294901760
    %125 = vmatmul.mubr.f32.gmra.mxu0 %v124
    %v126 = vpop.f32.mrf.mxu0
    %v127 = vadd.f32 %v45, %v126
    %v128 = vpop.f32.mrf.mxu0
    %129 = vdwg.mxu0
    %130 = vmatprep.subr.mxu0 0.0
    %131 = vmatpush1.msra.mxu0 0.0
    %132 = vmatprep.subr.mxu0 0.0
    %133 = vmatpush1.msra.mxu0 0.0
    %134 = vmatprep.subr.mxu0 0.0
    %135 = vmatpush1.msra.mxu0 0.0
    %136 = vmatprep.subr.mxu0 0.0
    %137 = vmatpush1.msra.mxu0 0.0
    %138 = vmatprep.subr.mxu0 0.0
    %139 = vmatpush1.msra.mxu0 0.0
    %140 = vmatprep.subr.mxu0 0.0
    %141 = vmatpush1.msra.mxu0 0.0
    %142 = vmatprep.subr.mxu0 0.0
    %143 = vmatpush1.msra.mxu0 0.0
    %144 = vmatprep.subr.mxu0 0.0
    %145 = vmatpush1.msra.mxu0 0.0
    %146 = vmatprep.subr.mxu0 0.0
    %147 = vmatpush1.msra.mxu0 0.0
    %148 = vmatprep.subr.mxu0 0.0
    %149 = vmatpush1.msra.mxu0 0.0
    %150 = vmatprep.subr.mxu0 0.0
    %151 = vmatpush1.msra.mxu0 0.0
    %152 = vmatprep.subr.mxu0 0.0
    %153 = vmatpush1.msra.mxu0 0.0
    %154 = vmatprep.subr.mxu0 0.0
    %155 = vmatpush1.msra.mxu0 0.0
    %156 = vmatprep.subr.mxu0 0.0
    %157 = vmatpush1.msra.mxu0 0.0
    %158 = vmatprep.subr.mxu0 0.0
    %v159 = vand.u32 %v24, 4294901760
    %v160 = vsub.f32 %v24, %v159
    %v161 = vand.u32 %v160, 4294901760
    %v162 = vsub.f32 %v160, %v161
    %v163 = vand.u32 %v162, 4294901760
    %164 = vmatpush1.msra.mxu0 %v163
    %165 = vmatprep.subr.mxu0 0.0
    %v166 = vand.u32 %v23, 4294901760
    %v167 = vsub.f32 %v23, %v166
    %v168 = vand.u32 %v167, 4294901760
    %v169 = vsub.f32 %v167, %v168
    %v170 = vand.u32 %v169, 4294901760
    %171 = vmatpush1.msra.mxu0 %v170
    %172 = vmatprep.subr.mxu0 0.0
    %173 = vmatpush2.msra.mxu0 0.0
    %174 = vmatprep.subr.mxu0 0.0
    %175 = vmatpush2.msra.mxu0 0.0
    %176 = vmatprep.subr.mxu0 0.0
    %177 = vmatpush2.msra.mxu0 0.0
    %178 = vmatprep.subr.mxu0 0.0
    %179 = vmatpush2.msra.mxu0 0.0
    %180 = vmatprep.subr.mxu0 0.0
    %181 = vmatpush2.msra.mxu0 0.0
    %182 = vmatprep.subr.mxu0 0.0
    %183 = vmatpush2.msra.mxu0 0.0
    %184 = vmatprep.subr.mxu0 0.0
    %185 = vmatpush2.msra.mxu0 0.0
    %186 = vmatprep.subr.mxu0 0.0
    %187 = vmatpush2.msra.mxu0 0.0
    %188 = vmatprep.subr.mxu0 0.0
    %189 = vmatpush2.msra.mxu0 0.0
    %190 = vmatprep.subr.mxu0 0.0
    %191 = vmatpush2.msra.mxu0 0.0
    %192 = vmatprep.subr.mxu0 0.0
    %193 = vmatpush2.msra.mxu0 0.0
    %194 = vmatprep.subr.mxu0 0.0
    %195 = vmatpush2.msra.mxu0 0.0
    %196 = vmatprep.subr.mxu0 0.0
    %197 = vmatpush2.msra.mxu0 0.0
    %198 = vmatprep.subr.mxu0 0.0
    %199 = vmatpush2.msra.mxu0 0.0
    %200 = vmatprep.subr.mxu0 0.0
    %201 = vmatpush2.msra.mxu0 0.0
    %202 = vmatprep.subr.mxu0 0.0
    %203 = vmatpush2.msra.mxu0 0.0
    %204 = vmatprep.mubr.f32.mxu0 0.0
    %v205 = vand.u32 %v51, 4294901760
    %206 = vmatmul.mubr.f32.gmra.mxu0 %v205
    %v207 = vpop.f32.mrf.mxu0
    %v208 = vadd.f32 %v127, %v207
    %v209 = vpop.f32.mrf.mxu0
    %210 = vdwg.mxu0
    %211 = vmatprep.subr.mxu0 0.0
    %212 = vmatpush1.msra.mxu0 0.0
    %213 = vmatprep.subr.mxu0 0.0
    %214 = vmatpush1.msra.mxu0 0.0
    %215 = vmatprep.subr.mxu0 0.0
    %216 = vmatpush1.msra.mxu0 0.0
    %217 = vmatprep.subr.mxu0 0.0
    %218 = vmatpush1.msra.mxu0 0.0
    %219 = vmatprep.subr.mxu0 0.0
    %220 = vmatpush1.msra.mxu0 0.0
    %221 = vmatprep.subr.mxu0 0.0
    %222 = vmatpush1.msra.mxu0 0.0
    %223 = vmatprep.subr.mxu0 0.0
    %224 = vmatpush1.msra.mxu0 0.0
    %225 = vmatprep.subr.mxu0 0.0
    %226 = vmatpush1.msra.mxu0 0.0
    %227 = vmatprep.subr.mxu0 0.0
    %228 = vmatpush1.msra.mxu0 0.0
    %229 = vmatprep.subr.mxu0 0.0
    %230 = vmatpush1.msra.mxu0 0.0
    %231 = vmatprep.subr.mxu0 0.0
    %232 = vmatpush1.msra.mxu0 0.0
    %233 = vmatprep.subr.mxu0 0.0
    %234 = vmatpush1.msra.mxu0 0.0
    %235 = vmatprep.subr.mxu0 0.0
    %236 = vmatpush1.msra.mxu0 0.0
    %237 = vmatprep.subr.mxu0 0.0
    %238 = vmatpush1.msra.mxu0 0.0
    %239 = vmatprep.subr.mxu0 0.0
    %v240 = vand.u32 %v24, 4294901760
    %v241 = vsub.f32 %v24, %v240
    %242 = vmatpush1.msra.mxu0 %v241
    %243 = vmatprep.subr.mxu0 0.0
    %v244 = vand.u32 %v23, 4294901760
    %v245 = vsub.f32 %v23, %v244
    %246 = vmatpush1.msra.mxu0 %v245
    %247 = vmatprep.subr.mxu0 0.0
    %248 = vmatpush2.msra.mxu0 0.0
    %249 = vmatprep.subr.mxu0 0.0
    %250 = vmatpush2.msra.mxu0 0.0
    %251 = vmatprep.subr.mxu0 0.0
    %252 = vmatpush2.msra.mxu0 0.0
    %253 = vmatprep.subr.mxu0 0.0
    %254 = vmatpush2.msra.mxu0 0.0
    %255 = vmatprep.subr.mxu0 0.0
    %256 = vmatpush2.msra.mxu0 0.0
    %257 = vmatprep.subr.mxu0 0.0
    %258 = vmatpush2.msra.mxu0 0.0
    %259 = vmatprep.subr.mxu0 0.0
    %260 = vmatpush2.msra.mxu0 0.0
    %261 = vmatprep.subr.mxu0 0.0
    %262 = vmatpush2.msra.mxu0 0.0
    %263 = vmatprep.subr.mxu0 0.0
    %264 = vmatpush2.msra.mxu0 0.0
    %265 = vmatprep.subr.mxu0 0.0
    %266 = vmatpush2.msra.mxu0 0.0
    %267 = vmatprep.subr.mxu0 0.0
    %268 = vmatpush2.msra.mxu0 0.0
    %269 = vmatprep.subr.mxu0 0.0
    %270 = vmatpush2.msra.mxu0 0.0
    %271 = vmatprep.subr.mxu0 0.0
    %272 = vmatpush2.msra.mxu0 0.0
    %273 = vmatprep.subr.mxu0 0.0
    %274 = vmatpush2.msra.mxu0 0.0
    %275 = vmatprep.subr.mxu0 0.0
    %276 = vmatpush2.msra.mxu0 0.0
    %277 = vmatprep.subr.mxu0 0.0
    %278 = vmatpush2.msra.mxu0 0.0
    %279 = vmatprep.mubr.f32.mxu0 0.0
    %v280 = vand.u32 %v51, 4294901760
    %v281 = vsub.f32 %v51, %v280
    %282 = vmatmul.mubr.f32.gmra.mxu0 %v281
    %v283 = vpop.f32.mrf.mxu0
    %v284 = vadd.f32 %v208, %v283
    %v285 = vpop.f32.mrf.mxu0
    %286 = vdwg.mxu0
    %287 = vmatprep.subr.mxu0 0.0
    %288 = vmatpush1.msra.mxu0 0.0
    %289 = vmatprep.subr.mxu0 0.0
    %290 = vmatpush1.msra.mxu0 0.0
    %291 = vmatprep.subr.mxu0 0.0
    %292 = vmatpush1.msra.mxu0 0.0
    %293 = vmatprep.subr.mxu0 0.0
    %294 = vmatpush1.msra.mxu0 0.0
    %295 = vmatprep.subr.mxu0 0.0
    %296 = vmatpush1.msra.mxu0 0.0
    %297 = vmatprep.subr.mxu0 0.0
    %298 = vmatpush1.msra.mxu0 0.0
    %299 = vmatprep.subr.mxu0 0.0
    %300 = vmatpush1.msra.mxu0 0.0
    %301 = vmatprep.subr.mxu0 0.0
    %302 = vmatpush1.msra.mxu0 0.0
    %303 = vmatprep.subr.mxu0 0.0
    %304 = vmatpush1.msra.mxu0 0.0
    %305 = vmatprep.subr.mxu0 0.0
    %306 = vmatpush1.msra.mxu0 0.0
    %307 = vmatprep.subr.mxu0 0.0
    %308 = vmatpush1.msra.mxu0 0.0
    %309 = vmatprep.subr.mxu0 0.0
    %310 = vmatpush1.msra.mxu0 0.0
    %311 = vmatprep.subr.mxu0 0.0
    %312 = vmatpush1.msra.mxu0 0.0
    %313 = vmatprep.subr.mxu0 0.0
    %314 = vmatpush1.msra.mxu0 0.0
    %315 = vmatprep.subr.mxu0 0.0
    %v316 = vand.u32 %v24, 4294901760
    %317 = vmatpush1.msra.mxu0 %v316
    %318 = vmatprep.subr.mxu0 0.0
    %v319 = vand.u32 %v23, 4294901760
    %320 = vmatpush1.msra.mxu0 %v319
    %321 = vmatprep.subr.mxu0 0.0
    %322 = vmatpush2.msra.mxu0 0.0
    %323 = vmatprep.subr.mxu0 0.0
    %324 = vmatpush2.msra.mxu0 0.0
    %325 = vmatprep.subr.mxu0 0.0
    %326 = vmatpush2.msra.mxu0 0.0
    %327 = vmatprep.subr.mxu0 0.0
    %328 = vmatpush2.msra.mxu0 0.0
    %329 = vmatprep.subr.mxu0 0.0
    %330 = vmatpush2.msra.mxu0 0.0
    %331 = vmatprep.subr.mxu0 0.0
    %332 = vmatpush2.msra.mxu0 0.0
    %333 = vmatprep.subr.mxu0 0.0
    %334 = vmatpush2.msra.mxu0 0.0
    %335 = vmatprep.subr.mxu0 0.0
    %336 = vmatpush2.msra.mxu0 0.0
    %337 = vmatprep.subr.mxu0 0.0
    %338 = vmatpush2.msra.mxu0 0.0
    %339 = vmatprep.subr.mxu0 0.0
    %340 = vmatpush2.msra.mxu0 0.0
    %341 = vmatprep.subr.mxu0 0.0
    %342 = vmatpush2.msra.mxu0 0.0
    %343 = vmatprep.subr.mxu0 0.0
    %344 = vmatpush2.msra.mxu0 0.0
    %345 = vmatprep.subr.mxu0 0.0
    %346 = vmatpush2.msra.mxu0 0.0
    %347 = vmatprep.subr.mxu0 0.0
    %348 = vmatpush2.msra.mxu0 0.0
    %349 = vmatprep.subr.mxu0 0.0
    %350 = vmatpush2.msra.mxu0 0.0
    %351 = vmatprep.subr.mxu0 0.0
    %352 = vmatpush2.msra.mxu0 0.0
    %353 = vmatprep.mubr.f32.mxu0 0.0
    %v354 = vand.u32 %v51, 4294901760
    %v355 = vsub.f32 %v51, %v354
    %v356 = vand.u32 %v355, 4294901760
    %357 = vmatmul.mubr.f32.gmra.mxu0 %v356
    %v358 = vpop.f32.mrf.mxu0
    %v359 = vadd.f32 %v284, %v358
    %v360 = vpop.f32.mrf.mxu0
    %361 = vdwg.mxu0
    %362 = vmatprep.subr.mxu0 0.0
    %363 = vmatpush1.msra.mxu0 0.0
    %364 = vmatprep.subr.mxu0 0.0
    %365 = vmatpush1.msra.mxu0 0.0
    %366 = vmatprep.subr.mxu0 0.0
    %367 = vmatpush1.msra.mxu0 0.0
    %368 = vmatprep.subr.mxu0 0.0
    %369 = vmatpush1.msra.mxu0 0.0
    %370 = vmatprep.subr.mxu0 0.0
    %371 = vmatpush1.msra.mxu0 0.0
    %372 = vmatprep.subr.mxu0 0.0
    %373 = vmatpush1.msra.mxu0 0.0
    %374 = vmatprep.subr.mxu0 0.0
    %375 = vmatpush1.msra.mxu0 0.0
    %376 = vmatprep.subr.mxu0 0.0
    %377 = vmatpush1.msra.mxu0 0.0
    %378 = vmatprep.subr.mxu0 0.0
    %379 = vmatpush1.msra.mxu0 0.0
    %380 = vmatprep.subr.mxu0 0.0
    %381 = vmatpush1.msra.mxu0 0.0
    %382 = vmatprep.subr.mxu0 0.0
    %383 = vmatpush1.msra.mxu0 0.0
    %384 = vmatprep.subr.mxu0 0.0
    %385 = vmatpush1.msra.mxu0 0.0
    %386 = vmatprep.subr.mxu0 0.0
    %387 = vmatpush1.msra.mxu0 0.0
    %388 = vmatprep.subr.mxu0 0.0
    %389 = vmatpush1.msra.mxu0 0.0
    %390 = vmatprep.subr.mxu0 0.0
    %v391 = vand.u32 %v24, 4294901760
    %v392 = vsub.f32 %v24, %v391
    %v393 = vand.u32 %v392, 4294901760
    %394 = vmatpush1.msra.mxu0 %v393
    %395 = vmatprep.subr.mxu0 0.0
    %v396 = vand.u32 %v23, 4294901760
    %v397 = vsub.f32 %v23, %v396
    %v398 = vand.u32 %v397, 4294901760
    %399 = vmatpush1.msra.mxu0 %v398
    %400 = vmatprep.subr.mxu0 0.0
    %401 = vmatpush2.msra.mxu0 0.0
    %402 = vmatprep.subr.mxu0 0.0
    %403 = vmatpush2.msra.mxu0 0.0
    %404 = vmatprep.subr.mxu0 0.0
    %405 = vmatpush2.msra.mxu0 0.0
    %406 = vmatprep.subr.mxu0 0.0
    %407 = vmatpush2.msra.mxu0 0.0
    %408 = vmatprep.subr.mxu0 0.0
    %409 = vmatpush2.msra.mxu0 0.0
    %410 = vmatprep.subr.mxu0 0.0
    %411 = vmatpush2.msra.mxu0 0.0
    %412 = vmatprep.subr.mxu0 0.0
    %413 = vmatpush2.msra.mxu0 0.0
    %414 = vmatprep.subr.mxu0 0.0
    %415 = vmatpush2.msra.mxu0 0.0
    %416 = vmatprep.subr.mxu0 0.0
    %417 = vmatpush2.msra.mxu0 0.0
    %418 = vmatprep.subr.mxu0 0.0
    %419 = vmatpush2.msra.mxu0 0.0
    %420 = vmatprep.subr.mxu0 0.0
    %421 = vmatpush2.msra.mxu0 0.0
    %422 = vmatprep.subr.mxu0 0.0
    %423 = vmatpush2.msra.mxu0 0.0
    %424 = vmatprep.subr.mxu0 0.0
    %425 = vmatpush2.msra.mxu0 0.0
    %426 = vmatprep.subr.mxu0 0.0
    %427 = vmatpush2.msra.mxu0 0.0
    %428 = vmatprep.subr.mxu0 0.0
    %429 = vmatpush2.msra.mxu0 0.0
    %430 = vmatprep.subr.mxu0 0.0
    %431 = vmatpush2.msra.mxu0 0.0
    %432 = vmatprep.mubr.f32.mxu0 0.0
    %v433 = vand.u32 %v51, 4294901760
    %434 = vmatmul.mubr.f32.gmra.mxu0 %v433
    %v435 = vpop.f32.mrf.mxu0
    %v436 = vadd.f32 %v359, %v435
    %v437 = vpop.f32.mrf.mxu0
    %438 = vdwg.mxu0
    %439 = vmatprep.subr.mxu0 0.0
    %440 = vmatpush1.msra.mxu0 0.0
    %441 = vmatprep.subr.mxu0 0.0
    %442 = vmatpush1.msra.mxu0 0.0
    %443 = vmatprep.subr.mxu0 0.0
    %444 = vmatpush1.msra.mxu0 0.0
    %445 = vmatprep.subr.mxu0 0.0
    %446 = vmatpush1.msra.mxu0 0.0
    %447 = vmatprep.subr.mxu0 0.0
    %448 = vmatpush1.msra.mxu0 0.0
    %449 = vmatprep.subr.mxu0 0.0
    %450 = vmatpush1.msra.mxu0 0.0
    %451 = vmatprep.subr.mxu0 0.0
    %452 = vmatpush1.msra.mxu0 0.0
    %453 = vmatprep.subr.mxu0 0.0
    %454 = vmatpush1.msra.mxu0 0.0
    %455 = vmatprep.subr.mxu0 0.0
    %456 = vmatpush1.msra.mxu0 0.0
    %457 = vmatprep.subr.mxu0 0.0
    %458 = vmatpush1.msra.mxu0 0.0
    %459 = vmatprep.subr.mxu0 0.0
    %460 = vmatpush1.msra.mxu0 0.0
    %461 = vmatprep.subr.mxu0 0.0
    %462 = vmatpush1.msra.mxu0 0.0
    %463 = vmatprep.subr.mxu0 0.0
    %464 = vmatpush1.msra.mxu0 0.0
    %465 = vmatprep.subr.mxu0 0.0
    %466 = vmatpush1.msra.mxu0 0.0
    %467 = vmatprep.subr.mxu0 0.0
    %v468 = vand.u32 %v24, 4294901760
    %469 = vmatpush1.msra.mxu0 %v468
    %470 = vmatprep.subr.mxu0 0.0
    %v471 = vand.u32 %v23, 4294901760
    %472 = vmatpush1.msra.mxu0 %v471
    %473 = vmatprep.subr.mxu0 0.0
    %474 = vmatpush2.msra.mxu0 0.0
    %475 = vmatprep.subr.mxu0 0.0
    %476 = vmatpush2.msra.mxu0 0.0
    %477 = vmatprep.subr.mxu0 0.0
    %478 = vmatpush2.msra.mxu0 0.0
    %479 = vmatprep.subr.mxu0 0.0
    %480 = vmatpush2.msra.mxu0 0.0
    %481 = vmatprep.subr.mxu0 0.0
    %482 = vmatpush2.msra.mxu0 0.0
    %483 = vmatprep.subr.mxu0 0.0
    %484 = vmatpush2.msra.mxu0 0.0
    %485 = vmatprep.subr.mxu0 0.0
    %486 = vmatpush2.msra.mxu0 0.0
    %487 = vmatprep.subr.mxu0 0.0
    %488 = vmatpush2.msra.mxu0 0.0
    %489 = vmatprep.subr.mxu0 0.0
    %490 = vmatpush2.msra.mxu0 0.0
    %491 = vmatprep.subr.mxu0 0.0
    %492 = vmatpush2.msra.mxu0 0.0
    %493 = vmatprep.subr.mxu0 0.0
    %494 = vmatpush2.msra.mxu0 0.0
    %495 = vmatprep.subr.mxu0 0.0
    %496 = vmatpush2.msra.mxu0 0.0
    %497 = vmatprep.subr.mxu0 0.0
    %498 = vmatpush2.msra.mxu0 0.0
    %499 = vmatprep.subr.mxu0 0.0
    %500 = vmatpush2.msra.mxu0 0.0
    %501 = vmatprep.subr.mxu0 0.0
    %502 = vmatpush2.msra.mxu0 0.0
    %503 = vmatprep.subr.mxu0 0.0
    %504 = vmatpush2.msra.mxu0 0.0
    %505 = vmatprep.mubr.f32.mxu0 0.0
    %v506 = vand.u32 %v51, 4294901760
    %507 = vmatmul.mubr.f32.gmra.mxu0 %v506
    %v508 = vpop.f32.mrf.mxu0
    %v509 = vadd.f32 %v436, %v508
    %v510 = vpop.f32.mrf.mxu0
    %511 = vdwg.mxu0
    %v512 = vadd.f32 %v40, %v509
    %v513 = vxor.u32 %v512, 2147483648
    %v514 = vmul.f32 %v513, 1.442695
    %v515 = vpow.pop %v514
    %v516 = vadd.f32 %v515, 1.0
    %v517 = vrcp.pop %v516
    %v518 = vmul.f32 1.0, %v517
    %520 = vrot.lane.b32.xlu0 %v509, 96
    %v521 = vpop.permute.xlu0 %520
    %v523 = vmul.f32 %v518, %v521
    %525 = vrot.lane.b32.xlu0 %v523, 32
    %v526 = vpop.permute.xlu0 %525
    %v528 = vadd.f32 %v40, %v526
    %v529 = vtanh.pop %v528
    %v530 = vsub.f32 1.0, %v518
    %532 = vrot.lane.b32.xlu0 %v529, 112
    %v533 = vpop.permute.xlu0 %532
    %v535 = vmul.f32 %v530, %v533
    %v536 = vmul.f32 %v518, %v35
    %v537 = vadd.f32 %v535, %v536
    %s538 = smul.u32 %s37, 8
    %s539 = scalar_lea.vmem %s1, %s538
    %v540 = vld [vmem:[%s539] sm:$0xff]
    %v542 = vlaneseq
    %v543 = vshrl.u32 %v542, 7
    %v544 = vsub.s32 0, %v543
    %v545 = vrot.slane %v28, %v544
    %548 = vrot.lane.b32.xlu0 %v36, 112
    %v549 = vpop.permute.xlu0 %548
    %v550 = vsel %vm50, %v549, 0
    %552 = vmatprep.subr.mxu0 0.0
    %553 = vmatpush1.msra.mxu0 0.0
    %554 = vmatprep.subr.mxu0 0.0
    %555 = vmatpush1.msra.mxu0 0.0
    %556 = vmatprep.subr.mxu0 0.0
    %557 = vmatpush1.msra.mxu0 0.0
    %558 = vmatprep.subr.mxu0 0.0
    %559 = vmatpush1.msra.mxu0 0.0
    %560 = vmatprep.subr.mxu0 0.0
    %561 = vmatpush1.msra.mxu0 0.0
    %562 = vmatprep.subr.mxu0 0.0
    %563 = vmatpush1.msra.mxu0 0.0
    %564 = vmatprep.subr.mxu0 0.0
    %565 = vmatpush1.msra.mxu0 0.0
    %566 = vmatprep.subr.mxu0 0.0
    %567 = vmatpush1.msra.mxu0 0.0
    %568 = vmatprep.subr.mxu0 0.0
    %569 = vmatpush1.msra.mxu0 0.0
    %570 = vmatprep.subr.mxu0 0.0
    %571 = vmatpush1.msra.mxu0 0.0
    %572 = vmatprep.subr.mxu0 0.0
    %573 = vmatpush1.msra.mxu0 0.0
    %574 = vmatprep.subr.mxu0 0.0
    %575 = vmatpush1.msra.mxu0 0.0
    %576 = vmatprep.subr.mxu0 0.0
    %577 = vmatpush1.msra.mxu0 0.0
    %578 = vmatprep.subr.mxu0 0.0
    %579 = vmatpush1.msra.mxu0 0.0
    %580 = vmatprep.subr.mxu0 0.0
    %v581 = vand.u32 %v26, 4294901760
    %582 = vmatpush1.msra.mxu0 %v581
    %583 = vmatprep.subr.mxu0 0.0
    %v584 = vand.u32 %v25, 4294901760
    %585 = vmatpush1.msra.mxu0 %v584
    %586 = vmatprep.subr.mxu0 0.0
    %587 = vmatpush2.msra.mxu0 0.0
    %588 = vmatprep.subr.mxu0 0.0
    %589 = vmatpush2.msra.mxu0 0.0
    %590 = vmatprep.subr.mxu0 0.0
    %591 = vmatpush2.msra.mxu0 0.0
    %592 = vmatprep.subr.mxu0 0.0
    %593 = vmatpush2.msra.mxu0 0.0
    %594 = vmatprep.subr.mxu0 0.0
    %595 = vmatpush2.msra.mxu0 0.0
    %596 = vmatprep.subr.mxu0 0.0
    %597 = vmatpush2.msra.mxu0 0.0
    %598 = vmatprep.subr.mxu0 0.0
    %599 = vmatpush2.msra.mxu0 0.0
    %600 = vmatprep.subr.mxu0 0.0
    %601 = vmatpush2.msra.mxu0 0.0
    %602 = vmatprep.subr.mxu0 0.0
    %603 = vmatpush2.msra.mxu0 0.0
    %604 = vmatprep.subr.mxu0 0.0
    %605 = vmatpush2.msra.mxu0 0.0
    %606 = vmatprep.subr.mxu0 0.0
    %607 = vmatpush2.msra.mxu0 0.0
    %608 = vmatprep.subr.mxu0 0.0
    %609 = vmatpush2.msra.mxu0 0.0
    %610 = vmatprep.subr.mxu0 0.0
    %611 = vmatpush2.msra.mxu0 0.0
    %612 = vmatprep.subr.mxu0 0.0
    %613 = vmatpush2.msra.mxu0 0.0
    %614 = vmatprep.subr.mxu0 0.0
    %615 = vmatpush2.msra.mxu0 0.0
    %616 = vmatprep.subr.mxu0 0.0
    %617 = vmatpush2.msra.mxu0 0.0
    %618 = vmatprep.mubr.f32.mxu0 0.0
    %v619 = vand.u32 %v550, 4294901760
    %v620 = vsub.f32 %v550, %v619
    %v621 = vand.u32 %v620, 4294901760
    %v622 = vsub.f32 %v620, %v621
    %v623 = vand.u32 %v622, 4294901760
    %624 = vmatmul.mubr.f32.gmra.mxu0 %v623
    %v625 = vpop.f32.mrf.mxu0
    %v626 = vadd.f32 %v545, %v625
    %v627 = vpop.f32.mrf.mxu0
    %628 = vdwg.mxu0
    %629 = vmatprep.subr.mxu0 0.0
    %630 = vmatpush1.msra.mxu0 0.0
    %631 = vmatprep.subr.mxu0 0.0
    %632 = vmatpush1.msra.mxu0 0.0
    %633 = vmatprep.subr.mxu0 0.0
    %634 = vmatpush1.msra.mxu0 0.0
    %635 = vmatprep.subr.mxu0 0.0
    %636 = vmatpush1.msra.mxu0 0.0
    %637 = vmatprep.subr.mxu0 0.0
    %638 = vmatpush1.msra.mxu0 0.0
    %639 = vmatprep.subr.mxu0 0.0
    %640 = vmatpush1.msra.mxu0 0.0
    %641 = vmatprep.subr.mxu0 0.0
    %642 = vmatpush1.msra.mxu0 0.0
    %643 = vmatprep.subr.mxu0 0.0
    %644 = vmatpush1.msra.mxu0 0.0
    %645 = vmatprep.subr.mxu0 0.0
    %646 = vmatpush1.msra.mxu0 0.0
    %647 = vmatprep.subr.mxu0 0.0
    %648 = vmatpush1.msra.mxu0 0.0
    %649 = vmatprep.subr.mxu0 0.0
    %650 = vmatpush1.msra.mxu0 0.0
    %651 = vmatprep.subr.mxu0 0.0
    %652 = vmatpush1.msra.mxu0 0.0
    %653 = vmatprep.subr.mxu0 0.0
    %654 = vmatpush1.msra.mxu0 0.0
    %655 = vmatprep.subr.mxu0 0.0
    %656 = vmatpush1.msra.mxu0 0.0
    %657 = vmatprep.subr.mxu0 0.0
    %v658 = vand.u32 %v26, 4294901760
    %v659 = vsub.f32 %v26, %v658
    %v660 = vand.u32 %v659, 4294901760
    %v661 = vsub.f32 %v659, %v660
    %v662 = vand.u32 %v661, 4294901760
    %663 = vmatpush1.msra.mxu0 %v662
    %664 = vmatprep.subr.mxu0 0.0
    %v665 = vand.u32 %v25, 4294901760
    %v666 = vsub.f32 %v25, %v665
    %v667 = vand.u32 %v666, 4294901760
    %v668 = vsub.f32 %v666, %v667
    %v669 = vand.u32 %v668, 4294901760
    %670 = vmatpush1.msra.mxu0 %v669
    %671 = vmatprep.subr.mxu0 0.0
    %672 = vmatpush2.msra.mxu0 0.0
    %673 = vmatprep.subr.mxu0 0.0
    %674 = vmatpush2.msra.mxu0 0.0
    %675 = vmatprep.subr.mxu0 0.0
    %676 = vmatpush2.msra.mxu0 0.0
    %677 = vmatprep.subr.mxu0 0.0
    %678 = vmatpush2.msra.mxu0 0.0
    %679 = vmatprep.subr.mxu0 0.0
    %680 = vmatpush2.msra.mxu0 0.0
    %681 = vmatprep.subr.mxu0 0.0
    %682 = vmatpush2.msra.mxu0 0.0
    %683 = vmatprep.subr.mxu0 0.0
    %684 = vmatpush2.msra.mxu0 0.0
    %685 = vmatprep.subr.mxu0 0.0
    %686 = vmatpush2.msra.mxu0 0.0
    %687 = vmatprep.subr.mxu0 0.0
    %688 = vmatpush2.msra.mxu0 0.0
    %689 = vmatprep.subr.mxu0 0.0
    %690 = vmatpush2.msra.mxu0 0.0
    %691 = vmatprep.subr.mxu0 0.0
    %692 = vmatpush2.msra.mxu0 0.0
    %693 = vmatprep.subr.mxu0 0.0
    %694 = vmatpush2.msra.mxu0 0.0
    %695 = vmatprep.subr.mxu0 0.0
    %696 = vmatpush2.msra.mxu0 0.0
    %697 = vmatprep.subr.mxu0 0.0
    %698 = vmatpush2.msra.mxu0 0.0
    %699 = vmatprep.subr.mxu0 0.0
    %700 = vmatpush2.msra.mxu0 0.0
    %701 = vmatprep.subr.mxu0 0.0
    %702 = vmatpush2.msra.mxu0 0.0
    %703 = vmatprep.mubr.f32.mxu0 0.0
    %v704 = vand.u32 %v550, 4294901760
    %705 = vmatmul.mubr.f32.gmra.mxu0 %v704
    %v706 = vpop.f32.mrf.mxu0
    %v707 = vadd.f32 %v626, %v706
    %v708 = vpop.f32.mrf.mxu0
    %709 = vdwg.mxu0
    %710 = vmatprep.subr.mxu0 0.0
    %711 = vmatpush1.msra.mxu0 0.0
    %712 = vmatprep.subr.mxu0 0.0
    %713 = vmatpush1.msra.mxu0 0.0
    %714 = vmatprep.subr.mxu0 0.0
    %715 = vmatpush1.msra.mxu0 0.0
    %716 = vmatprep.subr.mxu0 0.0
    %717 = vmatpush1.msra.mxu0 0.0
    %718 = vmatprep.subr.mxu0 0.0
    %719 = vmatpush1.msra.mxu0 0.0
    %720 = vmatprep.subr.mxu0 0.0
    %721 = vmatpush1.msra.mxu0 0.0
    %722 = vmatprep.subr.mxu0 0.0
    %723 = vmatpush1.msra.mxu0 0.0
    %724 = vmatprep.subr.mxu0 0.0
    %725 = vmatpush1.msra.mxu0 0.0
    %726 = vmatprep.subr.mxu0 0.0
    %727 = vmatpush1.msra.mxu0 0.0
    %728 = vmatprep.subr.mxu0 0.0
    %729 = vmatpush1.msra.mxu0 0.0
    %730 = vmatprep.subr.mxu0 0.0
    %731 = vmatpush1.msra.mxu0 0.0
    %732 = vmatprep.subr.mxu0 0.0
    %733 = vmatpush1.msra.mxu0 0.0
    %734 = vmatprep.subr.mxu0 0.0
    %735 = vmatpush1.msra.mxu0 0.0
    %736 = vmatprep.subr.mxu0 0.0
    %737 = vmatpush1.msra.mxu0 0.0
    %738 = vmatprep.subr.mxu0 0.0
    %v739 = vand.u32 %v26, 4294901760
    %v740 = vsub.f32 %v26, %v739
    %741 = vmatpush1.msra.mxu0 %v740
    %742 = vmatprep.subr.mxu0 0.0
    %v743 = vand.u32 %v25, 4294901760
    %v744 = vsub.f32 %v25, %v743
    %745 = vmatpush1.msra.mxu0 %v744
    %746 = vmatprep.subr.mxu0 0.0
    %747 = vmatpush2.msra.mxu0 0.0
    %748 = vmatprep.subr.mxu0 0.0
    %749 = vmatpush2.msra.mxu0 0.0
    %750 = vmatprep.subr.mxu0 0.0
    %751 = vmatpush2.msra.mxu0 0.0
    %752 = vmatprep.subr.mxu0 0.0
    %753 = vmatpush2.msra.mxu0 0.0
    %754 = vmatprep.subr.mxu0 0.0
    %755 = vmatpush2.msra.mxu0 0.0
    %756 = vmatprep.subr.mxu0 0.0
    %757 = vmatpush2.msra.mxu0 0.0
    %758 = vmatprep.subr.mxu0 0.0
    %759 = vmatpush2.msra.mxu0 0.0
    %760 = vmatprep.subr.mxu0 0.0
    %761 = vmatpush2.msra.mxu0 0.0
    %762 = vmatprep.subr.mxu0 0.0
    %763 = vmatpush2.msra.mxu0 0.0
    %764 = vmatprep.subr.mxu0 0.0
    %765 = vmatpush2.msra.mxu0 0.0
    %766 = vmatprep.subr.mxu0 0.0
    %767 = vmatpush2.msra.mxu0 0.0
    %768 = vmatprep.subr.mxu0 0.0
    %769 = vmatpush2.msra.mxu0 0.0
    %770 = vmatprep.subr.mxu0 0.0
    %771 = vmatpush2.msra.mxu0 0.0
    %772 = vmatprep.subr.mxu0 0.0
    %773 = vmatpush2.msra.mxu0 0.0
    %774 = vmatprep.subr.mxu0 0.0
    %775 = vmatpush2.msra.mxu0 0.0
    %776 = vmatprep.subr.mxu0 0.0
    %777 = vmatpush2.msra.mxu0 0.0
    %778 = vmatprep.mubr.f32.mxu0 0.0
    %v779 = vand.u32 %v550, 4294901760
    %v780 = vsub.f32 %v550, %v779
    %781 = vmatmul.mubr.f32.gmra.mxu0 %v780
    %v782 = vpop.f32.mrf.mxu0
    %v783 = vadd.f32 %v707, %v782
    %v784 = vpop.f32.mrf.mxu0
    %785 = vdwg.mxu0
    %786 = vmatprep.subr.mxu0 0.0
    %787 = vmatpush1.msra.mxu0 0.0
    %788 = vmatprep.subr.mxu0 0.0
    %789 = vmatpush1.msra.mxu0 0.0
    %790 = vmatprep.subr.mxu0 0.0
    %791 = vmatpush1.msra.mxu0 0.0
    %792 = vmatprep.subr.mxu0 0.0
    %793 = vmatpush1.msra.mxu0 0.0
    %794 = vmatprep.subr.mxu0 0.0
    %795 = vmatpush1.msra.mxu0 0.0
    %796 = vmatprep.subr.mxu0 0.0
    %797 = vmatpush1.msra.mxu0 0.0
    %798 = vmatprep.subr.mxu0 0.0
    %799 = vmatpush1.msra.mxu0 0.0
    %800 = vmatprep.subr.mxu0 0.0
    %801 = vmatpush1.msra.mxu0 0.0
    %802 = vmatprep.subr.mxu0 0.0
    %803 = vmatpush1.msra.mxu0 0.0
    %804 = vmatprep.subr.mxu0 0.0
    %805 = vmatpush1.msra.mxu0 0.0
    %806 = vmatprep.subr.mxu0 0.0
    %807 = vmatpush1.msra.mxu0 0.0
    %808 = vmatprep.subr.mxu0 0.0
    %809 = vmatpush1.msra.mxu0 0.0
    %810 = vmatprep.subr.mxu0 0.0
    %811 = vmatpush1.msra.mxu0 0.0
    %812 = vmatprep.subr.mxu0 0.0
    %813 = vmatpush1.msra.mxu0 0.0
    %814 = vmatprep.subr.mxu0 0.0
    %v815 = vand.u32 %v26, 4294901760
    %816 = vmatpush1.msra.mxu0 %v815
    %817 = vmatprep.subr.mxu0 0.0
    %v818 = vand.u32 %v25, 4294901760
    %819 = vmatpush1.msra.mxu0 %v818
    %820 = vmatprep.subr.mxu0 0.0
    %821 = vmatpush2.msra.mxu0 0.0
    %822 = vmatprep.subr.mxu0 0.0
    %823 = vmatpush2.msra.mxu0 0.0
    %824 = vmatprep.subr.mxu0 0.0
    %825 = vmatpush2.msra.mxu0 0.0
    %826 = vmatprep.subr.mxu0 0.0
    %827 = vmatpush2.msra.mxu0 0.0
    %828 = vmatprep.subr.mxu0 0.0
    %829 = vmatpush2.msra.mxu0 0.0
    %830 = vmatprep.subr.mxu0 0.0
    %831 = vmatpush2.msra.mxu0 0.0
    %832 = vmatprep.subr.mxu0 0.0
    %833 = vmatpush2.msra.mxu0 0.0
    %834 = vmatprep.subr.mxu0 0.0
    %835 = vmatpush2.msra.mxu0 0.0
    %836 = vmatprep.subr.mxu0 0.0
    %837 = vmatpush2.msra.mxu0 0.0
    %838 = vmatprep.subr.mxu0 0.0
    %839 = vmatpush2.msra.mxu0 0.0
    %840 = vmatprep.subr.mxu0 0.0
    %841 = vmatpush2.msra.mxu0 0.0
    %842 = vmatprep.subr.mxu0 0.0
    %843 = vmatpush2.msra.mxu0 0.0
    %844 = vmatprep.subr.mxu0 0.0
    %845 = vmatpush2.msra.mxu0 0.0
    %846 = vmatprep.subr.mxu0 0.0
    %847 = vmatpush2.msra.mxu0 0.0
    %848 = vmatprep.subr.mxu0 0.0
    %849 = vmatpush2.msra.mxu0 0.0
    %850 = vmatprep.subr.mxu0 0.0
    %851 = vmatpush2.msra.mxu0 0.0
    %852 = vmatprep.mubr.f32.mxu0 0.0
    %v853 = vand.u32 %v550, 4294901760
    %v854 = vsub.f32 %v550, %v853
    %v855 = vand.u32 %v854, 4294901760
    %856 = vmatmul.mubr.f32.gmra.mxu0 %v855
    %v857 = vpop.f32.mrf.mxu0
    %v858 = vadd.f32 %v783, %v857
    %v859 = vpop.f32.mrf.mxu0
    %860 = vdwg.mxu0
    %861 = vmatprep.subr.mxu0 0.0
    %862 = vmatpush1.msra.mxu0 0.0
    %863 = vmatprep.subr.mxu0 0.0
    %864 = vmatpush1.msra.mxu0 0.0
    %865 = vmatprep.subr.mxu0 0.0
    %866 = vmatpush1.msra.mxu0 0.0
    %867 = vmatprep.subr.mxu0 0.0
    %868 = vmatpush1.msra.mxu0 0.0
    %869 = vmatprep.subr.mxu0 0.0
    %870 = vmatpush1.msra.mxu0 0.0
    %871 = vmatprep.subr.mxu0 0.0
    %872 = vmatpush1.msra.mxu0 0.0
    %873 = vmatprep.subr.mxu0 0.0
    %874 = vmatpush1.msra.mxu0 0.0
    %875 = vmatprep.subr.mxu0 0.0
    %876 = vmatpush1.msra.mxu0 0.0
    %877 = vmatprep.subr.mxu0 0.0
    %878 = vmatpush1.msra.mxu0 0.0
    %879 = vmatprep.subr.mxu0 0.0
    %880 = vmatpush1.msra.mxu0 0.0
    %881 = vmatprep.subr.mxu0 0.0
    %882 = vmatpush1.msra.mxu0 0.0
    %883 = vmatprep.subr.mxu0 0.0
    %884 = vmatpush1.msra.mxu0 0.0
    %885 = vmatprep.subr.mxu0 0.0
    %886 = vmatpush1.msra.mxu0 0.0
    %887 = vmatprep.subr.mxu0 0.0
    %888 = vmatpush1.msra.mxu0 0.0
    %889 = vmatprep.subr.mxu0 0.0
    %v890 = vand.u32 %v26, 4294901760
    %v891 = vsub.f32 %v26, %v890
    %v892 = vand.u32 %v891, 4294901760
    %893 = vmatpush1.msra.mxu0 %v892
    %894 = vmatprep.subr.mxu0 0.0
    %v895 = vand.u32 %v25, 4294901760
    %v896 = vsub.f32 %v25, %v895
    %v897 = vand.u32 %v896, 4294901760
    %898 = vmatpush1.msra.mxu0 %v897
    %899 = vmatprep.subr.mxu0 0.0
    %900 = vmatpush2.msra.mxu0 0.0
    %901 = vmatprep.subr.mxu0 0.0
    %902 = vmatpush2.msra.mxu0 0.0
    %903 = vmatprep.subr.mxu0 0.0
    %904 = vmatpush2.msra.mxu0 0.0
    %905 = vmatprep.subr.mxu0 0.0
    %906 = vmatpush2.msra.mxu0 0.0
    %907 = vmatprep.subr.mxu0 0.0
    %908 = vmatpush2.msra.mxu0 0.0
    %909 = vmatprep.subr.mxu0 0.0
    %910 = vmatpush2.msra.mxu0 0.0
    %911 = vmatprep.subr.mxu0 0.0
    %912 = vmatpush2.msra.mxu0 0.0
    %913 = vmatprep.subr.mxu0 0.0
    %914 = vmatpush2.msra.mxu0 0.0
    %915 = vmatprep.subr.mxu0 0.0
    %916 = vmatpush2.msra.mxu0 0.0
    %917 = vmatprep.subr.mxu0 0.0
    %918 = vmatpush2.msra.mxu0 0.0
    %919 = vmatprep.subr.mxu0 0.0
    %920 = vmatpush2.msra.mxu0 0.0
    %921 = vmatprep.subr.mxu0 0.0
    %922 = vmatpush2.msra.mxu0 0.0
    %923 = vmatprep.subr.mxu0 0.0
    %924 = vmatpush2.msra.mxu0 0.0
    %925 = vmatprep.subr.mxu0 0.0
    %926 = vmatpush2.msra.mxu0 0.0
    %927 = vmatprep.subr.mxu0 0.0
    %928 = vmatpush2.msra.mxu0 0.0
    %929 = vmatprep.subr.mxu0 0.0
    %930 = vmatpush2.msra.mxu0 0.0
    %931 = vmatprep.mubr.f32.mxu0 0.0
    %v932 = vand.u32 %v550, 4294901760
    %933 = vmatmul.mubr.f32.gmra.mxu0 %v932
    %v934 = vpop.f32.mrf.mxu0
    %v935 = vadd.f32 %v858, %v934
    %v936 = vpop.f32.mrf.mxu0
    %937 = vdwg.mxu0
    %938 = vmatprep.subr.mxu0 0.0
    %939 = vmatpush1.msra.mxu0 0.0
    %940 = vmatprep.subr.mxu0 0.0
    %941 = vmatpush1.msra.mxu0 0.0
    %942 = vmatprep.subr.mxu0 0.0
    %943 = vmatpush1.msra.mxu0 0.0
    %944 = vmatprep.subr.mxu0 0.0
    %945 = vmatpush1.msra.mxu0 0.0
    %946 = vmatprep.subr.mxu0 0.0
    %947 = vmatpush1.msra.mxu0 0.0
    %948 = vmatprep.subr.mxu0 0.0
    %949 = vmatpush1.msra.mxu0 0.0
    %950 = vmatprep.subr.mxu0 0.0
    %951 = vmatpush1.msra.mxu0 0.0
    %952 = vmatprep.subr.mxu0 0.0
    %953 = vmatpush1.msra.mxu0 0.0
    %954 = vmatprep.subr.mxu0 0.0
    %955 = vmatpush1.msra.mxu0 0.0
    %956 = vmatprep.subr.mxu0 0.0
    %957 = vmatpush1.msra.mxu0 0.0
    %958 = vmatprep.subr.mxu0 0.0
    %959 = vmatpush1.msra.mxu0 0.0
    %960 = vmatprep.subr.mxu0 0.0
    %961 = vmatpush1.msra.mxu0 0.0
    %962 = vmatprep.subr.mxu0 0.0
    %963 = vmatpush1.msra.mxu0 0.0
    %964 = vmatprep.subr.mxu0 0.0
    %965 = vmatpush1.msra.mxu0 0.0
    %966 = vmatprep.subr.mxu0 0.0
    %v967 = vand.u32 %v26, 4294901760
    %968 = vmatpush1.msra.mxu0 %v967
    %969 = vmatprep.subr.mxu0 0.0
    %v970 = vand.u32 %v25, 4294901760
    %971 = vmatpush1.msra.mxu0 %v970
    %972 = vmatprep.subr.mxu0 0.0
    %973 = vmatpush2.msra.mxu0 0.0
    %974 = vmatprep.subr.mxu0 0.0
    %975 = vmatpush2.msra.mxu0 0.0
    %976 = vmatprep.subr.mxu0 0.0
    %977 = vmatpush2.msra.mxu0 0.0
    %978 = vmatprep.subr.mxu0 0.0
    %979 = vmatpush2.msra.mxu0 0.0
    %980 = vmatprep.subr.mxu0 0.0
    %981 = vmatpush2.msra.mxu0 0.0
    %982 = vmatprep.subr.mxu0 0.0
    %983 = vmatpush2.msra.mxu0 0.0
    %984 = vmatprep.subr.mxu0 0.0
    %985 = vmatpush2.msra.mxu0 0.0
    %986 = vmatprep.subr.mxu0 0.0
    %987 = vmatpush2.msra.mxu0 0.0
    %988 = vmatprep.subr.mxu0 0.0
    %989 = vmatpush2.msra.mxu0 0.0
    %990 = vmatprep.subr.mxu0 0.0
    %991 = vmatpush2.msra.mxu0 0.0
    %992 = vmatprep.subr.mxu0 0.0
    %993 = vmatpush2.msra.mxu0 0.0
    %994 = vmatprep.subr.mxu0 0.0
    %995 = vmatpush2.msra.mxu0 0.0
    %996 = vmatprep.subr.mxu0 0.0
    %997 = vmatpush2.msra.mxu0 0.0
    %998 = vmatprep.subr.mxu0 0.0
    %999 = vmatpush2.msra.mxu0 0.0
    %1000 = vmatprep.subr.mxu0 0.0
    %1001 = vmatpush2.msra.mxu0 0.0
    %1002 = vmatprep.subr.mxu0 0.0
    %1003 = vmatpush2.msra.mxu0 0.0
    %1004 = vmatprep.mubr.f32.mxu0 0.0
    %v1005 = vand.u32 %v550, 4294901760
    %1006 = vmatmul.mubr.f32.gmra.mxu0 %v1005
    %v1007 = vpop.f32.mrf.mxu0
    %v1008 = vadd.f32 %v935, %v1007
    %v1009 = vpop.f32.mrf.mxu0
    %1010 = vdwg.mxu0
    %v1011 = vadd.f32 %v540, %v1008
    %v1012 = vxor.u32 %v1011, 2147483648
    %v1013 = vmul.f32 %v1012, 1.442695
    %v1014 = vpow.pop %v1013
    %v1015 = vadd.f32 %v1014, 1.0
    %v1016 = vrcp.pop %v1015
    %v1017 = vmul.f32 1.0, %v1016
    %1019 = vrot.lane.b32.xlu0 %v1008, 96
    %v1020 = vpop.permute.xlu0 %1019
    %v1022 = vmul.f32 %v1017, %v1020
    %1024 = vrot.lane.b32.xlu0 %v1022, 32
    %v1025 = vpop.permute.xlu0 %1024
    %v1027 = vadd.f32 %v540, %v1025
    %v1028 = vtanh.pop %v1027
    %v1029 = vsub.f32 1.0, %v1017
    %1031 = vrot.lane.b32.xlu0 %v1028, 112
    %v1032 = vpop.permute.xlu0 %1031
    %v1034 = vmul.f32 %v1029, %v1032
    %v1035 = vmul.f32 %v1017, %v36
    %v1036 = vadd.f32 %v1034, %v1035
    %1038 = vrot.lane.b32.xlu0 %v537, 112
    %v1039 = vpop.permute.xlu0 %1038
    %s1041 = scalar_lea.vmem [#allocation2], %s38
    %1042 = vst.msk [vmem:[%s1041] sm:$0xff] %vm50, %v1039
    %1044 = vrot.lane.b32.xlu0 %v1036, 112
    %v1045 = vpop.permute.xlu0 %1044
    %s1047 = scalar_lea.vmem [#allocation3], %s538
    %1048 = vst.msk [vmem:[%s1047] sm:$0xff] %vm50, %v1045
  $region30: #{forward.7} parent=0 // loop_footer
    %s34 = sadd.s32 1, %s30
  $region31: #{forward.7} parent=0 // loop_footer_branch
    %29 = sbr.rel target = $region27
  $region32: #{forward.7} parent=0 // loop_exit
    _
  %v1049 = vld [vmem:[#allocation2] sm:$0xff]
  %v1050 = vld [vmem:[#allocation2 + $0x8] sm:$0xff]
  %v1051 = vld [vmem:[#allocation2 + $0x10] sm:$0xff]
  %v1052 = vld [vmem:[#allocation2 + $0x18] sm:$0xff]
  %v1053 = vld [vmem:[#allocation2 + $0x20] sm:$0xff]
  %v1054 = vld [vmem:[#allocation2 + $0x28] sm:$0xff]
  %v1055 = vld [vmem:[#allocation2 + $0x30] sm:$0xff]
  %v1056 = vld [vmem:[#allocation2 + $0x38] sm:$0xff]
  %vm1057 = vcmask 130048
  %1058 = vst.msk [vmem:[%s6] sm:$0xff] %vm1057, %v1049
  %1059 = vst.msk [vmem:[%s6 + $0x8] sm:$0xff] %vm1057, %v1050
  %1060 = vst.msk [vmem:[%s6 + $0x10] sm:$0xff] %vm1057, %v1051
  %1061 = vst.msk [vmem:[%s6 + $0x18] sm:$0xff] %vm1057, %v1052
  %1062 = vst.msk [vmem:[%s6 + $0x20] sm:$0xff] %vm1057, %v1053
  %1063 = vst.msk [vmem:[%s6 + $0x28] sm:$0xff] %vm1057, %v1054
  %1064 = vst.msk [vmem:[%s6 + $0x30] sm:$0xff] %vm1057, %v1055
  %1065 = vst.msk [vmem:[%s6 + $0x38] sm:$0xff] %vm1057, %v1056
  %v1066 = vld [vmem:[#allocation3] sm:$0xff]
  %v1067 = vld [vmem:[#allocation3 + $0x8] sm:$0xff]
  %v1068 = vld [vmem:[#allocation3 + $0x10] sm:$0xff]
  %v1069 = vld [vmem:[#allocation3 + $0x18] sm:$0xff]
  %v1070 = vld [vmem:[#allocation3 + $0x20] sm:$0xff]
  %v1071 = vld [vmem:[#allocation3 + $0x28] sm:$0xff]
  %v1072 = vld [vmem:[#allocation3 + $0x30] sm:$0xff]
  %v1073 = vld [vmem:[#allocation3 + $0x38] sm:$0xff]
  %1082 = vrot.lane.b32.xlu0 %v1066, 16
  %v1083 = vpop.permute.xlu0 %1082
  %1084 = vrot.lane.b32.xlu0 %v1067, 16
  %v1085 = vpop.permute.xlu0 %1084
  %1086 = vrot.lane.b32.xlu0 %v1068, 16
  %v1087 = vpop.permute.xlu0 %1086
  %1088 = vrot.lane.b32.xlu0 %v1069, 16
  %v1089 = vpop.permute.xlu0 %1088
  %1090 = vrot.lane.b32.xlu0 %v1070, 16
  %v1091 = vpop.permute.xlu0 %1090
  %1092 = vrot.lane.b32.xlu0 %v1071, 16
  %v1093 = vpop.permute.xlu0 %1092
  %1094 = vrot.lane.b32.xlu0 %v1072, 16
  %v1095 = vpop.permute.xlu0 %1094
  %1096 = vrot.lane.b32.xlu0 %v1073, 16
  %v1097 = vpop.permute.xlu0 %1096
  %vm1106 = vcmask 261248
  %1107 = vst.msk [vmem:[%s6] sm:$0xff] %vm1106, %v1083
  %1108 = vst.msk [vmem:[%s6 + $0x8] sm:$0xff] %vm1106, %v1085
  %1109 = vst.msk [vmem:[%s6 + $0x10] sm:$0xff] %vm1106, %v1087
  %1110 = vst.msk [vmem:[%s6 + $0x18] sm:$0xff] %vm1106, %v1089
  %1111 = vst.msk [vmem:[%s6 + $0x20] sm:$0xff] %vm1106, %v1091
  %1112 = vst.msk [vmem:[%s6 + $0x28] sm:$0xff] %vm1106, %v1093
  %1113 = vst.msk [vmem:[%s6 + $0x30] sm:$0xff] %vm1106, %v1095
  %1114 = vst.msk [vmem:[%s6 + $0x38] sm:$0xff] %vm1106, %v1097
  // Predicated region
  $region33: #{forward.7} parent=0 // pred_check
    _
  $region34: #{forward.7} parent=0 // pred_check_branch
    %1116 = sbr.rel (0) target = $region36
  $region35: #{forward.7} parent=0 // pred_region
    _
  $region36: #{forward.7} parent=0 // pred_fallthru
    _
  // Predicated region
  $region37: #{forward.7} parent=0 // pred_check
    _
  $region38: #{forward.7} parent=0 // pred_check_branch
    %1118 = sbr.rel (0) target = $region40
  $region39: #{forward.7} parent=0 // pred_region
    _
  $region40: #{forward.7} parent=0 // pred_fallthru
    _

// kernel: forward.6
$region0: #{forward.6}
  #allocation0 [shape = 'u32[]', space=smem, size = 0x4, offset = 0x4, fixed_abs, tag = 'smem constant byte address 0x4 - core index']
  #allocation1 [shape = 'u32[144,128]{1,0:T(1,128)}', space=vmem, size = 0x12000, scoped, tag = 'internal scratch']
  %s0 = inlined_call_operand.vmem [shape: f32[64,16], index: 0, kind: input, shape index: {}]
  %s1 = inlined_call_operand.vmem [shape: f32[16,48], index: 1, kind: input, shape index: {}]
  %s2 = inlined_call_operand.vmem [shape: f32[16,48], index: 2, kind: input, shape index: {}]
  %s3 = inlined_call_operand.vmem [shape: f32[1,48], index: 3, kind: input, shape index: {}]
  %s4 = inlined_call_operand.vmem [shape: f32[1,48], index: 4, kind: input, shape index: {}]
  %s5 = inlined_call_operand.vmem [shape: f32[64,48], index: 5, kind: output, shape index: {0}]
  %s6 = inlined_call_operand.vmem [shape: f32[64,48], index: 6, kind: output, shape index: {1}]
  %7 = xla_tuple %s5, %s6
  %s8 = sld [smem:[#allocation0]]
  $region38: #{forward.6} parent=0
    _
  %s10 = ssub.s32 1, %s8
  %s11 = scalar_select 0, %s10, %s8
  // Predicated region
  $region2: #{forward.6} parent=0 // pred_check
    _
  $region3: #{forward.6} parent=0 // pred_check_branch
    %13 = sbr.rel (0) target = $region5
  $region4: #{forward.6} parent=0 // pred_region
    _
  $region5: #{forward.6} parent=0 // pred_fallthru
    _
  // Predicated region
  $region6: #{forward.6} parent=0 // pred_check
    _
  $region7: #{forward.6} parent=0 // pred_check_branch
    %15 = sbr.rel (0) target = $region9
  $region8: #{forward.6} parent=0 // pred_region
    _
  $region9: #{forward.6} parent=0 // pred_fallthru
    _
  // Predicated region
  $region10: #{forward.6} parent=0 // pred_check
    _
  $region11: #{forward.6} parent=0 // pred_check_branch
    %17 = sbr.rel (0) target = $region13
  $region12: #{forward.6} parent=0 // pred_region
    _
  $region13: #{forward.6} parent=0 // pred_fallthru
    _
  // Predicated region
  $region14: #{forward.6} parent=0 // pred_check
    _
  $region15: #{forward.6} parent=0 // pred_check_branch
    %19 = sbr.rel (0) target = $region17
  $region16: #{forward.6} parent=0 // pred_region
    _
  $region17: #{forward.6} parent=0 // pred_fallthru
    _
  // Predicated region
  $region18: #{forward.6} parent=0 // pred_check
    _
  $region19: #{forward.6} parent=0 // pred_check_branch
    %21 = sbr.rel (0) target = $region21
  $region20: #{forward.6} parent=0 // pred_region
    _
  $region21: #{forward.6} parent=0 // pred_fallthru
    _
  %v22 = vld [vmem:[%s0] sm:$0xff]
  %v23 = vld [vmem:[%s0 + $0x8] sm:$0xff]
  %v24 = vld [vmem:[%s0 + $0x10] sm:$0xff]
  %v25 = vld [vmem:[%s0 + $0x18] sm:$0xff]
  %v26 = vld [vmem:[%s0 + $0x20] sm:$0xff]
  %v27 = vld [vmem:[%s0 + $0x28] sm:$0xff]
  %v28 = vld [vmem:[%s0 + $0x30] sm:$0xff]
  %v29 = vld [vmem:[%s0 + $0x38] sm:$0xff]
  %v30 = vld [vmem:[%s1] sm:$0xff]
  %v31 = vld [vmem:[%s1 + $0x8] sm:$0xff]
  %v32 = vld [vmem:[%s3] sm:$0x1]
  %v34 = vlaneseq
  %v35 = vshrl.u32 %v34, 7
  %v36 = vsub.s32 0, %v35
  %v37 = vrot.slane %v32, %v36
  %vm39 = vcmask 130048
  %v41 = vsel %vm39, %v22, 0
  %v44 = vsel %vm39, %v23, 0
  %v47 = vsel %vm39, %v24, 0
  %v50 = vsel %vm39, %v25, 0
  %v53 = vsel %vm39, %v26, 0
  %v56 = vsel %vm39, %v27, 0
  %v59 = vsel %vm39, %v28, 0
  %v62 = vsel %vm39, %v29, 0
  %64 = vmatprep.subr.mxu0 0.0
  %65 = vmatpush1.msra.mxu0 0.0
  %66 = vmatprep.subr.mxu0 0.0
  %67 = vmatpush1.msra.mxu0 0.0
  %68 = vmatprep.subr.mxu0 0.0
  %69 = vmatpush1.msra.mxu0 0.0
  %70 = vmatprep.subr.mxu0 0.0
  %71 = vmatpush1.msra.mxu0 0.0
  %72 = vmatprep.subr.mxu0 0.0
  %73 = vmatpush1.msra.mxu0 0.0
  %74 = vmatprep.subr.mxu0 0.0
  %75 = vmatpush1.msra.mxu0 0.0
  %76 = vmatprep.subr.mxu0 0.0
  %77 = vmatpush1.msra.mxu0 0.0
  %78 = vmatprep.subr.mxu0 0.0
  %79 = vmatpush1.msra.mxu0 0.0
  %80 = vmatprep.subr.mxu0 0.0
  %81 = vmatpush1.msra.mxu0 0.0
  %82 = vmatprep.subr.mxu0 0.0
  %83 = vmatpush1.msra.mxu0 0.0
  %84 = vmatprep.subr.mxu0 0.0
  %85 = vmatpush1.msra.mxu0 0.0
  %86 = vmatprep.subr.mxu0 0.0
  %87 = vmatpush1.msra.mxu0 0.0
  %88 = vmatprep.subr.mxu0 0.0
  %89 = vmatpush1.msra.mxu0 0.0
  %90 = vmatprep.subr.mxu0 0.0
  %91 = vmatpush1.msra.mxu0 0.0
  %92 = vmatprep.subr.mxu0 0.0
  %v93 = vand.u32 %v31, 4294901760
  %94 = vmatpush1.msra.mxu0 %v93
  %95 = vmatprep.subr.mxu0 0.0
  %v96 = vand.u32 %v30, 4294901760
  %97 = vmatpush1.msra.mxu0 %v96
  %98 = vmatprep.subr.mxu0 0.0
  %99 = vmatpush2.msra.mxu0 0.0
  %100 = vmatprep.subr.mxu0 0.0
  %101 = vmatpush2.msra.mxu0 0.0
  %102 = vmatprep.subr.mxu0 0.0
  %103 = vmatpush2.msra.mxu0 0.0
  %104 = vmatprep.subr.mxu0 0.0
  %105 = vmatpush2.msra.mxu0 0.0
  %106 = vmatprep.subr.mxu0 0.0
  %107 = vmatpush2.msra.mxu0 0.0
  %108 = vmatprep.subr.mxu0 0.0
  %109 = vmatpush2.msra.mxu0 0.0
  %110 = vmatprep.subr.mxu0 0.0
  %111 = vmatpush2.msra.mxu0 0.0
  %112 = vmatprep.subr.mxu0 0.0
  %113 = vmatpush2.msra.mxu0 0.0
  %114 = vmatprep.subr.mxu0 0.0
  %115 = vmatpush2.msra.mxu0 0.0
  %116 = vmatprep.subr.mxu0 0.0
  %117 = vmatpush2.msra.mxu0 0.0
  %118 = vmatprep.subr.mxu0 0.0
  %119 = vmatpush2.msra.mxu0 0.0
  %120 = vmatprep.subr.mxu0 0.0
  %121 = vmatpush2.msra.mxu0 0.0
  %122 = vmatprep.subr.mxu0 0.0
  %123 = vmatpush2.msra.mxu0 0.0
  %124 = vmatprep.subr.mxu0 0.0
  %125 = vmatpush2.msra.mxu0 0.0
  %126 = vmatprep.subr.mxu0 0.0
  %127 = vmatpush2.msra.mxu0 0.0
  %128 = vmatprep.subr.mxu0 0.0
  %129 = vmatpush2.msra.mxu0 0.0
  %130 = vmatprep.mubr.f32.mxu0 0.0
  %v131 = vand.u32 %v41, 4294901760
  %v132 = vsub.f32 %v41, %v131
  %v133 = vand.u32 %v132, 4294901760
  %v134 = vsub.f32 %v132, %v133
  %v135 = vand.u32 %v134, 4294901760
  %136 = vmatmul.mubr.f32.gmra.mxu0 %v135
  %v137 = vpop.f32.mrf.mxu0
  %v138 = vadd.f32 %v37, %v137
  %v139 = vpop.f32.mrf.mxu0
  %140 = vmatprep.mubr.f32.mxu0 0.0
  %v141 = vand.u32 %v44, 4294901760
  %v142 = vsub.f32 %v44, %v141
  %v143 = vand.u32 %v142, 4294901760
  %v144 = vsub.f32 %v142, %v143
  %v145 = vand.u32 %v144, 4294901760
  %146 = vmatmul.mubr.f32.gmra.mxu0 %v145
  %v147 = vpop.f32.mrf.mxu0
  %v148 = vadd.f32 %v37, %v147
  %v149 = vpop.f32.mrf.mxu0
  %150 = vmatprep.mubr.f32.mxu0 0.0
  %v151 = vand.u32 %v47, 4294901760
  %v152 = vsub.f32 %v47, %v151
  %v153 = vand.u32 %v152, 4294901760
  %v154 = vsub.f32 %v152, %v153
  %v155 = vand.u32 %v154, 4294901760
  %156 = vmatmul.mubr.f32.gmra.mxu0 %v155
  %v157 = vpop.f32.mrf.mxu0
  %v158 = vadd.f32 %v37, %v157
  %v159 = vpop.f32.mrf.mxu0
  %160 = vmatprep.mubr.f32.mxu0 0.0
  %v161 = vand.u32 %v50, 4294901760
  %v162 = vsub.f32 %v50, %v161
  %v163 = vand.u32 %v162, 4294901760
  %v164 = vsub.f32 %v162, %v163
  %v165 = vand.u32 %v164, 4294901760
  %166 = vmatmul.mubr.f32.gmra.mxu0 %v165
  %v167 = vpop.f32.mrf.mxu0
  %v168 = vadd.f32 %v37, %v167
  %v169 = vpop.f32.mrf.mxu0
  %170 = vmatprep.mubr.f32.mxu0 0.0
  %v171 = vand.u32 %v53, 4294901760
  %v172 = vsub.f32 %v53, %v171
  %v173 = vand.u32 %v172, 4294901760
  %v174 = vsub.f32 %v172, %v173
  %v175 = vand.u32 %v174, 4294901760
  %176 = vmatmul.mubr.f32.gmra.mxu0 %v175
  %v177 = vpop.f32.mrf.mxu0
  %v178 = vadd.f32 %v37, %v177
  %v179 = vpop.f32.mrf.mxu0
  %180 = vmatprep.mubr.f32.mxu0 0.0
  %v181 = vand.u32 %v56, 4294901760
  %v182 = vsub.f32 %v56, %v181
  %v183 = vand.u32 %v182, 4294901760
  %v184 = vsub.f32 %v182, %v183
  %v185 = vand.u32 %v184, 4294901760
  %186 = vmatmul.mubr.f32.gmra.mxu0 %v185
  %v187 = vpop.f32.mrf.mxu0
  %v188 = vadd.f32 %v37, %v187
  %v189 = vpop.f32.mrf.mxu0
  %190 = vmatprep.mubr.f32.mxu0 0.0
  %v191 = vand.u32 %v59, 4294901760
  %v192 = vsub.f32 %v59, %v191
  %v193 = vand.u32 %v192, 4294901760
  %v194 = vsub.f32 %v192, %v193
  %v195 = vand.u32 %v194, 4294901760
  %196 = vmatmul.mubr.f32.gmra.mxu0 %v195
  %v197 = vpop.f32.mrf.mxu0
  %v198 = vadd.f32 %v37, %v197
  %v199 = vpop.f32.mrf.mxu0
  %200 = vmatprep.mubr.f32.mxu0 0.0
  %v201 = vand.u32 %v62, 4294901760
  %v202 = vsub.f32 %v62, %v201
  %v203 = vand.u32 %v202, 4294901760
  %v204 = vsub.f32 %v202, %v203
  %v205 = vand.u32 %v204, 4294901760
  %206 = vmatmul.mubr.f32.gmra.mxu0 %v205
  %v207 = vpop.f32.mrf.mxu0
  %v208 = vadd.f32 %v37, %v207
  %v209 = vpop.f32.mrf.mxu0
  %210 = vdwg.mxu0
  %211 = vmatprep.subr.mxu0 0.0
  %212 = vmatpush1.msra.mxu0 0.0
  %213 = vmatprep.subr.mxu0 0.0
  %214 = vmatpush1.msra.mxu0 0.0
  %215 = vmatprep.subr.mxu0 0.0
  %216 = vmatpush1.msra.mxu0 0.0
  %217 = vmatprep.subr.mxu0 0.0
  %218 = vmatpush1.msra.mxu0 0.0
  %219 = vmatprep.subr.mxu0 0.0
  %220 = vmatpush1.msra.mxu0 0.0
  %221 = vmatprep.subr.mxu0 0.0
  %222 = vmatpush1.msra.mxu0 0.0
  %223 = vmatprep.subr.mxu0 0.0
  %224 = vmatpush1.msra.mxu0 0.0
  %225 = vmatprep.subr.mxu0 0.0
  %226 = vmatpush1.msra.mxu0 0.0
  %227 = vmatprep.subr.mxu0 0.0
  %228 = vmatpush1.msra.mxu0 0.0
  %229 = vmatprep.subr.mxu0 0.0
  %230 = vmatpush1.msra.mxu0 0.0
  %231 = vmatprep.subr.mxu0 0.0
  %232 = vmatpush1.msra.mxu0 0.0
  %233 = vmatprep.subr.mxu0 0.0
  %234 = vmatpush1.msra.mxu0 0.0
  %235 = vmatprep.subr.mxu0 0.0
  %236 = vmatpush1.msra.mxu0 0.0
  %237 = vmatprep.subr.mxu0 0.0
  %238 = vmatpush1.msra.mxu0 0.0
  %239 = vmatprep.subr.mxu0 0.0
  %v240 = vand.u32 %v31, 4294901760
  %v241 = vsub.f32 %v31, %v240
  %v242 = vand.u32 %v241, 4294901760
  %v243 = vsub.f32 %v241, %v242
  %v244 = vand.u32 %v243, 4294901760
  %245 = vmatpush1.msra.mxu0 %v244
  %246 = vmatprep.subr.mxu0 0.0
  %v247 = vand.u32 %v30, 4294901760
  %v248 = vsub.f32 %v30, %v247
  %v249 = vand.u32 %v248, 4294901760
  %v250 = vsub.f32 %v248, %v249
  %v251 = vand.u32 %v250, 4294901760
  %252 = vmatpush1.msra.mxu0 %v251
  %253 = vmatprep.subr.mxu0 0.0
  %254 = vmatpush2.msra.mxu0 0.0
  %255 = vmatprep.subr.mxu0 0.0
  %256 = vmatpush2.msra.mxu0 0.0
  %257 = vmatprep.subr.mxu0 0.0
  %258 = vmatpush2.msra.mxu0 0.0
  %259 = vmatprep.subr.mxu0 0.0
  %260 = vmatpush2.msra.mxu0 0.0
  %261 = vmatprep.subr.mxu0 0.0
  %262 = vmatpush2.msra.mxu0 0.0
  %263 = vmatprep.subr.mxu0 0.0
  %264 = vmatpush2.msra.mxu0 0.0
  %265 = vmatprep.subr.mxu0 0.0
  %266 = vmatpush2.msra.mxu0 0.0
  %267 = vmatprep.subr.mxu0 0.0
  %268 = vmatpush2.msra.mxu0 0.0
  %269 = vmatprep.subr.mxu0 0.0
  %270 = vmatpush2.msra.mxu0 0.0
  %271 = vmatprep.subr.mxu0 0.0
  %272 = vmatpush2.msra.mxu0 0.0
  %273 = vmatprep.subr.mxu0 0.0
  %274 = vmatpush2.msra.mxu0 0.0
  %275 = vmatprep.subr.mxu0 0.0
  %276 = vmatpush2.msra.mxu0 0.0
  %277 = vmatprep.subr.mxu0 0.0
  %278 = vmatpush2.msra.mxu0 0.0
  %279 = vmatprep.subr.mxu0 0.0
  %280 = vmatpush2.msra.mxu0 0.0
  %281 = vmatprep.subr.mxu0 0.0
  %282 = vmatpush2.msra.mxu0 0.0
  %283 = vmatprep.subr.mxu0 0.0
  %284 = vmatpush2.msra.mxu0 0.0
  %285 = vmatprep.mubr.f32.mxu0 0.0
  %v286 = vand.u32 %v41, 4294901760
  %287 = vmatmul.mubr.f32.gmra.mxu0 %v286
  %v288 = vpop.f32.mrf.mxu0
  %v289 = vadd.f32 %v138, %v288
  %v290 = vpop.f32.mrf.mxu0
  %291 = vmatprep.mubr.f32.mxu0 0.0
  %v292 = vand.u32 %v44, 4294901760
  %293 = vmatmul.mubr.f32.gmra.mxu0 %v292
  %v294 = vpop.f32.mrf.mxu0
  %v295 = vadd.f32 %v148, %v294
  %v296 = vpop.f32.mrf.mxu0
  %297 = vmatprep.mubr.f32.mxu0 0.0
  %v298 = vand.u32 %v47, 4294901760
  %299 = vmatmul.mubr.f32.gmra.mxu0 %v298
  %v300 = vpop.f32.mrf.mxu0
  %v301 = vadd.f32 %v158, %v300
  %v302 = vpop.f32.mrf.mxu0
  %303 = vmatprep.mubr.f32.mxu0 0.0
  %v304 = vand.u32 %v50, 4294901760
  %305 = vmatmul.mubr.f32.gmra.mxu0 %v304
  %v306 = vpop.f32.mrf.mxu0
  %v307 = vadd.f32 %v168, %v306
  %v308 = vpop.f32.mrf.mxu0
  %309 = vmatprep.mubr.f32.mxu0 0.0
  %v310 = vand.u32 %v53, 4294901760
  %311 = vmatmul.mubr.f32.gmra.mxu0 %v310
  %v312 = vpop.f32.mrf.mxu0
  %v313 = vadd.f32 %v178, %v312
  %v314 = vpop.f32.mrf.mxu0
  %315 = vmatprep.mubr.f32.mxu0 0.0
  %v316 = vand.u32 %v56, 4294901760
  %317 = vmatmul.mubr.f32.gmra.mxu0 %v316
  %v318 = vpop.f32.mrf.mxu0
  %v319 = vadd.f32 %v188, %v318
  %v320 = vpop.f32.mrf.mxu0
  %321 = vmatprep.mubr.f32.mxu0 0.0
  %v322 = vand.u32 %v59, 4294901760
  %323 = vmatmul.mubr.f32.gmra.mxu0 %v322
  %v324 = vpop.f32.mrf.mxu0
  %v325 = vadd.f32 %v198, %v324
  %v326 = vpop.f32.mrf.mxu0
  %327 = vmatprep.mubr.f32.mxu0 0.0
  %v328 = vand.u32 %v62, 4294901760
  %329 = vmatmul.mubr.f32.gmra.mxu0 %v328
  %v330 = vpop.f32.mrf.mxu0
  %v331 = vadd.f32 %v208, %v330
  %v332 = vpop.f32.mrf.mxu0
  %333 = vdwg.mxu0
  %334 = vmatprep.subr.mxu0 0.0
  %335 = vmatpush1.msra.mxu0 0.0
  %336 = vmatprep.subr.mxu0 0.0
  %337 = vmatpush1.msra.mxu0 0.0
  %338 = vmatprep.subr.mxu0 0.0
  %339 = vmatpush1.msra.mxu0 0.0
  %340 = vmatprep.subr.mxu0 0.0
  %341 = vmatpush1.msra.mxu0 0.0
  %342 = vmatprep.subr.mxu0 0.0
  %343 = vmatpush1.msra.mxu0 0.0
  %344 = vmatprep.subr.mxu0 0.0
  %345 = vmatpush1.msra.mxu0 0.0
  %346 = vmatprep.subr.mxu0 0.0
  %347 = vmatpush1.msra.mxu0 0.0
  %348 = vmatprep.subr.mxu0 0.0
  %349 = vmatpush1.msra.mxu0 0.0
  %350 = vmatprep.subr.mxu0 0.0
  %351 = vmatpush1.msra.mxu0 0.0
  %352 = vmatprep.subr.mxu0 0.0
  %353 = vmatpush1.msra.mxu0 0.0
  %354 = vmatprep.subr.mxu0 0.0
  %355 = vmatpush1.msra.mxu0 0.0
  %356 = vmatprep.subr.mxu0 0.0
  %357 = vmatpush1.msra.mxu0 0.0
  %358 = vmatprep.subr.mxu0 0.0
  %359 = vmatpush1.msra.mxu0 0.0
  %360 = vmatprep.subr.mxu0 0.0
  %361 = vmatpush1.msra.mxu0 0.0
  %362 = vmatprep.subr.mxu0 0.0
  %v363 = vand.u32 %v31, 4294901760
  %v364 = vsub.f32 %v31, %v363
  %365 = vmatpush1.msra.mxu0 %v364
  %366 = vmatprep.subr.mxu0 0.0
  %v367 = vand.u32 %v30, 4294901760
  %v368 = vsub.f32 %v30, %v367
  %369 = vmatpush1.msra.mxu0 %v368
  %370 = vmatprep.subr.mxu0 0.0
  %371 = vmatpush2.msra.mxu0 0.0
  %372 = vmatprep.subr.mxu0 0.0
  %373 = vmatpush2.msra.mxu0 0.0
  %374 = vmatprep.subr.mxu0 0.0
  %375 = vmatpush2.msra.mxu0 0.0
  %376 = vmatprep.subr.mxu0 0.0
  %377 = vmatpush2.msra.mxu0 0.0
  %378 = vmatprep.subr.mxu0 0.0
  %379 = vmatpush2.msra.mxu0 0.0
  %380 = vmatprep.subr.mxu0 0.0
  %381 = vmatpush2.msra.mxu0 0.0
  %382 = vmatprep.subr.mxu0 0.0
  %383 = vmatpush2.msra.mxu0 0.0
  %384 = vmatprep.subr.mxu0 0.0
  %385 = vmatpush2.msra.mxu0 0.0
  %386 = vmatprep.subr.mxu0 0.0
  %387 = vmatpush2.msra.mxu0 0.0
  %388 = vmatprep.subr.mxu0 0.0
  %389 = vmatpush2.msra.mxu0 0.0
  %390 = vmatprep.subr.mxu0 0.0
  %391 = vmatpush2.msra.mxu0 0.0
  %392 = vmatprep.subr.mxu0 0.0
  %393 = vmatpush2.msra.mxu0 0.0
  %394 = vmatprep.subr.mxu0 0.0
  %395 = vmatpush2.msra.mxu0 0.0
  %396 = vmatprep.subr.mxu0 0.0
  %397 = vmatpush2.msra.mxu0 0.0
  %398 = vmatprep.subr.mxu0 0.0
  %399 = vmatpush2.msra.mxu0 0.0
  %400 = vmatprep.subr.mxu0 0.0
  %401 = vmatpush2.msra.mxu0 0.0
  %402 = vmatprep.mubr.f32.mxu0 0.0
  %v403 = vand.u32 %v41, 4294901760
  %v404 = vsub.f32 %v41, %v403
  %405 = vmatmul.mubr.f32.gmra.mxu0 %v404
  %v406 = vpop.f32.mrf.mxu0
  %v407 = vadd.f32 %v289, %v406
  %v408 = vpop.f32.mrf.mxu0
  %409 = vmatprep.mubr.f32.mxu0 0.0
  %v410 = vand.u32 %v44, 4294901760
  %v411 = vsub.f32 %v44, %v410
  %412 = vmatmul.mubr.f32.gmra.mxu0 %v411
  %v413 = vpop.f32.mrf.mxu0
  %v414 = vadd.f32 %v295, %v413
  %v415 = vpop.f32.mrf.mxu0
  %416 = vmatprep.mubr.f32.mxu0 0.0
  %v417 = vand.u32 %v47, 4294901760
  %v418 = vsub.f32 %v47, %v417
  %419 = vmatmul.mubr.f32.gmra.mxu0 %v418
  %v420 = vpop.f32.mrf.mxu0
  %v421 = vadd.f32 %v301, %v420
  %v422 = vpop.f32.mrf.mxu0
  %423 = vmatprep.mubr.f32.mxu0 0.0
  %v424 = vand.u32 %v50, 4294901760
  %v425 = vsub.f32 %v50, %v424
  %426 = vmatmul.mubr.f32.gmra.mxu0 %v425
  %v427 = vpop.f32.mrf.mxu0
  %v428 = vadd.f32 %v307, %v427
  %v429 = vpop.f32.mrf.mxu0
  %430 = vmatprep.mubr.f32.mxu0 0.0
  %v431 = vand.u32 %v53, 4294901760
  %v432 = vsub.f32 %v53, %v431
  %433 = vmatmul.mubr.f32.gmra.mxu0 %v432
  %v434 = vpop.f32.mrf.mxu0
  %v435 = vadd.f32 %v313, %v434
  %v436 = vpop.f32.mrf.mxu0
  %437 = vmatprep.mubr.f32.mxu0 0.0
  %v438 = vand.u32 %v56, 4294901760
  %v439 = vsub.f32 %v56, %v438
  %440 = vmatmul.mubr.f32.gmra.mxu0 %v439
  %v441 = vpop.f32.mrf.mxu0
  %v442 = vadd.f32 %v319, %v441
  %v443 = vpop.f32.mrf.mxu0
  %444 = vmatprep.mubr.f32.mxu0 0.0
  %v445 = vand.u32 %v59, 4294901760
  %v446 = vsub.f32 %v59, %v445
  %447 = vmatmul.mubr.f32.gmra.mxu0 %v446
  %v448 = vpop.f32.mrf.mxu0
  %v449 = vadd.f32 %v325, %v448
  %v450 = vpop.f32.mrf.mxu0
  %451 = vmatprep.mubr.f32.mxu0 0.0
  %v452 = vand.u32 %v62, 4294901760
  %v453 = vsub.f32 %v62, %v452
  %454 = vmatmul.mubr.f32.gmra.mxu0 %v453
  %v455 = vpop.f32.mrf.mxu0
  %v456 = vadd.f32 %v331, %v455
  %v457 = vpop.f32.mrf.mxu0
  %458 = vdwg.mxu0
  %459 = vmatprep.subr.mxu0 0.0
  %460 = vmatpush1.msra.mxu0 0.0
  %461 = vmatprep.subr.mxu0 0.0
  %462 = vmatpush1.msra.mxu0 0.0
  %463 = vmatprep.subr.mxu0 0.0
  %464 = vmatpush1.msra.mxu0 0.0
  %465 = vmatprep.subr.mxu0 0.0
  %466 = vmatpush1.msra.mxu0 0.0
  %467 = vmatprep.subr.mxu0 0.0
  %468 = vmatpush1.msra.mxu0 0.0
  %469 = vmatprep.subr.mxu0 0.0
  %470 = vmatpush1.msra.mxu0 0.0
  %471 = vmatprep.subr.mxu0 0.0
  %472 = vmatpush1.msra.mxu0 0.0
  %473 = vmatprep.subr.mxu0 0.0
  %474 = vmatpush1.msra.mxu0 0.0
  %475 = vmatprep.subr.mxu0 0.0
  %476 = vmatpush1.msra.mxu0 0.0
  %477 = vmatprep.subr.mxu0 0.0
  %478 = vmatpush1.msra.mxu0 0.0
  %479 = vmatprep.subr.mxu0 0.0
  %480 = vmatpush1.msra.mxu0 0.0
  %481 = vmatprep.subr.mxu0 0.0
  %482 = vmatpush1.msra.mxu0 0.0
  %483 = vmatprep.subr.mxu0 0.0
  %484 = vmatpush1.msra.mxu0 0.0
  %485 = vmatprep.subr.mxu0 0.0
  %486 = vmatpush1.msra.mxu0 0.0
  %487 = vmatprep.subr.mxu0 0.0
  %v488 = vand.u32 %v31, 4294901760
  %489 = vmatpush1.msra.mxu0 %v488
  %490 = vmatprep.subr.mxu0 0.0
  %v491 = vand.u32 %v30, 4294901760
  %492 = vmatpush1.msra.mxu0 %v491
  %493 = vmatprep.subr.mxu0 0.0
  %494 = vmatpush2.msra.mxu0 0.0
  %495 = vmatprep.subr.mxu0 0.0
  %496 = vmatpush2.msra.mxu0 0.0
  %497 = vmatprep.subr.mxu0 0.0
  %498 = vmatpush2.msra.mxu0 0.0
  %499 = vmatprep.subr.mxu0 0.0
  %500 = vmatpush2.msra.mxu0 0.0
  %501 = vmatprep.subr.mxu0 0.0
  %502 = vmatpush2.msra.mxu0 0.0
  %503 = vmatprep.subr.mxu0 0.0
  %504 = vmatpush2.msra.mxu0 0.0
  %505 = vmatprep.subr.mxu0 0.0
  %506 = vmatpush2.msra.mxu0 0.0
  %507 = vmatprep.subr.mxu0 0.0
  %508 = vmatpush2.msra.mxu0 0.0
  %509 = vmatprep.subr.mxu0 0.0
  %510 = vmatpush2.msra.mxu0 0.0
  %511 = vmatprep.subr.mxu0 0.0
  %512 = vmatpush2.msra.mxu0 0.0
  %513 = vmatprep.subr.mxu0 0.0
  %514 = vmatpush2.msra.mxu0 0.0
  %515 = vmatprep.subr.mxu0 0.0
  %516 = vmatpush2.msra.mxu0 0.0
  %517 = vmatprep.subr.mxu0 0.0
  %518 = vmatpush2.msra.mxu0 0.0
  %519 = vmatprep.subr.mxu0 0.0
  %520 = vmatpush2.msra.mxu0 0.0
  %521 = vmatprep.subr.mxu0 0.0
  %522 = vmatpush2.msra.mxu0 0.0
  %523 = vmatprep.subr.mxu0 0.0
  %524 = vmatpush2.msra.mxu0 0.0
  %525 = vmatprep.mubr.f32.mxu0 0.0
  %v526 = vand.u32 %v41, 4294901760
  %v527 = vsub.f32 %v41, %v526
  %v528 = vand.u32 %v527, 4294901760
  %529 = vmatmul.mubr.f32.gmra.mxu0 %v528
  %v530 = vpop.f32.mrf.mxu0
  %v531 = vadd.f32 %v407, %v530
  %v532 = vpop.f32.mrf.mxu0
  %533 = vmatprep.mubr.f32.mxu0 0.0
  %v534 = vand.u32 %v44, 4294901760
  %v535 = vsub.f32 %v44, %v534
  %v536 = vand.u32 %v535, 4294901760
  %537 = vmatmul.mubr.f32.gmra.mxu0 %v536
  %v538 = vpop.f32.mrf.mxu0
  %v539 = vadd.f32 %v414, %v538
  %v540 = vpop.f32.mrf.mxu0
  %541 = vmatprep.mubr.f32.mxu0 0.0
  %v542 = vand.u32 %v47, 4294901760
  %v543 = vsub.f32 %v47, %v542
  %v544 = vand.u32 %v543, 4294901760
  %545 = vmatmul.mubr.f32.gmra.mxu0 %v544
  %v546 = vpop.f32.mrf.mxu0
  %v547 = vadd.f32 %v421, %v546
  %v548 = vpop.f32.mrf.mxu0
  %549 = vmatprep.mubr.f32.mxu0 0.0
  %v550 = vand.u32 %v50, 4294901760
  %v551 = vsub.f32 %v50, %v550
  %v552 = vand.u32 %v551, 4294901760
  %553 = vmatmul.mubr.f32.gmra.mxu0 %v552
  %v554 = vpop.f32.mrf.mxu0
  %v555 = vadd.f32 %v428, %v554
  %v556 = vpop.f32.mrf.mxu0
  %557 = vmatprep.mubr.f32.mxu0 0.0
  %v558 = vand.u32 %v53, 4294901760
  %v559 = vsub.f32 %v53, %v558
  %v560 = vand.u32 %v559, 4294901760
  %561 = vmatmul.mubr.f32.gmra.mxu0 %v560
  %v562 = vpop.f32.mrf.mxu0
  %v563 = vadd.f32 %v435, %v562
  %v564 = vpop.f32.mrf.mxu0
  %565 = vmatprep.mubr.f32.mxu0 0.0
  %v566 = vand.u32 %v56, 4294901760
  %v567 = vsub.f32 %v56, %v566
  %v568 = vand.u32 %v567, 4294901760
  %569 = vmatmul.mubr.f32.gmra.mxu0 %v568
  %v570 = vpop.f32.mrf.mxu0
  %v571 = vadd.f32 %v442, %v570
  %v572 = vpop.f32.mrf.mxu0
  %573 = vmatprep.mubr.f32.mxu0 0.0
  %v574 = vand.u32 %v59, 4294901760
  %v575 = vsub.f32 %v59, %v574
  %v576 = vand.u32 %v575, 4294901760
  %577 = vmatmul.mubr.f32.gmra.mxu0 %v576
  %v578 = vpop.f32.mrf.mxu0
  %v579 = vadd.f32 %v449, %v578
  %v580 = vpop.f32.mrf.mxu0
  %581 = vmatprep.mubr.f32.mxu0 0.0
  %v582 = vand.u32 %v62, 4294901760
  %v583 = vsub.f32 %v62, %v582
  %v584 = vand.u32 %v583, 4294901760
  %585 = vmatmul.mubr.f32.gmra.mxu0 %v584
  %v586 = vpop.f32.mrf.mxu0
  %v587 = vadd.f32 %v456, %v586
  %v588 = vpop.f32.mrf.mxu0
  %589 = vdwg.mxu0
  %590 = vmatprep.subr.mxu0 0.0
  %591 = vmatpush1.msra.mxu0 0.0
  %592 = vmatprep.subr.mxu0 0.0
  %593 = vmatpush1.msra.mxu0 0.0
  %594 = vmatprep.subr.mxu0 0.0
  %595 = vmatpush1.msra.mxu0 0.0
  %596 = vmatprep.subr.mxu0 0.0
  %597 = vmatpush1.msra.mxu0 0.0
  %598 = vmatprep.subr.mxu0 0.0
  %599 = vmatpush1.msra.mxu0 0.0
  %600 = vmatprep.subr.mxu0 0.0
  %601 = vmatpush1.msra.mxu0 0.0
  %602 = vmatprep.subr.mxu0 0.0
  %603 = vmatpush1.msra.mxu0 0.0
  %604 = vmatprep.subr.mxu0 0.0
  %605 = vmatpush1.msra.mxu0 0.0
  %606 = vmatprep.subr.mxu0 0.0
  %607 = vmatpush1.msra.mxu0 0.0
  %608 = vmatprep.subr.mxu0 0.0
  %609 = vmatpush1.msra.mxu0 0.0
  %610 = vmatprep.subr.mxu0 0.0
  %611 = vmatpush1.msra.mxu0 0.0
  %612 = vmatprep.subr.mxu0 0.0
  %613 = vmatpush1.msra.mxu0 0.0
  %614 = vmatprep.subr.mxu0 0.0
  %615 = vmatpush1.msra.mxu0 0.0
  %616 = vmatprep.subr.mxu0 0.0
  %617 = vmatpush1.msra.mxu0 0.0
  %618 = vmatprep.subr.mxu0 0.0
  %v619 = vand.u32 %v31, 4294901760
  %v620 = vsub.f32 %v31, %v619
  %v621 = vand.u32 %v620, 4294901760
  %622 = vmatpush1.msra.mxu0 %v621
  %623 = vmatprep.subr.mxu0 0.0
  %v624 = vand.u32 %v30, 4294901760
  %v625 = vsub.f32 %v30, %v624
  %v626 = vand.u32 %v625, 4294901760
  %627 = vmatpush1.msra.mxu0 %v626
  %628 = vmatprep.subr.mxu0 0.0
  %629 = vmatpush2.msra.mxu0 0.0
  %630 = vmatprep.subr.mxu0 0.0
  %631 = vmatpush2.msra.mxu0 0.0
  %632 = vmatprep.subr.mxu0 0.0
  %633 = vmatpush2.msra.mxu0 0.0
  %634 = vmatprep.subr.mxu0 0.0
  %635 = vmatpush2.msra.mxu0 0.0
  %636 = vmatprep.subr.mxu0 0.0
  %637 = vmatpush2.msra.mxu0 0.0
  %638 = vmatprep.subr.mxu0 0.0
  %639 = vmatpush2.msra.mxu0 0.0
  %640 = vmatprep.subr.mxu0 0.0
  %641 = vmatpush2.msra.mxu0 0.0
  %642 = vmatprep.subr.mxu0 0.0
  %643 = vmatpush2.msra.mxu0 0.0
  %644 = vmatprep.subr.mxu0 0.0
  %645 = vmatpush2.msra.mxu0 0.0
  %646 = vmatprep.subr.mxu0 0.0
  %647 = vmatpush2.msra.mxu0 0.0
  %648 = vmatprep.subr.mxu0 0.0
  %649 = vmatpush2.msra.mxu0 0.0
  %650 = vmatprep.subr.mxu0 0.0
  %651 = vmatpush2.msra.mxu0 0.0
  %652 = vmatprep.subr.mxu0 0.0
  %653 = vmatpush2.msra.mxu0 0.0
  %654 = vmatprep.subr.mxu0 0.0
  %655 = vmatpush2.msra.mxu0 0.0
  %656 = vmatprep.subr.mxu0 0.0
  %657 = vmatpush2.msra.mxu0 0.0
  %658 = vmatprep.subr.mxu0 0.0
  %659 = vmatpush2.msra.mxu0 0.0
  %660 = vmatprep.mubr.f32.mxu0 0.0
  %v661 = vand.u32 %v41, 4294901760
  %662 = vmatmul.mubr.f32.gmra.mxu0 %v661
  %v663 = vpop.f32.mrf.mxu0
  %v664 = vadd.f32 %v531, %v663
  %v665 = vpop.f32.mrf.mxu0
  %666 = vmatprep.mubr.f32.mxu0 0.0
  %v667 = vand.u32 %v44, 4294901760
  %668 = vmatmul.mubr.f32.gmra.mxu0 %v667
  %v669 = vpop.f32.mrf.mxu0
  %v670 = vadd.f32 %v539, %v669
  %v671 = vpop.f32.mrf.mxu0
  %672 = vmatprep.mubr.f32.mxu0 0.0
  %v673 = vand.u32 %v47, 4294901760
  %674 = vmatmul.mubr.f32.gmra.mxu0 %v673
  %v675 = vpop.f32.mrf.mxu0
  %v676 = vadd.f32 %v547, %v675
  %v677 = vpop.f32.mrf.mxu0
  %678 = vmatprep.mubr.f32.mxu0 0.0
  %v679 = vand.u32 %v50, 4294901760
  %680 = vmatmul.mubr.f32.gmra.mxu0 %v679
  %v681 = vpop.f32.mrf.mxu0
  %v682 = vadd.f32 %v555, %v681
  %v683 = vpop.f32.mrf.mxu0
  %684 = vmatprep.mubr.f32.mxu0 0.0
  %v685 = vand.u32 %v53, 4294901760
  %686 = vmatmul.mubr.f32.gmra.mxu0 %v685
  %v687 = vpop.f32.mrf.mxu0
  %v688 = vadd.f32 %v563, %v687
  %v689 = vpop.f32.mrf.mxu0
  %690 = vmatprep.mubr.f32.mxu0 0.0
  %v691 = vand.u32 %v56, 4294901760
  %692 = vmatmul.mubr.f32.gmra.mxu0 %v691
  %v693 = vpop.f32.mrf.mxu0
  %v694 = vadd.f32 %v571, %v693
  %v695 = vpop.f32.mrf.mxu0
  %696 = vmatprep.mubr.f32.mxu0 0.0
  %v697 = vand.u32 %v59, 4294901760
  %698 = vmatmul.mubr.f32.gmra.mxu0 %v697
  %v699 = vpop.f32.mrf.mxu0
  %v700 = vadd.f32 %v579, %v699
  %v701 = vpop.f32.mrf.mxu0
  %702 = vmatprep.mubr.f32.mxu0 0.0
  %v703 = vand.u32 %v62, 4294901760
  %704 = vmatmul.mubr.f32.gmra.mxu0 %v703
  %v705 = vpop.f32.mrf.mxu0
  %v706 = vadd.f32 %v587, %v705
  %v707 = vpop.f32.mrf.mxu0
  %708 = vdwg.mxu0
  %709 = vmatprep.subr.mxu0 0.0
  %710 = vmatpush1.msra.mxu0 0.0
  %711 = vmatprep.subr.mxu0 0.0
  %712 = vmatpush1.msra.mxu0 0.0
  %713 = vmatprep.subr.mxu0 0.0
  %714 = vmatpush1.msra.mxu0 0.0
  %715 = vmatprep.subr.mxu0 0.0
  %716 = vmatpush1.msra.mxu0 0.0
  %717 = vmatprep.subr.mxu0 0.0
  %718 = vmatpush1.msra.mxu0 0.0
  %719 = vmatprep.subr.mxu0 0.0
  %720 = vmatpush1.msra.mxu0 0.0
  %721 = vmatprep.subr.mxu0 0.0
  %722 = vmatpush1.msra.mxu0 0.0
  %723 = vmatprep.subr.mxu0 0.0
  %724 = vmatpush1.msra.mxu0 0.0
  %725 = vmatprep.subr.mxu0 0.0
  %726 = vmatpush1.msra.mxu0 0.0
  %727 = vmatprep.subr.mxu0 0.0
  %728 = vmatpush1.msra.mxu0 0.0
  %729 = vmatprep.subr.mxu0 0.0
  %730 = vmatpush1.msra.mxu0 0.0
  %731 = vmatprep.subr.mxu0 0.0
  %732 = vmatpush1.msra.mxu0 0.0
  %733 = vmatprep.subr.mxu0 0.0
  %734 = vmatpush1.msra.mxu0 0.0
  %735 = vmatprep.subr.mxu0 0.0
  %736 = vmatpush1.msra.mxu0 0.0
  %737 = vmatprep.subr.mxu0 0.0
  %v738 = vand.u32 %v31, 4294901760
  %739 = vmatpush1.msra.mxu0 %v738
  %740 = vmatprep.subr.mxu0 0.0
  %v741 = vand.u32 %v30, 4294901760
  %742 = vmatpush1.msra.mxu0 %v741
  %743 = vmatprep.subr.mxu0 0.0
  %744 = vmatpush2.msra.mxu0 0.0
  %745 = vmatprep.subr.mxu0 0.0
  %746 = vmatpush2.msra.mxu0 0.0
  %747 = vmatprep.subr.mxu0 0.0
  %748 = vmatpush2.msra.mxu0 0.0
  %749 = vmatprep.subr.mxu0 0.0
  %750 = vmatpush2.msra.mxu0 0.0
  %751 = vmatprep.subr.mxu0 0.0
  %752 = vmatpush2.msra.mxu0 0.0
  %753 = vmatprep.subr.mxu0 0.0
  %754 = vmatpush2.msra.mxu0 0.0
  %755 = vmatprep.subr.mxu0 0.0
  %756 = vmatpush2.msra.mxu0 0.0
  %757 = vmatprep.subr.mxu0 0.0
  %758 = vmatpush2.msra.mxu0 0.0
  %759 = vmatprep.subr.mxu0 0.0
  %760 = vmatpush2.msra.mxu0 0.0
  %761 = vmatprep.subr.mxu0 0.0
  %762 = vmatpush2.msra.mxu0 0.0
  %763 = vmatprep.subr.mxu0 0.0
  %764 = vmatpush2.msra.mxu0 0.0
  %765 = vmatprep.subr.mxu0 0.0
  %766 = vmatpush2.msra.mxu0 0.0
  %767 = vmatprep.subr.mxu0 0.0
  %768 = vmatpush2.msra.mxu0 0.0
  %769 = vmatprep.subr.mxu0 0.0
  %770 = vmatpush2.msra.mxu0 0.0
  %771 = vmatprep.subr.mxu0 0.0
  %772 = vmatpush2.msra.mxu0 0.0
  %773 = vmatprep.subr.mxu0 0.0
  %774 = vmatpush2.msra.mxu0 0.0
  %775 = vmatprep.mubr.f32.mxu0 0.0
  %v776 = vand.u32 %v41, 4294901760
  %777 = vmatmul.mubr.f32.gmra.mxu0 %v776
  %v778 = vpop.f32.mrf.mxu0
  %v779 = vadd.f32 %v664, %v778
  %v780 = vpop.f32.mrf.mxu0
  %781 = vmatprep.mubr.f32.mxu0 0.0
  %v782 = vand.u32 %v44, 4294901760
  %783 = vmatmul.mubr.f32.gmra.mxu0 %v782
  %v784 = vpop.f32.mrf.mxu0
  %v785 = vadd.f32 %v670, %v784
  %v786 = vpop.f32.mrf.mxu0
  %787 = vmatprep.mubr.f32.mxu0 0.0
  %v788 = vand.u32 %v47, 4294901760
  %789 = vmatmul.mubr.f32.gmra.mxu0 %v788
  %v790 = vpop.f32.mrf.mxu0
  %v791 = vadd.f32 %v676, %v790
  %v792 = vpop.f32.mrf.mxu0
  %793 = vmatprep.mubr.f32.mxu0 0.0
  %v794 = vand.u32 %v50, 4294901760
  %795 = vmatmul.mubr.f32.gmra.mxu0 %v794
  %v796 = vpop.f32.mrf.mxu0
  %v797 = vadd.f32 %v682, %v796
  %v798 = vpop.f32.mrf.mxu0
  %799 = vmatprep.mubr.f32.mxu0 0.0
  %v800 = vand.u32 %v53, 4294901760
  %801 = vmatmul.mubr.f32.gmra.mxu0 %v800
  %v802 = vpop.f32.mrf.mxu0
  %v803 = vadd.f32 %v688, %v802
  %v804 = vpop.f32.mrf.mxu0
  %805 = vmatprep.mubr.f32.mxu0 0.0
  %v806 = vand.u32 %v56, 4294901760
  %807 = vmatmul.mubr.f32.gmra.mxu0 %v806
  %v808 = vpop.f32.mrf.mxu0
  %v809 = vadd.f32 %v694, %v808
  %v810 = vpop.f32.mrf.mxu0
  %811 = vmatprep.mubr.f32.mxu0 0.0
  %v812 = vand.u32 %v59, 4294901760
  %813 = vmatmul.mubr.f32.gmra.mxu0 %v812
  %v814 = vpop.f32.mrf.mxu0
  %v815 = vadd.f32 %v700, %v814
  %v816 = vpop.f32.mrf.mxu0
  %817 = vmatprep.mubr.f32.mxu0 0.0
  %v818 = vand.u32 %v62, 4294901760
  %819 = vmatmul.mubr.f32.gmra.mxu0 %v818
  %v820 = vpop.f32.mrf.mxu0
  %v821 = vadd.f32 %v706, %v820
  %v822 = vpop.f32.mrf.mxu0
  %823 = vdwg.mxu0
  %vm824 = vcmask 392192
  %825 = vst.msk [vmem:[%s5] sm:$0xff] %vm824, %v779
  %826 = vst.msk [vmem:[%s5 + $0x8] sm:$0xff] %vm824, %v785
  %827 = vst.msk [vmem:[%s5 + $0x10] sm:$0xff] %vm824, %v791
  %828 = vst.msk [vmem:[%s5 + $0x18] sm:$0xff] %vm824, %v797
  %829 = vst.msk [vmem:[%s5 + $0x20] sm:$0xff] %vm824, %v803
  %830 = vst.msk [vmem:[%s5 + $0x28] sm:$0xff] %vm824, %v809
  %831 = vst.msk [vmem:[%s5 + $0x30] sm:$0xff] %vm824, %v815
  %832 = vst.msk [vmem:[%s5 + $0x38] sm:$0xff] %vm824, %v821
  %v833 = vld [vmem:[%s2] sm:$0xff]
  %v834 = vld [vmem:[%s2 + $0x8] sm:$0xff]
  %v835 = vld [vmem:[%s4] sm:$0x1]
  %v837 = vlaneseq
  %v838 = vshrl.u32 %v837, 7
  %v839 = vsub.s32 0, %v838
  %v840 = vrot.slane %v835, %v839
  %842 = vmatprep.subr.mxu0 0.0
  %843 = vmatpush1.msra.mxu0 0.0
  %844 = vmatprep.subr.mxu0 0.0
  %845 = vmatpush1.msra.mxu0 0.0
  %846 = vmatprep.subr.mxu0 0.0
  %847 = vmatpush1.msra.mxu0 0.0
  %848 = vmatprep.subr.mxu0 0.0
  %849 = vmatpush1.msra.mxu0 0.0
  %850 = vmatprep.subr.mxu0 0.0
  %851 = vmatpush1.msra.mxu0 0.0
  %852 = vmatprep.subr.mxu0 0.0
  %853 = vmatpush1.msra.mxu0 0.0
  %854 = vmatprep.subr.mxu0 0.0
  %855 = vmatpush1.msra.mxu0 0.0
  %856 = vmatprep.subr.mxu0 0.0
  %857 = vmatpush1.msra.mxu0 0.0
  %858 = vmatprep.subr.mxu0 0.0
  %859 = vmatpush1.msra.mxu0 0.0
  %860 = vmatprep.subr.mxu0 0.0
  %861 = vmatpush1.msra.mxu0 0.0
  %862 = vmatprep.subr.mxu0 0.0
  %863 = vmatpush1.msra.mxu0 0.0
  %864 = vmatprep.subr.mxu0 0.0
  %865 = vmatpush1.msra.mxu0 0.0
  %866 = vmatprep.subr.mxu0 0.0
  %867 = vmatpush1.msra.mxu0 0.0
  %868 = vmatprep.subr.mxu0 0.0
  %869 = vmatpush1.msra.mxu0 0.0
  %870 = vmatprep.subr.mxu0 0.0
  %v871 = vand.u32 %v834, 4294901760
  %872 = vmatpush1.msra.mxu0 %v871
  %873 = vmatprep.subr.mxu0 0.0
  %v874 = vand.u32 %v833, 4294901760
  %875 = vmatpush1.msra.mxu0 %v874
  %876 = vmatprep.subr.mxu0 0.0
  %877 = vmatpush2.msra.mxu0 0.0
  %878 = vmatprep.subr.mxu0 0.0
  %879 = vmatpush2.msra.mxu0 0.0
  %880 = vmatprep.subr.mxu0 0.0
  %881 = vmatpush2.msra.mxu0 0.0
  %882 = vmatprep.subr.mxu0 0.0
  %883 = vmatpush2.msra.mxu0 0.0
  %884 = vmatprep.subr.mxu0 0.0
  %885 = vmatpush2.msra.mxu0 0.0
  %886 = vmatprep.subr.mxu0 0.0
  %887 = vmatpush2.msra.mxu0 0.0
  %888 = vmatprep.subr.mxu0 0.0
  %889 = vmatpush2.msra.mxu0 0.0
  %890 = vmatprep.subr.mxu0 0.0
  %891 = vmatpush2.msra.mxu0 0.0
  %892 = vmatprep.subr.mxu0 0.0
  %893 = vmatpush2.msra.mxu0 0.0
  %894 = vmatprep.subr.mxu0 0.0
  %895 = vmatpush2.msra.mxu0 0.0
  %896 = vmatprep.subr.mxu0 0.0
  %897 = vmatpush2.msra.mxu0 0.0
  %898 = vmatprep.subr.mxu0 0.0
  %899 = vmatpush2.msra.mxu0 0.0
  %900 = vmatprep.subr.mxu0 0.0
  %901 = vmatpush2.msra.mxu0 0.0
  %902 = vmatprep.subr.mxu0 0.0
  %903 = vmatpush2.msra.mxu0 0.0
  %904 = vmatprep.subr.mxu0 0.0
  %905 = vmatpush2.msra.mxu0 0.0
  %906 = vmatprep.subr.mxu0 0.0
  %907 = vmatpush2.msra.mxu0 0.0
  %908 = vmatprep.mubr.f32.mxu0 0.0
  %v909 = vand.u32 %v41, 4294901760
  %v910 = vsub.f32 %v41, %v909
  %v911 = vand.u32 %v910, 4294901760
  %v912 = vsub.f32 %v910, %v911
  %v913 = vand.u32 %v912, 4294901760
  %914 = vmatmul.mubr.f32.gmra.mxu0 %v913
  %v915 = vpop.f32.mrf.mxu0
  %v916 = vadd.f32 %v840, %v915
  %v917 = vpop.f32.mrf.mxu0
  %918 = vmatprep.mubr.f32.mxu0 0.0
  %v919 = vand.u32 %v44, 4294901760
  %v920 = vsub.f32 %v44, %v919
  %v921 = vand.u32 %v920, 4294901760
  %v922 = vsub.f32 %v920, %v921
  %v923 = vand.u32 %v922, 4294901760
  %924 = vmatmul.mubr.f32.gmra.mxu0 %v923
  %v925 = vpop.f32.mrf.mxu0
  %v926 = vadd.f32 %v840, %v925
  %v927 = vpop.f32.mrf.mxu0
  %928 = vmatprep.mubr.f32.mxu0 0.0
  %v929 = vand.u32 %v47, 4294901760
  %v930 = vsub.f32 %v47, %v929
  %v931 = vand.u32 %v930, 4294901760
  %v932 = vsub.f32 %v930, %v931
  %v933 = vand.u32 %v932, 4294901760
  %934 = vmatmul.mubr.f32.gmra.mxu0 %v933
  %v935 = vpop.f32.mrf.mxu0
  %v936 = vadd.f32 %v840, %v935
  %v937 = vpop.f32.mrf.mxu0
  %938 = vmatprep.mubr.f32.mxu0 0.0
  %v939 = vand.u32 %v50, 4294901760
  %v940 = vsub.f32 %v50, %v939
  %v941 = vand.u32 %v940, 4294901760
  %v942 = vsub.f32 %v940, %v941
  %v943 = vand.u32 %v942, 4294901760
  %944 = vmatmul.mubr.f32.gmra.mxu0 %v943
  %v945 = vpop.f32.mrf.mxu0
  %v946 = vadd.f32 %v840, %v945
  %v947 = vpop.f32.mrf.mxu0
  %948 = vmatprep.mubr.f32.mxu0 0.0
  %v949 = vand.u32 %v53, 4294901760
  %v950 = vsub.f32 %v53, %v949
  %v951 = vand.u32 %v950, 4294901760
  %v952 = vsub.f32 %v950, %v951
  %v953 = vand.u32 %v952, 4294901760
  %954 = vmatmul.mubr.f32.gmra.mxu0 %v953
  %v955 = vpop.f32.mrf.mxu0
  %v956 = vadd.f32 %v840, %v955
  %v957 = vpop.f32.mrf.mxu0
  %958 = vmatprep.mubr.f32.mxu0 0.0
  %v959 = vand.u32 %v56, 4294901760
  %v960 = vsub.f32 %v56, %v959
  %v961 = vand.u32 %v960, 4294901760
  %v962 = vsub.f32 %v960, %v961
  %v963 = vand.u32 %v962, 4294901760
  %964 = vmatmul.mubr.f32.gmra.mxu0 %v963
  %v965 = vpop.f32.mrf.mxu0
  %v966 = vadd.f32 %v840, %v965
  %v967 = vpop.f32.mrf.mxu0
  %968 = vmatprep.mubr.f32.mxu0 0.0
  %v969 = vand.u32 %v59, 4294901760
  %v970 = vsub.f32 %v59, %v969
  %v971 = vand.u32 %v970, 4294901760
  %v972 = vsub.f32 %v970, %v971
  %v973 = vand.u32 %v972, 4294901760
  %974 = vmatmul.mubr.f32.gmra.mxu0 %v973
  %v975 = vpop.f32.mrf.mxu0
  %v976 = vadd.f32 %v840, %v975
  %v977 = vpop.f32.mrf.mxu0
  %978 = vmatprep.mubr.f32.mxu0 0.0
  %v979 = vand.u32 %v62, 4294901760
  %v980 = vsub.f32 %v62, %v979
  %v981 = vand.u32 %v980, 4294901760
  %v982 = vsub.f32 %v980, %v981
  %v983 = vand.u32 %v982, 4294901760
  %984 = vmatmul.mubr.f32.gmra.mxu0 %v983
  %v985 = vpop.f32.mrf.mxu0
  %v986 = vadd.f32 %v840, %v985
  %v987 = vpop.f32.mrf.mxu0
  %988 = vdwg.mxu0
  %989 = vmatprep.subr.mxu0 0.0
  %990 = vmatpush1.msra.mxu0 0.0
  %991 = vmatprep.subr.mxu0 0.0
  %992 = vmatpush1.msra.mxu0 0.0
  %993 = vmatprep.subr.mxu0 0.0
  %994 = vmatpush1.msra.mxu0 0.0
  %995 = vmatprep.subr.mxu0 0.0
  %996 = vmatpush1.msra.mxu0 0.0
  %997 = vmatprep.subr.mxu0 0.0
  %998 = vmatpush1.msra.mxu0 0.0
  %999 = vmatprep.subr.mxu0 0.0
  %1000 = vmatpush1.msra.mxu0 0.0
  %1001 = vmatprep.subr.mxu0 0.0
  %1002 = vmatpush1.msra.mxu0 0.0
  %1003 = vmatprep.subr.mxu0 0.0
  %1004 = vmatpush1.msra.mxu0 0.0
  %1005 = vmatprep.subr.mxu0 0.0
  %1006 = vmatpush1.msra.mxu0 0.0
  %1007 = vmatprep.subr.mxu0 0.0
  %1008 = vmatpush1.msra.mxu0 0.0
  %1009 = vmatprep.subr.mxu0 0.0
  %1010 = vmatpush1.msra.mxu0 0.0
  %1011 = vmatprep.subr.mxu0 0.0
  %1012 = vmatpush1.msra.mxu0 0.0
  %1013 = vmatprep.subr.mxu0 0.0
  %1014 = vmatpush1.msra.mxu0 0.0
  %1015 = vmatprep.subr.mxu0 0.0
  %1016 = vmatpush1.msra.mxu0 0.0
  %1017 = vmatprep.subr.mxu0 0.0
  %v1018 = vand.u32 %v834, 4294901760
  %v1019 = vsub.f32 %v834, %v1018
  %v1020 = vand.u32 %v1019, 4294901760
  %v1021 = vsub.f32 %v1019, %v1020
  %v1022 = vand.u32 %v1021, 4294901760
  %1023 = vmatpush1.msra.mxu0 %v1022
  %1024 = vmatprep.subr.mxu0 0.0
  %v1025 = vand.u32 %v833, 4294901760
  %v1026 = vsub.f32 %v833, %v1025
  %v1027 = vand.u32 %v1026, 4294901760
  %v1028 = vsub.f32 %v1026, %v1027
  %v1029 = vand.u32 %v1028, 4294901760
  %1030 = vmatpush1.msra.mxu0 %v1029
  %1031 = vmatprep.subr.mxu0 0.0
  %1032 = vmatpush2.msra.mxu0 0.0
  %1033 = vmatprep.subr.mxu0 0.0
  %1034 = vmatpush2.msra.mxu0 0.0
  %1035 = vmatprep.subr.mxu0 0.0
  %1036 = vmatpush2.msra.mxu0 0.0
  %1037 = vmatprep.subr.mxu0 0.0
  %1038 = vmatpush2.msra.mxu0 0.0
  %1039 = vmatprep.subr.mxu0 0.0
  %1040 = vmatpush2.msra.mxu0 0.0
  %1041 = vmatprep.subr.mxu0 0.0
  %1042 = vmatpush2.msra.mxu0 0.0
  %1043 = vmatprep.subr.mxu0 0.0
  %1044 = vmatpush2.msra.mxu0 0.0
  %1045 = vmatprep.subr.mxu0 0.0
  %1046 = vmatpush2.msra.mxu0 0.0
  %1047 = vmatprep.subr.mxu0 0.0
  %1048 = vmatpush2.msra.mxu0 0.0
  %1049 = vmatprep.subr.mxu0 0.0
  %1050 = vmatpush2.msra.mxu0 0.0
  %1051 = vmatprep.subr.mxu0 0.0
  %1052 = vmatpush2.msra.mxu0 0.0
  %1053 = vmatprep.subr.mxu0 0.0
  %1054 = vmatpush2.msra.mxu0 0.0
  %1055 = vmatprep.subr.mxu0 0.0
  %1056 = vmatpush2.msra.mxu0 0.0
  %1057 = vmatprep.subr.mxu0 0.0
  %1058 = vmatpush2.msra.mxu0 0.0
  %1059 = vmatprep.subr.mxu0 0.0
  %1060 = vmatpush2.msra.mxu0 0.0
  %1061 = vmatprep.subr.mxu0 0.0
  %1062 = vmatpush2.msra.mxu0 0.0
  %1063 = vmatprep.mubr.f32.mxu0 0.0
  %v1064 = vand.u32 %v41, 4294901760
  %1065 = vmatmul.mubr.f32.gmra.mxu0 %v1064
  %v1066 = vpop.f32.mrf.mxu0
  %v1067 = vadd.f32 %v916, %v1066
  %v1068 = vpop.f32.mrf.mxu0
  %1069 = vmatprep.mubr.f32.mxu0 0.0
  %v1070 = vand.u32 %v44, 4294901760
  %1071 = vmatmul.mubr.f32.gmra.mxu0 %v1070
  %v1072 = vpop.f32.mrf.mxu0
  %v1073 = vadd.f32 %v926, %v1072
  %v1074 = vpop.f32.mrf.mxu0
  %1075 = vmatprep.mubr.f32.mxu0 0.0
  %v1076 = vand.u32 %v47, 4294901760
  %1077 = vmatmul.mubr.f32.gmra.mxu0 %v1076
  %v1078 = vpop.f32.mrf.mxu0
  %v1079 = vadd.f32 %v936, %v1078
  %v1080 = vpop.f32.mrf.mxu0
  %1081 = vmatprep.mubr.f32.mxu0 0.0
  %v1082 = vand.u32 %v50, 4294901760
  %1083 = vmatmul.mubr.f32.gmra.mxu0 %v1082
  %v1084 = vpop.f32.mrf.mxu0
  %v1085 = vadd.f32 %v946, %v1084
  %v1086 = vpop.f32.mrf.mxu0
  %1087 = vmatprep.mubr.f32.mxu0 0.0
  %v1088 = vand.u32 %v53, 4294901760
  %1089 = vmatmul.mubr.f32.gmra.mxu0 %v1088
  %v1090 = vpop.f32.mrf.mxu0
  %v1091 = vadd.f32 %v956, %v1090
  %v1092 = vpop.f32.mrf.mxu0
  %1093 = vmatprep.mubr.f32.mxu0 0.0
  %v1094 = vand.u32 %v56, 4294901760
  %1095 = vmatmul.mubr.f32.gmra.mxu0 %v1094
  %v1096 = vpop.f32.mrf.mxu0
  %v1097 = vadd.f32 %v966, %v1096
  %v1098 = vpop.f32.mrf.mxu0
  %1099 = vmatprep.mubr.f32.mxu0 0.0
  %v1100 = vand.u32 %v59, 4294901760
  %1101 = vmatmul.mubr.f32.gmra.mxu0 %v1100
  %v1102 = vpop.f32.mrf.mxu0
  %v1103 = vadd.f32 %v976, %v1102
  %v1104 = vpop.f32.mrf.mxu0
  %1105 = vmatprep.mubr.f32.mxu0 0.0
  %v1106 = vand.u32 %v62, 4294901760
  %1107 = vmatmul.mubr.f32.gmra.mxu0 %v1106
  %v1108 = vpop.f32.mrf.mxu0
  %v1109 = vadd.f32 %v986, %v1108
  %v1110 = vpop.f32.mrf.mxu0
  %1111 = vdwg.mxu0
  %1112 = vmatprep.subr.mxu0 0.0
  %1113 = vmatpush1.msra.mxu0 0.0
  %1114 = vmatprep.subr.mxu0 0.0
  %1115 = vmatpush1.msra.mxu0 0.0
  %1116 = vmatprep.subr.mxu0 0.0
  %1117 = vmatpush1.msra.mxu0 0.0
  %1118 = vmatprep.subr.mxu0 0.0
  %1119 = vmatpush1.msra.mxu0 0.0
  %1120 = vmatprep.subr.mxu0 0.0
  %1121 = vmatpush1.msra.mxu0 0.0
  %1122 = vmatprep.subr.mxu0 0.0
  %1123 = vmatpush1.msra.mxu0 0.0
  %1124 = vmatprep.subr.mxu0 0.0
  %1125 = vmatpush1.msra.mxu0 0.0
  %1126 = vmatprep.subr.mxu0 0.0
  %1127 = vmatpush1.msra.mxu0 0.0
  %1128 = vmatprep.subr.mxu0 0.0
  %1129 = vmatpush1.msra.mxu0 0.0
  %1130 = vmatprep.subr.mxu0 0.0
  %1131 = vmatpush1.msra.mxu0 0.0
  %1132 = vmatprep.subr.mxu0 0.0
  %1133 = vmatpush1.msra.mxu0 0.0
  %1134 = vmatprep.subr.mxu0 0.0
  %1135 = vmatpush1.msra.mxu0 0.0
  %1136 = vmatprep.subr.mxu0 0.0
  %1137 = vmatpush1.msra.mxu0 0.0
  %1138 = vmatprep.subr.mxu0 0.0
  %1139 = vmatpush1.msra.mxu0 0.0
  %1140 = vmatprep.subr.mxu0 0.0
  %v1141 = vand.u32 %v834, 4294901760
  %v1142 = vsub.f32 %v834, %v1141
  %1143 = vmatpush1.msra.mxu0 %v1142
  %1144 = vmatprep.subr.mxu0 0.0
  %v1145 = vand.u32 %v833, 4294901760
  %v1146 = vsub.f32 %v833, %v1145
  %1147 = vmatpush1.msra.mxu0 %v1146
  %1148 = vmatprep.subr.mxu0 0.0
  %1149 = vmatpush2.msra.mxu0 0.0
  %1150 = vmatprep.subr.mxu0 0.0
  %1151 = vmatpush2.msra.mxu0 0.0
  %1152 = vmatprep.subr.mxu0 0.0
  %1153 = vmatpush2.msra.mxu0 0.0
  %1154 = vmatprep.subr.mxu0 0.0
  %1155 = vmatpush2.msra.mxu0 0.0
  %1156 = vmatprep.subr.mxu0 0.0
  %1157 = vmatpush2.msra.mxu0 0.0
  %1158 = vmatprep.subr.mxu0 0.0
  %1159 = vmatpush2.msra.mxu0 0.0
  %1160 = vmatprep.subr.mxu0 0.0
  %1161 = vmatpush2.msra.mxu0 0.0
  %1162 = vmatprep.subr.mxu0 0.0
  %1163 = vmatpush2.msra.mxu0 0.0
  %1164 = vmatprep.subr.mxu0 0.0
  %1165 = vmatpush2.msra.mxu0 0.0
  %1166 = vmatprep.subr.mxu0 0.0
  %1167 = vmatpush2.msra.mxu0 0.0
  %1168 = vmatprep.subr.mxu0 0.0
  %1169 = vmatpush2.msra.mxu0 0.0
  %1170 = vmatprep.subr.mxu0 0.0
  %1171 = vmatpush2.msra.mxu0 0.0
  %1172 = vmatprep.subr.mxu0 0.0
  %1173 = vmatpush2.msra.mxu0 0.0
  %1174 = vmatprep.subr.mxu0 0.0
  %1175 = vmatpush2.msra.mxu0 0.0
  %1176 = vmatprep.subr.mxu0 0.0
  %1177 = vmatpush2.msra.mxu0 0.0
  %1178 = vmatprep.subr.mxu0 0.0
  %1179 = vmatpush2.msra.mxu0 0.0
  %1180 = vmatprep.mubr.f32.mxu0 0.0
  %v1181 = vand.u32 %v41, 4294901760
  %v1182 = vsub.f32 %v41, %v1181
  %1183 = vmatmul.mubr.f32.gmra.mxu0 %v1182
  %v1184 = vpop.f32.mrf.mxu0
  %v1185 = vadd.f32 %v1067, %v1184
  %v1186 = vpop.f32.mrf.mxu0
  %1187 = vmatprep.mubr.f32.mxu0 0.0
  %v1188 = vand.u32 %v44, 4294901760
  %v1189 = vsub.f32 %v44, %v1188
  %1190 = vmatmul.mubr.f32.gmra.mxu0 %v1189
  %v1191 = vpop.f32.mrf.mxu0
  %v1192 = vadd.f32 %v1073, %v1191
  %v1193 = vpop.f32.mrf.mxu0
  %1194 = vmatprep.mubr.f32.mxu0 0.0
  %v1195 = vand.u32 %v47, 4294901760
  %v1196 = vsub.f32 %v47, %v1195
  %1197 = vmatmul.mubr.f32.gmra.mxu0 %v1196
  %v1198 = vpop.f32.mrf.mxu0
  %v1199 = vadd.f32 %v1079, %v1198
  %v1200 = vpop.f32.mrf.mxu0
  %1201 = vmatprep.mubr.f32.mxu0 0.0
  %v1202 = vand.u32 %v50, 4294901760
  %v1203 = vsub.f32 %v50, %v1202
  %1204 = vmatmul.mubr.f32.gmra.mxu0 %v1203
  %v1205 = vpop.f32.mrf.mxu0
  %v1206 = vadd.f32 %v1085, %v1205
  %v1207 = vpop.f32.mrf.mxu0
  %1208 = vmatprep.mubr.f32.mxu0 0.0
  %v1209 = vand.u32 %v53, 4294901760
  %v1210 = vsub.f32 %v53, %v1209
  %1211 = vmatmul.mubr.f32.gmra.mxu0 %v1210
  %v1212 = vpop.f32.mrf.mxu0
  %v1213 = vadd.f32 %v1091, %v1212
  %v1214 = vpop.f32.mrf.mxu0
  %1215 = vmatprep.mubr.f32.mxu0 0.0
  %v1216 = vand.u32 %v56, 4294901760
  %v1217 = vsub.f32 %v56, %v1216
  %1218 = vmatmul.mubr.f32.gmra.mxu0 %v1217
  %v1219 = vpop.f32.mrf.mxu0
  %v1220 = vadd.f32 %v1097, %v1219
  %v1221 = vpop.f32.mrf.mxu0
  %1222 = vmatprep.mubr.f32.mxu0 0.0
  %v1223 = vand.u32 %v59, 4294901760
  %v1224 = vsub.f32 %v59, %v1223
  %1225 = vmatmul.mubr.f32.gmra.mxu0 %v1224
  %v1226 = vpop.f32.mrf.mxu0
  %v1227 = vadd.f32 %v1103, %v1226
  %v1228 = vpop.f32.mrf.mxu0
  %1229 = vmatprep.mubr.f32.mxu0 0.0
  %v1230 = vand.u32 %v62, 4294901760
  %v1231 = vsub.f32 %v62, %v1230
  %1232 = vmatmul.mubr.f32.gmra.mxu0 %v1231
  %v1233 = vpop.f32.mrf.mxu0
  %v1234 = vadd.f32 %v1109, %v1233
  %v1235 = vpop.f32.mrf.mxu0
  %1236 = vdwg.mxu0
  %1237 = vmatprep.subr.mxu0 0.0
  %1238 = vmatpush1.msra.mxu0 0.0
  %1239 = vmatprep.subr.mxu0 0.0
  %1240 = vmatpush1.msra.mxu0 0.0
  %1241 = vmatprep.subr.mxu0 0.0
  %1242 = vmatpush1.msra.mxu0 0.0
  %1243 = vmatprep.subr.mxu0 0.0
  %1244 = vmatpush1.msra.mxu0 0.0
  %1245 = vmatprep.subr.mxu0 0.0
  %1246 = vmatpush1.msra.mxu0 0.0
  %1247 = vmatprep.subr.mxu0 0.0
  %1248 = vmatpush1.msra.mxu0 0.0
  %1249 = vmatprep.subr.mxu0 0.0
  %1250 = vmatpush1.msra.mxu0 0.0
  %1251 = vmatprep.subr.mxu0 0.0
  %1252 = vmatpush1.msra.mxu0 0.0
  %1253 = vmatprep.subr.mxu0 0.0
  %1254 = vmatpush1.msra.mxu0 0.0
  %1255 = vmatprep.subr.mxu0 0.0
  %1256 = vmatpush1.msra.mxu0 0.0
  %1257 = vmatprep.subr.mxu0 0.0
  %1258 = vmatpush1.msra.mxu0 0.0
  %1259 = vmatprep.subr.mxu0 0.0
  %1260 = vmatpush1.msra.mxu0 0.0
  %1261 = vmatprep.subr.mxu0 0.0
  %1262 = vmatpush1.msra.mxu0 0.0
  %1263 = vmatprep.subr.mxu0 0.0
  %1264 = vmatpush1.msra.mxu0 0.0
  %1265 = vmatprep.subr.mxu0 0.0
  %v1266 = vand.u32 %v834, 4294901760
  %1267 = vmatpush1.msra.mxu0 %v1266
  %1268 = vmatprep.subr.mxu0 0.0
  %v1269 = vand.u32 %v833, 4294901760
  %1270 = vmatpush1.msra.mxu0 %v1269
  %1271 = vmatprep.subr.mxu0 0.0
  %1272 = vmatpush2.msra.mxu0 0.0
  %1273 = vmatprep.subr.mxu0 0.0
  %1274 = vmatpush2.msra.mxu0 0.0
  %1275 = vmatprep.subr.mxu0 0.0
  %1276 = vmatpush2.msra.mxu0 0.0
  %1277 = vmatprep.subr.mxu0 0.0
  %1278 = vmatpush2.msra.mxu0 0.0
  %1279 = vmatprep.subr.mxu0 0.0
  %1280 = vmatpush2.msra.mxu0 0.0
  %1281 = vmatprep.subr.mxu0 0.0
  %1282 = vmatpush2.msra.mxu0 0.0
  %1283 = vmatprep.subr.mxu0 0.0
  %1284 = vmatpush2.msra.mxu0 0.0
  %1285 = vmatprep.subr.mxu0 0.0
  %1286 = vmatpush2.msra.mxu0 0.0
  %1287 = vmatprep.subr.mxu0 0.0
  %1288 = vmatpush2.msra.mxu0 0.0
  %1289 = vmatprep.subr.mxu0 0.0
  %1290 = vmatpush2.msra.mxu0 0.0
  %1291 = vmatprep.subr.mxu0 0.0
  %1292 = vmatpush2.msra.mxu0 0.0
  %1293 = vmatprep.subr.mxu0 0.0
  %1294 = vmatpush2.msra.mxu0 0.0
  %1295 = vmatprep.subr.mxu0 0.0
  %1296 = vmatpush2.msra.mxu0 0.0
  %1297 = vmatprep.subr.mxu0 0.0
  %1298 = vmatpush2.msra.mxu0 0.0
  %1299 = vmatprep.subr.mxu0 0.0
  %1300 = vmatpush2.msra.mxu0 0.0
  %1301 = vmatprep.subr.mxu0 0.0
  %1302 = vmatpush2.msra.mxu0 0.0
  %1303 = vmatprep.mubr.f32.mxu0 0.0
  %v1304 = vand.u32 %v41, 4294901760
  %v1305 = vsub.f32 %v41, %v1304
  %v1306 = vand.u32 %v1305, 4294901760
  %1307 = vmatmul.mubr.f32.gmra.mxu0 %v1306
  %v1308 = vpop.f32.mrf.mxu0
  %v1309 = vadd.f32 %v1185, %v1308
  %v1310 = vpop.f32.mrf.mxu0
  %1311 = vmatprep.mubr.f32.mxu0 0.0
  %v1312 = vand.u32 %v44, 4294901760
  %v1313 = vsub.f32 %v44, %v1312
  %v1314 = vand.u32 %v1313, 4294901760
  %1315 = vmatmul.mubr.f32.gmra.mxu0 %v1314
  %v1316 = vpop.f32.mrf.mxu0
  %v1317 = vadd.f32 %v1192, %v1316
  %v1318 = vpop.f32.mrf.mxu0
  %1319 = vmatprep.mubr.f32.mxu0 0.0
  %v1320 = vand.u32 %v47, 4294901760
  %v1321 = vsub.f32 %v47, %v1320
  %v1322 = vand.u32 %v1321, 4294901760
  %1323 = vmatmul.mubr.f32.gmra.mxu0 %v1322
  %v1324 = vpop.f32.mrf.mxu0
  %v1325 = vadd.f32 %v1199, %v1324
  %v1326 = vpop.f32.mrf.mxu0
  %1327 = vmatprep.mubr.f32.mxu0 0.0
  %v1328 = vand.u32 %v50, 4294901760
  %v1329 = vsub.f32 %v50, %v1328
  %v1330 = vand.u32 %v1329, 4294901760
  %1331 = vmatmul.mubr.f32.gmra.mxu0 %v1330
  %v1332 = vpop.f32.mrf.mxu0
  %v1333 = vadd.f32 %v1206, %v1332
  %v1334 = vpop.f32.mrf.mxu0
  %1335 = vmatprep.mubr.f32.mxu0 0.0
  %v1336 = vand.u32 %v53, 4294901760
  %v1337 = vsub.f32 %v53, %v1336
  %v1338 = vand.u32 %v1337, 4294901760
  %1339 = vmatmul.mubr.f32.gmra.mxu0 %v1338
  %v1340 = vpop.f32.mrf.mxu0
  %v1341 = vadd.f32 %v1213, %v1340
  %v1342 = vpop.f32.mrf.mxu0
  %1343 = vmatprep.mubr.f32.mxu0 0.0
  %v1344 = vand.u32 %v56, 4294901760
  %v1345 = vsub.f32 %v56, %v1344
  %v1346 = vand.u32 %v1345, 4294901760
  %1347 = vmatmul.mubr.f32.gmra.mxu0 %v1346
  %v1348 = vpop.f32.mrf.mxu0
  %v1349 = vadd.f32 %v1220, %v1348
  %v1350 = vpop.f32.mrf.mxu0
  %1351 = vmatprep.mubr.f32.mxu0 0.0
  %v1352 = vand.u32 %v59, 4294901760
  %v1353 = vsub.f32 %v59, %v1352
  %v1354 = vand.u32 %v1353, 4294901760
  %1355 = vmatmul.mubr.f32.gmra.mxu0 %v1354
  %v1356 = vpop.f32.mrf.mxu0
  %v1357 = vadd.f32 %v1227, %v1356
  %v1358 = vpop.f32.mrf.mxu0
  %1359 = vmatprep.mubr.f32.mxu0 0.0
  %v1360 = vand.u32 %v62, 4294901760
  %v1361 = vsub.f32 %v62, %v1360
  %v1362 = vand.u32 %v1361, 4294901760
  %1363 = vmatmul.mubr.f32.gmra.mxu0 %v1362
  %v1364 = vpop.f32.mrf.mxu0
  %v1365 = vadd.f32 %v1234, %v1364
  %v1366 = vpop.f32.mrf.mxu0
  %1367 = vdwg.mxu0
  %1368 = vmatprep.subr.mxu0 0.0
  %1369 = vmatpush1.msra.mxu0 0.0
  %1370 = vmatprep.subr.mxu0 0.0
  %1371 = vmatpush1.msra.mxu0 0.0
  %1372 = vmatprep.subr.mxu0 0.0
  %1373 = vmatpush1.msra.mxu0 0.0
  %1374 = vmatprep.subr.mxu0 0.0
  %1375 = vmatpush1.msra.mxu0 0.0
  %1376 = vmatprep.subr.mxu0 0.0
  %1377 = vmatpush1.msra.mxu0 0.0
  %1378 = vmatprep.subr.mxu0 0.0
  %1379 = vmatpush1.msra.mxu0 0.0
  %1380 = vmatprep.subr.mxu0 0.0
  %1381 = vmatpush1.msra.mxu0 0.0
  %1382 = vmatprep.subr.mxu0 0.0
  %1383 = vmatpush1.msra.mxu0 0.0
  %1384 = vmatprep.subr.mxu0 0.0
  %1385 = vmatpush1.msra.mxu0 0.0
  %1386 = vmatprep.subr.mxu0 0.0
  %1387 = vmatpush1.msra.mxu0 0.0
  %1388 = vmatprep.subr.mxu0 0.0
  %1389 = vmatpush1.msra.mxu0 0.0
  %1390 = vmatprep.subr.mxu0 0.0
  %1391 = vmatpush1.msra.mxu0 0.0
  %1392 = vmatprep.subr.mxu0 0.0
  %1393 = vmatpush1.msra.mxu0 0.0
  %1394 = vmatprep.subr.mxu0 0.0
  %1395 = vmatpush1.msra.mxu0 0.0
  %1396 = vmatprep.subr.mxu0 0.0
  %v1397 = vand.u32 %v834, 4294901760
  %v1398 = vsub.f32 %v834, %v1397
  %v1399 = vand.u32 %v1398, 4294901760
  %1400 = vmatpush1.msra.mxu0 %v1399
  %1401 = vmatprep.subr.mxu0 0.0
  %v1402 = vand.u32 %v833, 4294901760
  %v1403 = vsub.f32 %v833, %v1402
  %v1404 = vand.u32 %v1403, 4294901760
  %1405 = vmatpush1.msra.mxu0 %v1404
  %1406 = vmatprep.subr.mxu0 0.0
  %1407 = vmatpush2.msra.mxu0 0.0
  %1408 = vmatprep.subr.mxu0 0.0
  %1409 = vmatpush2.msra.mxu0 0.0
  %1410 = vmatprep.subr.mxu0 0.0
  %1411 = vmatpush2.msra.mxu0 0.0
  %1412 = vmatprep.subr.mxu0 0.0
  %1413 = vmatpush2.msra.mxu0 0.0
  %1414 = vmatprep.subr.mxu0 0.0
  %1415 = vmatpush2.msra.mxu0 0.0
  %1416 = vmatprep.subr.mxu0 0.0
  %1417 = vmatpush2.msra.mxu0 0.0
  %1418 = vmatprep.subr.mxu0 0.0
  %1419 = vmatpush2.msra.mxu0 0.0
  %1420 = vmatprep.subr.mxu0 0.0
  %1421 = vmatpush2.msra.mxu0 0.0
  %1422 = vmatprep.subr.mxu0 0.0
  %1423 = vmatpush2.msra.mxu0 0.0
  %1424 = vmatprep.subr.mxu0 0.0
  %1425 = vmatpush2.msra.mxu0 0.0
  %1426 = vmatprep.subr.mxu0 0.0
  %1427 = vmatpush2.msra.mxu0 0.0
  %1428 = vmatprep.subr.mxu0 0.0
  %1429 = vmatpush2.msra.mxu0 0.0
  %1430 = vmatprep.subr.mxu0 0.0
  %1431 = vmatpush2.msra.mxu0 0.0
  %1432 = vmatprep.subr.mxu0 0.0
  %1433 = vmatpush2.msra.mxu0 0.0
  %1434 = vmatprep.subr.mxu0 0.0
  %1435 = vmatpush2.msra.mxu0 0.0
  %1436 = vmatprep.subr.mxu0 0.0
  %1437 = vmatpush2.msra.mxu0 0.0
  %1438 = vmatprep.mubr.f32.mxu0 0.0
  %v1439 = vand.u32 %v41, 4294901760
  %1440 = vmatmul.mubr.f32.gmra.mxu0 %v1439
  %v1441 = vpop.f32.mrf.mxu0
  %v1442 = vadd.f32 %v1309, %v1441
  %v1443 = vpop.f32.mrf.mxu0
  %1444 = vmatprep.mubr.f32.mxu0 0.0
  %v1445 = vand.u32 %v44, 4294901760
  %1446 = vmatmul.mubr.f32.gmra.mxu0 %v1445
  %v1447 = vpop.f32.mrf.mxu0
  %v1448 = vadd.f32 %v1317, %v1447
  %v1449 = vpop.f32.mrf.mxu0
  %1450 = vmatprep.mubr.f32.mxu0 0.0
  %v1451 = vand.u32 %v47, 4294901760
  %1452 = vmatmul.mubr.f32.gmra.mxu0 %v1451
  %v1453 = vpop.f32.mrf.mxu0
  %v1454 = vadd.f32 %v1325, %v1453
  %v1455 = vpop.f32.mrf.mxu0
  %1456 = vmatprep.mubr.f32.mxu0 0.0
  %v1457 = vand.u32 %v50, 4294901760
  %1458 = vmatmul.mubr.f32.gmra.mxu0 %v1457
  %v1459 = vpop.f32.mrf.mxu0
  %v1460 = vadd.f32 %v1333, %v1459
  %v1461 = vpop.f32.mrf.mxu0
  %1462 = vmatprep.mubr.f32.mxu0 0.0
  %v1463 = vand.u32 %v53, 4294901760
  %1464 = vmatmul.mubr.f32.gmra.mxu0 %v1463
  %v1465 = vpop.f32.mrf.mxu0
  %v1466 = vadd.f32 %v1341, %v1465
  %v1467 = vpop.f32.mrf.mxu0
  %1468 = vmatprep.mubr.f32.mxu0 0.0
  %v1469 = vand.u32 %v56, 4294901760
  %1470 = vmatmul.mubr.f32.gmra.mxu0 %v1469
  %v1471 = vpop.f32.mrf.mxu0
  %v1472 = vadd.f32 %v1349, %v1471
  %v1473 = vpop.f32.mrf.mxu0
  %1474 = vmatprep.mubr.f32.mxu0 0.0
  %v1475 = vand.u32 %v59, 4294901760
  %1476 = vmatmul.mubr.f32.gmra.mxu0 %v1475
  %v1477 = vpop.f32.mrf.mxu0
  %v1478 = vadd.f32 %v1357, %v1477
  %v1479 = vpop.f32.mrf.mxu0
  %1480 = vmatprep.mubr.f32.mxu0 0.0
  %v1481 = vand.u32 %v62, 4294901760
  %1482 = vmatmul.mubr.f32.gmra.mxu0 %v1481
  %v1483 = vpop.f32.mrf.mxu0
  %v1484 = vadd.f32 %v1365, %v1483
  %v1485 = vpop.f32.mrf.mxu0
  %1486 = vdwg.mxu0
  %1487 = vmatprep.subr.mxu0 0.0
  %1488 = vmatpush1.msra.mxu0 0.0
  %1489 = vmatprep.subr.mxu0 0.0
  %1490 = vmatpush1.msra.mxu0 0.0
  %1491 = vmatprep.subr.mxu0 0.0
  %1492 = vmatpush1.msra.mxu0 0.0
  %1493 = vmatprep.subr.mxu0 0.0
  %1494 = vmatpush1.msra.mxu0 0.0
  %1495 = vmatprep.subr.mxu0 0.0
  %1496 = vmatpush1.msra.mxu0 0.0
  %1497 = vmatprep.subr.mxu0 0.0
  %1498 = vmatpush1.msra.mxu0 0.0
  %1499 = vmatprep.subr.mxu0 0.0
  %1500 = vmatpush1.msra.mxu0 0.0
  %1501 = vmatprep.subr.mxu0 0.0
  %1502 = vmatpush1.msra.mxu0 0.0
  %1503 = vmatprep.subr.mxu0 0.0
  %1504 = vmatpush1.msra.mxu0 0.0
  %1505 = vmatprep.subr.mxu0 0.0
  %1506 = vmatpush1.msra.mxu0 0.0
  %1507 = vmatprep.subr.mxu0 0.0
  %1508 = vmatpush1.msra.mxu0 0.0
  %1509 = vmatprep.subr.mxu0 0.0
  %1510 = vmatpush1.msra.mxu0 0.0
  %1511 = vmatprep.subr.mxu0 0.0
  %1512 = vmatpush1.msra.mxu0 0.0
  %1513 = vmatprep.subr.mxu0 0.0
  %1514 = vmatpush1.msra.mxu0 0.0
  %1515 = vmatprep.subr.mxu0 0.0
  %v1516 = vand.u32 %v834, 4294901760
  %1517 = vmatpush1.msra.mxu0 %v1516
  %1518 = vmatprep.subr.mxu0 0.0
  %v1519 = vand.u32 %v833, 4294901760
  %1520 = vmatpush1.msra.mxu0 %v1519
  %1521 = vmatprep.subr.mxu0 0.0
  %1522 = vmatpush2.msra.mxu0 0.0
  %1523 = vmatprep.subr.mxu0 0.0
  %1524 = vmatpush2.msra.mxu0 0.0
  %1525 = vmatprep.subr.mxu0 0.0
  %1526 = vmatpush2.msra.mxu0 0.0
  %1527 = vmatprep.subr.mxu0 0.0
  %1528 = vmatpush2.msra.mxu0 0.0
  %1529 = vmatprep.subr.mxu0 0.0
  %1530 = vmatpush2.msra.mxu0 0.0
  %1531 = vmatprep.subr.mxu0 0.0
  %1532 = vmatpush2.msra.mxu0 0.0
  %1533 = vmatprep.subr.mxu0 0.0
  %1534 = vmatpush2.msra.mxu0 0.0
  %1535 = vmatprep.subr.mxu0 0.0
  %1536 = vmatpush2.msra.mxu0 0.0
  %1537 = vmatprep.subr.mxu0 0.0
  %1538 = vmatpush2.msra.mxu0 0.0
  %1539 = vmatprep.subr.mxu0 0.0
  %1540 = vmatpush2.msra.mxu0 0.0
  %1541 = vmatprep.subr.mxu0 0.0
  %1542 = vmatpush2.msra.mxu0 0.0
  %1543 = vmatprep.subr.mxu0 0.0
  %1544 = vmatpush2.msra.mxu0 0.0
  %1545 = vmatprep.subr.mxu0 0.0
  %1546 = vmatpush2.msra.mxu0 0.0
  %1547 = vmatprep.subr.mxu0 0.0
  %1548 = vmatpush2.msra.mxu0 0.0
  %1549 = vmatprep.subr.mxu0 0.0
  %1550 = vmatpush2.msra.mxu0 0.0
  %1551 = vmatprep.subr.mxu0 0.0
  %1552 = vmatpush2.msra.mxu0 0.0
  %1553 = vmatprep.mubr.f32.mxu0 0.0
  %v1554 = vand.u32 %v41, 4294901760
  %1555 = vmatmul.mubr.f32.gmra.mxu0 %v1554
  %v1556 = vpop.f32.mrf.mxu0
  %v1557 = vadd.f32 %v1442, %v1556
  %v1558 = vpop.f32.mrf.mxu0
  %1559 = vmatprep.mubr.f32.mxu0 0.0
  %v1560 = vand.u32 %v44, 4294901760
  %1561 = vmatmul.mubr.f32.gmra.mxu0 %v1560
  %v1562 = vpop.f32.mrf.mxu0
  %v1563 = vadd.f32 %v1448, %v1562
  %v1564 = vpop.f32.mrf.mxu0
  %1565 = vmatprep.mubr.f32.mxu0 0.0
  %v1566 = vand.u32 %v47, 4294901760
  %1567 = vmatmul.mubr.f32.gmra.mxu0 %v1566
  %v1568 = vpop.f32.mrf.mxu0
  %v1569 = vadd.f32 %v1454, %v1568
  %v1570 = vpop.f32.mrf.mxu0
  %1571 = vmatprep.mubr.f32.mxu0 0.0
  %v1572 = vand.u32 %v50, 4294901760
  %1573 = vmatmul.mubr.f32.gmra.mxu0 %v1572
  %v1574 = vpop.f32.mrf.mxu0
  %v1575 = vadd.f32 %v1460, %v1574
  %v1576 = vpop.f32.mrf.mxu0
  %1577 = vmatprep.mubr.f32.mxu0 0.0
  %v1578 = vand.u32 %v53, 4294901760
  %1579 = vmatmul.mubr.f32.gmra.mxu0 %v1578
  %v1580 = vpop.f32.mrf.mxu0
  %v1581 = vadd.f32 %v1466, %v1580
  %v1582 = vpop.f32.mrf.mxu0
  %1583 = vmatprep.mubr.f32.mxu0 0.0
  %v1584 = vand.u32 %v56, 4294901760
  %1585 = vmatmul.mubr.f32.gmra.mxu0 %v1584
  %v1586 = vpop.f32.mrf.mxu0
  %v1587 = vadd.f32 %v1472, %v1586
  %v1588 = vpop.f32.mrf.mxu0
  %1589 = vmatprep.mubr.f32.mxu0 0.0
  %v1590 = vand.u32 %v59, 4294901760
  %1591 = vmatmul.mubr.f32.gmra.mxu0 %v1590
  %v1592 = vpop.f32.mrf.mxu0
  %v1593 = vadd.f32 %v1478, %v1592
  %v1594 = vpop.f32.mrf.mxu0
  %1595 = vmatprep.mubr.f32.mxu0 0.0
  %v1596 = vand.u32 %v62, 4294901760
  %1597 = vmatmul.mubr.f32.gmra.mxu0 %v1596
  %v1598 = vpop.f32.mrf.mxu0
  %v1599 = vadd.f32 %v1484, %v1598
  %v1600 = vpop.f32.mrf.mxu0
  %1601 = vdwg.mxu0
  %1602 = vst.msk [vmem:[%s6] sm:$0xff] %vm824, %v1557
  %1603 = vst.msk [vmem:[%s6 + $0x8] sm:$0xff] %vm824, %v1563
  %1604 = vst.msk [vmem:[%s6 + $0x10] sm:$0xff] %vm824, %v1569
  %1605 = vst.msk [vmem:[%s6 + $0x18] sm:$0xff] %vm824, %v1575
  %1606 = vst.msk [vmem:[%s6 + $0x20] sm:$0xff] %vm824, %v1581
  %1607 = vst.msk [vmem:[%s6 + $0x28] sm:$0xff] %vm824, %v1587
  %1608 = vst.msk [vmem:[%s6 + $0x30] sm:$0xff] %vm824, %v1593
  %1609 = vst.msk [vmem:[%s6 + $0x38] sm:$0xff] %vm824, %v1599
  // Predicated region
  $region22: #{forward.6} parent=0 // pred_check
    _
  $region23: #{forward.6} parent=0 // pred_check_branch
    %1611 = sbr.rel (0) target = $region25
  $region24: #{forward.6} parent=0 // pred_region
    _
  $region25: #{forward.6} parent=0 // pred_fallthru
    _
  // Predicated region
  $region26: #{forward.6} parent=0 // pred_check
    _
  $region27: #{forward.6} parent=0 // pred_check_branch
    %1613 = sbr.rel (0) target = $region29
  $region28: #{forward.6} parent=0 // pred_region
    _
  $region29: #{forward.6} parent=0 // pred_fallthru
    _
  // Predicated region
  $region30: #{forward.6} parent=0 // pred_check
    _
  $region31: #{forward.6} parent=0 // pred_check_branch
    %1615 = sbr.rel (0) target = $region33
  $region32: #{forward.6} parent=0 // pred_region
    _
  $region33: #{forward.6} parent=0 // pred_fallthru
    _
  // Predicated region
  $region34: #{forward.6} parent=0 // pred_check
    _
  $region35: #{forward.6} parent=0 // pred_check_branch
    %1617 = sbr.rel (0) target = $region37
  $region36: #{forward.6} parent=0 // pred_region
    _
  $region37: #{forward.6} parent=0 // pred_fallthru
    _

// kernel: forward.8
$region0: #{forward.8}
  #allocation0 [shape = 'u32[]', space=smem, size = 0x4, offset = 0x4, fixed_abs, tag = 'smem constant byte address 0x4 - core index']
  #allocation1 [shape = 'u32[144,128]{1,0:T(1,128)}', space=vmem, size = 0x12000, scoped, tag = 'internal scratch']
  %s0 = inlined_call_operand.vmem [shape: f32[64,32], index: 0, kind: input, shape index: {}]
  %s1 = inlined_call_operand.vmem [shape: f32[32,48], index: 1, kind: input, shape index: {}]
  %s2 = inlined_call_operand.vmem [shape: f32[32,48], index: 2, kind: input, shape index: {}]
  %s3 = inlined_call_operand.vmem [shape: f32[1,48], index: 3, kind: input, shape index: {}]
  %s4 = inlined_call_operand.vmem [shape: f32[1,48], index: 4, kind: input, shape index: {}]
  %s5 = inlined_call_operand.vmem [shape: f32[64,48], index: 5, kind: output, shape index: {0}]
  %s6 = inlined_call_operand.vmem [shape: f32[64,48], index: 6, kind: output, shape index: {1}]
  %7 = xla_tuple %s5, %s6
  %s8 = sld [smem:[#allocation0]]
  $region38: #{forward.8} parent=0
    _
  %s10 = ssub.s32 1, %s8
  %s11 = scalar_select 0, %s10, %s8
  // Predicated region
  $region2: #{forward.8} parent=0 // pred_check
    _
  $region3: #{forward.8} parent=0 // pred_check_branch
    %13 = sbr.rel (0) target = $region5
  $region4: #{forward.8} parent=0 // pred_region
    _
  $region5: #{forward.8} parent=0 // pred_fallthru
    _
  // Predicated region
  $region6: #{forward.8} parent=0 // pred_check
    _
  $region7: #{forward.8} parent=0 // pred_check_branch
    %15 = sbr.rel (0) target = $region9
  $region8: #{forward.8} parent=0 // pred_region
    _
  $region9: #{forward.8} parent=0 // pred_fallthru
    _
  // Predicated region
  $region10: #{forward.8} parent=0 // pred_check
    _
  $region11: #{forward.8} parent=0 // pred_check_branch
    %17 = sbr.rel (0) target = $region13
  $region12: #{forward.8} parent=0 // pred_region
    _
  $region13: #{forward.8} parent=0 // pred_fallthru
    _
  // Predicated region
  $region14: #{forward.8} parent=0 // pred_check
    _
  $region15: #{forward.8} parent=0 // pred_check_branch
    %19 = sbr.rel (0) target = $region17
  $region16: #{forward.8} parent=0 // pred_region
    _
  $region17: #{forward.8} parent=0 // pred_fallthru
    _
  // Predicated region
  $region18: #{forward.8} parent=0 // pred_check
    _
  $region19: #{forward.8} parent=0 // pred_check_branch
    %21 = sbr.rel (0) target = $region21
  $region20: #{forward.8} parent=0 // pred_region
    _
  $region21: #{forward.8} parent=0 // pred_fallthru
    _
  %v22 = vld [vmem:[%s0] sm:$0xff]
  %v23 = vld [vmem:[%s0 + $0x8] sm:$0xff]
  %v24 = vld [vmem:[%s0 + $0x10] sm:$0xff]
  %v25 = vld [vmem:[%s0 + $0x18] sm:$0xff]
  %v26 = vld [vmem:[%s0 + $0x20] sm:$0xff]
  %v27 = vld [vmem:[%s0 + $0x28] sm:$0xff]
  %v28 = vld [vmem:[%s0 + $0x30] sm:$0xff]
  %v29 = vld [vmem:[%s0 + $0x38] sm:$0xff]
  %v30 = vld [vmem:[%s1] sm:$0xff]
  %v31 = vld [vmem:[%s1 + $0x8] sm:$0xff]
  %v32 = vld [vmem:[%s1 + $0x10] sm:$0xff]
  %v33 = vld [vmem:[%s1 + $0x18] sm:$0xff]
  %v34 = vld [vmem:[%s3] sm:$0x1]
  %v36 = vlaneseq
  %v37 = vshrl.u32 %v36, 7
  %v38 = vsub.s32 0, %v37
  %v39 = vrot.slane %v34, %v38
  %vm41 = vcmask 261120
  %v43 = vsel %vm41, %v22, 0
  %v46 = vsel %vm41, %v23, 0
  %v49 = vsel %vm41, %v24, 0
  %v52 = vsel %vm41, %v25, 0
  %v55 = vsel %vm41, %v26, 0
  %v58 = vsel %vm41, %v27, 0
  %v61 = vsel %vm41, %v28, 0
  %v64 = vsel %vm41, %v29, 0
  %66 = vmatprep.subr.mxu0 0.0
  %67 = vmatpush1.msra.mxu0 0.0
  %68 = vmatprep.subr.mxu0 0.0
  %69 = vmatpush1.msra.mxu0 0.0
  %70 = vmatprep.subr.mxu0 0.0
  %71 = vmatpush1.msra.mxu0 0.0
  %72 = vmatprep.subr.mxu0 0.0
  %73 = vmatpush1.msra.mxu0 0.0
  %74 = vmatprep.subr.mxu0 0.0
  %75 = vmatpush1.msra.mxu0 0.0
  %76 = vmatprep.subr.mxu0 0.0
  %77 = vmatpush1.msra.mxu0 0.0
  %78 = vmatprep.subr.mxu0 0.0
  %79 = vmatpush1.msra.mxu0 0.0
  %80 = vmatprep.subr.mxu0 0.0
  %81 = vmatpush1.msra.mxu0 0.0
  %82 = vmatprep.subr.mxu0 0.0
  %83 = vmatpush1.msra.mxu0 0.0
  %84 = vmatprep.subr.mxu0 0.0
  %85 = vmatpush1.msra.mxu0 0.0
  %86 = vmatprep.subr.mxu0 0.0
  %87 = vmatpush1.msra.mxu0 0.0
  %88 = vmatprep.subr.mxu0 0.0
  %89 = vmatpush1.msra.mxu0 0.0
  %90 = vmatprep.subr.mxu0 0.0
  %v91 = vand.u32 %v33, 4294901760
  %92 = vmatpush1.msra.mxu0 %v91
  %93 = vmatprep.subr.mxu0 0.0
  %v94 = vand.u32 %v32, 4294901760
  %95 = vmatpush1.msra.mxu0 %v94
  %96 = vmatprep.subr.mxu0 0.0
  %v97 = vand.u32 %v31, 4294901760
  %98 = vmatpush1.msra.mxu0 %v97
  %99 = vmatprep.subr.mxu0 0.0
  %v100 = vand.u32 %v30, 4294901760
  %101 = vmatpush1.msra.mxu0 %v100
  %102 = vmatprep.subr.mxu0 0.0
  %103 = vmatpush2.msra.mxu0 0.0
  %104 = vmatprep.subr.mxu0 0.0
  %105 = vmatpush2.msra.mxu0 0.0
  %106 = vmatprep.subr.mxu0 0.0
  %107 = vmatpush2.msra.mxu0 0.0
  %108 = vmatprep.subr.mxu0 0.0
  %109 = vmatpush2.msra.mxu0 0.0
  %110 = vmatprep.subr.mxu0 0.0
  %111 = vmatpush2.msra.mxu0 0.0
  %112 = vmatprep.subr.mxu0 0.0
  %113 = vmatpush2.msra.mxu0 0.0
  %114 = vmatprep.subr.mxu0 0.0
  %115 = vmatpush2.msra.mxu0 0.0
  %116 = vmatprep.subr.mxu0 0.0
  %117 = vmatpush2.msra.mxu0 0.0
  %118 = vmatprep.subr.mxu0 0.0
  %119 = vmatpush2.msra.mxu0 0.0
  %120 = vmatprep.subr.mxu0 0.0
  %121 = vmatpush2.msra.mxu0 0.0
  %122 = vmatprep.subr.mxu0 0.0
  %123 = vmatpush2.msra.mxu0 0.0
  %124 = vmatprep.subr.mxu0 0.0
  %125 = vmatpush2.msra.mxu0 0.0
  %126 = vmatprep.subr.mxu0 0.0
  %127 = vmatpush2.msra.mxu0 0.0
  %128 = vmatprep.subr.mxu0 0.0
  %129 = vmatpush2.msra.mxu0 0.0
  %130 = vmatprep.subr.mxu0 0.0
  %131 = vmatpush2.msra.mxu0 0.0
  %132 = vmatprep.subr.mxu0 0.0
  %133 = vmatpush2.msra.mxu0 0.0
  %134 = vmatprep.mubr.f32.mxu0 0.0
  %v135 = vand.u32 %v43, 4294901760
  %v136 = vsub.f32 %v43, %v135
  %v137 = vand.u32 %v136, 4294901760
  %v138 = vsub.f32 %v136, %v137
  %v139 = vand.u32 %v138, 4294901760
  %140 = vmatmul.mubr.f32.gmra.mxu0 %v139
  %v141 = vpop.f32.mrf.mxu0
  %v142 = vadd.f32 %v39, %v141
  %v143 = vpop.f32.mrf.mxu0
  %144 = vmatprep.mubr.f32.mxu0 0.0
  %v145 = vand.u32 %v46, 4294901760
  %v146 = vsub.f32 %v46, %v145
  %v147 = vand.u32 %v146, 4294901760
  %v148 = vsub.f32 %v146, %v147
  %v149 = vand.u32 %v148, 4294901760
  %150 = vmatmul.mubr.f32.gmra.mxu0 %v149
  %v151 = vpop.f32.mrf.mxu0
  %v152 = vadd.f32 %v39, %v151
  %v153 = vpop.f32.mrf.mxu0
  %154 = vmatprep.mubr.f32.mxu0 0.0
  %v155 = vand.u32 %v49, 4294901760
  %v156 = vsub.f32 %v49, %v155
  %v157 = vand.u32 %v156, 4294901760
  %v158 = vsub.f32 %v156, %v157
  %v159 = vand.u32 %v158, 4294901760
  %160 = vmatmul.mubr.f32.gmra.mxu0 %v159
  %v161 = vpop.f32.mrf.mxu0
  %v162 = vadd.f32 %v39, %v161
  %v163 = vpop.f32.mrf.mxu0
  %164 = vmatprep.mubr.f32.mxu0 0.0
  %v165 = vand.u32 %v52, 4294901760
  %v166 = vsub.f32 %v52, %v165
  %v167 = vand.u32 %v166, 4294901760
  %v168 = vsub.f32 %v166, %v167
  %v169 = vand.u32 %v168, 4294901760
  %170 = vmatmul.mubr.f32.gmra.mxu0 %v169
  %v171 = vpop.f32.mrf.mxu0
  %v172 = vadd.f32 %v39, %v171
  %v173 = vpop.f32.mrf.mxu0
  %174 = vmatprep.mubr.f32.mxu0 0.0
  %v175 = vand.u32 %v55, 4294901760
  %v176 = vsub.f32 %v55, %v175
  %v177 = vand.u32 %v176, 4294901760
  %v178 = vsub.f32 %v176, %v177
  %v179 = vand.u32 %v178, 4294901760
  %180 = vmatmul.mubr.f32.gmra.mxu0 %v179
  %v181 = vpop.f32.mrf.mxu0
  %v182 = vadd.f32 %v39, %v181
  %v183 = vpop.f32.mrf.mxu0
  %184 = vmatprep.mubr.f32.mxu0 0.0
  %v185 = vand.u32 %v58, 4294901760
  %v186 = vsub.f32 %v58, %v185
  %v187 = vand.u32 %v186, 4294901760
  %v188 = vsub.f32 %v186, %v187
  %v189 = vand.u32 %v188, 4294901760
  %190 = vmatmul.mubr.f32.gmra.mxu0 %v189
  %v191 = vpop.f32.mrf.mxu0
  %v192 = vadd.f32 %v39, %v191
  %v193 = vpop.f32.mrf.mxu0
  %194 = vmatprep.mubr.f32.mxu0 0.0
  %v195 = vand.u32 %v61, 4294901760
  %v196 = vsub.f32 %v61, %v195
  %v197 = vand.u32 %v196, 4294901760
  %v198 = vsub.f32 %v196, %v197
  %v199 = vand.u32 %v198, 4294901760
  %200 = vmatmul.mubr.f32.gmra.mxu0 %v199
  %v201 = vpop.f32.mrf.mxu0
  %v202 = vadd.f32 %v39, %v201
  %v203 = vpop.f32.mrf.mxu0
  %204 = vmatprep.mubr.f32.mxu0 0.0
  %v205 = vand.u32 %v64, 4294901760
  %v206 = vsub.f32 %v64, %v205
  %v207 = vand.u32 %v206, 4294901760
  %v208 = vsub.f32 %v206, %v207
  %v209 = vand.u32 %v208, 4294901760
  %210 = vmatmul.mubr.f32.gmra.mxu0 %v209
  %v211 = vpop.f32.mrf.mxu0
  %v212 = vadd.f32 %v39, %v211
  %v213 = vpop.f32.mrf.mxu0
  %214 = vdwg.mxu0
  %215 = vmatprep.subr.mxu0 0.0
  %216 = vmatpush1.msra.mxu0 0.0
  %217 = vmatprep.subr.mxu0 0.0
  %218 = vmatpush1.msra.mxu0 0.0
  %219 = vmatprep.subr.mxu0 0.0
  %220 = vmatpush1.msra.mxu0 0.0
  %221 = vmatprep.subr.mxu0 0.0
  %222 = vmatpush1.msra.mxu0 0.0
  %223 = vmatprep.subr.mxu0 0.0
  %224 = vmatpush1.msra.mxu0 0.0
  %225 = vmatprep.subr.mxu0 0.0
  %226 = vmatpush1.msra.mxu0 0.0
  %227 = vmatprep.subr.mxu0 0.0
  %228 = vmatpush1.msra.mxu0 0.0
  %229 = vmatprep.subr.mxu0 0.0
  %230 = vmatpush1.msra.mxu0 0.0
  %231 = vmatprep.subr.mxu0 0.0
  %232 = vmatpush1.msra.mxu0 0.0
  %233 = vmatprep.subr.mxu0 0.0
  %234 = vmatpush1.msra.mxu0 0.0
  %235 = vmatprep.subr.mxu0 0.0
  %236 = vmatpush1.msra.mxu0 0.0
  %237 = vmatprep.subr.mxu0 0.0
  %238 = vmatpush1.msra.mxu0 0.0
  %239 = vmatprep.subr.mxu0 0.0
  %v240 = vand.u32 %v33, 4294901760
  %v241 = vsub.f32 %v33, %v240
  %v242 = vand.u32 %v241, 4294901760
  %v243 = vsub.f32 %v241, %v242
  %v244 = vand.u32 %v243, 4294901760
  %245 = vmatpush1.msra.mxu0 %v244
  %246 = vmatprep.subr.mxu0 0.0
  %v247 = vand.u32 %v32, 4294901760
  %v248 = vsub.f32 %v32, %v247
  %v249 = vand.u32 %v248, 4294901760
  %v250 = vsub.f32 %v248, %v249
  %v251 = vand.u32 %v250, 4294901760
  %252 = vmatpush1.msra.mxu0 %v251
  %253 = vmatprep.subr.mxu0 0.0
  %v254 = vand.u32 %v31, 4294901760
  %v255 = vsub.f32 %v31, %v254
  %v256 = vand.u32 %v255, 4294901760
  %v257 = vsub.f32 %v255, %v256
  %v258 = vand.u32 %v257, 4294901760
  %259 = vmatpush1.msra.mxu0 %v258
  %260 = vmatprep.subr.mxu0 0.0
  %v261 = vand.u32 %v30, 4294901760
  %v262 = vsub.f32 %v30, %v261
  %v263 = vand.u32 %v262, 4294901760
  %v264 = vsub.f32 %v262, %v263
  %v265 = vand.u32 %v264, 4294901760
  %266 = vmatpush1.msra.mxu0 %v265
  %267 = vmatprep.subr.mxu0 0.0
  %268 = vmatpush2.msra.mxu0 0.0
  %269 = vmatprep.subr.mxu0 0.0
  %270 = vmatpush2.msra.mxu0 0.0
  %271 = vmatprep.subr.mxu0 0.0
  %272 = vmatpush2.msra.mxu0 0.0
  %273 = vmatprep.subr.mxu0 0.0
  %274 = vmatpush2.msra.mxu0 0.0
  %275 = vmatprep.subr.mxu0 0.0
  %276 = vmatpush2.msra.mxu0 0.0
  %277 = vmatprep.subr.mxu0 0.0
  %278 = vmatpush2.msra.mxu0 0.0
  %279 = vmatprep.subr.mxu0 0.0
  %280 = vmatpush2.msra.mxu0 0.0
  %281 = vmatprep.subr.mxu0 0.0
  %282 = vmatpush2.msra.mxu0 0.0
  %283 = vmatprep.subr.mxu0 0.0
  %284 = vmatpush2.msra.mxu0 0.0
  %285 = vmatprep.subr.mxu0 0.0
  %286 = vmatpush2.msra.mxu0 0.0
  %287 = vmatprep.subr.mxu0 0.0
  %288 = vmatpush2.msra.mxu0 0.0
  %289 = vmatprep.subr.mxu0 0.0
  %290 = vmatpush2.msra.mxu0 0.0
  %291 = vmatprep.subr.mxu0 0.0
  %292 = vmatpush2.msra.mxu0 0.0
  %293 = vmatprep.subr.mxu0 0.0
  %294 = vmatpush2.msra.mxu0 0.0
  %295 = vmatprep.subr.mxu0 0.0
  %296 = vmatpush2.msra.mxu0 0.0
  %297 = vmatprep.subr.mxu0 0.0
  %298 = vmatpush2.msra.mxu0 0.0
  %299 = vmatprep.mubr.f32.mxu0 0.0
  %v300 = vand.u32 %v43, 4294901760
  %301 = vmatmul.mubr.f32.gmra.mxu0 %v300
  %v302 = vpop.f32.mrf.mxu0
  %v303 = vadd.f32 %v142, %v302
  %v304 = vpop.f32.mrf.mxu0
  %305 = vmatprep.mubr.f32.mxu0 0.0
  %v306 = vand.u32 %v46, 4294901760
  %307 = vmatmul.mubr.f32.gmra.mxu0 %v306
  %v308 = vpop.f32.mrf.mxu0
  %v309 = vadd.f32 %v152, %v308
  %v310 = vpop.f32.mrf.mxu0
  %311 = vmatprep.mubr.f32.mxu0 0.0
  %v312 = vand.u32 %v49, 4294901760
  %313 = vmatmul.mubr.f32.gmra.mxu0 %v312
  %v314 = vpop.f32.mrf.mxu0
  %v315 = vadd.f32 %v162, %v314
  %v316 = vpop.f32.mrf.mxu0
  %317 = vmatprep.mubr.f32.mxu0 0.0
  %v318 = vand.u32 %v52, 4294901760
  %319 = vmatmul.mubr.f32.gmra.mxu0 %v318
  %v320 = vpop.f32.mrf.mxu0
  %v321 = vadd.f32 %v172, %v320
  %v322 = vpop.f32.mrf.mxu0
  %323 = vmatprep.mubr.f32.mxu0 0.0
  %v324 = vand.u32 %v55, 4294901760
  %325 = vmatmul.mubr.f32.gmra.mxu0 %v324
  %v326 = vpop.f32.mrf.mxu0
  %v327 = vadd.f32 %v182, %v326
  %v328 = vpop.f32.mrf.mxu0
  %329 = vmatprep.mubr.f32.mxu0 0.0
  %v330 = vand.u32 %v58, 4294901760
  %331 = vmatmul.mubr.f32.gmra.mxu0 %v330
  %v332 = vpop.f32.mrf.mxu0
  %v333 = vadd.f32 %v192, %v332
  %v334 = vpop.f32.mrf.mxu0
  %335 = vmatprep.mubr.f32.mxu0 0.0
  %v336 = vand.u32 %v61, 4294901760
  %337 = vmatmul.mubr.f32.gmra.mxu0 %v336
  %v338 = vpop.f32.mrf.mxu0
  %v339 = vadd.f32 %v202, %v338
  %v340 = vpop.f32.mrf.mxu0
  %341 = vmatprep.mubr.f32.mxu0 0.0
  %v342 = vand.u32 %v64, 4294901760
  %343 = vmatmul.mubr.f32.gmra.mxu0 %v342
  %v344 = vpop.f32.mrf.mxu0
  %v345 = vadd.f32 %v212, %v344
  %v346 = vpop.f32.mrf.mxu0
  %347 = vdwg.mxu0
  %348 = vmatprep.subr.mxu0 0.0
  %349 = vmatpush1.msra.mxu0 0.0
  %350 = vmatprep.subr.mxu0 0.0
  %351 = vmatpush1.msra.mxu0 0.0
  %352 = vmatprep.subr.mxu0 0.0
  %353 = vmatpush1.msra.mxu0 0.0
  %354 = vmatprep.subr.mxu0 0.0
  %355 = vmatpush1.msra.mxu0 0.0
  %356 = vmatprep.subr.mxu0 0.0
  %357 = vmatpush1.msra.mxu0 0.0
  %358 = vmatprep.subr.mxu0 0.0
  %359 = vmatpush1.msra.mxu0 0.0
  %360 = vmatprep.subr.mxu0 0.0
  %361 = vmatpush1.msra.mxu0 0.0
  %362 = vmatprep.subr.mxu0 0.0
  %363 = vmatpush1.msra.mxu0 0.0
  %364 = vmatprep.subr.mxu0 0.0
  %365 = vmatpush1.msra.mxu0 0.0
  %366 = vmatprep.subr.mxu0 0.0
  %367 = vmatpush1.msra.mxu0 0.0
  %368 = vmatprep.subr.mxu0 0.0
  %369 = vmatpush1.msra.mxu0 0.0
  %370 = vmatprep.subr.mxu0 0.0
  %371 = vmatpush1.msra.mxu0 0.0
  %372 = vmatprep.subr.mxu0 0.0
  %v373 = vand.u32 %v33, 4294901760
  %v374 = vsub.f32 %v33, %v373
  %375 = vmatpush1.msra.mxu0 %v374
  %376 = vmatprep.subr.mxu0 0.0
  %v377 = vand.u32 %v32, 4294901760
  %v378 = vsub.f32 %v32, %v377
  %379 = vmatpush1.msra.mxu0 %v378
  %380 = vmatprep.subr.mxu0 0.0
  %v381 = vand.u32 %v31, 4294901760
  %v382 = vsub.f32 %v31, %v381
  %383 = vmatpush1.msra.mxu0 %v382
  %384 = vmatprep.subr.mxu0 0.0
  %v385 = vand.u32 %v30, 4294901760
  %v386 = vsub.f32 %v30, %v385
  %387 = vmatpush1.msra.mxu0 %v386
  %388 = vmatprep.subr.mxu0 0.0
  %389 = vmatpush2.msra.mxu0 0.0
  %390 = vmatprep.subr.mxu0 0.0
  %391 = vmatpush2.msra.mxu0 0.0
  %392 = vmatprep.subr.mxu0 0.0
  %393 = vmatpush2.msra.mxu0 0.0
  %394 = vmatprep.subr.mxu0 0.0
  %395 = vmatpush2.msra.mxu0 0.0
  %396 = vmatprep.subr.mxu0 0.0
  %397 = vmatpush2.msra.mxu0 0.0
  %398 = vmatprep.subr.mxu0 0.0
  %399 = vmatpush2.msra.mxu0 0.0
  %400 = vmatprep.subr.mxu0 0.0
  %401 = vmatpush2.msra.mxu0 0.0
  %402 = vmatprep.subr.mxu0 0.0
  %403 = vmatpush2.msra.mxu0 0.0
  %404 = vmatprep.subr.mxu0 0.0
  %405 = vmatpush2.msra.mxu0 0.0
  %406 = vmatprep.subr.mxu0 0.0
  %407 = vmatpush2.msra.mxu0 0.0
  %408 = vmatprep.subr.mxu0 0.0
  %409 = vmatpush2.msra.mxu0 0.0
  %410 = vmatprep.subr.mxu0 0.0
  %411 = vmatpush2.msra.mxu0 0.0
  %412 = vmatprep.subr.mxu0 0.0
  %413 = vmatpush2.msra.mxu0 0.0
  %414 = vmatprep.subr.mxu0 0.0
  %415 = vmatpush2.msra.mxu0 0.0
  %416 = vmatprep.subr.mxu0 0.0
  %417 = vmatpush2.msra.mxu0 0.0
  %418 = vmatprep.subr.mxu0 0.0
  %419 = vmatpush2.msra.mxu0 0.0
  %420 = vmatprep.mubr.f32.mxu0 0.0
  %v421 = vand.u32 %v43, 4294901760
  %v422 = vsub.f32 %v43, %v421
  %423 = vmatmul.mubr.f32.gmra.mxu0 %v422
  %v424 = vpop.f32.mrf.mxu0
  %v425 = vadd.f32 %v303, %v424
  %v426 = vpop.f32.mrf.mxu0
  %427 = vmatprep.mubr.f32.mxu0 0.0
  %v428 = vand.u32 %v46, 4294901760
  %v429 = vsub.f32 %v46, %v428
  %430 = vmatmul.mubr.f32.gmra.mxu0 %v429
  %v431 = vpop.f32.mrf.mxu0
  %v432 = vadd.f32 %v309, %v431
  %v433 = vpop.f32.mrf.mxu0
  %434 = vmatprep.mubr.f32.mxu0 0.0
  %v435 = vand.u32 %v49, 4294901760
  %v436 = vsub.f32 %v49, %v435
  %437 = vmatmul.mubr.f32.gmra.mxu0 %v436
  %v438 = vpop.f32.mrf.mxu0
  %v439 = vadd.f32 %v315, %v438
  %v440 = vpop.f32.mrf.mxu0
  %441 = vmatprep.mubr.f32.mxu0 0.0
  %v442 = vand.u32 %v52, 4294901760
  %v443 = vsub.f32 %v52, %v442
  %444 = vmatmul.mubr.f32.gmra.mxu0 %v443
  %v445 = vpop.f32.mrf.mxu0
  %v446 = vadd.f32 %v321, %v445
  %v447 = vpop.f32.mrf.mxu0
  %448 = vmatprep.mubr.f32.mxu0 0.0
  %v449 = vand.u32 %v55, 4294901760
  %v450 = vsub.f32 %v55, %v449
  %451 = vmatmul.mubr.f32.gmra.mxu0 %v450
  %v452 = vpop.f32.mrf.mxu0
  %v453 = vadd.f32 %v327, %v452
  %v454 = vpop.f32.mrf.mxu0
  %455 = vmatprep.mubr.f32.mxu0 0.0
  %v456 = vand.u32 %v58, 4294901760
  %v457 = vsub.f32 %v58, %v456
  %458 = vmatmul.mubr.f32.gmra.mxu0 %v457
  %v459 = vpop.f32.mrf.mxu0
  %v460 = vadd.f32 %v333, %v459
  %v461 = vpop.f32.mrf.mxu0
  %462 = vmatprep.mubr.f32.mxu0 0.0
  %v463 = vand.u32 %v61, 4294901760
  %v464 = vsub.f32 %v61, %v463
  %465 = vmatmul.mubr.f32.gmra.mxu0 %v464
  %v466 = vpop.f32.mrf.mxu0
  %v467 = vadd.f32 %v339, %v466
  %v468 = vpop.f32.mrf.mxu0
  %469 = vmatprep.mubr.f32.mxu0 0.0
  %v470 = vand.u32 %v64, 4294901760
  %v471 = vsub.f32 %v64, %v470
  %472 = vmatmul.mubr.f32.gmra.mxu0 %v471
  %v473 = vpop.f32.mrf.mxu0
  %v474 = vadd.f32 %v345, %v473
  %v475 = vpop.f32.mrf.mxu0
  %476 = vdwg.mxu0
  %477 = vmatprep.subr.mxu0 0.0
  %478 = vmatpush1.msra.mxu0 0.0
  %479 = vmatprep.subr.mxu0 0.0
  %480 = vmatpush1.msra.mxu0 0.0
  %481 = vmatprep.subr.mxu0 0.0
  %482 = vmatpush1.msra.mxu0 0.0
  %483 = vmatprep.subr.mxu0 0.0
  %484 = vmatpush1.msra.mxu0 0.0
  %485 = vmatprep.subr.mxu0 0.0
  %486 = vmatpush1.msra.mxu0 0.0
  %487 = vmatprep.subr.mxu0 0.0
  %488 = vmatpush1.msra.mxu0 0.0
  %489 = vmatprep.subr.mxu0 0.0
  %490 = vmatpush1.msra.mxu0 0.0
  %491 = vmatprep.subr.mxu0 0.0
  %492 = vmatpush1.msra.mxu0 0.0
  %493 = vmatprep.subr.mxu0 0.0
  %494 = vmatpush1.msra.mxu0 0.0
  %495 = vmatprep.subr.mxu0 0.0
  %496 = vmatpush1.msra.mxu0 0.0
  %497 = vmatprep.subr.mxu0 0.0
  %498 = vmatpush1.msra.mxu0 0.0
  %499 = vmatprep.subr.mxu0 0.0
  %500 = vmatpush1.msra.mxu0 0.0
  %501 = vmatprep.subr.mxu0 0.0
  %v502 = vand.u32 %v33, 4294901760
  %503 = vmatpush1.msra.mxu0 %v502
  %504 = vmatprep.subr.mxu0 0.0
  %v505 = vand.u32 %v32, 4294901760
  %506 = vmatpush1.msra.mxu0 %v505
  %507 = vmatprep.subr.mxu0 0.0
  %v508 = vand.u32 %v31, 4294901760
  %509 = vmatpush1.msra.mxu0 %v508
  %510 = vmatprep.subr.mxu0 0.0
  %v511 = vand.u32 %v30, 4294901760
  %512 = vmatpush1.msra.mxu0 %v511
  %513 = vmatprep.subr.mxu0 0.0
  %514 = vmatpush2.msra.mxu0 0.0
  %515 = vmatprep.subr.mxu0 0.0
  %516 = vmatpush2.msra.mxu0 0.0
  %517 = vmatprep.subr.mxu0 0.0
  %518 = vmatpush2.msra.mxu0 0.0
  %519 = vmatprep.subr.mxu0 0.0
  %520 = vmatpush2.msra.mxu0 0.0
  %521 = vmatprep.subr.mxu0 0.0
  %522 = vmatpush2.msra.mxu0 0.0
  %523 = vmatprep.subr.mxu0 0.0
  %524 = vmatpush2.msra.mxu0 0.0
  %525 = vmatprep.subr.mxu0 0.0
  %526 = vmatpush2.msra.mxu0 0.0
  %527 = vmatprep.subr.mxu0 0.0
  %528 = vmatpush2.msra.mxu0 0.0
  %529 = vmatprep.subr.mxu0 0.0
  %530 = vmatpush2.msra.mxu0 0.0
  %531 = vmatprep.subr.mxu0 0.0
  %532 = vmatpush2.msra.mxu0 0.0
  %533 = vmatprep.subr.mxu0 0.0
  %534 = vmatpush2.msra.mxu0 0.0
  %535 = vmatprep.subr.mxu0 0.0
  %536 = vmatpush2.msra.mxu0 0.0
  %537 = vmatprep.subr.mxu0 0.0
  %538 = vmatpush2.msra.mxu0 0.0
  %539 = vmatprep.subr.mxu0 0.0
  %540 = vmatpush2.msra.mxu0 0.0
  %541 = vmatprep.subr.mxu0 0.0
  %542 = vmatpush2.msra.mxu0 0.0
  %543 = vmatprep.subr.mxu0 0.0
  %544 = vmatpush2.msra.mxu0 0.0
  %545 = vmatprep.mubr.f32.mxu0 0.0
  %v546 = vand.u32 %v43, 4294901760
  %v547 = vsub.f32 %v43, %v546
  %v548 = vand.u32 %v547, 4294901760
  %549 = vmatmul.mubr.f32.gmra.mxu0 %v548
  %v550 = vpop.f32.mrf.mxu0
  %v551 = vadd.f32 %v425, %v550
  %v552 = vpop.f32.mrf.mxu0
  %553 = vmatprep.mubr.f32.mxu0 0.0
  %v554 = vand.u32 %v46, 4294901760
  %v555 = vsub.f32 %v46, %v554
  %v556 = vand.u32 %v555, 4294901760
  %557 = vmatmul.mubr.f32.gmra.mxu0 %v556
  %v558 = vpop.f32.mrf.mxu0
  %v559 = vadd.f32 %v432, %v558
  %v560 = vpop.f32.mrf.mxu0
  %561 = vmatprep.mubr.f32.mxu0 0.0
  %v562 = vand.u32 %v49, 4294901760
  %v563 = vsub.f32 %v49, %v562
  %v564 = vand.u32 %v563, 4294901760
  %565 = vmatmul.mubr.f32.gmra.mxu0 %v564
  %v566 = vpop.f32.mrf.mxu0
  %v567 = vadd.f32 %v439, %v566
  %v568 = vpop.f32.mrf.mxu0
  %569 = vmatprep.mubr.f32.mxu0 0.0
  %v570 = vand.u32 %v52, 4294901760
  %v571 = vsub.f32 %v52, %v570
  %v572 = vand.u32 %v571, 4294901760
  %573 = vmatmul.mubr.f32.gmra.mxu0 %v572
  %v574 = vpop.f32.mrf.mxu0
  %v575 = vadd.f32 %v446, %v574
  %v576 = vpop.f32.mrf.mxu0
  %577 = vmatprep.mubr.f32.mxu0 0.0
  %v578 = vand.u32 %v55, 4294901760
  %v579 = vsub.f32 %v55, %v578
  %v580 = vand.u32 %v579, 4294901760
  %581 = vmatmul.mubr.f32.gmra.mxu0 %v580
  %v582 = vpop.f32.mrf.mxu0
  %v583 = vadd.f32 %v453, %v582
  %v584 = vpop.f32.mrf.mxu0
  %585 = vmatprep.mubr.f32.mxu0 0.0
  %v586 = vand.u32 %v58, 4294901760
  %v587 = vsub.f32 %v58, %v586
  %v588 = vand.u32 %v587, 4294901760
  %589 = vmatmul.mubr.f32.gmra.mxu0 %v588
  %v590 = vpop.f32.mrf.mxu0
  %v591 = vadd.f32 %v460, %v590
  %v592 = vpop.f32.mrf.mxu0
  %593 = vmatprep.mubr.f32.mxu0 0.0
  %v594 = vand.u32 %v61, 4294901760
  %v595 = vsub.f32 %v61, %v594
  %v596 = vand.u32 %v595, 4294901760
  %597 = vmatmul.mubr.f32.gmra.mxu0 %v596
  %v598 = vpop.f32.mrf.mxu0
  %v599 = vadd.f32 %v467, %v598
  %v600 = vpop.f32.mrf.mxu0
  %601 = vmatprep.mubr.f32.mxu0 0.0
  %v602 = vand.u32 %v64, 4294901760
  %v603 = vsub.f32 %v64, %v602
  %v604 = vand.u32 %v603, 4294901760
  %605 = vmatmul.mubr.f32.gmra.mxu0 %v604
  %v606 = vpop.f32.mrf.mxu0
  %v607 = vadd.f32 %v474, %v606
  %v608 = vpop.f32.mrf.mxu0
  %609 = vdwg.mxu0
  %610 = vmatprep.subr.mxu0 0.0
  %611 = vmatpush1.msra.mxu0 0.0
  %612 = vmatprep.subr.mxu0 0.0
  %613 = vmatpush1.msra.mxu0 0.0
  %614 = vmatprep.subr.mxu0 0.0
  %615 = vmatpush1.msra.mxu0 0.0
  %616 = vmatprep.subr.mxu0 0.0
  %617 = vmatpush1.msra.mxu0 0.0
  %618 = vmatprep.subr.mxu0 0.0
  %619 = vmatpush1.msra.mxu0 0.0
  %620 = vmatprep.subr.mxu0 0.0
  %621 = vmatpush1.msra.mxu0 0.0
  %622 = vmatprep.subr.mxu0 0.0
  %623 = vmatpush1.msra.mxu0 0.0
  %624 = vmatprep.subr.mxu0 0.0
  %625 = vmatpush1.msra.mxu0 0.0
  %626 = vmatprep.subr.mxu0 0.0
  %627 = vmatpush1.msra.mxu0 0.0
  %628 = vmatprep.subr.mxu0 0.0
  %629 = vmatpush1.msra.mxu0 0.0
  %630 = vmatprep.subr.mxu0 0.0
  %631 = vmatpush1.msra.mxu0 0.0
  %632 = vmatprep.subr.mxu0 0.0
  %633 = vmatpush1.msra.mxu0 0.0
  %634 = vmatprep.subr.mxu0 0.0
  %v635 = vand.u32 %v33, 4294901760
  %v636 = vsub.f32 %v33, %v635
  %v637 = vand.u32 %v636, 4294901760
  %638 = vmatpush1.msra.mxu0 %v637
  %639 = vmatprep.subr.mxu0 0.0
  %v640 = vand.u32 %v32, 4294901760
  %v641 = vsub.f32 %v32, %v640
  %v642 = vand.u32 %v641, 4294901760
  %643 = vmatpush1.msra.mxu0 %v642
  %644 = vmatprep.subr.mxu0 0.0
  %v645 = vand.u32 %v31, 4294901760
  %v646 = vsub.f32 %v31, %v645
  %v647 = vand.u32 %v646, 4294901760
  %648 = vmatpush1.msra.mxu0 %v647
  %649 = vmatprep.subr.mxu0 0.0
  %v650 = vand.u32 %v30, 4294901760
  %v651 = vsub.f32 %v30, %v650
  %v652 = vand.u32 %v651, 4294901760
  %653 = vmatpush1.msra.mxu0 %v652
  %654 = vmatprep.subr.mxu0 0.0
  %655 = vmatpush2.msra.mxu0 0.0
  %656 = vmatprep.subr.mxu0 0.0
  %657 = vmatpush2.msra.mxu0 0.0
  %658 = vmatprep.subr.mxu0 0.0
  %659 = vmatpush2.msra.mxu0 0.0
  %660 = vmatprep.subr.mxu0 0.0
  %661 = vmatpush2.msra.mxu0 0.0
  %662 = vmatprep.subr.mxu0 0.0
  %663 = vmatpush2.msra.mxu0 0.0
  %664 = vmatprep.subr.mxu0 0.0
  %665 = vmatpush2.msra.mxu0 0.0
  %666 = vmatprep.subr.mxu0 0.0
  %667 = vmatpush2.msra.mxu0 0.0
  %668 = vmatprep.subr.mxu0 0.0
  %669 = vmatpush2.msra.mxu0 0.0
  %670 = vmatprep.subr.mxu0 0.0
  %671 = vmatpush2.msra.mxu0 0.0
  %672 = vmatprep.subr.mxu0 0.0
  %673 = vmatpush2.msra.mxu0 0.0
  %674 = vmatprep.subr.mxu0 0.0
  %675 = vmatpush2.msra.mxu0 0.0
  %676 = vmatprep.subr.mxu0 0.0
  %677 = vmatpush2.msra.mxu0 0.0
  %678 = vmatprep.subr.mxu0 0.0
  %679 = vmatpush2.msra.mxu0 0.0
  %680 = vmatprep.subr.mxu0 0.0
  %681 = vmatpush2.msra.mxu0 0.0
  %682 = vmatprep.subr.mxu0 0.0
  %683 = vmatpush2.msra.mxu0 0.0
  %684 = vmatprep.subr.mxu0 0.0
  %685 = vmatpush2.msra.mxu0 0.0
  %686 = vmatprep.mubr.f32.mxu0 0.0
  %v687 = vand.u32 %v43, 4294901760
  %688 = vmatmul.mubr.f32.gmra.mxu0 %v687
  %v689 = vpop.f32.mrf.mxu0
  %v690 = vadd.f32 %v551, %v689
  %v691 = vpop.f32.mrf.mxu0
  %692 = vmatprep.mubr.f32.mxu0 0.0
  %v693 = vand.u32 %v46, 4294901760
  %694 = vmatmul.mubr.f32.gmra.mxu0 %v693
  %v695 = vpop.f32.mrf.mxu0
  %v696 = vadd.f32 %v559, %v695
  %v697 = vpop.f32.mrf.mxu0
  %698 = vmatprep.mubr.f32.mxu0 0.0
  %v699 = vand.u32 %v49, 4294901760
  %700 = vmatmul.mubr.f32.gmra.mxu0 %v699
  %v701 = vpop.f32.mrf.mxu0
  %v702 = vadd.f32 %v567, %v701
  %v703 = vpop.f32.mrf.mxu0
  %704 = vmatprep.mubr.f32.mxu0 0.0
  %v705 = vand.u32 %v52, 4294901760
  %706 = vmatmul.mubr.f32.gmra.mxu0 %v705
  %v707 = vpop.f32.mrf.mxu0
  %v708 = vadd.f32 %v575, %v707
  %v709 = vpop.f32.mrf.mxu0
  %710 = vmatprep.mubr.f32.mxu0 0.0
  %v711 = vand.u32 %v55, 4294901760
  %712 = vmatmul.mubr.f32.gmra.mxu0 %v711
  %v713 = vpop.f32.mrf.mxu0
  %v714 = vadd.f32 %v583, %v713
  %v715 = vpop.f32.mrf.mxu0
  %716 = vmatprep.mubr.f32.mxu0 0.0
  %v717 = vand.u32 %v58, 4294901760
  %718 = vmatmul.mubr.f32.gmra.mxu0 %v717
  %v719 = vpop.f32.mrf.mxu0
  %v720 = vadd.f32 %v591, %v719
  %v721 = vpop.f32.mrf.mxu0
  %722 = vmatprep.mubr.f32.mxu0 0.0
  %v723 = vand.u32 %v61, 4294901760
  %724 = vmatmul.mubr.f32.gmra.mxu0 %v723
  %v725 = vpop.f32.mrf.mxu0
  %v726 = vadd.f32 %v599, %v725
  %v727 = vpop.f32.mrf.mxu0
  %728 = vmatprep.mubr.f32.mxu0 0.0
  %v729 = vand.u32 %v64, 4294901760
  %730 = vmatmul.mubr.f32.gmra.mxu0 %v729
  %v731 = vpop.f32.mrf.mxu0
  %v732 = vadd.f32 %v607, %v731
  %v733 = vpop.f32.mrf.mxu0
  %734 = vdwg.mxu0
  %735 = vmatprep.subr.mxu0 0.0
  %736 = vmatpush1.msra.mxu0 0.0
  %737 = vmatprep.subr.mxu0 0.0
  %738 = vmatpush1.msra.mxu0 0.0
  %739 = vmatprep.subr.mxu0 0.0
  %740 = vmatpush1.msra.mxu0 0.0
  %741 = vmatprep.subr.mxu0 0.0
  %742 = vmatpush1.msra.mxu0 0.0
  %743 = vmatprep.subr.mxu0 0.0
  %744 = vmatpush1.msra.mxu0 0.0
  %745 = vmatprep.subr.mxu0 0.0
  %746 = vmatpush1.msra.mxu0 0.0
  %747 = vmatprep.subr.mxu0 0.0
  %748 = vmatpush1.msra.mxu0 0.0
  %749 = vmatprep.subr.mxu0 0.0
  %750 = vmatpush1.msra.mxu0 0.0
  %751 = vmatprep.subr.mxu0 0.0
  %752 = vmatpush1.msra.mxu0 0.0
  %753 = vmatprep.subr.mxu0 0.0
  %754 = vmatpush1.msra.mxu0 0.0
  %755 = vmatprep.subr.mxu0 0.0
  %756 = vmatpush1.msra.mxu0 0.0
  %757 = vmatprep.subr.mxu0 0.0
  %758 = vmatpush1.msra.mxu0 0.0
  %759 = vmatprep.subr.mxu0 0.0
  %v760 = vand.u32 %v33, 4294901760
  %761 = vmatpush1.msra.mxu0 %v760
  %762 = vmatprep.subr.mxu0 0.0
  %v763 = vand.u32 %v32, 4294901760
  %764 = vmatpush1.msra.mxu0 %v763
  %765 = vmatprep.subr.mxu0 0.0
  %v766 = vand.u32 %v31, 4294901760
  %767 = vmatpush1.msra.mxu0 %v766
  %768 = vmatprep.subr.mxu0 0.0
  %v769 = vand.u32 %v30, 4294901760
  %770 = vmatpush1.msra.mxu0 %v769
  %771 = vmatprep.subr.mxu0 0.0
  %772 = vmatpush2.msra.mxu0 0.0
  %773 = vmatprep.subr.mxu0 0.0
  %774 = vmatpush2.msra.mxu0 0.0
  %775 = vmatprep.subr.mxu0 0.0
  %776 = vmatpush2.msra.mxu0 0.0
  %777 = vmatprep.subr.mxu0 0.0
  %778 = vmatpush2.msra.mxu0 0.0
  %779 = vmatprep.subr.mxu0 0.0
  %780 = vmatpush2.msra.mxu0 0.0
  %781 = vmatprep.subr.mxu0 0.0
  %782 = vmatpush2.msra.mxu0 0.0
  %783 = vmatprep.subr.mxu0 0.0
  %784 = vmatpush2.msra.mxu0 0.0
  %785 = vmatprep.subr.mxu0 0.0
  %786 = vmatpush2.msra.mxu0 0.0
  %787 = vmatprep.subr.mxu0 0.0
  %788 = vmatpush2.msra.mxu0 0.0
  %789 = vmatprep.subr.mxu0 0.0
  %790 = vmatpush2.msra.mxu0 0.0
  %791 = vmatprep.subr.mxu0 0.0
  %792 = vmatpush2.msra.mxu0 0.0
  %793 = vmatprep.subr.mxu0 0.0
  %794 = vmatpush2.msra.mxu0 0.0
  %795 = vmatprep.subr.mxu0 0.0
  %796 = vmatpush2.msra.mxu0 0.0
  %797 = vmatprep.subr.mxu0 0.0
  %798 = vmatpush2.msra.mxu0 0.0
  %799 = vmatprep.subr.mxu0 0.0
  %800 = vmatpush2.msra.mxu0 0.0
  %801 = vmatprep.subr.mxu0 0.0
  %802 = vmatpush2.msra.mxu0 0.0
  %803 = vmatprep.mubr.f32.mxu0 0.0
  %v804 = vand.u32 %v43, 4294901760
  %805 = vmatmul.mubr.f32.gmra.mxu0 %v804
  %v806 = vpop.f32.mrf.mxu0
  %v807 = vadd.f32 %v690, %v806
  %v808 = vpop.f32.mrf.mxu0
  %809 = vmatprep.mubr.f32.mxu0 0.0
  %v810 = vand.u32 %v46, 4294901760
  %811 = vmatmul.mubr.f32.gmra.mxu0 %v810
  %v812 = vpop.f32.mrf.mxu0
  %v813 = vadd.f32 %v696, %v812
  %v814 = vpop.f32.mrf.mxu0
  %815 = vmatprep.mubr.f32.mxu0 0.0
  %v816 = vand.u32 %v49, 4294901760
  %817 = vmatmul.mubr.f32.gmra.mxu0 %v816
  %v818 = vpop.f32.mrf.mxu0
  %v819 = vadd.f32 %v702, %v818
  %v820 = vpop.f32.mrf.mxu0
  %821 = vmatprep.mubr.f32.mxu0 0.0
  %v822 = vand.u32 %v52, 4294901760
  %823 = vmatmul.mubr.f32.gmra.mxu0 %v822
  %v824 = vpop.f32.mrf.mxu0
  %v825 = vadd.f32 %v708, %v824
  %v826 = vpop.f32.mrf.mxu0
  %827 = vmatprep.mubr.f32.mxu0 0.0
  %v828 = vand.u32 %v55, 4294901760
  %829 = vmatmul.mubr.f32.gmra.mxu0 %v828
  %v830 = vpop.f32.mrf.mxu0
  %v831 = vadd.f32 %v714, %v830
  %v832 = vpop.f32.mrf.mxu0
  %833 = vmatprep.mubr.f32.mxu0 0.0
  %v834 = vand.u32 %v58, 4294901760
  %835 = vmatmul.mubr.f32.gmra.mxu0 %v834
  %v836 = vpop.f32.mrf.mxu0
  %v837 = vadd.f32 %v720, %v836
  %v838 = vpop.f32.mrf.mxu0
  %839 = vmatprep.mubr.f32.mxu0 0.0
  %v840 = vand.u32 %v61, 4294901760
  %841 = vmatmul.mubr.f32.gmra.mxu0 %v840
  %v842 = vpop.f32.mrf.mxu0
  %v843 = vadd.f32 %v726, %v842
  %v844 = vpop.f32.mrf.mxu0
  %845 = vmatprep.mubr.f32.mxu0 0.0
  %v846 = vand.u32 %v64, 4294901760
  %847 = vmatmul.mubr.f32.gmra.mxu0 %v846
  %v848 = vpop.f32.mrf.mxu0
  %v849 = vadd.f32 %v732, %v848
  %v850 = vpop.f32.mrf.mxu0
  %851 = vdwg.mxu0
  %vm852 = vcmask 392192
  %853 = vst.msk [vmem:[%s5] sm:$0xff] %vm852, %v807
  %854 = vst.msk [vmem:[%s5 + $0x8] sm:$0xff] %vm852, %v813
  %855 = vst.msk [vmem:[%s5 + $0x10] sm:$0xff] %vm852, %v819
  %856 = vst.msk [vmem:[%s5 + $0x18] sm:$0xff] %vm852, %v825
  %857 = vst.msk [vmem:[%s5 + $0x20] sm:$0xff] %vm852, %v831
  %858 = vst.msk [vmem:[%s5 + $0x28] sm:$0xff] %vm852, %v837
  %859 = vst.msk [vmem:[%s5 + $0x30] sm:$0xff] %vm852, %v843
  %860 = vst.msk [vmem:[%s5 + $0x38] sm:$0xff] %vm852, %v849
  %v861 = vld [vmem:[%s2] sm:$0xff]
  %v862 = vld [vmem:[%s2 + $0x8] sm:$0xff]
  %v863 = vld [vmem:[%s2 + $0x10] sm:$0xff]
  %v864 = vld [vmem:[%s2 + $0x18] sm:$0xff]
  %v865 = vld [vmem:[%s4] sm:$0x1]
  %v867 = vlaneseq
  %v868 = vshrl.u32 %v867, 7
  %v869 = vsub.s32 0, %v868
  %v870 = vrot.slane %v865, %v869
  %872 = vmatprep.subr.mxu0 0.0
  %873 = vmatpush1.msra.mxu0 0.0
  %874 = vmatprep.subr.mxu0 0.0
  %875 = vmatpush1.msra.mxu0 0.0
  %876 = vmatprep.subr.mxu0 0.0
  %877 = vmatpush1.msra.mxu0 0.0
  %878 = vmatprep.subr.mxu0 0.0
  %879 = vmatpush1.msra.mxu0 0.0
  %880 = vmatprep.subr.mxu0 0.0
  %881 = vmatpush1.msra.mxu0 0.0
  %882 = vmatprep.subr.mxu0 0.0
  %883 = vmatpush1.msra.mxu0 0.0
  %884 = vmatprep.subr.mxu0 0.0
  %885 = vmatpush1.msra.mxu0 0.0
  %886 = vmatprep.subr.mxu0 0.0
  %887 = vmatpush1.msra.mxu0 0.0
  %888 = vmatprep.subr.mxu0 0.0
  %889 = vmatpush1.msra.mxu0 0.0
  %890 = vmatprep.subr.mxu0 0.0
  %891 = vmatpush1.msra.mxu0 0.0
  %892 = vmatprep.subr.mxu0 0.0
  %893 = vmatpush1.msra.mxu0 0.0
  %894 = vmatprep.subr.mxu0 0.0
  %895 = vmatpush1.msra.mxu0 0.0
  %896 = vmatprep.subr.mxu0 0.0
  %v897 = vand.u32 %v864, 4294901760
  %898 = vmatpush1.msra.mxu0 %v897
  %899 = vmatprep.subr.mxu0 0.0
  %v900 = vand.u32 %v863, 4294901760
  %901 = vmatpush1.msra.mxu0 %v900
  %902 = vmatprep.subr.mxu0 0.0
  %v903 = vand.u32 %v862, 4294901760
  %904 = vmatpush1.msra.mxu0 %v903
  %905 = vmatprep.subr.mxu0 0.0
  %v906 = vand.u32 %v861, 4294901760
  %907 = vmatpush1.msra.mxu0 %v906
  %908 = vmatprep.subr.mxu0 0.0
  %909 = vmatpush2.msra.mxu0 0.0
  %910 = vmatprep.subr.mxu0 0.0
  %911 = vmatpush2.msra.mxu0 0.0
  %912 = vmatprep.subr.mxu0 0.0
  %913 = vmatpush2.msra.mxu0 0.0
  %914 = vmatprep.subr.mxu0 0.0
  %915 = vmatpush2.msra.mxu0 0.0
  %916 = vmatprep.subr.mxu0 0.0
  %917 = vmatpush2.msra.mxu0 0.0
  %918 = vmatprep.subr.mxu0 0.0
  %919 = vmatpush2.msra.mxu0 0.0
  %920 = vmatprep.subr.mxu0 0.0
  %921 = vmatpush2.msra.mxu0 0.0
  %922 = vmatprep.subr.mxu0 0.0
  %923 = vmatpush2.msra.mxu0 0.0
  %924 = vmatprep.subr.mxu0 0.0
  %925 = vmatpush2.msra.mxu0 0.0
  %926 = vmatprep.subr.mxu0 0.0
  %927 = vmatpush2.msra.mxu0 0.0
  %928 = vmatprep.subr.mxu0 0.0
  %929 = vmatpush2.msra.mxu0 0.0
  %930 = vmatprep.subr.mxu0 0.0
  %931 = vmatpush2.msra.mxu0 0.0
  %932 = vmatprep.subr.mxu0 0.0
  %933 = vmatpush2.msra.mxu0 0.0
  %934 = vmatprep.subr.mxu0 0.0
  %935 = vmatpush2.msra.mxu0 0.0
  %936 = vmatprep.subr.mxu0 0.0
  %937 = vmatpush2.msra.mxu0 0.0
  %938 = vmatprep.subr.mxu0 0.0
  %939 = vmatpush2.msra.mxu0 0.0
  %940 = vmatprep.mubr.f32.mxu0 0.0
  %v941 = vand.u32 %v43, 4294901760
  %v942 = vsub.f32 %v43, %v941
  %v943 = vand.u32 %v942, 4294901760
  %v944 = vsub.f32 %v942, %v943
  %v945 = vand.u32 %v944, 4294901760
  %946 = vmatmul.mubr.f32.gmra.mxu0 %v945
  %v947 = vpop.f32.mrf.mxu0
  %v948 = vadd.f32 %v870, %v947
  %v949 = vpop.f32.mrf.mxu0
  %950 = vmatprep.mubr.f32.mxu0 0.0
  %v951 = vand.u32 %v46, 4294901760
  %v952 = vsub.f32 %v46, %v951
  %v953 = vand.u32 %v952, 4294901760
  %v954 = vsub.f32 %v952, %v953
  %v955 = vand.u32 %v954, 4294901760
  %956 = vmatmul.mubr.f32.gmra.mxu0 %v955
  %v957 = vpop.f32.mrf.mxu0
  %v958 = vadd.f32 %v870, %v957
  %v959 = vpop.f32.mrf.mxu0
  %960 = vmatprep.mubr.f32.mxu0 0.0
  %v961 = vand.u32 %v49, 4294901760
  %v962 = vsub.f32 %v49, %v961
  %v963 = vand.u32 %v962, 4294901760
  %v964 = vsub.f32 %v962, %v963
  %v965 = vand.u32 %v964, 4294901760
  %966 = vmatmul.mubr.f32.gmra.mxu0 %v965
  %v967 = vpop.f32.mrf.mxu0
  %v968 = vadd.f32 %v870, %v967
  %v969 = vpop.f32.mrf.mxu0
  %970 = vmatprep.mubr.f32.mxu0 0.0
  %v971 = vand.u32 %v52, 4294901760
  %v972 = vsub.f32 %v52, %v971
  %v973 = vand.u32 %v972, 4294901760
  %v974 = vsub.f32 %v972, %v973
  %v975 = vand.u32 %v974, 4294901760
  %976 = vmatmul.mubr.f32.gmra.mxu0 %v975
  %v977 = vpop.f32.mrf.mxu0
  %v978 = vadd.f32 %v870, %v977
  %v979 = vpop.f32.mrf.mxu0
  %980 = vmatprep.mubr.f32.mxu0 0.0
  %v981 = vand.u32 %v55, 4294901760
  %v982 = vsub.f32 %v55, %v981
  %v983 = vand.u32 %v982, 4294901760
  %v984 = vsub.f32 %v982, %v983
  %v985 = vand.u32 %v984, 4294901760
  %986 = vmatmul.mubr.f32.gmra.mxu0 %v985
  %v987 = vpop.f32.mrf.mxu0
  %v988 = vadd.f32 %v870, %v987
  %v989 = vpop.f32.mrf.mxu0
  %990 = vmatprep.mubr.f32.mxu0 0.0
  %v991 = vand.u32 %v58, 4294901760
  %v992 = vsub.f32 %v58, %v991
  %v993 = vand.u32 %v992, 4294901760
  %v994 = vsub.f32 %v992, %v993
  %v995 = vand.u32 %v994, 4294901760
  %996 = vmatmul.mubr.f32.gmra.mxu0 %v995
  %v997 = vpop.f32.mrf.mxu0
  %v998 = vadd.f32 %v870, %v997
  %v999 = vpop.f32.mrf.mxu0
  %1000 = vmatprep.mubr.f32.mxu0 0.0
  %v1001 = vand.u32 %v61, 4294901760
  %v1002 = vsub.f32 %v61, %v1001
  %v1003 = vand.u32 %v1002, 4294901760
  %v1004 = vsub.f32 %v1002, %v1003
  %v1005 = vand.u32 %v1004, 4294901760
  %1006 = vmatmul.mubr.f32.gmra.mxu0 %v1005
  %v1007 = vpop.f32.mrf.mxu0
  %v1008 = vadd.f32 %v870, %v1007
  %v1009 = vpop.f32.mrf.mxu0
  %1010 = vmatprep.mubr.f32.mxu0 0.0
  %v1011 = vand.u32 %v64, 4294901760
  %v1012 = vsub.f32 %v64, %v1011
  %v1013 = vand.u32 %v1012, 4294901760
  %v1014 = vsub.f32 %v1012, %v1013
  %v1015 = vand.u32 %v1014, 4294901760
  %1016 = vmatmul.mubr.f32.gmra.mxu0 %v1015
  %v1017 = vpop.f32.mrf.mxu0
  %v1018 = vadd.f32 %v870, %v1017
  %v1019 = vpop.f32.mrf.mxu0
  %1020 = vdwg.mxu0
  %1021 = vmatprep.subr.mxu0 0.0
  %1022 = vmatpush1.msra.mxu0 0.0
  %1023 = vmatprep.subr.mxu0 0.0
  %1024 = vmatpush1.msra.mxu0 0.0
  %1025 = vmatprep.subr.mxu0 0.0
  %1026 = vmatpush1.msra.mxu0 0.0
  %1027 = vmatprep.subr.mxu0 0.0
  %1028 = vmatpush1.msra.mxu0 0.0
  %1029 = vmatprep.subr.mxu0 0.0
  %1030 = vmatpush1.msra.mxu0 0.0
  %1031 = vmatprep.subr.mxu0 0.0
  %1032 = vmatpush1.msra.mxu0 0.0
  %1033 = vmatprep.subr.mxu0 0.0
  %1034 = vmatpush1.msra.mxu0 0.0
  %1035 = vmatprep.subr.mxu0 0.0
  %1036 = vmatpush1.msra.mxu0 0.0
  %1037 = vmatprep.subr.mxu0 0.0
  %1038 = vmatpush1.msra.mxu0 0.0
  %1039 = vmatprep.subr.mxu0 0.0
  %1040 = vmatpush1.msra.mxu0 0.0
  %1041 = vmatprep.subr.mxu0 0.0
  %1042 = vmatpush1.msra.mxu0 0.0
  %1043 = vmatprep.subr.mxu0 0.0
  %1044 = vmatpush1.msra.mxu0 0.0
  %1045 = vmatprep.subr.mxu0 0.0
  %v1046 = vand.u32 %v864, 4294901760
  %v1047 = vsub.f32 %v864, %v1046
  %v1048 = vand.u32 %v1047, 4294901760
  %v1049 = vsub.f32 %v1047, %v1048
  %v1050 = vand.u32 %v1049, 4294901760
  %1051 = vmatpush1.msra.mxu0 %v1050
  %1052 = vmatprep.subr.mxu0 0.0
  %v1053 = vand.u32 %v863, 4294901760
  %v1054 = vsub.f32 %v863, %v1053
  %v1055 = vand.u32 %v1054, 4294901760
  %v1056 = vsub.f32 %v1054, %v1055
  %v1057 = vand.u32 %v1056, 4294901760
  %1058 = vmatpush1.msra.mxu0 %v1057
  %1059 = vmatprep.subr.mxu0 0.0
  %v1060 = vand.u32 %v862, 4294901760
  %v1061 = vsub.f32 %v862, %v1060
  %v1062 = vand.u32 %v1061, 4294901760
  %v1063 = vsub.f32 %v1061, %v1062
  %v1064 = vand.u32 %v1063, 4294901760
  %1065 = vmatpush1.msra.mxu0 %v1064
  %1066 = vmatprep.subr.mxu0 0.0
  %v1067 = vand.u32 %v861, 4294901760
  %v1068 = vsub.f32 %v861, %v1067
  %v1069 = vand.u32 %v1068, 4294901760
  %v1070 = vsub.f32 %v1068, %v1069
  %v1071 = vand.u32 %v1070, 4294901760
  %1072 = vmatpush1.msra.mxu0 %v1071
  %1073 = vmatprep.subr.mxu0 0.0
  %1074 = vmatpush2.msra.mxu0 0.0
  %1075 = vmatprep.subr.mxu0 0.0
  %1076 = vmatpush2.msra.mxu0 0.0
  %1077 = vmatprep.subr.mxu0 0.0
  %1078 = vmatpush2.msra.mxu0 0.0
  %1079 = vmatprep.subr.mxu0 0.0
  %1080 = vmatpush2.msra.mxu0 0.0
  %1081 = vmatprep.subr.mxu0 0.0
  %1082 = vmatpush2.msra.mxu0 0.0
  %1083 = vmatprep.subr.mxu0 0.0
  %1084 = vmatpush2.msra.mxu0 0.0
  %1085 = vmatprep.subr.mxu0 0.0
  %1086 = vmatpush2.msra.mxu0 0.0
  %1087 = vmatprep.subr.mxu0 0.0
  %1088 = vmatpush2.msra.mxu0 0.0
  %1089 = vmatprep.subr.mxu0 0.0
  %1090 = vmatpush2.msra.mxu0 0.0
  %1091 = vmatprep.subr.mxu0 0.0
  %1092 = vmatpush2.msra.mxu0 0.0
  %1093 = vmatprep.subr.mxu0 0.0
  %1094 = vmatpush2.msra.mxu0 0.0
  %1095 = vmatprep.subr.mxu0 0.0
  %1096 = vmatpush2.msra.mxu0 0.0
  %1097 = vmatprep.subr.mxu0 0.0
  %1098 = vmatpush2.msra.mxu0 0.0
  %1099 = vmatprep.subr.mxu0 0.0
  %1100 = vmatpush2.msra.mxu0 0.0
  %1101 = vmatprep.subr.mxu0 0.0
  %1102 = vmatpush2.msra.mxu0 0.0
  %1103 = vmatprep.subr.mxu0 0.0
  %1104 = vmatpush2.msra.mxu0 0.0
  %1105 = vmatprep.mubr.f32.mxu0 0.0
  %v1106 = vand.u32 %v43, 4294901760
  %1107 = vmatmul.mubr.f32.gmra.mxu0 %v1106
  %v1108 = vpop.f32.mrf.mxu0
  %v1109 = vadd.f32 %v948, %v1108
  %v1110 = vpop.f32.mrf.mxu0
  %1111 = vmatprep.mubr.f32.mxu0 0.0
  %v1112 = vand.u32 %v46, 4294901760
  %1113 = vmatmul.mubr.f32.gmra.mxu0 %v1112
  %v1114 = vpop.f32.mrf.mxu0
  %v1115 = vadd.f32 %v958, %v1114
  %v1116 = vpop.f32.mrf.mxu0
  %1117 = vmatprep.mubr.f32.mxu0 0.0
  %v1118 = vand.u32 %v49, 4294901760
  %1119 = vmatmul.mubr.f32.gmra.mxu0 %v1118
  %v1120 = vpop.f32.mrf.mxu0
  %v1121 = vadd.f32 %v968, %v1120
  %v1122 = vpop.f32.mrf.mxu0
  %1123 = vmatprep.mubr.f32.mxu0 0.0
  %v1124 = vand.u32 %v52, 4294901760
  %1125 = vmatmul.mubr.f32.gmra.mxu0 %v1124
  %v1126 = vpop.f32.mrf.mxu0
  %v1127 = vadd.f32 %v978, %v1126
  %v1128 = vpop.f32.mrf.mxu0
  %1129 = vmatprep.mubr.f32.mxu0 0.0
  %v1130 = vand.u32 %v55, 4294901760
  %1131 = vmatmul.mubr.f32.gmra.mxu0 %v1130
  %v1132 = vpop.f32.mrf.mxu0
  %v1133 = vadd.f32 %v988, %v1132
  %v1134 = vpop.f32.mrf.mxu0
  %1135 = vmatprep.mubr.f32.mxu0 0.0
  %v1136 = vand.u32 %v58, 4294901760
  %1137 = vmatmul.mubr.f32.gmra.mxu0 %v1136
  %v1138 = vpop.f32.mrf.mxu0
  %v1139 = vadd.f32 %v998, %v1138
  %v1140 = vpop.f32.mrf.mxu0
  %1141 = vmatprep.mubr.f32.mxu0 0.0
  %v1142 = vand.u32 %v61, 4294901760
  %1143 = vmatmul.mubr.f32.gmra.mxu0 %v1142
  %v1144 = vpop.f32.mrf.mxu0
  %v1145 = vadd.f32 %v1008, %v1144
  %v1146 = vpop.f32.mrf.mxu0
  %1147 = vmatprep.mubr.f32.mxu0 0.0
  %v1148 = vand.u32 %v64, 4294901760
  %1149 = vmatmul.mubr.f32.gmra.mxu0 %v1148
  %v1150 = vpop.f32.mrf.mxu0
  %v1151 = vadd.f32 %v1018, %v1150
  %v1152 = vpop.f32.mrf.mxu0
  %1153 = vdwg.mxu0
  %1154 = vmatprep.subr.mxu0 0.0
  %1155 = vmatpush1.msra.mxu0 0.0
  %1156 = vmatprep.subr.mxu0 0.0
  %1157 = vmatpush1.msra.mxu0 0.0
  %1158 = vmatprep.subr.mxu0 0.0
  %1159 = vmatpush1.msra.mxu0 0.0
  %1160 = vmatprep.subr.mxu0 0.0
  %1161 = vmatpush1.msra.mxu0 0.0
  %1162 = vmatprep.subr.mxu0 0.0
  %1163 = vmatpush1.msra.mxu0 0.0
  %1164 = vmatprep.subr.mxu0 0.0
  %1165 = vmatpush1.msra.mxu0 0.0
  %1166 = vmatprep.subr.mxu0 0.0
  %1167 = vmatpush1.msra.mxu0 0.0
  %1168 = vmatprep.subr.mxu0 0.0
  %1169 = vmatpush1.msra.mxu0 0.0
  %1170 = vmatprep.subr.mxu0 0.0
  %1171 = vmatpush1.msra.mxu0 0.0
  %1172 = vmatprep.subr.mxu0 0.0
  %1173 = vmatpush1.msra.mxu0 0.0
  %1174 = vmatprep.subr.mxu0 0.0
  %1175 = vmatpush1.msra.mxu0 0.0
  %1176 = vmatprep.subr.mxu0 0.0
  %1177 = vmatpush1.msra.mxu0 0.0
  %1178 = vmatprep.subr.mxu0 0.0
  %v1179 = vand.u32 %v864, 4294901760
  %v1180 = vsub.f32 %v864, %v1179
  %1181 = vmatpush1.msra.mxu0 %v1180
  %1182 = vmatprep.subr.mxu0 0.0
  %v1183 = vand.u32 %v863, 4294901760
  %v1184 = vsub.f32 %v863, %v1183
  %1185 = vmatpush1.msra.mxu0 %v1184
  %1186 = vmatprep.subr.mxu0 0.0
  %v1187 = vand.u32 %v862, 4294901760
  %v1188 = vsub.f32 %v862, %v1187
  %1189 = vmatpush1.msra.mxu0 %v1188
  %1190 = vmatprep.subr.mxu0 0.0
  %v1191 = vand.u32 %v861, 4294901760
  %v1192 = vsub.f32 %v861, %v1191
  %1193 = vmatpush1.msra.mxu0 %v1192
  %1194 = vmatprep.subr.mxu0 0.0
  %1195 = vmatpush2.msra.mxu0 0.0
  %1196 = vmatprep.subr.mxu0 0.0
  %1197 = vmatpush2.msra.mxu0 0.0
  %1198 = vmatprep.subr.mxu0 0.0
  %1199 = vmatpush2.msra.mxu0 0.0
  %1200 = vmatprep.subr.mxu0 0.0
  %1201 = vmatpush2.msra.mxu0 0.0
  %1202 = vmatprep.subr.mxu0 0.0
  %1203 = vmatpush2.msra.mxu0 0.0
  %1204 = vmatprep.subr.mxu0 0.0
  %1205 = vmatpush2.msra.mxu0 0.0
  %1206 = vmatprep.subr.mxu0 0.0
  %1207 = vmatpush2.msra.mxu0 0.0
  %1208 = vmatprep.subr.mxu0 0.0
  %1209 = vmatpush2.msra.mxu0 0.0
  %1210 = vmatprep.subr.mxu0 0.0
  %1211 = vmatpush2.msra.mxu0 0.0
  %1212 = vmatprep.subr.mxu0 0.0
  %1213 = vmatpush2.msra.mxu0 0.0
  %1214 = vmatprep.subr.mxu0 0.0
  %1215 = vmatpush2.msra.mxu0 0.0
  %1216 = vmatprep.subr.mxu0 0.0
  %1217 = vmatpush2.msra.mxu0 0.0
  %1218 = vmatprep.subr.mxu0 0.0
  %1219 = vmatpush2.msra.mxu0 0.0
  %1220 = vmatprep.subr.mxu0 0.0
  %1221 = vmatpush2.msra.mxu0 0.0
  %1222 = vmatprep.subr.mxu0 0.0
  %1223 = vmatpush2.msra.mxu0 0.0
  %1224 = vmatprep.subr.mxu0 0.0
  %1225 = vmatpush2.msra.mxu0 0.0
  %1226 = vmatprep.mubr.f32.mxu0 0.0
  %v1227 = vand.u32 %v43, 4294901760
  %v1228 = vsub.f32 %v43, %v1227
  %1229 = vmatmul.mubr.f32.gmra.mxu0 %v1228
  %v1230 = vpop.f32.mrf.mxu0
  %v1231 = vadd.f32 %v1109, %v1230
  %v1232 = vpop.f32.mrf.mxu0
  %1233 = vmatprep.mubr.f32.mxu0 0.0
  %v1234 = vand.u32 %v46, 4294901760
  %v1235 = vsub.f32 %v46, %v1234
  %1236 = vmatmul.mubr.f32.gmra.mxu0 %v1235
  %v1237 = vpop.f32.mrf.mxu0
  %v1238 = vadd.f32 %v1115, %v1237
  %v1239 = vpop.f32.mrf.mxu0
  %1240 = vmatprep.mubr.f32.mxu0 0.0
  %v1241 = vand.u32 %v49, 4294901760
  %v1242 = vsub.f32 %v49, %v1241
  %1243 = vmatmul.mubr.f32.gmra.mxu0 %v1242
  %v1244 = vpop.f32.mrf.mxu0
  %v1245 = vadd.f32 %v1121, %v1244
  %v1246 = vpop.f32.mrf.mxu0
  %1247 = vmatprep.mubr.f32.mxu0 0.0
  %v1248 = vand.u32 %v52, 4294901760
  %v1249 = vsub.f32 %v52, %v1248
  %1250 = vmatmul.mubr.f32.gmra.mxu0 %v1249
  %v1251 = vpop.f32.mrf.mxu0
  %v1252 = vadd.f32 %v1127, %v1251
  %v1253 = vpop.f32.mrf.mxu0
  %1254 = vmatprep.mubr.f32.mxu0 0.0
  %v1255 = vand.u32 %v55, 4294901760
  %v1256 = vsub.f32 %v55, %v1255
  %1257 = vmatmul.mubr.f32.gmra.mxu0 %v1256
  %v1258 = vpop.f32.mrf.mxu0
  %v1259 = vadd.f32 %v1133, %v1258
  %v1260 = vpop.f32.mrf.mxu0
  %1261 = vmatprep.mubr.f32.mxu0 0.0
  %v1262 = vand.u32 %v58, 4294901760
  %v1263 = vsub.f32 %v58, %v1262
  %1264 = vmatmul.mubr.f32.gmra.mxu0 %v1263
  %v1265 = vpop.f32.mrf.mxu0
  %v1266 = vadd.f32 %v1139, %v1265
  %v1267 = vpop.f32.mrf.mxu0
  %1268 = vmatprep.mubr.f32.mxu0 0.0
  %v1269 = vand.u32 %v61, 4294901760
  %v1270 = vsub.f32 %v61, %v1269
  %1271 = vmatmul.mubr.f32.gmra.mxu0 %v1270
  %v1272 = vpop.f32.mrf.mxu0
  %v1273 = vadd.f32 %v1145, %v1272
  %v1274 = vpop.f32.mrf.mxu0
  %1275 = vmatprep.mubr.f32.mxu0 0.0
  %v1276 = vand.u32 %v64, 4294901760
  %v1277 = vsub.f32 %v64, %v1276
  %1278 = vmatmul.mubr.f32.gmra.mxu0 %v1277
  %v1279 = vpop.f32.mrf.mxu0
  %v1280 = vadd.f32 %v1151, %v1279
  %v1281 = vpop.f32.mrf.mxu0
  %1282 = vdwg.mxu0
  %1283 = vmatprep.subr.mxu0 0.0
  %1284 = vmatpush1.msra.mxu0 0.0
  %1285 = vmatprep.subr.mxu0 0.0
  %1286 = vmatpush1.msra.mxu0 0.0
  %1287 = vmatprep.subr.mxu0 0.0
  %1288 = vmatpush1.msra.mxu0 0.0
  %1289 = vmatprep.subr.mxu0 0.0
  %1290 = vmatpush1.msra.mxu0 0.0
  %1291 = vmatprep.subr.mxu0 0.0
  %1292 = vmatpush1.msra.mxu0 0.0
  %1293 = vmatprep.subr.mxu0 0.0
  %1294 = vmatpush1.msra.mxu0 0.0
  %1295 = vmatprep.subr.mxu0 0.0
  %1296 = vmatpush1.msra.mxu0 0.0
  %1297 = vmatprep.subr.mxu0 0.0
  %1298 = vmatpush1.msra.mxu0 0.0
  %1299 = vmatprep.subr.mxu0 0.0
  %1300 = vmatpush1.msra.mxu0 0.0
  %1301 = vmatprep.subr.mxu0 0.0
  %1302 = vmatpush1.msra.mxu0 0.0
  %1303 = vmatprep.subr.mxu0 0.0
  %1304 = vmatpush1.msra.mxu0 0.0
  %1305 = vmatprep.subr.mxu0 0.0
  %1306 = vmatpush1.msra.mxu0 0.0
  %1307 = vmatprep.subr.mxu0 0.0
  %v1308 = vand.u32 %v864, 4294901760
  %1309 = vmatpush1.msra.mxu0 %v1308
  %1310 = vmatprep.subr.mxu0 0.0
  %v1311 = vand.u32 %v863, 4294901760
  %1312 = vmatpush1.msra.mxu0 %v1311
  %1313 = vmatprep.subr.mxu0 0.0
  %v1314 = vand.u32 %v862, 4294901760
  %1315 = vmatpush1.msra.mxu0 %v1314
  %1316 = vmatprep.subr.mxu0 0.0
  %v1317 = vand.u32 %v861, 4294901760
  %1318 = vmatpush1.msra.mxu0 %v1317
  %1319 = vmatprep.subr.mxu0 0.0
  %1320 = vmatpush2.msra.mxu0 0.0
  %1321 = vmatprep.subr.mxu0 0.0
  %1322 = vmatpush2.msra.mxu0 0.0
  %1323 = vmatprep.subr.mxu0 0.0
  %1324 = vmatpush2.msra.mxu0 0.0
  %1325 = vmatprep.subr.mxu0 0.0
  %1326 = vmatpush2.msra.mxu0 0.0
  %1327 = vmatprep.subr.mxu0 0.0
  %1328 = vmatpush2.msra.mxu0 0.0
  %1329 = vmatprep.subr.mxu0 0.0
  %1330 = vmatpush2.msra.mxu0 0.0
  %1331 = vmatprep.subr.mxu0 0.0
  %1332 = vmatpush2.msra.mxu0 0.0
  %1333 = vmatprep.subr.mxu0 0.0
  %1334 = vmatpush2.msra.mxu0 0.0
  %1335 = vmatprep.subr.mxu0 0.0
  %1336 = vmatpush2.msra.mxu0 0.0
  %1337 = vmatprep.subr.mxu0 0.0
  %1338 = vmatpush2.msra.mxu0 0.0
  %1339 = vmatprep.subr.mxu0 0.0
  %1340 = vmatpush2.msra.mxu0 0.0
  %1341 = vmatprep.subr.mxu0 0.0
  %1342 = vmatpush2.msra.mxu0 0.0
  %1343 = vmatprep.subr.mxu0 0.0
  %1344 = vmatpush2.msra.mxu0 0.0
  %1345 = vmatprep.subr.mxu0 0.0
  %1346 = vmatpush2.msra.mxu0 0.0
  %1347 = vmatprep.subr.mxu0 0.0
  %1348 = vmatpush2.msra.mxu0 0.0
  %1349 = vmatprep.subr.mxu0 0.0
  %1350 = vmatpush2.msra.mxu0 0.0
  %1351 = vmatprep.mubr.f32.mxu0 0.0
  %v1352 = vand.u32 %v43, 4294901760
  %v1353 = vsub.f32 %v43, %v1352
  %v1354 = vand.u32 %v1353, 4294901760
  %1355 = vmatmul.mubr.f32.gmra.mxu0 %v1354
  %v1356 = vpop.f32.mrf.mxu0
  %v1357 = vadd.f32 %v1231, %v1356
  %v1358 = vpop.f32.mrf.mxu0
  %1359 = vmatprep.mubr.f32.mxu0 0.0
  %v1360 = vand.u32 %v46, 4294901760
  %v1361 = vsub.f32 %v46, %v1360
  %v1362 = vand.u32 %v1361, 4294901760
  %1363 = vmatmul.mubr.f32.gmra.mxu0 %v1362
  %v1364 = vpop.f32.mrf.mxu0
  %v1365 = vadd.f32 %v1238, %v1364
  %v1366 = vpop.f32.mrf.mxu0
  %1367 = vmatprep.mubr.f32.mxu0 0.0
  %v1368 = vand.u32 %v49, 4294901760
  %v1369 = vsub.f32 %v49, %v1368
  %v1370 = vand.u32 %v1369, 4294901760
  %1371 = vmatmul.mubr.f32.gmra.mxu0 %v1370
  %v1372 = vpop.f32.mrf.mxu0
  %v1373 = vadd.f32 %v1245, %v1372
  %v1374 = vpop.f32.mrf.mxu0
  %1375 = vmatprep.mubr.f32.mxu0 0.0
  %v1376 = vand.u32 %v52, 4294901760
  %v1377 = vsub.f32 %v52, %v1376
  %v1378 = vand.u32 %v1377, 4294901760
  %1379 = vmatmul.mubr.f32.gmra.mxu0 %v1378
  %v1380 = vpop.f32.mrf.mxu0
  %v1381 = vadd.f32 %v1252, %v1380
  %v1382 = vpop.f32.mrf.mxu0
  %1383 = vmatprep.mubr.f32.mxu0 0.0
  %v1384 = vand.u32 %v55, 4294901760
  %v1385 = vsub.f32 %v55, %v1384
  %v1386 = vand.u32 %v1385, 4294901760
  %1387 = vmatmul.mubr.f32.gmra.mxu0 %v1386
  %v1388 = vpop.f32.mrf.mxu0
  %v1389 = vadd.f32 %v1259, %v1388
  %v1390 = vpop.f32.mrf.mxu0
  %1391 = vmatprep.mubr.f32.mxu0 0.0
  %v1392 = vand.u32 %v58, 4294901760
  %v1393 = vsub.f32 %v58, %v1392
  %v1394 = vand.u32 %v1393, 4294901760
  %1395 = vmatmul.mubr.f32.gmra.mxu0 %v1394
  %v1396 = vpop.f32.mrf.mxu0
  %v1397 = vadd.f32 %v1266, %v1396
  %v1398 = vpop.f32.mrf.mxu0
  %1399 = vmatprep.mubr.f32.mxu0 0.0
  %v1400 = vand.u32 %v61, 4294901760
  %v1401 = vsub.f32 %v61, %v1400
  %v1402 = vand.u32 %v1401, 4294901760
  %1403 = vmatmul.mubr.f32.gmra.mxu0 %v1402
  %v1404 = vpop.f32.mrf.mxu0
  %v1405 = vadd.f32 %v1273, %v1404
  %v1406 = vpop.f32.mrf.mxu0
  %1407 = vmatprep.mubr.f32.mxu0 0.0
  %v1408 = vand.u32 %v64, 4294901760
  %v1409 = vsub.f32 %v64, %v1408
  %v1410 = vand.u32 %v1409, 4294901760
  %1411 = vmatmul.mubr.f32.gmra.mxu0 %v1410
  %v1412 = vpop.f32.mrf.mxu0
  %v1413 = vadd.f32 %v1280, %v1412
  %v1414 = vpop.f32.mrf.mxu0
  %1415 = vdwg.mxu0
  %1416 = vmatprep.subr.mxu0 0.0
  %1417 = vmatpush1.msra.mxu0 0.0
  %1418 = vmatprep.subr.mxu0 0.0
  %1419 = vmatpush1.msra.mxu0 0.0
  %1420 = vmatprep.subr.mxu0 0.0
  %1421 = vmatpush1.msra.mxu0 0.0
  %1422 = vmatprep.subr.mxu0 0.0
  %1423 = vmatpush1.msra.mxu0 0.0
  %1424 = vmatprep.subr.mxu0 0.0
  %1425 = vmatpush1.msra.mxu0 0.0
  %1426 = vmatprep.subr.mxu0 0.0
  %1427 = vmatpush1.msra.mxu0 0.0
  %1428 = vmatprep.subr.mxu0 0.0
  %1429 = vmatpush1.msra.mxu0 0.0
  %1430 = vmatprep.subr.mxu0 0.0
  %1431 = vmatpush1.msra.mxu0 0.0
  %1432 = vmatprep.subr.mxu0 0.0
  %1433 = vmatpush1.msra.mxu0 0.0
  %1434 = vmatprep.subr.mxu0 0.0
  %1435 = vmatpush1.msra.mxu0 0.0
  %1436 = vmatprep.subr.mxu0 0.0
  %1437 = vmatpush1.msra.mxu0 0.0
  %1438 = vmatprep.subr.mxu0 0.0
  %1439 = vmatpush1.msra.mxu0 0.0
  %1440 = vmatprep.subr.mxu0 0.0
  %v1441 = vand.u32 %v864, 4294901760
  %v1442 = vsub.f32 %v864, %v1441
  %v1443 = vand.u32 %v1442, 4294901760
  %1444 = vmatpush1.msra.mxu0 %v1443
  %1445 = vmatprep.subr.mxu0 0.0
  %v1446 = vand.u32 %v863, 4294901760
  %v1447 = vsub.f32 %v863, %v1446
  %v1448 = vand.u32 %v1447, 4294901760
  %1449 = vmatpush1.msra.mxu0 %v1448
  %1450 = vmatprep.subr.mxu0 0.0
  %v1451 = vand.u32 %v862, 4294901760
  %v1452 = vsub.f32 %v862, %v1451
  %v1453 = vand.u32 %v1452, 4294901760
  %1454 = vmatpush1.msra.mxu0 %v1453
  %1455 = vmatprep.subr.mxu0 0.0
  %v1456 = vand.u32 %v861, 4294901760
  %v1457 = vsub.f32 %v861, %v1456
  %v1458 = vand.u32 %v1457, 4294901760
  %1459 = vmatpush1.msra.mxu0 %v1458
  %1460 = vmatprep.subr.mxu0 0.0
  %1461 = vmatpush2.msra.mxu0 0.0
  %1462 = vmatprep.subr.mxu0 0.0
  %1463 = vmatpush2.msra.mxu0 0.0
  %1464 = vmatprep.subr.mxu0 0.0
  %1465 = vmatpush2.msra.mxu0 0.0
  %1466 = vmatprep.subr.mxu0 0.0
  %1467 = vmatpush2.msra.mxu0 0.0
  %1468 = vmatprep.subr.mxu0 0.0
  %1469 = vmatpush2.msra.mxu0 0.0
  %1470 = vmatprep.subr.mxu0 0.0
  %1471 = vmatpush2.msra.mxu0 0.0
  %1472 = vmatprep.subr.mxu0 0.0
  %1473 = vmatpush2.msra.mxu0 0.0
  %1474 = vmatprep.subr.mxu0 0.0
  %1475 = vmatpush2.msra.mxu0 0.0
  %1476 = vmatprep.subr.mxu0 0.0
  %1477 = vmatpush2.msra.mxu0 0.0
  %1478 = vmatprep.subr.mxu0 0.0
  %1479 = vmatpush2.msra.mxu0 0.0
  %1480 = vmatprep.subr.mxu0 0.0
  %1481 = vmatpush2.msra.mxu0 0.0
  %1482 = vmatprep.subr.mxu0 0.0
  %1483 = vmatpush2.msra.mxu0 0.0
  %1484 = vmatprep.subr.mxu0 0.0
  %1485 = vmatpush2.msra.mxu0 0.0
  %1486 = vmatprep.subr.mxu0 0.0
  %1487 = vmatpush2.msra.mxu0 0.0
  %1488 = vmatprep.subr.mxu0 0.0
  %1489 = vmatpush2.msra.mxu0 0.0
  %1490 = vmatprep.subr.mxu0 0.0
  %1491 = vmatpush2.msra.mxu0 0.0
  %1492 = vmatprep.mubr.f32.mxu0 0.0
  %v1493 = vand.u32 %v43, 4294901760
  %1494 = vmatmul.mubr.f32.gmra.mxu0 %v1493
  %v1495 = vpop.f32.mrf.mxu0
  %v1496 = vadd.f32 %v1357, %v1495
  %v1497 = vpop.f32.mrf.mxu0
  %1498 = vmatprep.mubr.f32.mxu0 0.0
  %v1499 = vand.u32 %v46, 4294901760
  %1500 = vmatmul.mubr.f32.gmra.mxu0 %v1499
  %v1501 = vpop.f32.mrf.mxu0
  %v1502 = vadd.f32 %v1365, %v1501
  %v1503 = vpop.f32.mrf.mxu0
  %1504 = vmatprep.mubr.f32.mxu0 0.0
  %v1505 = vand.u32 %v49, 4294901760
  %1506 = vmatmul.mubr.f32.gmra.mxu0 %v1505
  %v1507 = vpop.f32.mrf.mxu0
  %v1508 = vadd.f32 %v1373, %v1507
  %v1509 = vpop.f32.mrf.mxu0
  %1510 = vmatprep.mubr.f32.mxu0 0.0
  %v1511 = vand.u32 %v52, 4294901760
  %1512 = vmatmul.mubr.f32.gmra.mxu0 %v1511
  %v1513 = vpop.f32.mrf.mxu0
  %v1514 = vadd.f32 %v1381, %v1513
  %v1515 = vpop.f32.mrf.mxu0
  %1516 = vmatprep.mubr.f32.mxu0 0.0
  %v1517 = vand.u32 %v55, 4294901760
  %1518 = vmatmul.mubr.f32.gmra.mxu0 %v1517
  %v1519 = vpop.f32.mrf.mxu0
  %v1520 = vadd.f32 %v1389, %v1519
  %v1521 = vpop.f32.mrf.mxu0
  %1522 = vmatprep.mubr.f32.mxu0 0.0
  %v1523 = vand.u32 %v58, 4294901760
  %1524 = vmatmul.mubr.f32.gmra.mxu0 %v1523
  %v1525 = vpop.f32.mrf.mxu0
  %v1526 = vadd.f32 %v1397, %v1525
  %v1527 = vpop.f32.mrf.mxu0
  %1528 = vmatprep.mubr.f32.mxu0 0.0
  %v1529 = vand.u32 %v61, 4294901760
  %1530 = vmatmul.mubr.f32.gmra.mxu0 %v1529
  %v1531 = vpop.f32.mrf.mxu0
  %v1532 = vadd.f32 %v1405, %v1531
  %v1533 = vpop.f32.mrf.mxu0
  %1534 = vmatprep.mubr.f32.mxu0 0.0
  %v1535 = vand.u32 %v64, 4294901760
  %1536 = vmatmul.mubr.f32.gmra.mxu0 %v1535
  %v1537 = vpop.f32.mrf.mxu0
  %v1538 = vadd.f32 %v1413, %v1537
  %v1539 = vpop.f32.mrf.mxu0
  %1540 = vdwg.mxu0
  %1541 = vmatprep.subr.mxu0 0.0
  %1542 = vmatpush1.msra.mxu0 0.0
  %1543 = vmatprep.subr.mxu0 0.0
  %1544 = vmatpush1.msra.mxu0 0.0
  %1545 = vmatprep.subr.mxu0 0.0
  %1546 = vmatpush1.msra.mxu0 0.0
  %1547 = vmatprep.subr.mxu0 0.0
  %1548 = vmatpush1.msra.mxu0 0.0
  %1549 = vmatprep.subr.mxu0 0.0
  %1550 = vmatpush1.msra.mxu0 0.0
  %1551 = vmatprep.subr.mxu0 0.0
  %1552 = vmatpush1.msra.mxu0 0.0
  %1553 = vmatprep.subr.mxu0 0.0
  %1554 = vmatpush1.msra.mxu0 0.0
  %1555 = vmatprep.subr.mxu0 0.0
  %1556 = vmatpush1.msra.mxu0 0.0
  %1557 = vmatprep.subr.mxu0 0.0
  %1558 = vmatpush1.msra.mxu0 0.0
  %1559 = vmatprep.subr.mxu0 0.0
  %1560 = vmatpush1.msra.mxu0 0.0
  %1561 = vmatprep.subr.mxu0 0.0
  %1562 = vmatpush1.msra.mxu0 0.0
  %1563 = vmatprep.subr.mxu0 0.0
  %1564 = vmatpush1.msra.mxu0 0.0
  %1565 = vmatprep.subr.mxu0 0.0
  %v1566 = vand.u32 %v864, 4294901760
  %1567 = vmatpush1.msra.mxu0 %v1566
  %1568 = vmatprep.subr.mxu0 0.0
  %v1569 = vand.u32 %v863, 4294901760
  %1570 = vmatpush1.msra.mxu0 %v1569
  %1571 = vmatprep.subr.mxu0 0.0
  %v1572 = vand.u32 %v862, 4294901760
  %1573 = vmatpush1.msra.mxu0 %v1572
  %1574 = vmatprep.subr.mxu0 0.0
  %v1575 = vand.u32 %v861, 4294901760
  %1576 = vmatpush1.msra.mxu0 %v1575
  %1577 = vmatprep.subr.mxu0 0.0
  %1578 = vmatpush2.msra.mxu0 0.0
  %1579 = vmatprep.subr.mxu0 0.0
  %1580 = vmatpush2.msra.mxu0 0.0
  %1581 = vmatprep.subr.mxu0 0.0
  %1582 = vmatpush2.msra.mxu0 0.0
  %1583 = vmatprep.subr.mxu0 0.0
  %1584 = vmatpush2.msra.mxu0 0.0
  %1585 = vmatprep.subr.mxu0 0.0
  %1586 = vmatpush2.msra.mxu0 0.0
  %1587 = vmatprep.subr.mxu0 0.0
  %1588 = vmatpush2.msra.mxu0 0.0
  %1589 = vmatprep.subr.mxu0 0.0
  %1590 = vmatpush2.msra.mxu0 0.0
  %1591 = vmatprep.subr.mxu0 0.0
  %1592 = vmatpush2.msra.mxu0 0.0
  %1593 = vmatprep.subr.mxu0 0.0
  %1594 = vmatpush2.msra.mxu0 0.0
  %1595 = vmatprep.subr.mxu0 0.0
  %1596 = vmatpush2.msra.mxu0 0.0
  %1597 = vmatprep.subr.mxu0 0.0
  %1598 = vmatpush2.msra.mxu0 0.0
  %1599 = vmatprep.subr.mxu0 0.0
  %1600 = vmatpush2.msra.mxu0 0.0
  %1601 = vmatprep.subr.mxu0 0.0
  %1602 = vmatpush2.msra.mxu0 0.0
  %1603 = vmatprep.subr.mxu0 0.0
  %1604 = vmatpush2.msra.mxu0 0.0
  %1605 = vmatprep.subr.mxu0 0.0
  %1606 = vmatpush2.msra.mxu0 0.0
  %1607 = vmatprep.subr.mxu0 0.0
  %1608 = vmatpush2.msra.mxu0 0.0
  %1609 = vmatprep.mubr.f32.mxu0 0.0
  %v1610 = vand.u32 %v43, 4294901760
  %1611 = vmatmul.mubr.f32.gmra.mxu0 %v1610
  %v1612 = vpop.f32.mrf.mxu0
  %v1613 = vadd.f32 %v1496, %v1612
  %v1614 = vpop.f32.mrf.mxu0
  %1615 = vmatprep.mubr.f32.mxu0 0.0
  %v1616 = vand.u32 %v46, 4294901760
  %1617 = vmatmul.mubr.f32.gmra.mxu0 %v1616
  %v1618 = vpop.f32.mrf.mxu0
  %v1619 = vadd.f32 %v1502, %v1618
  %v1620 = vpop.f32.mrf.mxu0
  %1621 = vmatprep.mubr.f32.mxu0 0.0
  %v1622 = vand.u32 %v49, 4294901760
  %1623 = vmatmul.mubr.f32.gmra.mxu0 %v1622
  %v1624 = vpop.f32.mrf.mxu0
  %v1625 = vadd.f32 %v1508, %v1624
  %v1626 = vpop.f32.mrf.mxu0
  %1627 = vmatprep.mubr.f32.mxu0 0.0
  %v1628 = vand.u32 %v52, 4294901760
  %1629 = vmatmul.mubr.f32.gmra.mxu0 %v1628
  %v1630 = vpop.f32.mrf.mxu0
  %v1631 = vadd.f32 %v1514, %v1630
  %v1632 = vpop.f32.mrf.mxu0
  %1633 = vmatprep.mubr.f32.mxu0 0.0
  %v1634 = vand.u32 %v55, 4294901760
  %1635 = vmatmul.mubr.f32.gmra.mxu0 %v1634
  %v1636 = vpop.f32.mrf.mxu0
  %v1637 = vadd.f32 %v1520, %v1636
  %v1638 = vpop.f32.mrf.mxu0
  %1639 = vmatprep.mubr.f32.mxu0 0.0
  %v1640 = vand.u32 %v58, 4294901760
  %1641 = vmatmul.mubr.f32.gmra.mxu0 %v1640
  %v1642 = vpop.f32.mrf.mxu0
  %v1643 = vadd.f32 %v1526, %v1642
  %v1644 = vpop.f32.mrf.mxu0
  %1645 = vmatprep.mubr.f32.mxu0 0.0
  %v1646 = vand.u32 %v61, 4294901760
  %1647 = vmatmul.mubr.f32.gmra.mxu0 %v1646
  %v1648 = vpop.f32.mrf.mxu0
  %v1649 = vadd.f32 %v1532, %v1648
  %v1650 = vpop.f32.mrf.mxu0
  %1651 = vmatprep.mubr.f32.mxu0 0.0
  %v1652 = vand.u32 %v64, 4294901760
  %1653 = vmatmul.mubr.f32.gmra.mxu0 %v1652
  %v1654 = vpop.f32.mrf.mxu0
  %v1655 = vadd.f32 %v1538, %v1654
  %v1656 = vpop.f32.mrf.mxu0
  %1657 = vdwg.mxu0
  %1658 = vst.msk [vmem:[%s6] sm:$0xff] %vm852, %v1613
  %1659 = vst.msk [vmem:[%s6 + $0x8] sm:$0xff] %vm852, %v1619
  %1660 = vst.msk [vmem:[%s6 + $0x10] sm:$0xff] %vm852, %v1625
  %1661 = vst.msk [vmem:[%s6 + $0x18] sm:$0xff] %vm852, %v1631
  %1662 = vst.msk [vmem:[%s6 + $0x20] sm:$0xff] %vm852, %v1637
  %1663 = vst.msk [vmem:[%s6 + $0x28] sm:$0xff] %vm852, %v1643
  %1664 = vst.msk [vmem:[%s6 + $0x30] sm:$0xff] %vm852, %v1649
  %1665 = vst.msk [vmem:[%s6 + $0x38] sm:$0xff] %vm852, %v1655
  // Predicated region
  $region22: #{forward.8} parent=0 // pred_check
    _
  $region23: #{forward.8} parent=0 // pred_check_branch
    %1667 = sbr.rel (0) target = $region25
  $region24: #{forward.8} parent=0 // pred_region
    _
  $region25: #{forward.8} parent=0 // pred_fallthru
    _
  // Predicated region
  $region26: #{forward.8} parent=0 // pred_check
    _
  $region27: #{forward.8} parent=0 // pred_check_branch
    %1669 = sbr.rel (0) target = $region29
  $region28: #{forward.8} parent=0 // pred_region
    _
  $region29: #{forward.8} parent=0 // pred_fallthru
    _
  // Predicated region
  $region30: #{forward.8} parent=0 // pred_check
    _
  $region31: #{forward.8} parent=0 // pred_check_branch
    %1671 = sbr.rel (0) target = $region33
  $region32: #{forward.8} parent=0 // pred_region
    _
  $region33: #{forward.8} parent=0 // pred_fallthru
    _
  // Predicated region
  $region34: #{forward.8} parent=0 // pred_check
    _
  $region35: #{forward.8} parent=0 // pred_check_branch
    %1673 = sbr.rel (0) target = $region37
  $region36: #{forward.8} parent=0 // pred_region
    _
  $region37: #{forward.8} parent=0 // pred_fallthru
    _

// kernel: forward.10
$region0: #{forward.10}
  #allocation0 [shape = 'u32[]', space=smem, size = 0x4, offset = 0x4, fixed_abs, tag = 'smem constant byte address 0x4 - core index']
  #allocation1 [shape = 'u32[144,128]{1,0:T(1,128)}', space=vmem, size = 0x12000, scoped, tag = 'internal scratch']
  #allocation2 [shape = 'f32[1,1]{1,0:T(1,128)S(6)}', space=smem, size = 0x200, scoped, tag = 'scoped memory for forward.10']
  %s0 = inlined_call_operand.vmem [shape: f32[64,32], index: 0, kind: input, shape index: {}]
  %s1 = inlined_call_operand.vmem [shape: f32[32,32], index: 1, kind: input, shape index: {}]
  %s2 = inlined_call_operand.vmem [shape: f32[1,32], index: 2, kind: input, shape index: {}]
  %s3 = inlined_call_operand.vmem [shape: f32[32,1], index: 3, kind: input, shape index: {}]
  %s4 = inlined_call_operand.<no memory space> [shape: f32[1,1], index: 4, kind: input, shape index: {}]
  %s5 = inlined_call_operand.vmem [shape: f32[64,1], index: 5, kind: output, shape index: {}]
  %s6 = sld [smem:[#allocation0]]
  $region30: #{forward.10} parent=0
    _
  %s8 = ssub.s32 1, %s6
  %s9 = scalar_select 0, %s8, %s6
  %10 = sst [smem:[#allocation2]] %s4
  // Predicated region
  $region2: #{forward.10} parent=0 // pred_check
    _
  $region3: #{forward.10} parent=0 // pred_check_branch
    %12 = sbr.rel (0) target = $region5
  $region4: #{forward.10} parent=0 // pred_region
    _
  $region5: #{forward.10} parent=0 // pred_fallthru
    _
  // Predicated region
  $region6: #{forward.10} parent=0 // pred_check
    _
  $region7: #{forward.10} parent=0 // pred_check_branch
    %14 = sbr.rel (0) target = $region9
  $region8: #{forward.10} parent=0 // pred_region
    _
  $region9: #{forward.10} parent=0 // pred_fallthru
    _
  // Predicated region
  $region10: #{forward.10} parent=0 // pred_check
    _
  $region11: #{forward.10} parent=0 // pred_check_branch
    %16 = sbr.rel (0) target = $region13
  $region12: #{forward.10} parent=0 // pred_region
    _
  $region13: #{forward.10} parent=0 // pred_fallthru
    _
  // Predicated region
  $region14: #{forward.10} parent=0 // pred_check
    _
  $region15: #{forward.10} parent=0 // pred_check_branch
    %18 = sbr.rel (0) target = $region17
  $region16: #{forward.10} parent=0 // pred_region
    _
  $region17: #{forward.10} parent=0 // pred_fallthru
    _
  // Predicated region
  $region18: #{forward.10} parent=0 // pred_check
    _
  $region19: #{forward.10} parent=0 // pred_check_branch
    %20 = sbr.rel (0) target = $region21
  $region20: #{forward.10} parent=0 // pred_region
    _
  $region21: #{forward.10} parent=0 // pred_fallthru
    _
  %v21 = vld [vmem:[%s0] sm:$0xff]
  %v22 = vld [vmem:[%s0 + $0x8] sm:$0xff]
  %v23 = vld [vmem:[%s0 + $0x10] sm:$0xff]
  %v24 = vld [vmem:[%s0 + $0x18] sm:$0xff]
  %v25 = vld [vmem:[%s0 + $0x20] sm:$0xff]
  %v26 = vld [vmem:[%s0 + $0x28] sm:$0xff]
  %v27 = vld [vmem:[%s0 + $0x30] sm:$0xff]
  %v28 = vld [vmem:[%s0 + $0x38] sm:$0xff]
  %v29 = vld [vmem:[%s1] sm:$0xff]
  %v30 = vld [vmem:[%s1 + $0x8] sm:$0xff]
  %v31 = vld [vmem:[%s1 + $0x10] sm:$0xff]
  %v32 = vld [vmem:[%s1 + $0x18] sm:$0xff]
  %v33 = vld [vmem:[%s2] sm:$0x1]
  %v35 = vlaneseq
  %v36 = vshrl.u32 %v35, 7
  %v37 = vsub.s32 0, %v36
  %v38 = vrot.slane %v33, %v37
  %vm40 = vcmask 261120
  %v42 = vsel %vm40, %v21, 0
  %v45 = vsel %vm40, %v22, 0
  %v48 = vsel %vm40, %v23, 0
  %v51 = vsel %vm40, %v24, 0
  %v54 = vsel %vm40, %v25, 0
  %v57 = vsel %vm40, %v26, 0
  %v60 = vsel %vm40, %v27, 0
  %v63 = vsel %vm40, %v28, 0
  %65 = vmatprep.subr.mxu0 0.0
  %66 = vmatpush1.msra.mxu0 0.0
  %67 = vmatprep.subr.mxu0 0.0
  %68 = vmatpush1.msra.mxu0 0.0
  %69 = vmatprep.subr.mxu0 0.0
  %70 = vmatpush1.msra.mxu0 0.0
  %71 = vmatprep.subr.mxu0 0.0
  %72 = vmatpush1.msra.mxu0 0.0
  %73 = vmatprep.subr.mxu0 0.0
  %74 = vmatpush1.msra.mxu0 0.0
  %75 = vmatprep.subr.mxu0 0.0
  %76 = vmatpush1.msra.mxu0 0.0
  %77 = vmatprep.subr.mxu0 0.0
  %78 = vmatpush1.msra.mxu0 0.0
  %79 = vmatprep.subr.mxu0 0.0
  %80 = vmatpush1.msra.mxu0 0.0
  %81 = vmatprep.subr.mxu0 0.0
  %82 = vmatpush1.msra.mxu0 0.0
  %83 = vmatprep.subr.mxu0 0.0
  %84 = vmatpush1.msra.mxu0 0.0
  %85 = vmatprep.subr.mxu0 0.0
  %86 = vmatpush1.msra.mxu0 0.0
  %87 = vmatprep.subr.mxu0 0.0
  %88 = vmatpush1.msra.mxu0 0.0
  %89 = vmatprep.subr.mxu0 0.0
  %v90 = vand.u32 %v32, 4294901760
  %91 = vmatpush1.msra.mxu0 %v90
  %92 = vmatprep.subr.mxu0 0.0
  %v93 = vand.u32 %v31, 4294901760
  %94 = vmatpush1.msra.mxu0 %v93
  %95 = vmatprep.subr.mxu0 0.0
  %v96 = vand.u32 %v30, 4294901760
  %97 = vmatpush1.msra.mxu0 %v96
  %98 = vmatprep.subr.mxu0 0.0
  %v99 = vand.u32 %v29, 4294901760
  %100 = vmatpush1.msra.mxu0 %v99
  %101 = vmatprep.subr.mxu0 0.0
  %102 = vmatpush2.msra.mxu0 0.0
  %103 = vmatprep.subr.mxu0 0.0
  %104 = vmatpush2.msra.mxu0 0.0
  %105 = vmatprep.subr.mxu0 0.0
  %106 = vmatpush2.msra.mxu0 0.0
  %107 = vmatprep.subr.mxu0 0.0
  %108 = vmatpush2.msra.mxu0 0.0
  %109 = vmatprep.subr.mxu0 0.0
  %110 = vmatpush2.msra.mxu0 0.0
  %111 = vmatprep.subr.mxu0 0.0
  %112 = vmatpush2.msra.mxu0 0.0
  %113 = vmatprep.subr.mxu0 0.0
  %114 = vmatpush2.msra.mxu0 0.0
  %115 = vmatprep.subr.mxu0 0.0
  %116 = vmatpush2.msra.mxu0 0.0
  %117 = vmatprep.subr.mxu0 0.0
  %118 = vmatpush2.msra.mxu0 0.0
  %119 = vmatprep.subr.mxu0 0.0
  %120 = vmatpush2.msra.mxu0 0.0
  %121 = vmatprep.subr.mxu0 0.0
  %122 = vmatpush2.msra.mxu0 0.0
  %123 = vmatprep.subr.mxu0 0.0
  %124 = vmatpush2.msra.mxu0 0.0
  %125 = vmatprep.subr.mxu0 0.0
  %126 = vmatpush2.msra.mxu0 0.0
  %127 = vmatprep.subr.mxu0 0.0
  %128 = vmatpush2.msra.mxu0 0.0
  %129 = vmatprep.subr.mxu0 0.0
  %130 = vmatpush2.msra.mxu0 0.0
  %131 = vmatprep.subr.mxu0 0.0
  %132 = vmatpush2.msra.mxu0 0.0
  %133 = vmatprep.mubr.f32.mxu0 0.0
  %v134 = vand.u32 %v42, 4294901760
  %v135 = vsub.f32 %v42, %v134
  %v136 = vand.u32 %v135, 4294901760
  %v137 = vsub.f32 %v135, %v136
  %v138 = vand.u32 %v137, 4294901760
  %139 = vmatmul.mubr.f32.gmra.mxu0 %v138
  %v140 = vpop.f32.mrf.mxu0
  %v141 = vadd.f32 %v38, %v140
  %v142 = vpop.f32.mrf.mxu0
  %143 = vmatprep.mubr.f32.mxu0 0.0
  %v144 = vand.u32 %v45, 4294901760
  %v145 = vsub.f32 %v45, %v144
  %v146 = vand.u32 %v145, 4294901760
  %v147 = vsub.f32 %v145, %v146
  %v148 = vand.u32 %v147, 4294901760
  %149 = vmatmul.mubr.f32.gmra.mxu0 %v148
  %v150 = vpop.f32.mrf.mxu0
  %v151 = vadd.f32 %v38, %v150
  %v152 = vpop.f32.mrf.mxu0
  %153 = vmatprep.mubr.f32.mxu0 0.0
  %v154 = vand.u32 %v48, 4294901760
  %v155 = vsub.f32 %v48, %v154
  %v156 = vand.u32 %v155, 4294901760
  %v157 = vsub.f32 %v155, %v156
  %v158 = vand.u32 %v157, 4294901760
  %159 = vmatmul.mubr.f32.gmra.mxu0 %v158
  %v160 = vpop.f32.mrf.mxu0
  %v161 = vadd.f32 %v38, %v160
  %v162 = vpop.f32.mrf.mxu0
  %163 = vmatprep.mubr.f32.mxu0 0.0
  %v164 = vand.u32 %v51, 4294901760
  %v165 = vsub.f32 %v51, %v164
  %v166 = vand.u32 %v165, 4294901760
  %v167 = vsub.f32 %v165, %v166
  %v168 = vand.u32 %v167, 4294901760
  %169 = vmatmul.mubr.f32.gmra.mxu0 %v168
  %v170 = vpop.f32.mrf.mxu0
  %v171 = vadd.f32 %v38, %v170
  %v172 = vpop.f32.mrf.mxu0
  %173 = vmatprep.mubr.f32.mxu0 0.0
  %v174 = vand.u32 %v54, 4294901760
  %v175 = vsub.f32 %v54, %v174
  %v176 = vand.u32 %v175, 4294901760
  %v177 = vsub.f32 %v175, %v176
  %v178 = vand.u32 %v177, 4294901760
  %179 = vmatmul.mubr.f32.gmra.mxu0 %v178
  %v180 = vpop.f32.mrf.mxu0
  %v181 = vadd.f32 %v38, %v180
  %v182 = vpop.f32.mrf.mxu0
  %183 = vmatprep.mubr.f32.mxu0 0.0
  %v184 = vand.u32 %v57, 4294901760
  %v185 = vsub.f32 %v57, %v184
  %v186 = vand.u32 %v185, 4294901760
  %v187 = vsub.f32 %v185, %v186
  %v188 = vand.u32 %v187, 4294901760
  %189 = vmatmul.mubr.f32.gmra.mxu0 %v188
  %v190 = vpop.f32.mrf.mxu0
  %v191 = vadd.f32 %v38, %v190
  %v192 = vpop.f32.mrf.mxu0
  %193 = vmatprep.mubr.f32.mxu0 0.0
  %v194 = vand.u32 %v60, 4294901760
  %v195 = vsub.f32 %v60, %v194
  %v196 = vand.u32 %v195, 4294901760
  %v197 = vsub.f32 %v195, %v196
  %v198 = vand.u32 %v197, 4294901760
  %199 = vmatmul.mubr.f32.gmra.mxu0 %v198
  %v200 = vpop.f32.mrf.mxu0
  %v201 = vadd.f32 %v38, %v200
  %v202 = vpop.f32.mrf.mxu0
  %203 = vmatprep.mubr.f32.mxu0 0.0
  %v204 = vand.u32 %v63, 4294901760
  %v205 = vsub.f32 %v63, %v204
  %v206 = vand.u32 %v205, 4294901760
  %v207 = vsub.f32 %v205, %v206
  %v208 = vand.u32 %v207, 4294901760
  %209 = vmatmul.mubr.f32.gmra.mxu0 %v208
  %v210 = vpop.f32.mrf.mxu0
  %v211 = vadd.f32 %v38, %v210
  %v212 = vpop.f32.mrf.mxu0
  %213 = vdwg.mxu0
  %214 = vmatprep.subr.mxu0 0.0
  %215 = vmatpush1.msra.mxu0 0.0
  %216 = vmatprep.subr.mxu0 0.0
  %217 = vmatpush1.msra.mxu0 0.0
  %218 = vmatprep.subr.mxu0 0.0
  %219 = vmatpush1.msra.mxu0 0.0
  %220 = vmatprep.subr.mxu0 0.0
  %221 = vmatpush1.msra.mxu0 0.0
  %222 = vmatprep.subr.mxu0 0.0
  %223 = vmatpush1.msra.mxu0 0.0
  %224 = vmatprep.subr.mxu0 0.0
  %225 = vmatpush1.msra.mxu0 0.0
  %226 = vmatprep.subr.mxu0 0.0
  %227 = vmatpush1.msra.mxu0 0.0
  %228 = vmatprep.subr.mxu0 0.0
  %229 = vmatpush1.msra.mxu0 0.0
  %230 = vmatprep.subr.mxu0 0.0
  %231 = vmatpush1.msra.mxu0 0.0
  %232 = vmatprep.subr.mxu0 0.0
  %233 = vmatpush1.msra.mxu0 0.0
  %234 = vmatprep.subr.mxu0 0.0
  %235 = vmatpush1.msra.mxu0 0.0
  %236 = vmatprep.subr.mxu0 0.0
  %237 = vmatpush1.msra.mxu0 0.0
  %238 = vmatprep.subr.mxu0 0.0
  %v239 = vand.u32 %v32, 4294901760
  %v240 = vsub.f32 %v32, %v239
  %v241 = vand.u32 %v240, 4294901760
  %v242 = vsub.f32 %v240, %v241
  %v243 = vand.u32 %v242, 4294901760
  %244 = vmatpush1.msra.mxu0 %v243
  %245 = vmatprep.subr.mxu0 0.0
  %v246 = vand.u32 %v31, 4294901760
  %v247 = vsub.f32 %v31, %v246
  %v248 = vand.u32 %v247, 4294901760
  %v249 = vsub.f32 %v247, %v248
  %v250 = vand.u32 %v249, 4294901760
  %251 = vmatpush1.msra.mxu0 %v250
  %252 = vmatprep.subr.mxu0 0.0
  %v253 = vand.u32 %v30, 4294901760
  %v254 = vsub.f32 %v30, %v253
  %v255 = vand.u32 %v254, 4294901760
  %v256 = vsub.f32 %v254, %v255
  %v257 = vand.u32 %v256, 4294901760
  %258 = vmatpush1.msra.mxu0 %v257
  %259 = vmatprep.subr.mxu0 0.0
  %v260 = vand.u32 %v29, 4294901760
  %v261 = vsub.f32 %v29, %v260
  %v262 = vand.u32 %v261, 4294901760
  %v263 = vsub.f32 %v261, %v262
  %v264 = vand.u32 %v263, 4294901760
  %265 = vmatpush1.msra.mxu0 %v264
  %266 = vmatprep.subr.mxu0 0.0
  %267 = vmatpush2.msra.mxu0 0.0
  %268 = vmatprep.subr.mxu0 0.0
  %269 = vmatpush2.msra.mxu0 0.0
  %270 = vmatprep.subr.mxu0 0.0
  %271 = vmatpush2.msra.mxu0 0.0
  %272 = vmatprep.subr.mxu0 0.0
  %273 = vmatpush2.msra.mxu0 0.0
  %274 = vmatprep.subr.mxu0 0.0
  %275 = vmatpush2.msra.mxu0 0.0
  %276 = vmatprep.subr.mxu0 0.0
  %277 = vmatpush2.msra.mxu0 0.0
  %278 = vmatprep.subr.mxu0 0.0
  %279 = vmatpush2.msra.mxu0 0.0
  %280 = vmatprep.subr.mxu0 0.0
  %281 = vmatpush2.msra.mxu0 0.0
  %282 = vmatprep.subr.mxu0 0.0
  %283 = vmatpush2.msra.mxu0 0.0
  %284 = vmatprep.subr.mxu0 0.0
  %285 = vmatpush2.msra.mxu0 0.0
  %286 = vmatprep.subr.mxu0 0.0
  %287 = vmatpush2.msra.mxu0 0.0
  %288 = vmatprep.subr.mxu0 0.0
  %289 = vmatpush2.msra.mxu0 0.0
  %290 = vmatprep.subr.mxu0 0.0
  %291 = vmatpush2.msra.mxu0 0.0
  %292 = vmatprep.subr.mxu0 0.0
  %293 = vmatpush2.msra.mxu0 0.0
  %294 = vmatprep.subr.mxu0 0.0
  %295 = vmatpush2.msra.mxu0 0.0
  %296 = vmatprep.subr.mxu0 0.0
  %297 = vmatpush2.msra.mxu0 0.0
  %298 = vmatprep.mubr.f32.mxu0 0.0
  %v299 = vand.u32 %v42, 4294901760
  %300 = vmatmul.mubr.f32.gmra.mxu0 %v299
  %v301 = vpop.f32.mrf.mxu0
  %v302 = vadd.f32 %v141, %v301
  %v303 = vpop.f32.mrf.mxu0
  %304 = vmatprep.mubr.f32.mxu0 0.0
  %v305 = vand.u32 %v45, 4294901760
  %306 = vmatmul.mubr.f32.gmra.mxu0 %v305
  %v307 = vpop.f32.mrf.mxu0
  %v308 = vadd.f32 %v151, %v307
  %v309 = vpop.f32.mrf.mxu0
  %310 = vmatprep.mubr.f32.mxu0 0.0
  %v311 = vand.u32 %v48, 4294901760
  %312 = vmatmul.mubr.f32.gmra.mxu0 %v311
  %v313 = vpop.f32.mrf.mxu0
  %v314 = vadd.f32 %v161, %v313
  %v315 = vpop.f32.mrf.mxu0
  %316 = vmatprep.mubr.f32.mxu0 0.0
  %v317 = vand.u32 %v51, 4294901760
  %318 = vmatmul.mubr.f32.gmra.mxu0 %v317
  %v319 = vpop.f32.mrf.mxu0
  %v320 = vadd.f32 %v171, %v319
  %v321 = vpop.f32.mrf.mxu0
  %322 = vmatprep.mubr.f32.mxu0 0.0
  %v323 = vand.u32 %v54, 4294901760
  %324 = vmatmul.mubr.f32.gmra.mxu0 %v323
  %v325 = vpop.f32.mrf.mxu0
  %v326 = vadd.f32 %v181, %v325
  %v327 = vpop.f32.mrf.mxu0
  %328 = vmatprep.mubr.f32.mxu0 0.0
  %v329 = vand.u32 %v57, 4294901760
  %330 = vmatmul.mubr.f32.gmra.mxu0 %v329
  %v331 = vpop.f32.mrf.mxu0
  %v332 = vadd.f32 %v191, %v331
  %v333 = vpop.f32.mrf.mxu0
  %334 = vmatprep.mubr.f32.mxu0 0.0
  %v335 = vand.u32 %v60, 4294901760
  %336 = vmatmul.mubr.f32.gmra.mxu0 %v335
  %v337 = vpop.f32.mrf.mxu0
  %v338 = vadd.f32 %v201, %v337
  %v339 = vpop.f32.mrf.mxu0
  %340 = vmatprep.mubr.f32.mxu0 0.0
  %v341 = vand.u32 %v63, 4294901760
  %342 = vmatmul.mubr.f32.gmra.mxu0 %v341
  %v343 = vpop.f32.mrf.mxu0
  %v344 = vadd.f32 %v211, %v343
  %v345 = vpop.f32.mrf.mxu0
  %346 = vdwg.mxu0
  %347 = vmatprep.subr.mxu0 0.0
  %348 = vmatpush1.msra.mxu0 0.0
  %349 = vmatprep.subr.mxu0 0.0
  %350 = vmatpush1.msra.mxu0 0.0
  %351 = vmatprep.subr.mxu0 0.0
  %352 = vmatpush1.msra.mxu0 0.0
  %353 = vmatprep.subr.mxu0 0.0
  %354 = vmatpush1.msra.mxu0 0.0
  %355 = vmatprep.subr.mxu0 0.0
  %356 = vmatpush1.msra.mxu0 0.0
  %357 = vmatprep.subr.mxu0 0.0
  %358 = vmatpush1.msra.mxu0 0.0
  %359 = vmatprep.subr.mxu0 0.0
  %360 = vmatpush1.msra.mxu0 0.0
  %361 = vmatprep.subr.mxu0 0.0
  %362 = vmatpush1.msra.mxu0 0.0
  %363 = vmatprep.subr.mxu0 0.0
  %364 = vmatpush1.msra.mxu0 0.0
  %365 = vmatprep.subr.mxu0 0.0
  %366 = vmatpush1.msra.mxu0 0.0
  %367 = vmatprep.subr.mxu0 0.0
  %368 = vmatpush1.msra.mxu0 0.0
  %369 = vmatprep.subr.mxu0 0.0
  %370 = vmatpush1.msra.mxu0 0.0
  %371 = vmatprep.subr.mxu0 0.0
  %v372 = vand.u32 %v32, 4294901760
  %v373 = vsub.f32 %v32, %v372
  %374 = vmatpush1.msra.mxu0 %v373
  %375 = vmatprep.subr.mxu0 0.0
  %v376 = vand.u32 %v31, 4294901760
  %v377 = vsub.f32 %v31, %v376
  %378 = vmatpush1.msra.mxu0 %v377
  %379 = vmatprep.subr.mxu0 0.0
  %v380 = vand.u32 %v30, 4294901760
  %v381 = vsub.f32 %v30, %v380
  %382 = vmatpush1.msra.mxu0 %v381
  %383 = vmatprep.subr.mxu0 0.0
  %v384 = vand.u32 %v29, 4294901760
  %v385 = vsub.f32 %v29, %v384
  %386 = vmatpush1.msra.mxu0 %v385
  %387 = vmatprep.subr.mxu0 0.0
  %388 = vmatpush2.msra.mxu0 0.0
  %389 = vmatprep.subr.mxu0 0.0
  %390 = vmatpush2.msra.mxu0 0.0
  %391 = vmatprep.subr.mxu0 0.0
  %392 = vmatpush2.msra.mxu0 0.0
  %393 = vmatprep.subr.mxu0 0.0
  %394 = vmatpush2.msra.mxu0 0.0
  %395 = vmatprep.subr.mxu0 0.0
  %396 = vmatpush2.msra.mxu0 0.0
  %397 = vmatprep.subr.mxu0 0.0
  %398 = vmatpush2.msra.mxu0 0.0
  %399 = vmatprep.subr.mxu0 0.0
  %400 = vmatpush2.msra.mxu0 0.0
  %401 = vmatprep.subr.mxu0 0.0
  %402 = vmatpush2.msra.mxu0 0.0
  %403 = vmatprep.subr.mxu0 0.0
  %404 = vmatpush2.msra.mxu0 0.0
  %405 = vmatprep.subr.mxu0 0.0
  %406 = vmatpush2.msra.mxu0 0.0
  %407 = vmatprep.subr.mxu0 0.0
  %408 = vmatpush2.msra.mxu0 0.0
  %409 = vmatprep.subr.mxu0 0.0
  %410 = vmatpush2.msra.mxu0 0.0
  %411 = vmatprep.subr.mxu0 0.0
  %412 = vmatpush2.msra.mxu0 0.0
  %413 = vmatprep.subr.mxu0 0.0
  %414 = vmatpush2.msra.mxu0 0.0
  %415 = vmatprep.subr.mxu0 0.0
  %416 = vmatpush2.msra.mxu0 0.0
  %417 = vmatprep.subr.mxu0 0.0
  %418 = vmatpush2.msra.mxu0 0.0
  %419 = vmatprep.mubr.f32.mxu0 0.0
  %v420 = vand.u32 %v42, 4294901760
  %v421 = vsub.f32 %v42, %v420
  %422 = vmatmul.mubr.f32.gmra.mxu0 %v421
  %v423 = vpop.f32.mrf.mxu0
  %v424 = vadd.f32 %v302, %v423
  %v425 = vpop.f32.mrf.mxu0
  %426 = vmatprep.mubr.f32.mxu0 0.0
  %v427 = vand.u32 %v45, 4294901760
  %v428 = vsub.f32 %v45, %v427
  %429 = vmatmul.mubr.f32.gmra.mxu0 %v428
  %v430 = vpop.f32.mrf.mxu0
  %v431 = vadd.f32 %v308, %v430
  %v432 = vpop.f32.mrf.mxu0
  %433 = vmatprep.mubr.f32.mxu0 0.0
  %v434 = vand.u32 %v48, 4294901760
  %v435 = vsub.f32 %v48, %v434
  %436 = vmatmul.mubr.f32.gmra.mxu0 %v435
  %v437 = vpop.f32.mrf.mxu0
  %v438 = vadd.f32 %v314, %v437
  %v439 = vpop.f32.mrf.mxu0
  %440 = vmatprep.mubr.f32.mxu0 0.0
  %v441 = vand.u32 %v51, 4294901760
  %v442 = vsub.f32 %v51, %v441
  %443 = vmatmul.mubr.f32.gmra.mxu0 %v442
  %v444 = vpop.f32.mrf.mxu0
  %v445 = vadd.f32 %v320, %v444
  %v446 = vpop.f32.mrf.mxu0
  %447 = vmatprep.mubr.f32.mxu0 0.0
  %v448 = vand.u32 %v54, 4294901760
  %v449 = vsub.f32 %v54, %v448
  %450 = vmatmul.mubr.f32.gmra.mxu0 %v449
  %v451 = vpop.f32.mrf.mxu0
  %v452 = vadd.f32 %v326, %v451
  %v453 = vpop.f32.mrf.mxu0
  %454 = vmatprep.mubr.f32.mxu0 0.0
  %v455 = vand.u32 %v57, 4294901760
  %v456 = vsub.f32 %v57, %v455
  %457 = vmatmul.mubr.f32.gmra.mxu0 %v456
  %v458 = vpop.f32.mrf.mxu0
  %v459 = vadd.f32 %v332, %v458
  %v460 = vpop.f32.mrf.mxu0
  %461 = vmatprep.mubr.f32.mxu0 0.0
  %v462 = vand.u32 %v60, 4294901760
  %v463 = vsub.f32 %v60, %v462
  %464 = vmatmul.mubr.f32.gmra.mxu0 %v463
  %v465 = vpop.f32.mrf.mxu0
  %v466 = vadd.f32 %v338, %v465
  %v467 = vpop.f32.mrf.mxu0
  %468 = vmatprep.mubr.f32.mxu0 0.0
  %v469 = vand.u32 %v63, 4294901760
  %v470 = vsub.f32 %v63, %v469
  %471 = vmatmul.mubr.f32.gmra.mxu0 %v470
  %v472 = vpop.f32.mrf.mxu0
  %v473 = vadd.f32 %v344, %v472
  %v474 = vpop.f32.mrf.mxu0
  %475 = vdwg.mxu0
  %476 = vmatprep.subr.mxu0 0.0
  %477 = vmatpush1.msra.mxu0 0.0
  %478 = vmatprep.subr.mxu0 0.0
  %479 = vmatpush1.msra.mxu0 0.0
  %480 = vmatprep.subr.mxu0 0.0
  %481 = vmatpush1.msra.mxu0 0.0
  %482 = vmatprep.subr.mxu0 0.0
  %483 = vmatpush1.msra.mxu0 0.0
  %484 = vmatprep.subr.mxu0 0.0
  %485 = vmatpush1.msra.mxu0 0.0
  %486 = vmatprep.subr.mxu0 0.0
  %487 = vmatpush1.msra.mxu0 0.0
  %488 = vmatprep.subr.mxu0 0.0
  %489 = vmatpush1.msra.mxu0 0.0
  %490 = vmatprep.subr.mxu0 0.0
  %491 = vmatpush1.msra.mxu0 0.0
  %492 = vmatprep.subr.mxu0 0.0
  %493 = vmatpush1.msra.mxu0 0.0
  %494 = vmatprep.subr.mxu0 0.0
  %495 = vmatpush1.msra.mxu0 0.0
  %496 = vmatprep.subr.mxu0 0.0
  %497 = vmatpush1.msra.mxu0 0.0
  %498 = vmatprep.subr.mxu0 0.0
  %499 = vmatpush1.msra.mxu0 0.0
  %500 = vmatprep.subr.mxu0 0.0
  %v501 = vand.u32 %v32, 4294901760
  %502 = vmatpush1.msra.mxu0 %v501
  %503 = vmatprep.subr.mxu0 0.0
  %v504 = vand.u32 %v31, 4294901760
  %505 = vmatpush1.msra.mxu0 %v504
  %506 = vmatprep.subr.mxu0 0.0
  %v507 = vand.u32 %v30, 4294901760
  %508 = vmatpush1.msra.mxu0 %v507
  %509 = vmatprep.subr.mxu0 0.0
  %v510 = vand.u32 %v29, 4294901760
  %511 = vmatpush1.msra.mxu0 %v510
  %512 = vmatprep.subr.mxu0 0.0
  %513 = vmatpush2.msra.mxu0 0.0
  %514 = vmatprep.subr.mxu0 0.0
  %515 = vmatpush2.msra.mxu0 0.0
  %516 = vmatprep.subr.mxu0 0.0
  %517 = vmatpush2.msra.mxu0 0.0
  %518 = vmatprep.subr.mxu0 0.0
  %519 = vmatpush2.msra.mxu0 0.0
  %520 = vmatprep.subr.mxu0 0.0
  %521 = vmatpush2.msra.mxu0 0.0
  %522 = vmatprep.subr.mxu0 0.0
  %523 = vmatpush2.msra.mxu0 0.0
  %524 = vmatprep.subr.mxu0 0.0
  %525 = vmatpush2.msra.mxu0 0.0
  %526 = vmatprep.subr.mxu0 0.0
  %527 = vmatpush2.msra.mxu0 0.0
  %528 = vmatprep.subr.mxu0 0.0
  %529 = vmatpush2.msra.mxu0 0.0
  %530 = vmatprep.subr.mxu0 0.0
  %531 = vmatpush2.msra.mxu0 0.0
  %532 = vmatprep.subr.mxu0 0.0
  %533 = vmatpush2.msra.mxu0 0.0
  %534 = vmatprep.subr.mxu0 0.0
  %535 = vmatpush2.msra.mxu0 0.0
  %536 = vmatprep.subr.mxu0 0.0
  %537 = vmatpush2.msra.mxu0 0.0
  %538 = vmatprep.subr.mxu0 0.0
  %539 = vmatpush2.msra.mxu0 0.0
  %540 = vmatprep.subr.mxu0 0.0
  %541 = vmatpush2.msra.mxu0 0.0
  %542 = vmatprep.subr.mxu0 0.0
  %543 = vmatpush2.msra.mxu0 0.0
  %544 = vmatprep.mubr.f32.mxu0 0.0
  %v545 = vand.u32 %v42, 4294901760
  %v546 = vsub.f32 %v42, %v545
  %v547 = vand.u32 %v546, 4294901760
  %548 = vmatmul.mubr.f32.gmra.mxu0 %v547
  %v549 = vpop.f32.mrf.mxu0
  %v550 = vadd.f32 %v424, %v549
  %v551 = vpop.f32.mrf.mxu0
  %552 = vmatprep.mubr.f32.mxu0 0.0
  %v553 = vand.u32 %v45, 4294901760
  %v554 = vsub.f32 %v45, %v553
  %v555 = vand.u32 %v554, 4294901760
  %556 = vmatmul.mubr.f32.gmra.mxu0 %v555
  %v557 = vpop.f32.mrf.mxu0
  %v558 = vadd.f32 %v431, %v557
  %v559 = vpop.f32.mrf.mxu0
  %560 = vmatprep.mubr.f32.mxu0 0.0
  %v561 = vand.u32 %v48, 4294901760
  %v562 = vsub.f32 %v48, %v561
  %v563 = vand.u32 %v562, 4294901760
  %564 = vmatmul.mubr.f32.gmra.mxu0 %v563
  %v565 = vpop.f32.mrf.mxu0
  %v566 = vadd.f32 %v438, %v565
  %v567 = vpop.f32.mrf.mxu0
  %568 = vmatprep.mubr.f32.mxu0 0.0
  %v569 = vand.u32 %v51, 4294901760
  %v570 = vsub.f32 %v51, %v569
  %v571 = vand.u32 %v570, 4294901760
  %572 = vmatmul.mubr.f32.gmra.mxu0 %v571
  %v573 = vpop.f32.mrf.mxu0
  %v574 = vadd.f32 %v445, %v573
  %v575 = vpop.f32.mrf.mxu0
  %576 = vmatprep.mubr.f32.mxu0 0.0
  %v577 = vand.u32 %v54, 4294901760
  %v578 = vsub.f32 %v54, %v577
  %v579 = vand.u32 %v578, 4294901760
  %580 = vmatmul.mubr.f32.gmra.mxu0 %v579
  %v581 = vpop.f32.mrf.mxu0
  %v582 = vadd.f32 %v452, %v581
  %v583 = vpop.f32.mrf.mxu0
  %584 = vmatprep.mubr.f32.mxu0 0.0
  %v585 = vand.u32 %v57, 4294901760
  %v586 = vsub.f32 %v57, %v585
  %v587 = vand.u32 %v586, 4294901760
  %588 = vmatmul.mubr.f32.gmra.mxu0 %v587
  %v589 = vpop.f32.mrf.mxu0
  %v590 = vadd.f32 %v459, %v589
  %v591 = vpop.f32.mrf.mxu0
  %592 = vmatprep.mubr.f32.mxu0 0.0
  %v593 = vand.u32 %v60, 4294901760
  %v594 = vsub.f32 %v60, %v593
  %v595 = vand.u32 %v594, 4294901760
  %596 = vmatmul.mubr.f32.gmra.mxu0 %v595
  %v597 = vpop.f32.mrf.mxu0
  %v598 = vadd.f32 %v466, %v597
  %v599 = vpop.f32.mrf.mxu0
  %600 = vmatprep.mubr.f32.mxu0 0.0
  %v601 = vand.u32 %v63, 4294901760
  %v602 = vsub.f32 %v63, %v601
  %v603 = vand.u32 %v602, 4294901760
  %604 = vmatmul.mubr.f32.gmra.mxu0 %v603
  %v605 = vpop.f32.mrf.mxu0
  %v606 = vadd.f32 %v473, %v605
  %v607 = vpop.f32.mrf.mxu0
  %608 = vdwg.mxu0
  %609 = vmatprep.subr.mxu0 0.0
  %610 = vmatpush1.msra.mxu0 0.0
  %611 = vmatprep.subr.mxu0 0.0
  %612 = vmatpush1.msra.mxu0 0.0
  %613 = vmatprep.subr.mxu0 0.0
  %614 = vmatpush1.msra.mxu0 0.0
  %615 = vmatprep.subr.mxu0 0.0
  %616 = vmatpush1.msra.mxu0 0.0
  %617 = vmatprep.subr.mxu0 0.0
  %618 = vmatpush1.msra.mxu0 0.0
  %619 = vmatprep.subr.mxu0 0.0
  %620 = vmatpush1.msra.mxu0 0.0
  %621 = vmatprep.subr.mxu0 0.0
  %622 = vmatpush1.msra.mxu0 0.0
  %623 = vmatprep.subr.mxu0 0.0
  %624 = vmatpush1.msra.mxu0 0.0
  %625 = vmatprep.subr.mxu0 0.0
  %626 = vmatpush1.msra.mxu0 0.0
  %627 = vmatprep.subr.mxu0 0.0
  %628 = vmatpush1.msra.mxu0 0.0
  %629 = vmatprep.subr.mxu0 0.0
  %630 = vmatpush1.msra.mxu0 0.0
  %631 = vmatprep.subr.mxu0 0.0
  %632 = vmatpush1.msra.mxu0 0.0
  %633 = vmatprep.subr.mxu0 0.0
  %v634 = vand.u32 %v32, 4294901760
  %v635 = vsub.f32 %v32, %v634
  %v636 = vand.u32 %v635, 4294901760
  %637 = vmatpush1.msra.mxu0 %v636
  %638 = vmatprep.subr.mxu0 0.0
  %v639 = vand.u32 %v31, 4294901760
  %v640 = vsub.f32 %v31, %v639
  %v641 = vand.u32 %v640, 4294901760
  %642 = vmatpush1.msra.mxu0 %v641
  %643 = vmatprep.subr.mxu0 0.0
  %v644 = vand.u32 %v30, 4294901760
  %v645 = vsub.f32 %v30, %v644
  %v646 = vand.u32 %v645, 4294901760
  %647 = vmatpush1.msra.mxu0 %v646
  %648 = vmatprep.subr.mxu0 0.0
  %v649 = vand.u32 %v29, 4294901760
  %v650 = vsub.f32 %v29, %v649
  %v651 = vand.u32 %v650, 4294901760
  %652 = vmatpush1.msra.mxu0 %v651
  %653 = vmatprep.subr.mxu0 0.0
  %654 = vmatpush2.msra.mxu0 0.0
  %655 = vmatprep.subr.mxu0 0.0
  %656 = vmatpush2.msra.mxu0 0.0
  %657 = vmatprep.subr.mxu0 0.0
  %658 = vmatpush2.msra.mxu0 0.0
  %659 = vmatprep.subr.mxu0 0.0
  %660 = vmatpush2.msra.mxu0 0.0
  %661 = vmatprep.subr.mxu0 0.0
  %662 = vmatpush2.msra.mxu0 0.0
  %663 = vmatprep.subr.mxu0 0.0
  %664 = vmatpush2.msra.mxu0 0.0
  %665 = vmatprep.subr.mxu0 0.0
  %666 = vmatpush2.msra.mxu0 0.0
  %667 = vmatprep.subr.mxu0 0.0
  %668 = vmatpush2.msra.mxu0 0.0
  %669 = vmatprep.subr.mxu0 0.0
  %670 = vmatpush2.msra.mxu0 0.0
  %671 = vmatprep.subr.mxu0 0.0
  %672 = vmatpush2.msra.mxu0 0.0
  %673 = vmatprep.subr.mxu0 0.0
  %674 = vmatpush2.msra.mxu0 0.0
  %675 = vmatprep.subr.mxu0 0.0
  %676 = vmatpush2.msra.mxu0 0.0
  %677 = vmatprep.subr.mxu0 0.0
  %678 = vmatpush2.msra.mxu0 0.0
  %679 = vmatprep.subr.mxu0 0.0
  %680 = vmatpush2.msra.mxu0 0.0
  %681 = vmatprep.subr.mxu0 0.0
  %682 = vmatpush2.msra.mxu0 0.0
  %683 = vmatprep.subr.mxu0 0.0
  %684 = vmatpush2.msra.mxu0 0.0
  %685 = vmatprep.mubr.f32.mxu0 0.0
  %v686 = vand.u32 %v42, 4294901760
  %687 = vmatmul.mubr.f32.gmra.mxu0 %v686
  %v688 = vpop.f32.mrf.mxu0
  %v689 = vadd.f32 %v550, %v688
  %v690 = vpop.f32.mrf.mxu0
  %691 = vmatprep.mubr.f32.mxu0 0.0
  %v692 = vand.u32 %v45, 4294901760
  %693 = vmatmul.mubr.f32.gmra.mxu0 %v692
  %v694 = vpop.f32.mrf.mxu0
  %v695 = vadd.f32 %v558, %v694
  %v696 = vpop.f32.mrf.mxu0
  %697 = vmatprep.mubr.f32.mxu0 0.0
  %v698 = vand.u32 %v48, 4294901760
  %699 = vmatmul.mubr.f32.gmra.mxu0 %v698
  %v700 = vpop.f32.mrf.mxu0
  %v701 = vadd.f32 %v566, %v700
  %v702 = vpop.f32.mrf.mxu0
  %703 = vmatprep.mubr.f32.mxu0 0.0
  %v704 = vand.u32 %v51, 4294901760
  %705 = vmatmul.mubr.f32.gmra.mxu0 %v704
  %v706 = vpop.f32.mrf.mxu0
  %v707 = vadd.f32 %v574, %v706
  %v708 = vpop.f32.mrf.mxu0
  %709 = vmatprep.mubr.f32.mxu0 0.0
  %v710 = vand.u32 %v54, 4294901760
  %711 = vmatmul.mubr.f32.gmra.mxu0 %v710
  %v712 = vpop.f32.mrf.mxu0
  %v713 = vadd.f32 %v582, %v712
  %v714 = vpop.f32.mrf.mxu0
  %715 = vmatprep.mubr.f32.mxu0 0.0
  %v716 = vand.u32 %v57, 4294901760
  %717 = vmatmul.mubr.f32.gmra.mxu0 %v716
  %v718 = vpop.f32.mrf.mxu0
  %v719 = vadd.f32 %v590, %v718
  %v720 = vpop.f32.mrf.mxu0
  %721 = vmatprep.mubr.f32.mxu0 0.0
  %v722 = vand.u32 %v60, 4294901760
  %723 = vmatmul.mubr.f32.gmra.mxu0 %v722
  %v724 = vpop.f32.mrf.mxu0
  %v725 = vadd.f32 %v598, %v724
  %v726 = vpop.f32.mrf.mxu0
  %727 = vmatprep.mubr.f32.mxu0 0.0
  %v728 = vand.u32 %v63, 4294901760
  %729 = vmatmul.mubr.f32.gmra.mxu0 %v728
  %v730 = vpop.f32.mrf.mxu0
  %v731 = vadd.f32 %v606, %v730
  %v732 = vpop.f32.mrf.mxu0
  %733 = vdwg.mxu0
  %734 = vmatprep.subr.mxu0 0.0
  %735 = vmatpush1.msra.mxu0 0.0
  %736 = vmatprep.subr.mxu0 0.0
  %737 = vmatpush1.msra.mxu0 0.0
  %738 = vmatprep.subr.mxu0 0.0
  %739 = vmatpush1.msra.mxu0 0.0
  %740 = vmatprep.subr.mxu0 0.0
  %741 = vmatpush1.msra.mxu0 0.0
  %742 = vmatprep.subr.mxu0 0.0
  %743 = vmatpush1.msra.mxu0 0.0
  %744 = vmatprep.subr.mxu0 0.0
  %745 = vmatpush1.msra.mxu0 0.0
  %746 = vmatprep.subr.mxu0 0.0
  %747 = vmatpush1.msra.mxu0 0.0
  %748 = vmatprep.subr.mxu0 0.0
  %749 = vmatpush1.msra.mxu0 0.0
  %750 = vmatprep.subr.mxu0 0.0
  %751 = vmatpush1.msra.mxu0 0.0
  %752 = vmatprep.subr.mxu0 0.0
  %753 = vmatpush1.msra.mxu0 0.0
  %754 = vmatprep.subr.mxu0 0.0
  %755 = vmatpush1.msra.mxu0 0.0
  %756 = vmatprep.subr.mxu0 0.0
  %757 = vmatpush1.msra.mxu0 0.0
  %758 = vmatprep.subr.mxu0 0.0
  %v759 = vand.u32 %v32, 4294901760
  %760 = vmatpush1.msra.mxu0 %v759
  %761 = vmatprep.subr.mxu0 0.0
  %v762 = vand.u32 %v31, 4294901760
  %763 = vmatpush1.msra.mxu0 %v762
  %764 = vmatprep.subr.mxu0 0.0
  %v765 = vand.u32 %v30, 4294901760
  %766 = vmatpush1.msra.mxu0 %v765
  %767 = vmatprep.subr.mxu0 0.0
  %v768 = vand.u32 %v29, 4294901760
  %769 = vmatpush1.msra.mxu0 %v768
  %770 = vmatprep.subr.mxu0 0.0
  %771 = vmatpush2.msra.mxu0 0.0
  %772 = vmatprep.subr.mxu0 0.0
  %773 = vmatpush2.msra.mxu0 0.0
  %774 = vmatprep.subr.mxu0 0.0
  %775 = vmatpush2.msra.mxu0 0.0
  %776 = vmatprep.subr.mxu0 0.0
  %777 = vmatpush2.msra.mxu0 0.0
  %778 = vmatprep.subr.mxu0 0.0
  %779 = vmatpush2.msra.mxu0 0.0
  %780 = vmatprep.subr.mxu0 0.0
  %781 = vmatpush2.msra.mxu0 0.0
  %782 = vmatprep.subr.mxu0 0.0
  %783 = vmatpush2.msra.mxu0 0.0
  %784 = vmatprep.subr.mxu0 0.0
  %785 = vmatpush2.msra.mxu0 0.0
  %786 = vmatprep.subr.mxu0 0.0
  %787 = vmatpush2.msra.mxu0 0.0
  %788 = vmatprep.subr.mxu0 0.0
  %789 = vmatpush2.msra.mxu0 0.0
  %790 = vmatprep.subr.mxu0 0.0
  %791 = vmatpush2.msra.mxu0 0.0
  %792 = vmatprep.subr.mxu0 0.0
  %793 = vmatpush2.msra.mxu0 0.0
  %794 = vmatprep.subr.mxu0 0.0
  %795 = vmatpush2.msra.mxu0 0.0
  %796 = vmatprep.subr.mxu0 0.0
  %797 = vmatpush2.msra.mxu0 0.0
  %798 = vmatprep.subr.mxu0 0.0
  %799 = vmatpush2.msra.mxu0 0.0
  %800 = vmatprep.subr.mxu0 0.0
  %801 = vmatpush2.msra.mxu0 0.0
  %802 = vmatprep.mubr.f32.mxu0 0.0
  %v803 = vand.u32 %v42, 4294901760
  %804 = vmatmul.mubr.f32.gmra.mxu0 %v803
  %v805 = vpop.f32.mrf.mxu0
  %v806 = vadd.f32 %v689, %v805
  %v807 = vpop.f32.mrf.mxu0
  %808 = vmatprep.mubr.f32.mxu0 0.0
  %v809 = vand.u32 %v45, 4294901760
  %810 = vmatmul.mubr.f32.gmra.mxu0 %v809
  %v811 = vpop.f32.mrf.mxu0
  %v812 = vadd.f32 %v695, %v811
  %v813 = vpop.f32.mrf.mxu0
  %814 = vmatprep.mubr.f32.mxu0 0.0
  %v815 = vand.u32 %v48, 4294901760
  %816 = vmatmul.mubr.f32.gmra.mxu0 %v815
  %v817 = vpop.f32.mrf.mxu0
  %v818 = vadd.f32 %v701, %v817
  %v819 = vpop.f32.mrf.mxu0
  %820 = vmatprep.mubr.f32.mxu0 0.0
  %v821 = vand.u32 %v51, 4294901760
  %822 = vmatmul.mubr.f32.gmra.mxu0 %v821
  %v823 = vpop.f32.mrf.mxu0
  %v824 = vadd.f32 %v707, %v823
  %v825 = vpop.f32.mrf.mxu0
  %826 = vmatprep.mubr.f32.mxu0 0.0
  %v827 = vand.u32 %v54, 4294901760
  %828 = vmatmul.mubr.f32.gmra.mxu0 %v827
  %v829 = vpop.f32.mrf.mxu0
  %v830 = vadd.f32 %v713, %v829
  %v831 = vpop.f32.mrf.mxu0
  %832 = vmatprep.mubr.f32.mxu0 0.0
  %v833 = vand.u32 %v57, 4294901760
  %834 = vmatmul.mubr.f32.gmra.mxu0 %v833
  %v835 = vpop.f32.mrf.mxu0
  %v836 = vadd.f32 %v719, %v835
  %v837 = vpop.f32.mrf.mxu0
  %838 = vmatprep.mubr.f32.mxu0 0.0
  %v839 = vand.u32 %v60, 4294901760
  %840 = vmatmul.mubr.f32.gmra.mxu0 %v839
  %v841 = vpop.f32.mrf.mxu0
  %v842 = vadd.f32 %v725, %v841
  %v843 = vpop.f32.mrf.mxu0
  %844 = vmatprep.mubr.f32.mxu0 0.0
  %v845 = vand.u32 %v63, 4294901760
  %846 = vmatmul.mubr.f32.gmra.mxu0 %v845
  %v847 = vpop.f32.mrf.mxu0
  %v848 = vadd.f32 %v731, %v847
  %v849 = vpop.f32.mrf.mxu0
  %850 = vdwg.mxu0
  %v851 = vtanh.pop %v806
  %v852 = vtanh.pop %v812
  %v853 = vtanh.pop %v818
  %v854 = vtanh.pop %v824
  %v855 = vtanh.pop %v830
  %v856 = vtanh.pop %v836
  %v857 = vtanh.pop %v842
  %v858 = vtanh.pop %v848
  %v859 = vld [vmem:[%s3] sm:$0xff]
  %v860 = vld [vmem:[%s3 + $0x8] sm:$0xff]
  %v861 = vld [vmem:[%s3 + $0x10] sm:$0xff]
  %v862 = vld [vmem:[%s3 + $0x18] sm:$0xff]
  %s863 = sld [smem:[#allocation2]]
  %v864 = vstv %s863
  %v866 = vsel %vm40, %v851, 0
  %v869 = vsel %vm40, %v852, 0
  %v872 = vsel %vm40, %v853, 0
  %v875 = vsel %vm40, %v854, 0
  %v878 = vsel %vm40, %v855, 0
  %v881 = vsel %vm40, %v856, 0
  %v884 = vsel %vm40, %v857, 0
  %v887 = vsel %vm40, %v858, 0
  %889 = vmatprep.subr.mxu0 0.0
  %890 = vmatpush1.msra.mxu0 0.0
  %891 = vmatprep.subr.mxu0 0.0
  %892 = vmatpush1.msra.mxu0 0.0
  %893 = vmatprep.subr.mxu0 0.0
  %894 = vmatpush1.msra.mxu0 0.0
  %895 = vmatprep.subr.mxu0 0.0
  %896 = vmatpush1.msra.mxu0 0.0
  %897 = vmatprep.subr.mxu0 0.0
  %898 = vmatpush1.msra.mxu0 0.0
  %899 = vmatprep.subr.mxu0 0.0
  %900 = vmatpush1.msra.mxu0 0.0
  %901 = vmatprep.subr.mxu0 0.0
  %902 = vmatpush1.msra.mxu0 0.0
  %903 = vmatprep.subr.mxu0 0.0
  %904 = vmatpush1.msra.mxu0 0.0
  %905 = vmatprep.subr.mxu0 0.0
  %906 = vmatpush1.msra.mxu0 0.0
  %907 = vmatprep.subr.mxu0 0.0
  %908 = vmatpush1.msra.mxu0 0.0
  %909 = vmatprep.subr.mxu0 0.0
  %910 = vmatpush1.msra.mxu0 0.0
  %911 = vmatprep.subr.mxu0 0.0
  %912 = vmatpush1.msra.mxu0 0.0
  %913 = vmatprep.subr.mxu0 0.0
  %v914 = vand.u32 %v862, 4294901760
  %915 = vmatpush1.msra.mxu0 %v914
  %916 = vmatprep.subr.mxu0 0.0
  %v917 = vand.u32 %v861, 4294901760
  %918 = vmatpush1.msra.mxu0 %v917
  %919 = vmatprep.subr.mxu0 0.0
  %v920 = vand.u32 %v860, 4294901760
  %921 = vmatpush1.msra.mxu0 %v920
  %922 = vmatprep.subr.mxu0 0.0
  %v923 = vand.u32 %v859, 4294901760
  %924 = vmatpush1.msra.mxu0 %v923
  %925 = vmatprep.subr.mxu0 0.0
  %926 = vmatpush2.msra.mxu0 0.0
  %927 = vmatprep.subr.mxu0 0.0
  %928 = vmatpush2.msra.mxu0 0.0
  %929 = vmatprep.subr.mxu0 0.0
  %930 = vmatpush2.msra.mxu0 0.0
  %931 = vmatprep.subr.mxu0 0.0
  %932 = vmatpush2.msra.mxu0 0.0
  %933 = vmatprep.subr.mxu0 0.0
  %934 = vmatpush2.msra.mxu0 0.0
  %935 = vmatprep.subr.mxu0 0.0
  %936 = vmatpush2.msra.mxu0 0.0
  %937 = vmatprep.subr.mxu0 0.0
  %938 = vmatpush2.msra.mxu0 0.0
  %939 = vmatprep.subr.mxu0 0.0
  %940 = vmatpush2.msra.mxu0 0.0
  %941 = vmatprep.subr.mxu0 0.0
  %942 = vmatpush2.msra.mxu0 0.0
  %943 = vmatprep.subr.mxu0 0.0
  %944 = vmatpush2.msra.mxu0 0.0
  %945 = vmatprep.subr.mxu0 0.0
  %946 = vmatpush2.msra.mxu0 0.0
  %947 = vmatprep.subr.mxu0 0.0
  %948 = vmatpush2.msra.mxu0 0.0
  %949 = vmatprep.subr.mxu0 0.0
  %950 = vmatpush2.msra.mxu0 0.0
  %951 = vmatprep.subr.mxu0 0.0
  %952 = vmatpush2.msra.mxu0 0.0
  %953 = vmatprep.subr.mxu0 0.0
  %954 = vmatpush2.msra.mxu0 0.0
  %955 = vmatprep.subr.mxu0 0.0
  %956 = vmatpush2.msra.mxu0 0.0
  %957 = vmatprep.mubr.f32.mxu0 0.0
  %v958 = vand.u32 %v866, 4294901760
  %v959 = vsub.f32 %v866, %v958
  %v960 = vand.u32 %v959, 4294901760
  %v961 = vsub.f32 %v959, %v960
  %v962 = vand.u32 %v961, 4294901760
  %963 = vmatmul.mubr.f32.gmra.mxu0 %v962
  %v964 = vpop.f32.mrf.mxu0
  %v965 = vadd.f32 %v864, %v964
  %v966 = vpop.f32.mrf.mxu0
  %967 = vmatprep.mubr.f32.mxu0 0.0
  %v968 = vand.u32 %v869, 4294901760
  %v969 = vsub.f32 %v869, %v968
  %v970 = vand.u32 %v969, 4294901760
  %v971 = vsub.f32 %v969, %v970
  %v972 = vand.u32 %v971, 4294901760
  %973 = vmatmul.mubr.f32.gmra.mxu0 %v972
  %v974 = vpop.f32.mrf.mxu0
  %v975 = vadd.f32 %v864, %v974
  %v976 = vpop.f32.mrf.mxu0
  %977 = vmatprep.mubr.f32.mxu0 0.0
  %v978 = vand.u32 %v872, 4294901760
  %v979 = vsub.f32 %v872, %v978
  %v980 = vand.u32 %v979, 4294901760
  %v981 = vsub.f32 %v979, %v980
  %v982 = vand.u32 %v981, 4294901760
  %983 = vmatmul.mubr.f32.gmra.mxu0 %v982
  %v984 = vpop.f32.mrf.mxu0
  %v985 = vadd.f32 %v864, %v984
  %v986 = vpop.f32.mrf.mxu0
  %987 = vmatprep.mubr.f32.mxu0 0.0
  %v988 = vand.u32 %v875, 4294901760
  %v989 = vsub.f32 %v875, %v988
  %v990 = vand.u32 %v989, 4294901760
  %v991 = vsub.f32 %v989, %v990
  %v992 = vand.u32 %v991, 4294901760
  %993 = vmatmul.mubr.f32.gmra.mxu0 %v992
  %v994 = vpop.f32.mrf.mxu0
  %v995 = vadd.f32 %v864, %v994
  %v996 = vpop.f32.mrf.mxu0
  %997 = vmatprep.mubr.f32.mxu0 0.0
  %v998 = vand.u32 %v878, 4294901760
  %v999 = vsub.f32 %v878, %v998
  %v1000 = vand.u32 %v999, 4294901760
  %v1001 = vsub.f32 %v999, %v1000
  %v1002 = vand.u32 %v1001, 4294901760
  %1003 = vmatmul.mubr.f32.gmra.mxu0 %v1002
  %v1004 = vpop.f32.mrf.mxu0
  %v1005 = vadd.f32 %v864, %v1004
  %v1006 = vpop.f32.mrf.mxu0
  %1007 = vmatprep.mubr.f32.mxu0 0.0
  %v1008 = vand.u32 %v881, 4294901760
  %v1009 = vsub.f32 %v881, %v1008
  %v1010 = vand.u32 %v1009, 4294901760
  %v1011 = vsub.f32 %v1009, %v1010
  %v1012 = vand.u32 %v1011, 4294901760
  %1013 = vmatmul.mubr.f32.gmra.mxu0 %v1012
  %v1014 = vpop.f32.mrf.mxu0
  %v1015 = vadd.f32 %v864, %v1014
  %v1016 = vpop.f32.mrf.mxu0
  %1017 = vmatprep.mubr.f32.mxu0 0.0
  %v1018 = vand.u32 %v884, 4294901760
  %v1019 = vsub.f32 %v884, %v1018
  %v1020 = vand.u32 %v1019, 4294901760
  %v1021 = vsub.f32 %v1019, %v1020
  %v1022 = vand.u32 %v1021, 4294901760
  %1023 = vmatmul.mubr.f32.gmra.mxu0 %v1022
  %v1024 = vpop.f32.mrf.mxu0
  %v1025 = vadd.f32 %v864, %v1024
  %v1026 = vpop.f32.mrf.mxu0
  %1027 = vmatprep.mubr.f32.mxu0 0.0
  %v1028 = vand.u32 %v887, 4294901760
  %v1029 = vsub.f32 %v887, %v1028
  %v1030 = vand.u32 %v1029, 4294901760
  %v1031 = vsub.f32 %v1029, %v1030
  %v1032 = vand.u32 %v1031, 4294901760
  %1033 = vmatmul.mubr.f32.gmra.mxu0 %v1032
  %v1034 = vpop.f32.mrf.mxu0
  %v1035 = vadd.f32 %v864, %v1034
  %v1036 = vpop.f32.mrf.mxu0
  %1037 = vdwg.mxu0
  %1038 = vmatprep.subr.mxu0 0.0
  %1039 = vmatpush1.msra.mxu0 0.0
  %1040 = vmatprep.subr.mxu0 0.0
  %1041 = vmatpush1.msra.mxu0 0.0
  %1042 = vmatprep.subr.mxu0 0.0
  %1043 = vmatpush1.msra.mxu0 0.0
  %1044 = vmatprep.subr.mxu0 0.0
  %1045 = vmatpush1.msra.mxu0 0.0
  %1046 = vmatprep.subr.mxu0 0.0
  %1047 = vmatpush1.msra.mxu0 0.0
  %1048 = vmatprep.subr.mxu0 0.0
  %1049 = vmatpush1.msra.mxu0 0.0
  %1050 = vmatprep.subr.mxu0 0.0
  %1051 = vmatpush1.msra.mxu0 0.0
  %1052 = vmatprep.subr.mxu0 0.0
  %1053 = vmatpush1.msra.mxu0 0.0
  %1054 = vmatprep.subr.mxu0 0.0
  %1055 = vmatpush1.msra.mxu0 0.0
  %1056 = vmatprep.subr.mxu0 0.0
  %1057 = vmatpush1.msra.mxu0 0.0
  %1058 = vmatprep.subr.mxu0 0.0
  %1059 = vmatpush1.msra.mxu0 0.0
  %1060 = vmatprep.subr.mxu0 0.0
  %1061 = vmatpush1.msra.mxu0 0.0
  %1062 = vmatprep.subr.mxu0 0.0
  %v1063 = vand.u32 %v862, 4294901760
  %v1064 = vsub.f32 %v862, %v1063
  %v1065 = vand.u32 %v1064, 4294901760
  %v1066 = vsub.f32 %v1064, %v1065
  %v1067 = vand.u32 %v1066, 4294901760
  %1068 = vmatpush1.msra.mxu0 %v1067
  %1069 = vmatprep.subr.mxu0 0.0
  %v1070 = vand.u32 %v861, 4294901760
  %v1071 = vsub.f32 %v861, %v1070
  %v1072 = vand.u32 %v1071, 4294901760
  %v1073 = vsub.f32 %v1071, %v1072
  %v1074 = vand.u32 %v1073, 4294901760
  %1075 = vmatpush1.msra.mxu0 %v1074
  %1076 = vmatprep.subr.mxu0 0.0
  %v1077 = vand.u32 %v860, 4294901760
  %v1078 = vsub.f32 %v860, %v1077
  %v1079 = vand.u32 %v1078, 4294901760
  %v1080 = vsub.f32 %v1078, %v1079
  %v1081 = vand.u32 %v1080, 4294901760
  %1082 = vmatpush1.msra.mxu0 %v1081
  %1083 = vmatprep.subr.mxu0 0.0
  %v1084 = vand.u32 %v859, 4294901760
  %v1085 = vsub.f32 %v859, %v1084
  %v1086 = vand.u32 %v1085, 4294901760
  %v1087 = vsub.f32 %v1085, %v1086
  %v1088 = vand.u32 %v1087, 4294901760
  %1089 = vmatpush1.msra.mxu0 %v1088
  %1090 = vmatprep.subr.mxu0 0.0
  %1091 = vmatpush2.msra.mxu0 0.0
  %1092 = vmatprep.subr.mxu0 0.0
  %1093 = vmatpush2.msra.mxu0 0.0
  %1094 = vmatprep.subr.mxu0 0.0
  %1095 = vmatpush2.msra.mxu0 0.0
  %1096 = vmatprep.subr.mxu0 0.0
  %1097 = vmatpush2.msra.mxu0 0.0
  %1098 = vmatprep.subr.mxu0 0.0
  %1099 = vmatpush2.msra.mxu0 0.0
  %1100 = vmatprep.subr.mxu0 0.0
  %1101 = vmatpush2.msra.mxu0 0.0
  %1102 = vmatprep.subr.mxu0 0.0
  %1103 = vmatpush2.msra.mxu0 0.0
  %1104 = vmatprep.subr.mxu0 0.0
  %1105 = vmatpush2.msra.mxu0 0.0
  %1106 = vmatprep.subr.mxu0 0.0
  %1107 = vmatpush2.msra.mxu0 0.0
  %1108 = vmatprep.subr.mxu0 0.0
  %1109 = vmatpush2.msra.mxu0 0.0
  %1110 = vmatprep.subr.mxu0 0.0
  %1111 = vmatpush2.msra.mxu0 0.0
  %1112 = vmatprep.subr.mxu0 0.0
  %1113 = vmatpush2.msra.mxu0 0.0
  %1114 = vmatprep.subr.mxu0 0.0
  %1115 = vmatpush2.msra.mxu0 0.0
  %1116 = vmatprep.subr.mxu0 0.0
  %1117 = vmatpush2.msra.mxu0 0.0
  %1118 = vmatprep.subr.mxu0 0.0
  %1119 = vmatpush2.msra.mxu0 0.0
  %1120 = vmatprep.subr.mxu0 0.0
  %1121 = vmatpush2.msra.mxu0 0.0
  %1122 = vmatprep.mubr.f32.mxu0 0.0
  %v1123 = vand.u32 %v866, 4294901760
  %1124 = vmatmul.mubr.f32.gmra.mxu0 %v1123
  %v1125 = vpop.f32.mrf.mxu0
  %v1126 = vadd.f32 %v965, %v1125
  %v1127 = vpop.f32.mrf.mxu0
  %1128 = vmatprep.mubr.f32.mxu0 0.0
  %v1129 = vand.u32 %v869, 4294901760
  %1130 = vmatmul.mubr.f32.gmra.mxu0 %v1129
  %v1131 = vpop.f32.mrf.mxu0
  %v1132 = vadd.f32 %v975, %v1131
  %v1133 = vpop.f32.mrf.mxu0
  %1134 = vmatprep.mubr.f32.mxu0 0.0
  %v1135 = vand.u32 %v872, 4294901760
  %1136 = vmatmul.mubr.f32.gmra.mxu0 %v1135
  %v1137 = vpop.f32.mrf.mxu0
  %v1138 = vadd.f32 %v985, %v1137
  %v1139 = vpop.f32.mrf.mxu0
  %1140 = vmatprep.mubr.f32.mxu0 0.0
  %v1141 = vand.u32 %v875, 4294901760
  %1142 = vmatmul.mubr.f32.gmra.mxu0 %v1141
  %v1143 = vpop.f32.mrf.mxu0
  %v1144 = vadd.f32 %v995, %v1143
  %v1145 = vpop.f32.mrf.mxu0
  %1146 = vmatprep.mubr.f32.mxu0 0.0
  %v1147 = vand.u32 %v878, 4294901760
  %1148 = vmatmul.mubr.f32.gmra.mxu0 %v1147
  %v1149 = vpop.f32.mrf.mxu0
  %v1150 = vadd.f32 %v1005, %v1149
  %v1151 = vpop.f32.mrf.mxu0
  %1152 = vmatprep.mubr.f32.mxu0 0.0
  %v1153 = vand.u32 %v881, 4294901760
  %1154 = vmatmul.mubr.f32.gmra.mxu0 %v1153
  %v1155 = vpop.f32.mrf.mxu0
  %v1156 = vadd.f32 %v1015, %v1155
  %v1157 = vpop.f32.mrf.mxu0
  %1158 = vmatprep.mubr.f32.mxu0 0.0
  %v1159 = vand.u32 %v884, 4294901760
  %1160 = vmatmul.mubr.f32.gmra.mxu0 %v1159
  %v1161 = vpop.f32.mrf.mxu0
  %v1162 = vadd.f32 %v1025, %v1161
  %v1163 = vpop.f32.mrf.mxu0
  %1164 = vmatprep.mubr.f32.mxu0 0.0
  %v1165 = vand.u32 %v887, 4294901760
  %1166 = vmatmul.mubr.f32.gmra.mxu0 %v1165
  %v1167 = vpop.f32.mrf.mxu0
  %v1168 = vadd.f32 %v1035, %v1167
  %v1169 = vpop.f32.mrf.mxu0
  %1170 = vdwg.mxu0
  %1171 = vmatprep.subr.mxu0 0.0
  %1172 = vmatpush1.msra.mxu0 0.0
  %1173 = vmatprep.subr.mxu0 0.0
  %1174 = vmatpush1.msra.mxu0 0.0
  %1175 = vmatprep.subr.mxu0 0.0
  %1176 = vmatpush1.msra.mxu0 0.0
  %1177 = vmatprep.subr.mxu0 0.0
  %1178 = vmatpush1.msra.mxu0 0.0
  %1179 = vmatprep.subr.mxu0 0.0
  %1180 = vmatpush1.msra.mxu0 0.0
  %1181 = vmatprep.subr.mxu0 0.0
  %1182 = vmatpush1.msra.mxu0 0.0
  %1183 = vmatprep.subr.mxu0 0.0
  %1184 = vmatpush1.msra.mxu0 0.0
  %1185 = vmatprep.subr.mxu0 0.0
  %1186 = vmatpush1.msra.mxu0 0.0
  %1187 = vmatprep.subr.mxu0 0.0
  %1188 = vmatpush1.msra.mxu0 0.0
  %1189 = vmatprep.subr.mxu0 0.0
  %1190 = vmatpush1.msra.mxu0 0.0
  %1191 = vmatprep.subr.mxu0 0.0
  %1192 = vmatpush1.msra.mxu0 0.0
  %1193 = vmatprep.subr.mxu0 0.0
  %1194 = vmatpush1.msra.mxu0 0.0
  %1195 = vmatprep.subr.mxu0 0.0
  %v1196 = vand.u32 %v862, 4294901760
  %v1197 = vsub.f32 %v862, %v1196
  %1198 = vmatpush1.msra.mxu0 %v1197
  %1199 = vmatprep.subr.mxu0 0.0
  %v1200 = vand.u32 %v861, 4294901760
  %v1201 = vsub.f32 %v861, %v1200
  %1202 = vmatpush1.msra.mxu0 %v1201
  %1203 = vmatprep.subr.mxu0 0.0
  %v1204 = vand.u32 %v860, 4294901760
  %v1205 = vsub.f32 %v860, %v1204
  %1206 = vmatpush1.msra.mxu0 %v1205
  %1207 = vmatprep.subr.mxu0 0.0
  %v1208 = vand.u32 %v859, 4294901760
  %v1209 = vsub.f32 %v859, %v1208
  %1210 = vmatpush1.msra.mxu0 %v1209
  %1211 = vmatprep.subr.mxu0 0.0
  %1212 = vmatpush2.msra.mxu0 0.0
  %1213 = vmatprep.subr.mxu0 0.0
  %1214 = vmatpush2.msra.mxu0 0.0
  %1215 = vmatprep.subr.mxu0 0.0
  %1216 = vmatpush2.msra.mxu0 0.0
  %1217 = vmatprep.subr.mxu0 0.0
  %1218 = vmatpush2.msra.mxu0 0.0
  %1219 = vmatprep.subr.mxu0 0.0
  %1220 = vmatpush2.msra.mxu0 0.0
  %1221 = vmatprep.subr.mxu0 0.0
  %1222 = vmatpush2.msra.mxu0 0.0
  %1223 = vmatprep.subr.mxu0 0.0
  %1224 = vmatpush2.msra.mxu0 0.0
  %1225 = vmatprep.subr.mxu0 0.0
  %1226 = vmatpush2.msra.mxu0 0.0
  %1227 = vmatprep.subr.mxu0 0.0
  %1228 = vmatpush2.msra.mxu0 0.0
  %1229 = vmatprep.subr.mxu0 0.0
  %1230 = vmatpush2.msra.mxu0 0.0
  %1231 = vmatprep.subr.mxu0 0.0
  %1232 = vmatpush2.msra.mxu0 0.0
  %1233 = vmatprep.subr.mxu0 0.0
  %1234 = vmatpush2.msra.mxu0 0.0
  %1235 = vmatprep.subr.mxu0 0.0
  %1236 = vmatpush2.msra.mxu0 0.0
  %1237 = vmatprep.subr.mxu0 0.0
  %1238 = vmatpush2.msra.mxu0 0.0
  %1239 = vmatprep.subr.mxu0 0.0
  %1240 = vmatpush2.msra.mxu0 0.0
  %1241 = vmatprep.subr.mxu0 0.0
  %1242 = vmatpush2.msra.mxu0 0.0
  %1243 = vmatprep.mubr.f32.mxu0 0.0
  %v1244 = vand.u32 %v866, 4294901760
  %v1245 = vsub.f32 %v866, %v1244
  %1246 = vmatmul.mubr.f32.gmra.mxu0 %v1245
  %v1247 = vpop.f32.mrf.mxu0
  %v1248 = vadd.f32 %v1126, %v1247
  %v1249 = vpop.f32.mrf.mxu0
  %1250 = vmatprep.mubr.f32.mxu0 0.0
  %v1251 = vand.u32 %v869, 4294901760
  %v1252 = vsub.f32 %v869, %v1251
  %1253 = vmatmul.mubr.f32.gmra.mxu0 %v1252
  %v1254 = vpop.f32.mrf.mxu0
  %v1255 = vadd.f32 %v1132, %v1254
  %v1256 = vpop.f32.mrf.mxu0
  %1257 = vmatprep.mubr.f32.mxu0 0.0
  %v1258 = vand.u32 %v872, 4294901760
  %v1259 = vsub.f32 %v872, %v1258
  %1260 = vmatmul.mubr.f32.gmra.mxu0 %v1259
  %v1261 = vpop.f32.mrf.mxu0
  %v1262 = vadd.f32 %v1138, %v1261
  %v1263 = vpop.f32.mrf.mxu0
  %1264 = vmatprep.mubr.f32.mxu0 0.0
  %v1265 = vand.u32 %v875, 4294901760
  %v1266 = vsub.f32 %v875, %v1265
  %1267 = vmatmul.mubr.f32.gmra.mxu0 %v1266
  %v1268 = vpop.f32.mrf.mxu0
  %v1269 = vadd.f32 %v1144, %v1268
  %v1270 = vpop.f32.mrf.mxu0
  %1271 = vmatprep.mubr.f32.mxu0 0.0
  %v1272 = vand.u32 %v878, 4294901760
  %v1273 = vsub.f32 %v878, %v1272
  %1274 = vmatmul.mubr.f32.gmra.mxu0 %v1273
  %v1275 = vpop.f32.mrf.mxu0
  %v1276 = vadd.f32 %v1150, %v1275
  %v1277 = vpop.f32.mrf.mxu0
  %1278 = vmatprep.mubr.f32.mxu0 0.0
  %v1279 = vand.u32 %v881, 4294901760
  %v1280 = vsub.f32 %v881, %v1279
  %1281 = vmatmul.mubr.f32.gmra.mxu0 %v1280
  %v1282 = vpop.f32.mrf.mxu0
  %v1283 = vadd.f32 %v1156, %v1282
  %v1284 = vpop.f32.mrf.mxu0
  %1285 = vmatprep.mubr.f32.mxu0 0.0
  %v1286 = vand.u32 %v884, 4294901760
  %v1287 = vsub.f32 %v884, %v1286
  %1288 = vmatmul.mubr.f32.gmra.mxu0 %v1287
  %v1289 = vpop.f32.mrf.mxu0
  %v1290 = vadd.f32 %v1162, %v1289
  %v1291 = vpop.f32.mrf.mxu0
  %1292 = vmatprep.mubr.f32.mxu0 0.0
  %v1293 = vand.u32 %v887, 4294901760
  %v1294 = vsub.f32 %v887, %v1293
  %1295 = vmatmul.mubr.f32.gmra.mxu0 %v1294
  %v1296 = vpop.f32.mrf.mxu0
  %v1297 = vadd.f32 %v1168, %v1296
  %v1298 = vpop.f32.mrf.mxu0
  %1299 = vdwg.mxu0
  %1300 = vmatprep.subr.mxu0 0.0
  %1301 = vmatpush1.msra.mxu0 0.0
  %1302 = vmatprep.subr.mxu0 0.0
  %1303 = vmatpush1.msra.mxu0 0.0
  %1304 = vmatprep.subr.mxu0 0.0
  %1305 = vmatpush1.msra.mxu0 0.0
  %1306 = vmatprep.subr.mxu0 0.0
  %1307 = vmatpush1.msra.mxu0 0.0
  %1308 = vmatprep.subr.mxu0 0.0
  %1309 = vmatpush1.msra.mxu0 0.0
  %1310 = vmatprep.subr.mxu0 0.0
  %1311 = vmatpush1.msra.mxu0 0.0
  %1312 = vmatprep.subr.mxu0 0.0
  %1313 = vmatpush1.msra.mxu0 0.0
  %1314 = vmatprep.subr.mxu0 0.0
  %1315 = vmatpush1.msra.mxu0 0.0
  %1316 = vmatprep.subr.mxu0 0.0
  %1317 = vmatpush1.msra.mxu0 0.0
  %1318 = vmatprep.subr.mxu0 0.0
  %1319 = vmatpush1.msra.mxu0 0.0
  %1320 = vmatprep.subr.mxu0 0.0
  %1321 = vmatpush1.msra.mxu0 0.0
  %1322 = vmatprep.subr.mxu0 0.0
  %1323 = vmatpush1.msra.mxu0 0.0
  %1324 = vmatprep.subr.mxu0 0.0
  %v1325 = vand.u32 %v862, 4294901760
  %1326 = vmatpush1.msra.mxu0 %v1325
  %1327 = vmatprep.subr.mxu0 0.0
  %v1328 = vand.u32 %v861, 4294901760
  %1329 = vmatpush1.msra.mxu0 %v1328
  %1330 = vmatprep.subr.mxu0 0.0
  %v1331 = vand.u32 %v860, 4294901760
  %1332 = vmatpush1.msra.mxu0 %v1331
  %1333 = vmatprep.subr.mxu0 0.0
  %v1334 = vand.u32 %v859, 4294901760
  %1335 = vmatpush1.msra.mxu0 %v1334
  %1336 = vmatprep.subr.mxu0 0.0
  %1337 = vmatpush2.msra.mxu0 0.0
  %1338 = vmatprep.subr.mxu0 0.0
  %1339 = vmatpush2.msra.mxu0 0.0
  %1340 = vmatprep.subr.mxu0 0.0
  %1341 = vmatpush2.msra.mxu0 0.0
  %1342 = vmatprep.subr.mxu0 0.0
  %1343 = vmatpush2.msra.mxu0 0.0
  %1344 = vmatprep.subr.mxu0 0.0
  %1345 = vmatpush2.msra.mxu0 0.0
  %1346 = vmatprep.subr.mxu0 0.0
  %1347 = vmatpush2.msra.mxu0 0.0
  %1348 = vmatprep.subr.mxu0 0.0
  %1349 = vmatpush2.msra.mxu0 0.0
  %1350 = vmatprep.subr.mxu0 0.0
  %1351 = vmatpush2.msra.mxu0 0.0
  %1352 = vmatprep.subr.mxu0 0.0
  %1353 = vmatpush2.msra.mxu0 0.0
  %1354 = vmatprep.subr.mxu0 0.0
  %1355 = vmatpush2.msra.mxu0 0.0
  %1356 = vmatprep.subr.mxu0 0.0
  %1357 = vmatpush2.msra.mxu0 0.0
  %1358 = vmatprep.subr.mxu0 0.0
  %1359 = vmatpush2.msra.mxu0 0.0
  %1360 = vmatprep.subr.mxu0 0.0
  %1361 = vmatpush2.msra.mxu0 0.0
  %1362 = vmatprep.subr.mxu0 0.0
  %1363 = vmatpush2.msra.mxu0 0.0
  %1364 = vmatprep.subr.mxu0 0.0
  %1365 = vmatpush2.msra.mxu0 0.0
  %1366 = vmatprep.subr.mxu0 0.0
  %1367 = vmatpush2.msra.mxu0 0.0
  %1368 = vmatprep.mubr.f32.mxu0 0.0
  %v1369 = vand.u32 %v866, 4294901760
  %v1370 = vsub.f32 %v866, %v1369
  %v1371 = vand.u32 %v1370, 4294901760
  %1372 = vmatmul.mubr.f32.gmra.mxu0 %v1371
  %v1373 = vpop.f32.mrf.mxu0
  %v1374 = vadd.f32 %v1248, %v1373
  %v1375 = vpop.f32.mrf.mxu0
  %1376 = vmatprep.mubr.f32.mxu0 0.0
  %v1377 = vand.u32 %v869, 4294901760
  %v1378 = vsub.f32 %v869, %v1377
  %v1379 = vand.u32 %v1378, 4294901760
  %1380 = vmatmul.mubr.f32.gmra.mxu0 %v1379
  %v1381 = vpop.f32.mrf.mxu0
  %v1382 = vadd.f32 %v1255, %v1381
  %v1383 = vpop.f32.mrf.mxu0
  %1384 = vmatprep.mubr.f32.mxu0 0.0
  %v1385 = vand.u32 %v872, 4294901760
  %v1386 = vsub.f32 %v872, %v1385
  %v1387 = vand.u32 %v1386, 4294901760
  %1388 = vmatmul.mubr.f32.gmra.mxu0 %v1387
  %v1389 = vpop.f32.mrf.mxu0
  %v1390 = vadd.f32 %v1262, %v1389
  %v1391 = vpop.f32.mrf.mxu0
  %1392 = vmatprep.mubr.f32.mxu0 0.0
  %v1393 = vand.u32 %v875, 4294901760
  %v1394 = vsub.f32 %v875, %v1393
  %v1395 = vand.u32 %v1394, 4294901760
  %1396 = vmatmul.mubr.f32.gmra.mxu0 %v1395
  %v1397 = vpop.f32.mrf.mxu0
  %v1398 = vadd.f32 %v1269, %v1397
  %v1399 = vpop.f32.mrf.mxu0
  %1400 = vmatprep.mubr.f32.mxu0 0.0
  %v1401 = vand.u32 %v878, 4294901760
  %v1402 = vsub.f32 %v878, %v1401
  %v1403 = vand.u32 %v1402, 4294901760
  %1404 = vmatmul.mubr.f32.gmra.mxu0 %v1403
  %v1405 = vpop.f32.mrf.mxu0
  %v1406 = vadd.f32 %v1276, %v1405
  %v1407 = vpop.f32.mrf.mxu0
  %1408 = vmatprep.mubr.f32.mxu0 0.0
  %v1409 = vand.u32 %v881, 4294901760
  %v1410 = vsub.f32 %v881, %v1409
  %v1411 = vand.u32 %v1410, 4294901760
  %1412 = vmatmul.mubr.f32.gmra.mxu0 %v1411
  %v1413 = vpop.f32.mrf.mxu0
  %v1414 = vadd.f32 %v1283, %v1413
  %v1415 = vpop.f32.mrf.mxu0
  %1416 = vmatprep.mubr.f32.mxu0 0.0
  %v1417 = vand.u32 %v884, 4294901760
  %v1418 = vsub.f32 %v884, %v1417
  %v1419 = vand.u32 %v1418, 4294901760
  %1420 = vmatmul.mubr.f32.gmra.mxu0 %v1419
  %v1421 = vpop.f32.mrf.mxu0
  %v1422 = vadd.f32 %v1290, %v1421
  %v1423 = vpop.f32.mrf.mxu0
  %1424 = vmatprep.mubr.f32.mxu0 0.0
  %v1425 = vand.u32 %v887, 4294901760
  %v1426 = vsub.f32 %v887, %v1425
  %v1427 = vand.u32 %v1426, 4294901760
  %1428 = vmatmul.mubr.f32.gmra.mxu0 %v1427
  %v1429 = vpop.f32.mrf.mxu0
  %v1430 = vadd.f32 %v1297, %v1429
  %v1431 = vpop.f32.mrf.mxu0
  %1432 = vdwg.mxu0
  %1433 = vmatprep.subr.mxu0 0.0
  %1434 = vmatpush1.msra.mxu0 0.0
  %1435 = vmatprep.subr.mxu0 0.0
  %1436 = vmatpush1.msra.mxu0 0.0
  %1437 = vmatprep.subr.mxu0 0.0
  %1438 = vmatpush1.msra.mxu0 0.0
  %1439 = vmatprep.subr.mxu0 0.0
  %1440 = vmatpush1.msra.mxu0 0.0
  %1441 = vmatprep.subr.mxu0 0.0
  %1442 = vmatpush1.msra.mxu0 0.0
  %1443 = vmatprep.subr.mxu0 0.0
  %1444 = vmatpush1.msra.mxu0 0.0
  %1445 = vmatprep.subr.mxu0 0.0
  %1446 = vmatpush1.msra.mxu0 0.0
  %1447 = vmatprep.subr.mxu0 0.0
  %1448 = vmatpush1.msra.mxu0 0.0
  %1449 = vmatprep.subr.mxu0 0.0
  %1450 = vmatpush1.msra.mxu0 0.0
  %1451 = vmatprep.subr.mxu0 0.0
  %1452 = vmatpush1.msra.mxu0 0.0
  %1453 = vmatprep.subr.mxu0 0.0
  %1454 = vmatpush1.msra.mxu0 0.0
  %1455 = vmatprep.subr.mxu0 0.0
  %1456 = vmatpush1.msra.mxu0 0.0
  %1457 = vmatprep.subr.mxu0 0.0
  %v1458 = vand.u32 %v862, 4294901760
  %v1459 = vsub.f32 %v862, %v1458
  %v1460 = vand.u32 %v1459, 4294901760
  %1461 = vmatpush1.msra.mxu0 %v1460
  %1462 = vmatprep.subr.mxu0 0.0
  %v1463 = vand.u32 %v861, 4294901760
  %v1464 = vsub.f32 %v861, %v1463
  %v1465 = vand.u32 %v1464, 4294901760
  %1466 = vmatpush1.msra.mxu0 %v1465
  %1467 = vmatprep.subr.mxu0 0.0
  %v1468 = vand.u32 %v860, 4294901760
  %v1469 = vsub.f32 %v860, %v1468
  %v1470 = vand.u32 %v1469, 4294901760
  %1471 = vmatpush1.msra.mxu0 %v1470
  %1472 = vmatprep.subr.mxu0 0.0
  %v1473 = vand.u32 %v859, 4294901760
  %v1474 = vsub.f32 %v859, %v1473
  %v1475 = vand.u32 %v1474, 4294901760
  %1476 = vmatpush1.msra.mxu0 %v1475
  %1477 = vmatprep.subr.mxu0 0.0
  %1478 = vmatpush2.msra.mxu0 0.0
  %1479 = vmatprep.subr.mxu0 0.0
  %1480 = vmatpush2.msra.mxu0 0.0
  %1481 = vmatprep.subr.mxu0 0.0
  %1482 = vmatpush2.msra.mxu0 0.0
  %1483 = vmatprep.subr.mxu0 0.0
  %1484 = vmatpush2.msra.mxu0 0.0
  %1485 = vmatprep.subr.mxu0 0.0
  %1486 = vmatpush2.msra.mxu0 0.0
  %1487 = vmatprep.subr.mxu0 0.0
  %1488 = vmatpush2.msra.mxu0 0.0
  %1489 = vmatprep.subr.mxu0 0.0
  %1490 = vmatpush2.msra.mxu0 0.0
  %1491 = vmatprep.subr.mxu0 0.0
  %1492 = vmatpush2.msra.mxu0 0.0
  %1493 = vmatprep.subr.mxu0 0.0
  %1494 = vmatpush2.msra.mxu0 0.0
  %1495 = vmatprep.subr.mxu0 0.0
  %1496 = vmatpush2.msra.mxu0 0.0
  %1497 = vmatprep.subr.mxu0 0.0
  %1498 = vmatpush2.msra.mxu0 0.0
  %1499 = vmatprep.subr.mxu0 0.0
  %1500 = vmatpush2.msra.mxu0 0.0
  %1501 = vmatprep.subr.mxu0 0.0
  %1502 = vmatpush2.msra.mxu0 0.0
  %1503 = vmatprep.subr.mxu0 0.0
  %1504 = vmatpush2.msra.mxu0 0.0
  %1505 = vmatprep.subr.mxu0 0.0
  %1506 = vmatpush2.msra.mxu0 0.0
  %1507 = vmatprep.subr.mxu0 0.0
  %1508 = vmatpush2.msra.mxu0 0.0
  %1509 = vmatprep.mubr.f32.mxu0 0.0
  %v1510 = vand.u32 %v866, 4294901760
  %1511 = vmatmul.mubr.f32.gmra.mxu0 %v1510
  %v1512 = vpop.f32.mrf.mxu0
  %v1513 = vadd.f32 %v1374, %v1512
  %v1514 = vpop.f32.mrf.mxu0
  %1515 = vmatprep.mubr.f32.mxu0 0.0
  %v1516 = vand.u32 %v869, 4294901760
  %1517 = vmatmul.mubr.f32.gmra.mxu0 %v1516
  %v1518 = vpop.f32.mrf.mxu0
  %v1519 = vadd.f32 %v1382, %v1518
  %v1520 = vpop.f32.mrf.mxu0
  %1521 = vmatprep.mubr.f32.mxu0 0.0
  %v1522 = vand.u32 %v872, 4294901760
  %1523 = vmatmul.mubr.f32.gmra.mxu0 %v1522
  %v1524 = vpop.f32.mrf.mxu0
  %v1525 = vadd.f32 %v1390, %v1524
  %v1526 = vpop.f32.mrf.mxu0
  %1527 = vmatprep.mubr.f32.mxu0 0.0
  %v1528 = vand.u32 %v875, 4294901760
  %1529 = vmatmul.mubr.f32.gmra.mxu0 %v1528
  %v1530 = vpop.f32.mrf.mxu0
  %v1531 = vadd.f32 %v1398, %v1530
  %v1532 = vpop.f32.mrf.mxu0
  %1533 = vmatprep.mubr.f32.mxu0 0.0
  %v1534 = vand.u32 %v878, 4294901760
  %1535 = vmatmul.mubr.f32.gmra.mxu0 %v1534
  %v1536 = vpop.f32.mrf.mxu0
  %v1537 = vadd.f32 %v1406, %v1536
  %v1538 = vpop.f32.mrf.mxu0
  %1539 = vmatprep.mubr.f32.mxu0 0.0
  %v1540 = vand.u32 %v881, 4294901760
  %1541 = vmatmul.mubr.f32.gmra.mxu0 %v1540
  %v1542 = vpop.f32.mrf.mxu0
  %v1543 = vadd.f32 %v1414, %v1542
  %v1544 = vpop.f32.mrf.mxu0
  %1545 = vmatprep.mubr.f32.mxu0 0.0
  %v1546 = vand.u32 %v884, 4294901760
  %1547 = vmatmul.mubr.f32.gmra.mxu0 %v1546
  %v1548 = vpop.f32.mrf.mxu0
  %v1549 = vadd.f32 %v1422, %v1548
  %v1550 = vpop.f32.mrf.mxu0
  %1551 = vmatprep.mubr.f32.mxu0 0.0
  %v1552 = vand.u32 %v887, 4294901760
  %1553 = vmatmul.mubr.f32.gmra.mxu0 %v1552
  %v1554 = vpop.f32.mrf.mxu0
  %v1555 = vadd.f32 %v1430, %v1554
  %v1556 = vpop.f32.mrf.mxu0
  %1557 = vdwg.mxu0
  %1558 = vmatprep.subr.mxu0 0.0
  %1559 = vmatpush1.msra.mxu0 0.0
  %1560 = vmatprep.subr.mxu0 0.0
  %1561 = vmatpush1.msra.mxu0 0.0
  %1562 = vmatprep.subr.mxu0 0.0
  %1563 = vmatpush1.msra.mxu0 0.0
  %1564 = vmatprep.subr.mxu0 0.0
  %1565 = vmatpush1.msra.mxu0 0.0
  %1566 = vmatprep.subr.mxu0 0.0
  %1567 = vmatpush1.msra.mxu0 0.0
  %1568 = vmatprep.subr.mxu0 0.0
  %1569 = vmatpush1.msra.mxu0 0.0
  %1570 = vmatprep.subr.mxu0 0.0
  %1571 = vmatpush1.msra.mxu0 0.0
  %1572 = vmatprep.subr.mxu0 0.0
  %1573 = vmatpush1.msra.mxu0 0.0
  %1574 = vmatprep.subr.mxu0 0.0
  %1575 = vmatpush1.msra.mxu0 0.0
  %1576 = vmatprep.subr.mxu0 0.0
  %1577 = vmatpush1.msra.mxu0 0.0
  %1578 = vmatprep.subr.mxu0 0.0
  %1579 = vmatpush1.msra.mxu0 0.0
  %1580 = vmatprep.subr.mxu0 0.0
  %1581 = vmatpush1.msra.mxu0 0.0
  %1582 = vmatprep.subr.mxu0 0.0
  %v1583 = vand.u32 %v862, 4294901760
  %1584 = vmatpush1.msra.mxu0 %v1583
  %1585 = vmatprep.subr.mxu0 0.0
  %v1586 = vand.u32 %v861, 4294901760
  %1587 = vmatpush1.msra.mxu0 %v1586
  %1588 = vmatprep.subr.mxu0 0.0
  %v1589 = vand.u32 %v860, 4294901760
  %1590 = vmatpush1.msra.mxu0 %v1589
  %1591 = vmatprep.subr.mxu0 0.0
  %v1592 = vand.u32 %v859, 4294901760
  %1593 = vmatpush1.msra.mxu0 %v1592
  %1594 = vmatprep.subr.mxu0 0.0
  %1595 = vmatpush2.msra.mxu0 0.0
  %1596 = vmatprep.subr.mxu0 0.0
  %1597 = vmatpush2.msra.mxu0 0.0
  %1598 = vmatprep.subr.mxu0 0.0
  %1599 = vmatpush2.msra.mxu0 0.0
  %1600 = vmatprep.subr.mxu0 0.0
  %1601 = vmatpush2.msra.mxu0 0.0
  %1602 = vmatprep.subr.mxu0 0.0
  %1603 = vmatpush2.msra.mxu0 0.0
  %1604 = vmatprep.subr.mxu0 0.0
  %1605 = vmatpush2.msra.mxu0 0.0
  %1606 = vmatprep.subr.mxu0 0.0
  %1607 = vmatpush2.msra.mxu0 0.0
  %1608 = vmatprep.subr.mxu0 0.0
  %1609 = vmatpush2.msra.mxu0 0.0
  %1610 = vmatprep.subr.mxu0 0.0
  %1611 = vmatpush2.msra.mxu0 0.0
  %1612 = vmatprep.subr.mxu0 0.0
  %1613 = vmatpush2.msra.mxu0 0.0
  %1614 = vmatprep.subr.mxu0 0.0
  %1615 = vmatpush2.msra.mxu0 0.0
  %1616 = vmatprep.subr.mxu0 0.0
  %1617 = vmatpush2.msra.mxu0 0.0
  %1618 = vmatprep.subr.mxu0 0.0
  %1619 = vmatpush2.msra.mxu0 0.0
  %1620 = vmatprep.subr.mxu0 0.0
  %1621 = vmatpush2.msra.mxu0 0.0
  %1622 = vmatprep.subr.mxu0 0.0
  %1623 = vmatpush2.msra.mxu0 0.0
  %1624 = vmatprep.subr.mxu0 0.0
  %1625 = vmatpush2.msra.mxu0 0.0
  %1626 = vmatprep.mubr.f32.mxu0 0.0
  %v1627 = vand.u32 %v866, 4294901760
  %1628 = vmatmul.mubr.f32.gmra.mxu0 %v1627
  %v1629 = vpop.f32.mrf.mxu0
  %v1630 = vadd.f32 %v1513, %v1629
  %v1631 = vpop.f32.mrf.mxu0
  %1632 = vmatprep.mubr.f32.mxu0 0.0
  %v1633 = vand.u32 %v869, 4294901760
  %1634 = vmatmul.mubr.f32.gmra.mxu0 %v1633
  %v1635 = vpop.f32.mrf.mxu0
  %v1636 = vadd.f32 %v1519, %v1635
  %v1637 = vpop.f32.mrf.mxu0
  %1638 = vmatprep.mubr.f32.mxu0 0.0
  %v1639 = vand.u32 %v872, 4294901760
  %1640 = vmatmul.mubr.f32.gmra.mxu0 %v1639
  %v1641 = vpop.f32.mrf.mxu0
  %v1642 = vadd.f32 %v1525, %v1641
  %v1643 = vpop.f32.mrf.mxu0
  %1644 = vmatprep.mubr.f32.mxu0 0.0
  %v1645 = vand.u32 %v875, 4294901760
  %1646 = vmatmul.mubr.f32.gmra.mxu0 %v1645
  %v1647 = vpop.f32.mrf.mxu0
  %v1648 = vadd.f32 %v1531, %v1647
  %v1649 = vpop.f32.mrf.mxu0
  %1650 = vmatprep.mubr.f32.mxu0 0.0
  %v1651 = vand.u32 %v878, 4294901760
  %1652 = vmatmul.mubr.f32.gmra.mxu0 %v1651
  %v1653 = vpop.f32.mrf.mxu0
  %v1654 = vadd.f32 %v1537, %v1653
  %v1655 = vpop.f32.mrf.mxu0
  %1656 = vmatprep.mubr.f32.mxu0 0.0
  %v1657 = vand.u32 %v881, 4294901760
  %1658 = vmatmul.mubr.f32.gmra.mxu0 %v1657
  %v1659 = vpop.f32.mrf.mxu0
  %v1660 = vadd.f32 %v1543, %v1659
  %v1661 = vpop.f32.mrf.mxu0
  %1662 = vmatprep.mubr.f32.mxu0 0.0
  %v1663 = vand.u32 %v884, 4294901760
  %1664 = vmatmul.mubr.f32.gmra.mxu0 %v1663
  %v1665 = vpop.f32.mrf.mxu0
  %v1666 = vadd.f32 %v1549, %v1665
  %v1667 = vpop.f32.mrf.mxu0
  %1668 = vmatprep.mubr.f32.mxu0 0.0
  %v1669 = vand.u32 %v887, 4294901760
  %1670 = vmatmul.mubr.f32.gmra.mxu0 %v1669
  %v1671 = vpop.f32.mrf.mxu0
  %v1672 = vadd.f32 %v1555, %v1671
  %v1673 = vpop.f32.mrf.mxu0
  %1674 = vdwg.mxu0
  %vm1675 = vcmask 7168
  %1676 = vst.msk [vmem:[%s5] sm:$0xff] %vm1675, %v1630
  %1677 = vst.msk [vmem:[%s5 + $0x8] sm:$0xff] %vm1675, %v1636
  %1678 = vst.msk [vmem:[%s5 + $0x10] sm:$0xff] %vm1675, %v1642
  %1679 = vst.msk [vmem:[%s5 + $0x18] sm:$0xff] %vm1675, %v1648
  %1680 = vst.msk [vmem:[%s5 + $0x20] sm:$0xff] %vm1675, %v1654
  %1681 = vst.msk [vmem:[%s5 + $0x28] sm:$0xff] %vm1675, %v1660
  %1682 = vst.msk [vmem:[%s5 + $0x30] sm:$0xff] %vm1675, %v1666
  %1683 = vst.msk [vmem:[%s5 + $0x38] sm:$0xff] %vm1675, %v1672
  // Predicated region
  $region22: #{forward.10} parent=0 // pred_check
    _
  $region23: #{forward.10} parent=0 // pred_check_branch
    %1685 = sbr.rel (0) target = $region25
  $region24: #{forward.10} parent=0 // pred_region
    _
  $region25: #{forward.10} parent=0 // pred_fallthru
    _
  // Predicated region
  $region26: #{forward.10} parent=0 // pred_check
    _
  $region27: #{forward.10} parent=0 // pred_check_branch
    %1687 = sbr.rel (0) target = $region29
  $region28: #{forward.10} parent=0 // pred_region
    _
  $region29: #{forward.10} parent=0 // pred_fallthru
    _

// kernel: forward.11
$region0: #{forward.11}
  #allocation0 [shape = 'u32[]', space=smem, size = 0x4, offset = 0x4, fixed_abs, tag = 'smem constant byte address 0x4 - core index']
  #allocation1 [shape = 'u32[144,128]{1,0:T(1,128)}', space=vmem, size = 0x12000, scoped, tag = 'internal scratch']
  %s0 = inlined_call_operand.vmem [shape: f32[8,8,1], index: 0, kind: input, shape index: {}]
  %s1 = inlined_call_operand.vmem [shape: f32[8,8,32], index: 1, kind: input, shape index: {}]
  %s2 = inlined_call_operand.vmem [shape: f32[32,4], index: 2, kind: input, shape index: {}]
  %s3 = inlined_call_operand.vmem [shape: f32[1,4], index: 3, kind: input, shape index: {}]
  %s4 = inlined_call_operand.vmem [shape: f32[8,4], index: 4, kind: output, shape index: {}]
  %s5 = sld [smem:[#allocation0]]
  $region33: #{forward.11} parent=0
    _
  %s7 = ssub.s32 1, %s5
  %s8 = scalar_select 0, %s7, %s5
  // Predicated region
  $region2: #{forward.11} parent=0 // pred_check
    _
  $region3: #{forward.11} parent=0 // pred_check_branch
    %10 = sbr.rel (0) target = $region5
  $region4: #{forward.11} parent=0 // pred_region
    _
  $region5: #{forward.11} parent=0 // pred_fallthru
    _
  // Predicated region
  $region6: #{forward.11} parent=0 // pred_check
    _
  $region7: #{forward.11} parent=0 // pred_check_branch
    %12 = sbr.rel (0) target = $region9
  $region8: #{forward.11} parent=0 // pred_region
    _
  $region9: #{forward.11} parent=0 // pred_fallthru
    _
  // Predicated region
  $region10: #{forward.11} parent=0 // pred_check
    _
  $region11: #{forward.11} parent=0 // pred_check_branch
    %14 = sbr.rel (0) target = $region13
  $region12: #{forward.11} parent=0 // pred_region
    _
  $region13: #{forward.11} parent=0 // pred_fallthru
    _
  // Predicated region
  $region14: #{forward.11} parent=0 // pred_check
    _
  $region15: #{forward.11} parent=0 // pred_check_branch
    %16 = sbr.rel (0) target = $region17
  $region16: #{forward.11} parent=0 // pred_region
    _
  $region17: #{forward.11} parent=0 // pred_fallthru
    _
  loop: start=0, step=1, limit=8
  $region18: #{forward.11} parent=0 // loop_pre_header
    _
  $region19: #{forward.11} parent=0 // loop_header
    %s18 = sphi 0, %s22
    %p19 = scmp.ge.s32.totalorder %s18, 8
    %v23 = vphi -inf, %v31
    %v24 = vphi 0.0, %v39
    %v25 = vphi 0.0, %v52
  $region20: #{forward.11} parent=0 // loop_header_branch
    %21 = sbr.rel (%p19) target = $region24
  $region21: #{forward.11} parent=0 // loop_body
    %s26 = smul.u32 %s18, 8
    %s27 = scalar_lea.vmem %s0, %s26
    %v28 = vld [vmem:[%s27] sm:$0xff]
    %s29 = scalar_lea.vmem %s1, %s26
    %v30 = vld [vmem:[%s29] sm:$0xff]
    %v31 = vmax.f32 %v23, %v28
    %v32 = vsub.f32 %v23, %v31
    %v33 = vmul.f32 %v32, 1.442695
    %v34 = vpow.pop %v33
    %v35 = vsub.f32 %v28, %v31
    %v36 = vmul.f32 %v35, 1.442695
    %v37 = vpow.pop %v36
    %v38 = vmul.f32 %v24, %v34
    %v39 = vadd.f32 %v38, %v37
    %41 = vset.pattern.permute.xlu0 0
    %42 = vperm.xlu0 %41, %v34
    %v43 = vpop.permute.xlu0 %42
    %v45 = vmul.f32 %v25, %v43
    %47 = vset.pattern.permute.xlu0 0
    %48 = vperm.xlu0 %47, %v37
    %v49 = vpop.permute.xlu0 %48
    %v51 = vmul.f32 %v49, %v30
    %v52 = vadd.f32 %v45, %v51
  $region22: #{forward.11} parent=0 // loop_footer
    %s22 = sadd.s32 1, %s18
  $region23: #{forward.11} parent=0 // loop_footer_branch
    %17 = sbr.rel target = $region19
  $region24: #{forward.11} parent=0 // loop_exit
    _
  %54 = vset.pattern.permute.xlu0 0
  %55 = vperm.xlu0 %54, %v24
  %v56 = vpop.permute.xlu0 %55
  %v58 = vrcp.pop %v56
  %v59 = vmul.f32 %v25, %v58
  %v60 = vld [vmem:[%s2] sm:$0xff]
  %v61 = vld [vmem:[%s2 + $0x8] sm:$0xff]
  %v62 = vld [vmem:[%s2 + $0x10] sm:$0xff]
  %v63 = vld [vmem:[%s2 + $0x18] sm:$0xff]
  %v64 = vld [vmem:[%s3] sm:$0x1]
  %v66 = vlaneseq
  %v67 = vshrl.u32 %v66, 7
  %v68 = vsub.s32 0, %v67
  %v69 = vrot.slane %v64, %v68
  %vm71 = vcmask 261120
  %v73 = vsel %vm71, %v59, 0
  %75 = vmatprep.subr.mxu0 0.0
  %76 = vmatpush1.msra.mxu0 0.0
  %77 = vmatprep.subr.mxu0 0.0
  %78 = vmatpush1.msra.mxu0 0.0
  %79 = vmatprep.subr.mxu0 0.0
  %80 = vmatpush1.msra.mxu0 0.0
  %81 = vmatprep.subr.mxu0 0.0
  %82 = vmatpush1.msra.mxu0 0.0
  %83 = vmatprep.subr.mxu0 0.0
  %84 = vmatpush1.msra.mxu0 0.0
  %85 = vmatprep.subr.mxu0 0.0
  %86 = vmatpush1.msra.mxu0 0.0
  %87 = vmatprep.subr.mxu0 0.0
  %88 = vmatpush1.msra.mxu0 0.0
  %89 = vmatprep.subr.mxu0 0.0
  %90 = vmatpush1.msra.mxu0 0.0
  %91 = vmatprep.subr.mxu0 0.0
  %92 = vmatpush1.msra.mxu0 0.0
  %93 = vmatprep.subr.mxu0 0.0
  %94 = vmatpush1.msra.mxu0 0.0
  %95 = vmatprep.subr.mxu0 0.0
  %96 = vmatpush1.msra.mxu0 0.0
  %97 = vmatprep.subr.mxu0 0.0
  %98 = vmatpush1.msra.mxu0 0.0
  %99 = vmatprep.subr.mxu0 0.0
  %v100 = vand.u32 %v63, 4294901760
  %101 = vmatpush1.msra.mxu0 %v100
  %102 = vmatprep.subr.mxu0 0.0
  %v103 = vand.u32 %v62, 4294901760
  %104 = vmatpush1.msra.mxu0 %v103
  %105 = vmatprep.subr.mxu0 0.0
  %v106 = vand.u32 %v61, 4294901760
  %107 = vmatpush1.msra.mxu0 %v106
  %108 = vmatprep.subr.mxu0 0.0
  %v109 = vand.u32 %v60, 4294901760
  %110 = vmatpush1.msra.mxu0 %v109
  %111 = vmatprep.subr.mxu0 0.0
  %112 = vmatpush2.msra.mxu0 0.0
  %113 = vmatprep.subr.mxu0 0.0
  %114 = vmatpush2.msra.mxu0 0.0
  %115 = vmatprep.subr.mxu0 0.0
  %116 = vmatpush2.msra.mxu0 0.0
  %117 = vmatprep.subr.mxu0 0.0
  %118 = vmatpush2.msra.mxu0 0.0
  %119 = vmatprep.subr.mxu0 0.0
  %120 = vmatpush2.msra.mxu0 0.0
  %121 = vmatprep.subr.mxu0 0.0
  %122 = vmatpush2.msra.mxu0 0.0
  %123 = vmatprep.subr.mxu0 0.0
  %124 = vmatpush2.msra.mxu0 0.0
  %125 = vmatprep.subr.mxu0 0.0
  %126 = vmatpush2.msra.mxu0 0.0
  %127 = vmatprep.subr.mxu0 0.0
  %128 = vmatpush2.msra.mxu0 0.0
  %129 = vmatprep.subr.mxu0 0.0
  %130 = vmatpush2.msra.mxu0 0.0
  %131 = vmatprep.subr.mxu0 0.0
  %132 = vmatpush2.msra.mxu0 0.0
  %133 = vmatprep.subr.mxu0 0.0
  %134 = vmatpush2.msra.mxu0 0.0
  %135 = vmatprep.subr.mxu0 0.0
  %136 = vmatpush2.msra.mxu0 0.0
  %137 = vmatprep.subr.mxu0 0.0
  %138 = vmatpush2.msra.mxu0 0.0
  %139 = vmatprep.subr.mxu0 0.0
  %140 = vmatpush2.msra.mxu0 0.0
  %141 = vmatprep.subr.mxu0 0.0
  %142 = vmatpush2.msra.mxu0 0.0
  %143 = vmatprep.mubr.f32.mxu0 0.0
  %v144 = vand.u32 %v73, 4294901760
  %v145 = vsub.f32 %v73, %v144
  %v146 = vand.u32 %v145, 4294901760
  %v147 = vsub.f32 %v145, %v146
  %v148 = vand.u32 %v147, 4294901760
  %149 = vmatmul.mubr.f32.gmra.mxu0 %v148
  %v150 = vpop.f32.mrf.mxu0
  %v151 = vadd.f32 %v69, %v150
  %v152 = vpop.f32.mrf.mxu0
  %153 = vdwg.mxu0
  %154 = vmatprep.subr.mxu0 0.0
  %155 = vmatpush1.msra.mxu0 0.0
  %156 = vmatprep.subr.mxu0 0.0
  %157 = vmatpush1.msra.mxu0 0.0
  %158 = vmatprep.subr.mxu0 0.0
  %159 = vmatpush1.msra.mxu0 0.0
  %160 = vmatprep.subr.mxu0 0.0
  %161 = vmatpush1.msra.mxu0 0.0
  %162 = vmatprep.subr.mxu0 0.0
  %163 = vmatpush1.msra.mxu0 0.0
  %164 = vmatprep.subr.mxu0 0.0
  %165 = vmatpush1.msra.mxu0 0.0
  %166 = vmatprep.subr.mxu0 0.0
  %167 = vmatpush1.msra.mxu0 0.0
  %168 = vmatprep.subr.mxu0 0.0
  %169 = vmatpush1.msra.mxu0 0.0
  %170 = vmatprep.subr.mxu0 0.0
  %171 = vmatpush1.msra.mxu0 0.0
  %172 = vmatprep.subr.mxu0 0.0
  %173 = vmatpush1.msra.mxu0 0.0
  %174 = vmatprep.subr.mxu0 0.0
  %175 = vmatpush1.msra.mxu0 0.0
  %176 = vmatprep.subr.mxu0 0.0
  %177 = vmatpush1.msra.mxu0 0.0
  %178 = vmatprep.subr.mxu0 0.0
  %v179 = vand.u32 %v63, 4294901760
  %v180 = vsub.f32 %v63, %v179
  %v181 = vand.u32 %v180, 4294901760
  %v182 = vsub.f32 %v180, %v181
  %v183 = vand.u32 %v182, 4294901760
  %184 = vmatpush1.msra.mxu0 %v183
  %185 = vmatprep.subr.mxu0 0.0
  %v186 = vand.u32 %v62, 4294901760
  %v187 = vsub.f32 %v62, %v186
  %v188 = vand.u32 %v187, 4294901760
  %v189 = vsub.f32 %v187, %v188
  %v190 = vand.u32 %v189, 4294901760
  %191 = vmatpush1.msra.mxu0 %v190
  %192 = vmatprep.subr.mxu0 0.0
  %v193 = vand.u32 %v61, 4294901760
  %v194 = vsub.f32 %v61, %v193
  %v195 = vand.u32 %v194, 4294901760
  %v196 = vsub.f32 %v194, %v195
  %v197 = vand.u32 %v196, 4294901760
  %198 = vmatpush1.msra.mxu0 %v197
  %199 = vmatprep.subr.mxu0 0.0
  %v200 = vand.u32 %v60, 4294901760
  %v201 = vsub.f32 %v60, %v200
  %v202 = vand.u32 %v201, 4294901760
  %v203 = vsub.f32 %v201, %v202
  %v204 = vand.u32 %v203, 4294901760
  %205 = vmatpush1.msra.mxu0 %v204
  %206 = vmatprep.subr.mxu0 0.0
  %207 = vmatpush2.msra.mxu0 0.0
  %208 = vmatprep.subr.mxu0 0.0
  %209 = vmatpush2.msra.mxu0 0.0
  %210 = vmatprep.subr.mxu0 0.0
  %211 = vmatpush2.msra.mxu0 0.0
  %212 = vmatprep.subr.mxu0 0.0
  %213 = vmatpush2.msra.mxu0 0.0
  %214 = vmatprep.subr.mxu0 0.0
  %215 = vmatpush2.msra.mxu0 0.0
  %216 = vmatprep.subr.mxu0 0.0
  %217 = vmatpush2.msra.mxu0 0.0
  %218 = vmatprep.subr.mxu0 0.0
  %219 = vmatpush2.msra.mxu0 0.0
  %220 = vmatprep.subr.mxu0 0.0
  %221 = vmatpush2.msra.mxu0 0.0
  %222 = vmatprep.subr.mxu0 0.0
  %223 = vmatpush2.msra.mxu0 0.0
  %224 = vmatprep.subr.mxu0 0.0
  %225 = vmatpush2.msra.mxu0 0.0
  %226 = vmatprep.subr.mxu0 0.0
  %227 = vmatpush2.msra.mxu0 0.0
  %228 = vmatprep.subr.mxu0 0.0
  %229 = vmatpush2.msra.mxu0 0.0
  %230 = vmatprep.subr.mxu0 0.0
  %231 = vmatpush2.msra.mxu0 0.0
  %232 = vmatprep.subr.mxu0 0.0
  %233 = vmatpush2.msra.mxu0 0.0
  %234 = vmatprep.subr.mxu0 0.0
  %235 = vmatpush2.msra.mxu0 0.0
  %236 = vmatprep.subr.mxu0 0.0
  %237 = vmatpush2.msra.mxu0 0.0
  %238 = vmatprep.mubr.f32.mxu0 0.0
  %v239 = vand.u32 %v73, 4294901760
  %240 = vmatmul.mubr.f32.gmra.mxu0 %v239
  %v241 = vpop.f32.mrf.mxu0
  %v242 = vadd.f32 %v151, %v241
  %v243 = vpop.f32.mrf.mxu0
  %244 = vdwg.mxu0
  %245 = vmatprep.subr.mxu0 0.0
  %246 = vmatpush1.msra.mxu0 0.0
  %247 = vmatprep.subr.mxu0 0.0
  %248 = vmatpush1.msra.mxu0 0.0
  %249 = vmatprep.subr.mxu0 0.0
  %250 = vmatpush1.msra.mxu0 0.0
  %251 = vmatprep.subr.mxu0 0.0
  %252 = vmatpush1.msra.mxu0 0.0
  %253 = vmatprep.subr.mxu0 0.0
  %254 = vmatpush1.msra.mxu0 0.0
  %255 = vmatprep.subr.mxu0 0.0
  %256 = vmatpush1.msra.mxu0 0.0
  %257 = vmatprep.subr.mxu0 0.0
  %258 = vmatpush1.msra.mxu0 0.0
  %259 = vmatprep.subr.mxu0 0.0
  %260 = vmatpush1.msra.mxu0 0.0
  %261 = vmatprep.subr.mxu0 0.0
  %262 = vmatpush1.msra.mxu0 0.0
  %263 = vmatprep.subr.mxu0 0.0
  %264 = vmatpush1.msra.mxu0 0.0
  %265 = vmatprep.subr.mxu0 0.0
  %266 = vmatpush1.msra.mxu0 0.0
  %267 = vmatprep.subr.mxu0 0.0
  %268 = vmatpush1.msra.mxu0 0.0
  %269 = vmatprep.subr.mxu0 0.0
  %v270 = vand.u32 %v63, 4294901760
  %v271 = vsub.f32 %v63, %v270
  %272 = vmatpush1.msra.mxu0 %v271
  %273 = vmatprep.subr.mxu0 0.0
  %v274 = vand.u32 %v62, 4294901760
  %v275 = vsub.f32 %v62, %v274
  %276 = vmatpush1.msra.mxu0 %v275
  %277 = vmatprep.subr.mxu0 0.0
  %v278 = vand.u32 %v61, 4294901760
  %v279 = vsub.f32 %v61, %v278
  %280 = vmatpush1.msra.mxu0 %v279
  %281 = vmatprep.subr.mxu0 0.0
  %v282 = vand.u32 %v60, 4294901760
  %v283 = vsub.f32 %v60, %v282
  %284 = vmatpush1.msra.mxu0 %v283
  %285 = vmatprep.subr.mxu0 0.0
  %286 = vmatpush2.msra.mxu0 0.0
  %287 = vmatprep.subr.mxu0 0.0
  %288 = vmatpush2.msra.mxu0 0.0
  %289 = vmatprep.subr.mxu0 0.0
  %290 = vmatpush2.msra.mxu0 0.0
  %291 = vmatprep.subr.mxu0 0.0
  %292 = vmatpush2.msra.mxu0 0.0
  %293 = vmatprep.subr.mxu0 0.0
  %294 = vmatpush2.msra.mxu0 0.0
  %295 = vmatprep.subr.mxu0 0.0
  %296 = vmatpush2.msra.mxu0 0.0
  %297 = vmatprep.subr.mxu0 0.0
  %298 = vmatpush2.msra.mxu0 0.0
  %299 = vmatprep.subr.mxu0 0.0
  %300 = vmatpush2.msra.mxu0 0.0
  %301 = vmatprep.subr.mxu0 0.0
  %302 = vmatpush2.msra.mxu0 0.0
  %303 = vmatprep.subr.mxu0 0.0
  %304 = vmatpush2.msra.mxu0 0.0
  %305 = vmatprep.subr.mxu0 0.0
  %306 = vmatpush2.msra.mxu0 0.0
  %307 = vmatprep.subr.mxu0 0.0
  %308 = vmatpush2.msra.mxu0 0.0
  %309 = vmatprep.subr.mxu0 0.0
  %310 = vmatpush2.msra.mxu0 0.0
  %311 = vmatprep.subr.mxu0 0.0
  %312 = vmatpush2.msra.mxu0 0.0
  %313 = vmatprep.subr.mxu0 0.0
  %314 = vmatpush2.msra.mxu0 0.0
  %315 = vmatprep.subr.mxu0 0.0
  %316 = vmatpush2.msra.mxu0 0.0
  %317 = vmatprep.mubr.f32.mxu0 0.0
  %v318 = vand.u32 %v73, 4294901760
  %v319 = vsub.f32 %v73, %v318
  %320 = vmatmul.mubr.f32.gmra.mxu0 %v319
  %v321 = vpop.f32.mrf.mxu0
  %v322 = vadd.f32 %v242, %v321
  %v323 = vpop.f32.mrf.mxu0
  %324 = vdwg.mxu0
  %325 = vmatprep.subr.mxu0 0.0
  %326 = vmatpush1.msra.mxu0 0.0
  %327 = vmatprep.subr.mxu0 0.0
  %328 = vmatpush1.msra.mxu0 0.0
  %329 = vmatprep.subr.mxu0 0.0
  %330 = vmatpush1.msra.mxu0 0.0
  %331 = vmatprep.subr.mxu0 0.0
  %332 = vmatpush1.msra.mxu0 0.0
  %333 = vmatprep.subr.mxu0 0.0
  %334 = vmatpush1.msra.mxu0 0.0
  %335 = vmatprep.subr.mxu0 0.0
  %336 = vmatpush1.msra.mxu0 0.0
  %337 = vmatprep.subr.mxu0 0.0
  %338 = vmatpush1.msra.mxu0 0.0
  %339 = vmatprep.subr.mxu0 0.0
  %340 = vmatpush1.msra.mxu0 0.0
  %341 = vmatprep.subr.mxu0 0.0
  %342 = vmatpush1.msra.mxu0 0.0
  %343 = vmatprep.subr.mxu0 0.0
  %344 = vmatpush1.msra.mxu0 0.0
  %345 = vmatprep.subr.mxu0 0.0
  %346 = vmatpush1.msra.mxu0 0.0
  %347 = vmatprep.subr.mxu0 0.0
  %348 = vmatpush1.msra.mxu0 0.0
  %349 = vmatprep.subr.mxu0 0.0
  %v350 = vand.u32 %v63, 4294901760
  %351 = vmatpush1.msra.mxu0 %v350
  %352 = vmatprep.subr.mxu0 0.0
  %v353 = vand.u32 %v62, 4294901760
  %354 = vmatpush1.msra.mxu0 %v353
  %355 = vmatprep.subr.mxu0 0.0
  %v356 = vand.u32 %v61, 4294901760
  %357 = vmatpush1.msra.mxu0 %v356
  %358 = vmatprep.subr.mxu0 0.0
  %v359 = vand.u32 %v60, 4294901760
  %360 = vmatpush1.msra.mxu0 %v359
  %361 = vmatprep.subr.mxu0 0.0
  %362 = vmatpush2.msra.mxu0 0.0
  %363 = vmatprep.subr.mxu0 0.0
  %364 = vmatpush2.msra.mxu0 0.0
  %365 = vmatprep.subr.mxu0 0.0
  %366 = vmatpush2.msra.mxu0 0.0
  %367 = vmatprep.subr.mxu0 0.0
  %368 = vmatpush2.msra.mxu0 0.0
  %369 = vmatprep.subr.mxu0 0.0
  %370 = vmatpush2.msra.mxu0 0.0
  %371 = vmatprep.subr.mxu0 0.0
  %372 = vmatpush2.msra.mxu0 0.0
  %373 = vmatprep.subr.mxu0 0.0
  %374 = vmatpush2.msra.mxu0 0.0
  %375 = vmatprep.subr.mxu0 0.0
  %376 = vmatpush2.msra.mxu0 0.0
  %377 = vmatprep.subr.mxu0 0.0
  %378 = vmatpush2.msra.mxu0 0.0
  %379 = vmatprep.subr.mxu0 0.0
  %380 = vmatpush2.msra.mxu0 0.0
  %381 = vmatprep.subr.mxu0 0.0
  %382 = vmatpush2.msra.mxu0 0.0
  %383 = vmatprep.subr.mxu0 0.0
  %384 = vmatpush2.msra.mxu0 0.0
  %385 = vmatprep.subr.mxu0 0.0
  %386 = vmatpush2.msra.mxu0 0.0
  %387 = vmatprep.subr.mxu0 0.0
  %388 = vmatpush2.msra.mxu0 0.0
  %389 = vmatprep.subr.mxu0 0.0
  %390 = vmatpush2.msra.mxu0 0.0
  %391 = vmatprep.subr.mxu0 0.0
  %392 = vmatpush2.msra.mxu0 0.0
  %393 = vmatprep.mubr.f32.mxu0 0.0
  %v394 = vand.u32 %v73, 4294901760
  %v395 = vsub.f32 %v73, %v394
  %v396 = vand.u32 %v395, 4294901760
  %397 = vmatmul.mubr.f32.gmra.mxu0 %v396
  %v398 = vpop.f32.mrf.mxu0
  %v399 = vadd.f32 %v322, %v398
  %v400 = vpop.f32.mrf.mxu0
  %401 = vdwg.mxu0
  %402 = vmatprep.subr.mxu0 0.0
  %403 = vmatpush1.msra.mxu0 0.0
  %404 = vmatprep.subr.mxu0 0.0
  %405 = vmatpush1.msra.mxu0 0.0
  %406 = vmatprep.subr.mxu0 0.0
  %407 = vmatpush1.msra.mxu0 0.0
  %408 = vmatprep.subr.mxu0 0.0
  %409 = vmatpush1.msra.mxu0 0.0
  %410 = vmatprep.subr.mxu0 0.0
  %411 = vmatpush1.msra.mxu0 0.0
  %412 = vmatprep.subr.mxu0 0.0
  %413 = vmatpush1.msra.mxu0 0.0
  %414 = vmatprep.subr.mxu0 0.0
  %415 = vmatpush1.msra.mxu0 0.0
  %416 = vmatprep.subr.mxu0 0.0
  %417 = vmatpush1.msra.mxu0 0.0
  %418 = vmatprep.subr.mxu0 0.0
  %419 = vmatpush1.msra.mxu0 0.0
  %420 = vmatprep.subr.mxu0 0.0
  %421 = vmatpush1.msra.mxu0 0.0
  %422 = vmatprep.subr.mxu0 0.0
  %423 = vmatpush1.msra.mxu0 0.0
  %424 = vmatprep.subr.mxu0 0.0
  %425 = vmatpush1.msra.mxu0 0.0
  %426 = vmatprep.subr.mxu0 0.0
  %v427 = vand.u32 %v63, 4294901760
  %v428 = vsub.f32 %v63, %v427
  %v429 = vand.u32 %v428, 4294901760
  %430 = vmatpush1.msra.mxu0 %v429
  %431 = vmatprep.subr.mxu0 0.0
  %v432 = vand.u32 %v62, 4294901760
  %v433 = vsub.f32 %v62, %v432
  %v434 = vand.u32 %v433, 4294901760
  %435 = vmatpush1.msra.mxu0 %v434
  %436 = vmatprep.subr.mxu0 0.0
  %v437 = vand.u32 %v61, 4294901760
  %v438 = vsub.f32 %v61, %v437
  %v439 = vand.u32 %v438, 4294901760
  %440 = vmatpush1.msra.mxu0 %v439
  %441 = vmatprep.subr.mxu0 0.0
  %v442 = vand.u32 %v60, 4294901760
  %v443 = vsub.f32 %v60, %v442
  %v444 = vand.u32 %v443, 4294901760
  %445 = vmatpush1.msra.mxu0 %v444
  %446 = vmatprep.subr.mxu0 0.0
  %447 = vmatpush2.msra.mxu0 0.0
  %448 = vmatprep.subr.mxu0 0.0
  %449 = vmatpush2.msra.mxu0 0.0
  %450 = vmatprep.subr.mxu0 0.0
  %451 = vmatpush2.msra.mxu0 0.0
  %452 = vmatprep.subr.mxu0 0.0
  %453 = vmatpush2.msra.mxu0 0.0
  %454 = vmatprep.subr.mxu0 0.0
  %455 = vmatpush2.msra.mxu0 0.0
  %456 = vmatprep.subr.mxu0 0.0
  %457 = vmatpush2.msra.mxu0 0.0
  %458 = vmatprep.subr.mxu0 0.0
  %459 = vmatpush2.msra.mxu0 0.0
  %460 = vmatprep.subr.mxu0 0.0
  %461 = vmatpush2.msra.mxu0 0.0
  %462 = vmatprep.subr.mxu0 0.0
  %463 = vmatpush2.msra.mxu0 0.0
  %464 = vmatprep.subr.mxu0 0.0
  %465 = vmatpush2.msra.mxu0 0.0
  %466 = vmatprep.subr.mxu0 0.0
  %467 = vmatpush2.msra.mxu0 0.0
  %468 = vmatprep.subr.mxu0 0.0
  %469 = vmatpush2.msra.mxu0 0.0
  %470 = vmatprep.subr.mxu0 0.0
  %471 = vmatpush2.msra.mxu0 0.0
  %472 = vmatprep.subr.mxu0 0.0
  %473 = vmatpush2.msra.mxu0 0.0
  %474 = vmatprep.subr.mxu0 0.0
  %475 = vmatpush2.msra.mxu0 0.0
  %476 = vmatprep.subr.mxu0 0.0
  %477 = vmatpush2.msra.mxu0 0.0
  %478 = vmatprep.mubr.f32.mxu0 0.0
  %v479 = vand.u32 %v73, 4294901760
  %480 = vmatmul.mubr.f32.gmra.mxu0 %v479
  %v481 = vpop.f32.mrf.mxu0
  %v482 = vadd.f32 %v399, %v481
  %v483 = vpop.f32.mrf.mxu0
  %484 = vdwg.mxu0
  %485 = vmatprep.subr.mxu0 0.0
  %486 = vmatpush1.msra.mxu0 0.0
  %487 = vmatprep.subr.mxu0 0.0
  %488 = vmatpush1.msra.mxu0 0.0
  %489 = vmatprep.subr.mxu0 0.0
  %490 = vmatpush1.msra.mxu0 0.0
  %491 = vmatprep.subr.mxu0 0.0
  %492 = vmatpush1.msra.mxu0 0.0
  %493 = vmatprep.subr.mxu0 0.0
  %494 = vmatpush1.msra.mxu0 0.0
  %495 = vmatprep.subr.mxu0 0.0
  %496 = vmatpush1.msra.mxu0 0.0
  %497 = vmatprep.subr.mxu0 0.0
  %498 = vmatpush1.msra.mxu0 0.0
  %499 = vmatprep.subr.mxu0 0.0
  %500 = vmatpush1.msra.mxu0 0.0
  %501 = vmatprep.subr.mxu0 0.0
  %502 = vmatpush1.msra.mxu0 0.0
  %503 = vmatprep.subr.mxu0 0.0
  %504 = vmatpush1.msra.mxu0 0.0
  %505 = vmatprep.subr.mxu0 0.0
  %506 = vmatpush1.msra.mxu0 0.0
  %507 = vmatprep.subr.mxu0 0.0
  %508 = vmatpush1.msra.mxu0 0.0
  %509 = vmatprep.subr.mxu0 0.0
  %v510 = vand.u32 %v63, 4294901760
  %511 = vmatpush1.msra.mxu0 %v510
  %512 = vmatprep.subr.mxu0 0.0
  %v513 = vand.u32 %v62, 4294901760
  %514 = vmatpush1.msra.mxu0 %v513
  %515 = vmatprep.subr.mxu0 0.0
  %v516 = vand.u32 %v61, 4294901760
  %517 = vmatpush1.msra.mxu0 %v516
  %518 = vmatprep.subr.mxu0 0.0
  %v519 = vand.u32 %v60, 4294901760
  %520 = vmatpush1.msra.mxu0 %v519
  %521 = vmatprep.subr.mxu0 0.0
  %522 = vmatpush2.msra.mxu0 0.0
  %523 = vmatprep.subr.mxu0 0.0
  %524 = vmatpush2.msra.mxu0 0.0
  %525 = vmatprep.subr.mxu0 0.0
  %526 = vmatpush2.msra.mxu0 0.0
  %527 = vmatprep.subr.mxu0 0.0
  %528 = vmatpush2.msra.mxu0 0.0
  %529 = vmatprep.subr.mxu0 0.0
  %530 = vmatpush2.msra.mxu0 0.0
  %531 = vmatprep.subr.mxu0 0.0
  %532 = vmatpush2.msra.mxu0 0.0
  %533 = vmatprep.subr.mxu0 0.0
  %534 = vmatpush2.msra.mxu0 0.0
  %535 = vmatprep.subr.mxu0 0.0
  %536 = vmatpush2.msra.mxu0 0.0
  %537 = vmatprep.subr.mxu0 0.0
  %538 = vmatpush2.msra.mxu0 0.0
  %539 = vmatprep.subr.mxu0 0.0
  %540 = vmatpush2.msra.mxu0 0.0
  %541 = vmatprep.subr.mxu0 0.0
  %542 = vmatpush2.msra.mxu0 0.0
  %543 = vmatprep.subr.mxu0 0.0
  %544 = vmatpush2.msra.mxu0 0.0
  %545 = vmatprep.subr.mxu0 0.0
  %546 = vmatpush2.msra.mxu0 0.0
  %547 = vmatprep.subr.mxu0 0.0
  %548 = vmatpush2.msra.mxu0 0.0
  %549 = vmatprep.subr.mxu0 0.0
  %550 = vmatpush2.msra.mxu0 0.0
  %551 = vmatprep.subr.mxu0 0.0
  %552 = vmatpush2.msra.mxu0 0.0
  %553 = vmatprep.mubr.f32.mxu0 0.0
  %v554 = vand.u32 %v73, 4294901760
  %555 = vmatmul.mubr.f32.gmra.mxu0 %v554
  %v556 = vpop.f32.mrf.mxu0
  %v557 = vadd.f32 %v482, %v556
  %v558 = vpop.f32.mrf.mxu0
  %559 = vdwg.mxu0
  %vm560 = vcmask 31744
  %v561 = vsel %vm560, %v557, -inf
  %562 = vmax.xlane.f32.xlu0 %v561
  %v563 = vpop.xlane.xlu0 %562
  %v564 = vsub.f32 %v557, %v563
  %v565 = vmul.f32 %v564, 1.442695
  %v566 = vpow.pop %v565
  %v567 = vsel %vm560, %v566, 0.0
  %568 = vadd.xlane.f32.xlu0 %v567
  %v569 = vpop.xlane.xlu0 %568
  %v570 = vlog2.pop %v569
  %v571 = vmul.f32 %v570, 0.6931472
  %v572 = vadd.f32 %v571, %v563
  %v573 = vsub.f32 %v557, %v572
  %574 = vst.msk [vmem:[%s4] sm:$0xff] %vm560, %v573
  // Predicated region
  $region25: #{forward.11} parent=0 // pred_check
    _
  $region26: #{forward.11} parent=0 // pred_check_branch
    %576 = sbr.rel (0) target = $region28
  $region27: #{forward.11} parent=0 // pred_region
    _
  $region28: #{forward.11} parent=0 // pred_fallthru
    _
  // Predicated region
  $region29: #{forward.11} parent=0 // pred_check
    _
  $region30: #{forward.11} parent=0 // pred_check_branch
    %578 = sbr.rel (0) target = $region32
  $region31: #{forward.11} parent=0 // pred_region
    _
  $region32: #{forward.11} parent=0 // pred_fallthru
    _

</llo_original>
